<compile_context>
chip_gen: v6e
topology: v6e:2x2x1
jax: 0.10.0
libtpu: 0.0.40
codegen_flags: <defaults>
</compile_context>

<pallas_src>
import functools

import jax
import jax.numpy as jnp
from jax import lax
from jax.experimental import pallas as pl
from jax.experimental.pallas import tpu as pltpu


NEG_SLOPE = 0.2
BN_EPS = 1e-5

# Rows (N*OH*OW conv-output positions) per grid step. 256 so the toy test
# exercises a multi-tile grid; tune to 512-2048 at production resolutions.
_ROW_TILE = 256
_VMEM_LIMIT = 32 * 1024 * 1024


def _round_up(x, m):
    return (x + m - 1) // m * m


def _row_tiling(r):
    """Pad row count to a lane-friendly multiple of 128 and pick a row tile."""
    r_pad = _round_up(r, 128)          # R sits on the 128-lane axis of (Cout, R)
    tr = min(_ROW_TILE, r_pad)
    r_pad = _round_up(r_pad, tr)
    return r_pad, tr, r_pad // tr


def _maybe_pad_rows(cols, r, r_pad):
    if r_pad == r:
        return cols
    return jnp.pad(cols, ((0, r_pad - r), (0, 0)))


# ---------------------------------------------------------------------------
# Pallas kernels (all matmuls: bf16 operands, f32 accumulation, f32 epilogue)
# ---------------------------------------------------------------------------
def _conv_bias_act_kernel(x_ref, w_ref, b_ref, o_ref, *, apply_act):
    """o[Cout, TR] = [leaky_relu](w @ x^T + b)   (transposed, lane-dense output).

    x: (TR, K) bf16 im2col rows, w: (Cout, K) bf16, b: (Cout, 1) f32.
    """
    acc = lax.dot_general(
        w_ref[...], x_ref[...],
        dimension_numbers=(((1,), (1,)), ((), ())),      # contract K with K
        preferred_element_type=jnp.float32)              # (Cout, TR) f32
    acc = acc + b_ref[...]
    if apply_act:
        acc = jnp.where(acc >= 0, acc, NEG_SLOPE * acc)
    o_ref[...] = acc.astype(o_ref.dtype)


def _conv_stats_kernel(x_ref, w_ref, conv_ref, sum_ref, ssq_ref):
    """Pass 1 of a BN layer: tiled matmul + per-channel sum / sum-of-squares.

    sum/ssq outputs map to the same block every grid step (resident
    accumulators, init via pl.when at step 0, grid axis is "arbitrary").
    Stats are taken from the f32 accumulator; the conv tile itself is written
    back in bf16. Padded zero rows contribute exactly 0 to both sums (the conv
    has no bias).
    """
    i = pl.program_id(0)

    @pl.when(i == 0)
    def _():
        sum_ref[...] = jnp.zeros_like(sum_ref)
        ssq_ref[...] = jnp.zeros_like(ssq_ref)

    acc = lax.dot_general(
        w_ref[...], x_ref[...],
        dimension_numbers=(((1,), (1,)), ((), ())),
        preferred_element_type=jnp.float32)              # (Cout, TR) f32
    conv_ref[...] = acc.astype(conv_ref.dtype)
    sum_ref[...] += jnp.sum(acc, axis=1, keepdims=True)
    ssq_ref[...] += jnp.sum(acc * acc, axis=1, keepdims=True)


def _bn_act_kernel(x_ref, scale_ref, shift_ref, o_ref):
    """Pass 2 of a BN layer: y = leaky_relu(x * scale + shift), per channel.

    x is the bf16 conv tile; scale/shift are f32, so the affine + activation
    run in f32 on the VPU before the bf16 store.
    """
    y = x_ref[...].astype(jnp.float32) * scale_ref[...] + shift_ref[...]
    o_ref[...] = jnp.where(y >= 0, y, NEG_SLOPE * y).astype(o_ref.dtype)


# ---------------------------------------------------------------------------
# JAX glue: fused patch extraction + layer wrappers
# ---------------------------------------------------------------------------
def _extract_patches(x, in_spec, stride):
    """4x4 / pad-1 patches -> (N*OH*OW, Cin*16), feature order (cin, kh, kw).

    One fused XLA gather (identity grouped conv); the layout change from
    `in_spec` (NCHW / CNHW) to NHWC rows is folded into the same op.
    """
    patches = lax.conv_general_dilated_patches(
        x, filter_shape=(4, 4), window_strides=(stride, stride),
        padding=((1, 1), (1, 1)),
        dimension_numbers=(in_spec, "HWIO", "NHWC"))
    n, oh, ow, k = patches.shape
    return patches.reshape(n * oh * ow, k), (n, oh, ow)


def _conv_bias_layer(x, in_spec, w_ck, b_c1, stride, apply_act, out_dtype):
    """Conv(bias) [+ LeakyReLU]. Returns activation in (Cout, N, OH, OW) layout."""
    cols, (n, oh, ow) = _extract_patches(x, in_spec, stride)
    r, k = cols.shape
    cout = w_ck.shape[0]
    r_pad, tr, grid = _row_tiling(r)
    cols = _maybe_pad_rows(cols, r, r_pad)

    kern = functools.partial(_conv_bias_act_kernel, apply_act=apply_act)
    out_bytes = cout * r_pad * jnp.dtype(out_dtype).itemsize
    out = pl.pallas_call(
        kern,
        out_shape=jax.ShapeDtypeStruct((cout, r_pad), out_dtype),
        grid=(grid,),
        in_specs=[
            pl.BlockSpec((tr, k), lambda i: (i, 0)),      # patches, tiled over R
            pl.BlockSpec((cout, k), lambda i: (0, 0)),    # weights, resident
            pl.BlockSpec((cout, 1), lambda i: (0, 0)),    # bias, resident
        ],
        out_specs=pl.BlockSpec((cout, tr), lambda i: (0, i)),
        compiler_params=pltpu.CompilerParams(
            dimension_semantics=("parallel",),
            vmem_limit_bytes=_VMEM_LIMIT),
        cost_estimate=pl.CostEstimate(
            flops=2 * r_pad * k * cout,
            transcendentals=0,
            bytes_accessed=cols.size * 2 + w_ck.size * 2 + cout * 4 + out_bytes),
    )(cols, w_ck, b_c1)

    return out[:, :r].reshape(cout, n, oh, ow)


def _conv_bn_layer(x, in_spec, w_ck, gamma_c1, beta_c1, stride):
    """Conv(no bias) + BatchNorm(batch stats) + LeakyReLU, two tiled passes."""
    cols, (n, oh, ow) = _extract_patches(x, in_spec, stride)
    r, k = cols.shape
    cout = w_ck.shape[0]
    r_pad, tr, grid = _row_tiling(r)
    cols = _maybe_pad_rows(cols, r, r_pad)

    conv_t, csum, cssq = pl.pallas_call(
        _conv_stats_kernel,
        out_shape=(jax.ShapeDtypeStruct((cout, r_pad), jnp.bfloat16),
                   jax.ShapeDtypeStruct((cout, 1), jnp.float32),
                   jax.ShapeDtypeStruct((cout, 1), jnp.float32)),
        grid=(grid,),
        in_specs=[
            pl.BlockSpec((tr, k), lambda i: (i, 0)),
            pl.BlockSpec((cout, k), lambda i: (0, 0)),
        ],
        out_specs=(pl.BlockSpec((cout, tr), lambda i: (0, i)),
                   pl.BlockSpec((cout, 1), lambda i: (0, 0)),
                   pl.BlockSpec((cout, 1), lambda i: (0, 0))),
        compiler_params=pltpu.CompilerParams(
            dimension_semantics=("arbitrary",),   # stats accumulate across tiles
            vmem_limit_bytes=_VMEM_LIMIT),
        cost_estimate=pl.CostEstimate(
            flops=2 * r_pad * k * cout + 3 * r_pad * cout,
            transcendentals=0,
            bytes_accessed=cols.size * 2 + w_ck.size * 2
                           + cout * r_pad * 2 + 2 * cout * 4),
    )(cols, w_ck)

    # Training-mode batch statistics over the true R rows (padded rows add 0 to
    # both sums), biased variance, eps=1e-5 — matches PyTorch BatchNorm2d.train().
    # NOTE: E[x^2]-mean^2 in f32 is adequate here; switch to two-pass/Welford
    # for very large R if cancellation becomes a concern.
    mean = csum / r
    var = jnp.maximum(cssq / r - mean * mean, 0.0)
    scale = gamma_c1 * lax.rsqrt(var + BN_EPS)
    shift = beta_c1 - mean * scale

    act = pl.pallas_call(
        _bn_act_kernel,
        out_shape=jax.ShapeDtypeStruct((cout, r_pad), jnp.bfloat16),
        grid=(grid,),
        in_specs=[
            pl.BlockSpec((cout, tr), lambda i: (0, i)),
            pl.BlockSpec((cout, 1), lambda i: (0, 0)),
            pl.BlockSpec((cout, 1), lambda i: (0, 0)),
        ],
        out_specs=pl.BlockSpec((cout, tr), lambda i: (0, i)),
        compiler_params=pltpu.CompilerParams(
            dimension_semantics=("parallel",),
            vmem_limit_bytes=_VMEM_LIMIT),
    )(conv_t, scale, shift)

    return act[:, :r].reshape(cout, n, oh, ow)


# ---------------------------------------------------------------------------
# Parameters (PyTorch layout) + one-time kernel-layout conversion
# ---------------------------------------------------------------------------
def init_discriminator_params(key, nc, ndf, n_layers=3):
    params = []

    def conv_w(k_, cout, cin):
        return 0.02 * jax.random.normal(k_, (cout, cin, 4, 4), jnp.float32)

    keys = jax.random.split(key, 2 * (n_layers + 2))
    ki = iter(range(len(keys)))

    # layer 0: conv with bias + leaky relu (stride 2)
    params.append({
        "w": conv_w(keys[next(ki)], ndf, nc),
        "b": 0.02 * jax.random.normal(keys[next(ki)], (ndf,), jnp.float32),
    })

    ndf_mult = 1
    for n in range(1, n_layers):
        ndf_mult_prev, ndf_mult = ndf_mult, min(2 ** n, 8)
        cin, cout = ndf * ndf_mult_prev, ndf * ndf_mult
        params.append({
            "w": conv_w(keys[next(ki)], cout, cin),
            "gamma": 1.0 + 0.1 * jax.random.normal(keys[next(ki)], (cout,), jnp.float32),
            "beta": jnp.zeros((cout,), jnp.float32),
        })

    ndf_mult_prev, ndf_mult = ndf_mult, min(2 ** n_layers, 8)
    cin, cout = ndf * ndf_mult_prev, ndf * ndf_mult
    params.append({
        "w": conv_w(keys[next(ki)], cout, cin),
        "gamma": 1.0 + 0.1 * jax.random.normal(keys[next(ki)], (cout,), jnp.float32),
        "beta": jnp.zeros((cout,), jnp.float32),
    })

    # final 1-channel conv with bias, no activation (stride 1)
    params.append({
        "w": conv_w(keys[next(ki)], 1, cout),
        "b": 0.02 * jax.random.normal(keys[next(ki)], (1,), jnp.float32),
    })
    return params


def prepare_params(params):
    """One-time (hoisted) conversion to kernel layout.

    Torch weight (Cout, Cin, KH, KW) flattens directly to (Cout, Cin*KH*KW),
    matching conv_general_dilated_patches' feature order (cin major, kh, kw).
    Matmul operands in bf16; bias/gamma/beta stay f32 as (Cout, 1).
    """
    out = []
    for p in params:
        cout = p["w"].shape[0]
        q = {"w": p["w"].reshape(cout, -1).astype(jnp.bfloat16)}
        if "b" in p:
            q["b"] = p["b"].reshape(cout, 1).astype(jnp.float32)
        else:
            q["gamma"] = p["gamma"].reshape(cout, 1).astype(jnp.float32)
            q["beta"] = p["beta"].reshape(cout, 1).astype(jnp.float32)
        out.append(q)
    return out


# ---------------------------------------------------------------------------
# Forward pass (NCHW in, NCHW out — matches PyTorch)
# ---------------------------------------------------------------------------
def discriminator_forward(kparams, x_nchw):
    x = x_nchw.astype(jnp.bfloat16)

    # layer 0: conv(bias) + leaky relu, stride 2 (input layout NCHW)
    p0 = kparams[0]
    act = _conv_bias_layer(x, "NCHW", p0["w"], p0["b"], stride=2,
                           apply_act=True, out_dtype=jnp.bfloat16)

    # middle layers: conv(no bias) + batchnorm + leaky relu (activations in CNHW)
    mids = kparams[1:-1]
    for j, p in enumerate(mids):
        stride = 2 if j < len(mids) - 1 else 1
        act = _conv_bn_layer(act, "CNHW", p["w"], p["gamma"], p["beta"], stride)

    # final layer: conv(bias), stride 1, no activation, f32 output
    pf = kparams[-1]
    y = _conv_bias_layer(act, "CNHW", pf["w"], pf["b"], stride=1,
                         apply_act=False, out_dtype=jnp.float32)

    # (1, N, OH, OW) -> (N, 1, OH, OW)
    return jnp.transpose(y, (1, 0, 2, 3))


if __name__ == "__main__":
    nc, ndf, n_layers = 3, 8, 3
    batch, spatial = 2, 32  # 32 -> 16 -> 8 -> 4 -> 3 -> 2 spatial

    key = jax.random.PRNGKey(0)
    k_params, k_x = jax.random.split(key)
    params = init_discriminator_params(k_params, nc, ndf, n_layers)
    kparams = prepare_params(params)          # hoisted out of the forward pass
    x = jax.random.normal(k_x, (batch, nc, spatial, spatial), jnp.float32)

    fwd = jax.jit(discriminator_forward)
    out = jax.block_until_ready(fwd(kparams, x))

    assert out.shape == (batch, 1, 2, 2), out.shape
    assert bool(jnp.all(jnp.isfinite(out)))
    print("KERNEL_OK")
</pallas_src>

<mosaic_0001>
module attributes {stable_mosaic.version = 11 : i64} {
  func.func @_conv_bias_act_kernel(%arg0: i32, %arg1: memref<256x48xbf16, #tpu.memory_space<vmem>>, %arg2: memref<8x48xbf16, #tpu.memory_space<vmem>>, %arg3: memref<8x1xf32, #tpu.memory_space<vmem>>, %arg4: memref<8x256xbf16, #tpu.memory_space<vmem>>) attributes {dimension_semantics = [#tpu.dimension_semantics<parallel>], iteration_bounds = array<i64: 2>, scalar_prefetch = 0 : i64, scratch_operands = 0 : i64, tpu.core_type = #tpu.core_type<tc>, window_params = [{transform_indices = @transform_0, window_bounds = array<i64: 256, 48>}, {pipeline_mode = #tpu.pipeline_mode<synchronous>, transform_indices = @transform_1, window_bounds = array<i64: 8, 48>}, {pipeline_mode = #tpu.pipeline_mode<synchronous>, transform_indices = @transform_2, window_bounds = array<i64: 8, 1>}, {transform_indices = @transform_3, window_bounds = array<i64: 8, 256>}]} {
    %c0 = arith.constant 0 : index
    %c0_0 = arith.constant 0 : index
    %0 = vector.load %arg2[%c0, %c0_0] : memref<8x48xbf16, #tpu.memory_space<vmem>>, vector<8x48xbf16>
    %c0_1 = arith.constant 0 : index
    %c0_2 = arith.constant 0 : index
    %1 = vector.load %arg1[%c0_1, %c0_2] : memref<256x48xbf16, #tpu.memory_space<vmem>>, vector<256x48xbf16>
    %cst = arith.constant dense<0.000000e+00> : vector<8x256xf32>
    %2 = tpu.matmul %0, %1, %cst {dimension_numbers = #tpu.dot_dimension_numbers<[1], [1], [0], [0], [0, 0, 1, 0], [], []>} : vector<8x48xbf16>, vector<256x48xbf16>, vector<8x256xf32> -> vector<8x256xf32>
    %c0_3 = arith.constant 0 : index
    %c0_4 = arith.constant 0 : index
    %3 = vector.load %arg3[%c0_3, %c0_4] : memref<8x1xf32, #tpu.memory_space<vmem>>, vector<8x1xf32>
    %4 = vector.broadcast %3 : vector<8x1xf32> to vector<8x256xf32>
    %5 = arith.addf %2, %4 : vector<8x256xf32>
    %cst_5 = arith.constant 0.000000e+00 : f32
    %6 = vector.broadcast %cst_5 : f32 to vector<8x256xf32>
    %7 = arith.cmpf oge, %5, %6 : vector<8x256xf32>
    %cst_6 = arith.constant 2.000000e-01 : f32
    %8 = vector.broadcast %cst_6 : f32 to vector<8x256xf32>
    %9 = arith.mulf %8, %5 : vector<8x256xf32>
    %10 = arith.select %7, %5, %9 : vector<8x256xi1>, vector<8x256xf32>
    %11 = arith.truncf %10 : vector<8x256xf32> to vector<8x256xbf16>
    %c0_7 = arith.constant 0 : index
    %c0_8 = arith.constant 0 : index
    %12 = vector.load %arg4[%c0_7, %c0_8] : memref<8x256xbf16, #tpu.memory_space<vmem>>, vector<8x256xbf16>
    tpu.vector_store %arg4[%c0_7, %c0_8], %11 {strides = array<i32>} : memref<8x256xbf16, #tpu.memory_space<vmem>>, vector<8x256xbf16>,
    return
  }
  func.func @transform_0(%arg0: i32) -> (i32, i32) {
    %c0_i32 = arith.constant 0 : i32
    %c0_i32_0 = arith.constant 0 : i32
    return %arg0, %c0_i32 : i32, i32
  }
  func.func @transform_1(%arg0: i32) -> (i32, i32) {
    %c0_i32 = arith.constant 0 : i32
    %c0_i32_0 = arith.constant 0 : i32
    %c0_i32_1 = arith.constant 0 : i32
    return %c0_i32, %c0_i32_0 : i32, i32
  }
  func.func @transform_2(%arg0: i32) -> (i32, i32) {
    %c0_i32 = arith.constant 0 : i32
    %c0_i32_0 = arith.constant 0 : i32
    %c0_i32_1 = arith.constant 0 : i32
    return %c0_i32, %c0_i32_0 : i32, i32
  }
  func.func @transform_3(%arg0: i32) -> (i32, i32) {
    %c0_i32 = arith.constant 0 : i32
    %c0_i32_0 = arith.constant 0 : i32
    return %c0_i32, %arg0 : i32, i32
  }
}

module attributes {stable_mosaic.version = 11 : i64} {
  func.func @_conv_stats_kernel(%arg0: i32, %arg1: memref<128x128xbf16, #tpu.memory_space<vmem>>, %arg2: memref<16x128xbf16, #tpu.memory_space<vmem>>, %arg3: memref<16x128xbf16, #tpu.memory_space<vmem>>, %arg4: memref<16x1xf32, #tpu.memory_space<vmem>>, %arg5: memref<16x1xf32, #tpu.memory_space<vmem>>) attributes {dimension_semantics = [#tpu.dimension_semantics<arbitrary>], iteration_bounds = array<i64: 1>, scalar_prefetch = 0 : i64, scratch_operands = 0 : i64, tpu.core_type = #tpu.core_type<tc>, window_params = [{transform_indices = @transform_0, window_bounds = array<i64: 128, 128>}, {pipeline_mode = #tpu.pipeline_mode<synchronous>, transform_indices = @transform_1, window_bounds = array<i64: 16, 128>}, {transform_indices = @transform_2, window_bounds = array<i64: 16, 128>}, {pipeline_mode = #tpu.pipeline_mode<synchronous>, transform_indices = @transform_3, window_bounds = array<i64: 16, 1>}, {pipeline_mode = #tpu.pipeline_mode<synchronous>, transform_indices = @transform_4, window_bounds = array<i64: 16, 1>}]} {
    %c0_i32 = arith.constant 0 : i32
    %0 = arith.cmpi eq, %arg0, %c0_i32 : i32
    %1 = arith.extui %0 : i1 to i32
    %c0_i32_0 = arith.constant 0 : i32
    %2 = arith.cmpi ne, %1, %c0_i32_0 : i32
    scf.if %2 {
      %cst_16 = arith.constant 0.000000e+00 : f32
      %19 = vector.broadcast %cst_16 : f32 to vector<16x1xf32>
      %c0_17 = arith.constant 0 : index
      %c0_18 = arith.constant 0 : index
      %20 = vector.load %arg4[%c0_17, %c0_18] : memref<16x1xf32, #tpu.memory_space<vmem>>, vector<16x1xf32>
      tpu.vector_store %arg4[%c0_17, %c0_18], %19 {strides = array<i32>} : memref<16x1xf32, #tpu.memory_space<vmem>>, vector<16x1xf32>,
      %cst_19 = arith.constant 0.000000e+00 : f32
      %21 = vector.broadcast %cst_19 : f32 to vector<16x1xf32>
      %c0_20 = arith.constant 0 : index
      %c0_21 = arith.constant 0 : index
      %22 = vector.load %arg5[%c0_20, %c0_21] : memref<16x1xf32, #tpu.memory_space<vmem>>, vector<16x1xf32>
      tpu.vector_store %arg5[%c0_20, %c0_21], %21 {strides = array<i32>} : memref<16x1xf32, #tpu.memory_space<vmem>>, vector<16x1xf32>,
    } else {
    }
    %c0 = arith.constant 0 : index
    %c0_1 = arith.constant 0 : index
    %3 = vector.load %arg2[%c0, %c0_1] : memref<16x128xbf16, #tpu.memory_space<vmem>>, vector<16x128xbf16>
    %c0_2 = arith.constant 0 : index
    %c0_3 = arith.constant 0 : index
    %4 = vector.load %arg1[%c0_2, %c0_3] : memref<128x128xbf16, #tpu.memory_space<vmem>>, vector<128x128xbf16>
    %cst = arith.constant dense<0.000000e+00> : vector<16x128xf32>
    %5 = tpu.matmul %3, %4, %cst {dimension_numbers = #tpu.dot_dimension_numbers<[1], [1], [0], [0], [0, 0, 1, 0], [], []>} : vector<16x128xbf16>, vector<128x128xbf16>, vector<16x128xf32> -> vector<16x128xf32>
    %6 = arith.truncf %5 : vector<16x128xf32> to vector<16x128xbf16>
    %c0_4 = arith.constant 0 : index
    %c0_5 = arith.constant 0 : index
    %7 = vector.load %arg3[%c0_4, %c0_5] : memref<16x128xbf16, #tpu.memory_space<vmem>>, vector<16x128xbf16>
    tpu.vector_store %arg3[%c0_4, %c0_5], %6 {strides = array<i32>} : memref<16x128xbf16, #tpu.memory_space<vmem>>, vector<16x128xbf16>,
    %c0_6 = arith.constant 0 : index
    %c0_7 = arith.constant 0 : index
    %8 = vector.load %arg4[%c0_6, %c0_7] : memref<16x1xf32, #tpu.memory_space<vmem>>, vector<16x1xf32>
    %cst_8 = arith.constant dense<0.000000e+00> : vector<16xf32>
    %9 = vector.multi_reduction <add>, %5, %cst_8 [1] : vector<16x128xf32> to vector<16xf32>
    %10 = vector.shape_cast %9 : vector<16xf32> to vector<16x1xf32>
    %11 = arith.addf %8, %10 : vector<16x1xf32>
    %c0_9 = arith.constant 0 : index
    %c0_10 = arith.constant 0 : index
    %12 = vector.load %arg4[%c0_9, %c0_10] : memref<16x1xf32, #tpu.memory_space<vmem>>, vector<16x1xf32>
    tpu.vector_store %arg4[%c0_9, %c0_10], %11 {strides = array<i32>} : memref<16x1xf32, #tpu.memory_space<vmem>>, vector<16x1xf32>,
    %c0_11 = arith.constant 0 : index
    %c0_12 = arith.constant 0 : index
    %13 = vector.load %arg5[%c0_11, %c0_12] : memref<16x1xf32, #tpu.memory_space<vmem>>, vector<16x1xf32>
    %14 = arith.mulf %5, %5 : vector<16x128xf32>
    %cst_13 = arith.constant dense<0.000000e+00> : vector<16xf32>
    %15 = vector.multi_reduction <add>, %14, %cst_13 [1] : vector<16x128xf32> to vector<16xf32>
    %16 = vector.shape_cast %15 : vector<16xf32> to vector<16x1xf32>
    %17 = arith.addf %13, %16 : vector<16x1xf32>
    %c0_14 = arith.constant 0 : index
    %c0_15 = arith.constant 0 : index
    %18 = vector.load %arg5[%c0_14, %c0_15] : memref<16x1xf32, #tpu.memory_space<vmem>>, vector<16x1xf32>
    tpu.vector_store %arg5[%c0_14, %c0_15], %17 {strides = array<i32>} : memref<16x1xf32, #tpu.memory_space<vmem>>, vector<16x1xf32>,
    return
  }
  func.func @transform_0(%arg0: i32) -> (i32, i32) {
    %c0_i32 = arith.constant 0 : i32
    %c0_i32_0 = arith.constant 0 : i32
    return %arg0, %c0_i32 : i32, i32
  }
  func.func @transform_1(%arg0: i32) -> (i32, i32) {
    %c0_i32 = arith.constant 0 : i32
    %c0_i32_0 = arith.constant 0 : i32
    %c0_i32_1 = arith.constant 0 : i32
    return %c0_i32, %c0_i32_0 : i32, i32
  }
  func.func @transform_2(%arg0: i32) -> (i32, i32) {
    %c0_i32 = arith.constant 0 : i32
    %c0_i32_0 = arith.constant 0 : i32
    return %c0_i32, %arg0 : i32, i32
  }
  func.func @transform_3(%arg0: i32) -> (i32, i32) {
    %c0_i32 = arith.constant 0 : i32
    %c0_i32_0 = arith.constant 0 : i32
    %c0_i32_1 = arith.constant 0 : i32
    return %c0_i32, %c0_i32_0 : i32, i32
  }
  func.func @transform_4(%arg0: i32) -> (i32, i32) {
    %c0_i32 = arith.constant 0 : i32
    %c0_i32_0 = arith.constant 0 : i32
    %c0_i32_1 = arith.constant 0 : i32
    return %c0_i32, %c0_i32_0 : i32, i32
  }
}

module attributes {stable_mosaic.version = 11 : i64} {
  func.func @_bn_act_kernel(%arg0: i32, %arg1: memref<16x128xbf16, #tpu.memory_space<vmem>>, %arg2: memref<16x1xf32, #tpu.memory_space<vmem>>, %arg3: memref<16x1xf32, #tpu.memory_space<vmem>>, %arg4: memref<16x128xbf16, #tpu.memory_space<vmem>>) attributes {dimension_semantics = [#tpu.dimension_semantics<parallel>], iteration_bounds = array<i64: 1>, scalar_prefetch = 0 : i64, scratch_operands = 0 : i64, tpu.core_type = #tpu.core_type<tc>, window_params = [{transform_indices = @transform_0, window_bounds = array<i64: 16, 128>}, {pipeline_mode = #tpu.pipeline_mode<synchronous>, transform_indices = @transform_1, window_bounds = array<i64: 16, 1>}, {pipeline_mode = #tpu.pipeline_mode<synchronous>, transform_indices = @transform_2, window_bounds = array<i64: 16, 1>}, {transform_indices = @transform_3, window_bounds = array<i64: 16, 128>}]} {
    %c0 = arith.constant 0 : index
    %c0_0 = arith.constant 0 : index
    %0 = vector.load %arg1[%c0, %c0_0] : memref<16x128xbf16, #tpu.memory_space<vmem>>, vector<16x128xbf16>
    %1 = arith.extf %0 : vector<16x128xbf16> to vector<16x128xf32>
    %c0_1 = arith.constant 0 : index
    %c0_2 = arith.constant 0 : index
    %2 = vector.load %arg2[%c0_1, %c0_2] : memref<16x1xf32, #tpu.memory_space<vmem>>, vector<16x1xf32>
    %3 = vector.broadcast %2 : vector<16x1xf32> to vector<16x128xf32>
    %4 = arith.mulf %1, %3 : vector<16x128xf32>
    %c0_3 = arith.constant 0 : index
    %c0_4 = arith.constant 0 : index
    %5 = vector.load %arg3[%c0_3, %c0_4] : memref<16x1xf32, #tpu.memory_space<vmem>>, vector<16x1xf32>
    %6 = vector.broadcast %5 : vector<16x1xf32> to vector<16x128xf32>
    %7 = arith.addf %4, %6 : vector<16x128xf32>
    %cst = arith.constant 0.000000e+00 : f32
    %8 = vector.broadcast %cst : f32 to vector<16x128xf32>
    %9 = arith.cmpf oge, %7, %8 : vector<16x128xf32>
    %cst_5 = arith.constant 2.000000e-01 : f32
    %10 = vector.broadcast %cst_5 : f32 to vector<16x128xf32>
    %11 = arith.mulf %10, %7 : vector<16x128xf32>
    %12 = arith.select %9, %7, %11 : vector<16x128xi1>, vector<16x128xf32>
    %13 = arith.truncf %12 : vector<16x128xf32> to vector<16x128xbf16>
    %c0_6 = arith.constant 0 : index
    %c0_7 = arith.constant 0 : index
    %14 = vector.load %arg4[%c0_6, %c0_7] : memref<16x128xbf16, #tpu.memory_space<vmem>>, vector<16x128xbf16>
    tpu.vector_store %arg4[%c0_6, %c0_7], %13 {strides = array<i32>} : memref<16x128xbf16, #tpu.memory_space<vmem>>, vector<16x128xbf16>,
    return
  }
  func.func @transform_0(%arg0: i32) -> (i32, i32) {
    %c0_i32 = arith.constant 0 : i32
    %c0_i32_0 = arith.constant 0 : i32
    return %c0_i32, %arg0 : i32, i32
  }
  func.func @transform_1(%arg0: i32) -> (i32, i32) {
    %c0_i32 = arith.constant 0 : i32
    %c0_i32_0 = arith.constant 0 : i32
    %c0_i32_1 = arith.constant 0 : i32
    return %c0_i32, %c0_i32_0 : i32, i32
  }
  func.func @transform_2(%arg0: i32) -> (i32, i32) {
    %c0_i32 = arith.constant 0 : i32
    %c0_i32_0 = arith.constant 0 : i32
    %c0_i32_1 = arith.constant 0 : i32
    return %c0_i32, %c0_i32_0 : i32, i32
  }
  func.func @transform_3(%arg0: i32) -> (i32, i32) {
    %c0_i32 = arith.constant 0 : i32
    %c0_i32_0 = arith.constant 0 : i32
    return %c0_i32, %arg0 : i32, i32
  }
}

module attributes {stable_mosaic.version = 11 : i64} {
  func.func @_conv_stats_kernel(%arg0: i32, %arg1: memref<128x256xbf16, #tpu.memory_space<vmem>>, %arg2: memref<32x256xbf16, #tpu.memory_space<vmem>>, %arg3: memref<32x128xbf16, #tpu.memory_space<vmem>>, %arg4: memref<32x1xf32, #tpu.memory_space<vmem>>, %arg5: memref<32x1xf32, #tpu.memory_space<vmem>>) attributes {dimension_semantics = [#tpu.dimension_semantics<arbitrary>], iteration_bounds = array<i64: 1>, scalar_prefetch = 0 : i64, scratch_operands = 0 : i64, tpu.core_type = #tpu.core_type<tc>, window_params = [{transform_indices = @transform_0, window_bounds = array<i64: 128, 256>}, {pipeline_mode = #tpu.pipeline_mode<synchronous>, transform_indices = @transform_1, window_bounds = array<i64: 32, 256>}, {transform_indices = @transform_2, window_bounds = array<i64: 32, 128>}, {pipeline_mode = #tpu.pipeline_mode<synchronous>, transform_indices = @transform_3, window_bounds = array<i64: 32, 1>}, {pipeline_mode = #tpu.pipeline_mode<synchronous>, transform_indices = @transform_4, window_bounds = array<i64: 32, 1>}]} {
    %c0_i32 = arith.constant 0 : i32
    %0 = arith.cmpi eq, %arg0, %c0_i32 : i32
    %1 = arith.extui %0 : i1 to i32
    %c0_i32_0 = arith.constant 0 : i32
    %2 = arith.cmpi ne, %1, %c0_i32_0 : i32
    scf.if %2 {
      %cst_16 = arith.constant 0.000000e+00 : f32
      %19 = vector.broadcast %cst_16 : f32 to vector<32x1xf32>
      %c0_17 = arith.constant 0 : index
      %c0_18 = arith.constant 0 : index
      %20 = vector.load %arg4[%c0_17, %c0_18] : memref<32x1xf32, #tpu.memory_space<vmem>>, vector<32x1xf32>
      tpu.vector_store %arg4[%c0_17, %c0_18], %19 {strides = array<i32>} : memref<32x1xf32, #tpu.memory_space<vmem>>, vector<32x1xf32>,
      %cst_19 = arith.constant 0.000000e+00 : f32
      %21 = vector.broadcast %cst_19 : f32 to vector<32x1xf32>
      %c0_20 = arith.constant 0 : index
      %c0_21 = arith.constant 0 : index
      %22 = vector.load %arg5[%c0_20, %c0_21] : memref<32x1xf32, #tpu.memory_space<vmem>>, vector<32x1xf32>
      tpu.vector_store %arg5[%c0_20, %c0_21], %21 {strides = array<i32>} : memref<32x1xf32, #tpu.memory_space<vmem>>, vector<32x1xf32>,
    } else {
    }
    %c0 = arith.constant 0 : index
    %c0_1 = arith.constant 0 : index
    %3 = vector.load %arg2[%c0, %c0_1] : memref<32x256xbf16, #tpu.memory_space<vmem>>, vector<32x256xbf16>
    %c0_2 = arith.constant 0 : index
    %c0_3 = arith.constant 0 : index
    %4 = vector.load %arg1[%c0_2, %c0_3] : memref<128x256xbf16, #tpu.memory_space<vmem>>, vector<128x256xbf16>
    %cst = arith.constant dense<0.000000e+00> : vector<32x128xf32>
    %5 = tpu.matmul %3, %4, %cst {dimension_numbers = #tpu.dot_dimension_numbers<[1], [1], [0], [0], [0, 0, 1, 0], [], []>} : vector<32x256xbf16>, vector<128x256xbf16>, vector<32x128xf32> -> vector<32x128xf32>
    %6 = arith.truncf %5 : vector<32x128xf32> to vector<32x128xbf16>
    %c0_4 = arith.constant 0 : index
    %c0_5 = arith.constant 0 : index
    %7 = vector.load %arg3[%c0_4, %c0_5] : memref<32x128xbf16, #tpu.memory_space<vmem>>, vector<32x128xbf16>
    tpu.vector_store %arg3[%c0_4, %c0_5], %6 {strides = array<i32>} : memref<32x128xbf16, #tpu.memory_space<vmem>>, vector<32x128xbf16>,
    %c0_6 = arith.constant 0 : index
    %c0_7 = arith.constant 0 : index
    %8 = vector.load %arg4[%c0_6, %c0_7] : memref<32x1xf32, #tpu.memory_space<vmem>>, vector<32x1xf32>
    %cst_8 = arith.constant dense<0.000000e+00> : vector<32xf32>
    %9 = vector.multi_reduction <add>, %5, %cst_8 [1] : vector<32x128xf32> to vector<32xf32>
    %10 = vector.shape_cast %9 : vector<32xf32> to vector<32x1xf32>
    %11 = arith.addf %8, %10 : vector<32x1xf32>
    %c0_9 = arith.constant 0 : index
    %c0_10 = arith.constant 0 : index
    %12 = vector.load %arg4[%c0_9, %c0_10] : memref<32x1xf32, #tpu.memory_space<vmem>>, vector<32x1xf32>
    tpu.vector_store %arg4[%c0_9, %c0_10], %11 {strides = array<i32>} : memref<32x1xf32, #tpu.memory_space<vmem>>, vector<32x1xf32>,
    %c0_11 = arith.constant 0 : index
    %c0_12 = arith.constant 0 : index
    %13 = vector.load %arg5[%c0_11, %c0_12] : memref<32x1xf32, #tpu.memory_space<vmem>>, vector<32x1xf32>
    %14 = arith.mulf %5, %5 : vector<32x128xf32>
    %cst_13 = arith.constant dense<0.000000e+00> : vector<32xf32>
    %15 = vector.multi_reduction <add>, %14, %cst_13 [1] : vector<32x128xf32> to vector<32xf32>
    %16 = vector.shape_cast %15 : vector<32xf32> to vector<32x1xf32>
    %17 = arith.addf %13, %16 : vector<32x1xf32>
    %c0_14 = arith.constant 0 : index
    %c0_15 = arith.constant 0 : index
    %18 = vector.load %arg5[%c0_14, %c0_15] : memref<32x1xf32, #tpu.memory_space<vmem>>, vector<32x1xf32>
    tpu.vector_store %arg5[%c0_14, %c0_15], %17 {strides = array<i32>} : memref<32x1xf32, #tpu.memory_space<vmem>>, vector<32x1xf32>,
    return
  }
  func.func @transform_0(%arg0: i32) -> (i32, i32) {
    %c0_i32 = arith.constant 0 : i32
    %c0_i32_0 = arith.constant 0 : i32
    return %arg0, %c0_i32 : i32, i32
  }
  func.func @transform_1(%arg0: i32) -> (i32, i32) {
    %c0_i32 = arith.constant 0 : i32
    %c0_i32_0 = arith.constant 0 : i32
    %c0_i32_1 = arith.constant 0 : i32
    return %c0_i32, %c0_i32_0 : i32, i32
  }
  func.func @transform_2(%arg0: i32) -> (i32, i32) {
    %c0_i32 = arith.constant 0 : i32
    %c0_i32_0 = arith.constant 0 : i32
    return %c0_i32, %arg0 : i32, i32
  }
  func.func @transform_3(%arg0: i32) -> (i32, i32) {
    %c0_i32 = arith.constant 0 : i32
    %c0_i32_0 = arith.constant 0 : i32
    %c0_i32_1 = arith.constant 0 : i32
    return %c0_i32, %c0_i32_0 : i32, i32
  }
  func.func @transform_4(%arg0: i32) -> (i32, i32) {
    %c0_i32 = arith.constant 0 : i32
    %c0_i32_0 = arith.constant 0 : i32
    %c0_i32_1 = arith.constant 0 : i32
    return %c0_i32, %c0_i32_0 : i32, i32
  }
}

module attributes {stable_mosaic.version = 11 : i64} {
  func.func @_bn_act_kernel(%arg0: i32, %arg1: memref<32x128xbf16, #tpu.memory_space<vmem>>, %arg2: memref<32x1xf32, #tpu.memory_space<vmem>>, %arg3: memref<32x1xf32, #tpu.memory_space<vmem>>, %arg4: memref<32x128xbf16, #tpu.memory_space<vmem>>) attributes {dimension_semantics = [#tpu.dimension_semantics<parallel>], iteration_bounds = array<i64: 1>, scalar_prefetch = 0 : i64, scratch_operands = 0 : i64, tpu.core_type = #tpu.core_type<tc>, window_params = [{transform_indices = @transform_0, window_bounds = array<i64: 32, 128>}, {pipeline_mode = #tpu.pipeline_mode<synchronous>, transform_indices = @transform_1, window_bounds = array<i64: 32, 1>}, {pipeline_mode = #tpu.pipeline_mode<synchronous>, transform_indices = @transform_2, window_bounds = array<i64: 32, 1>}, {transform_indices = @transform_3, window_bounds = array<i64: 32, 128>}]} {
    %c0 = arith.constant 0 : index
    %c0_0 = arith.constant 0 : index
    %0 = vector.load %arg1[%c0, %c0_0] : memref<32x128xbf16, #tpu.memory_space<vmem>>, vector<32x128xbf16>
    %1 = arith.extf %0 : vector<32x128xbf16> to vector<32x128xf32>
    %c0_1 = arith.constant 0 : index
    %c0_2 = arith.constant 0 : index
    %2 = vector.load %arg2[%c0_1, %c0_2] : memref<32x1xf32, #tpu.memory_space<vmem>>, vector<32x1xf32>
    %3 = vector.broadcast %2 : vector<32x1xf32> to vector<32x128xf32>
    %4 = arith.mulf %1, %3 : vector<32x128xf32>
    %c0_3 = arith.constant 0 : index
    %c0_4 = arith.constant 0 : index
    %5 = vector.load %arg3[%c0_3, %c0_4] : memref<32x1xf32, #tpu.memory_space<vmem>>, vector<32x1xf32>
    %6 = vector.broadcast %5 : vector<32x1xf32> to vector<32x128xf32>
    %7 = arith.addf %4, %6 : vector<32x128xf32>
    %cst = arith.constant 0.000000e+00 : f32
    %8 = vector.broadcast %cst : f32 to vector<32x128xf32>
    %9 = arith.cmpf oge, %7, %8 : vector<32x128xf32>
    %cst_5 = arith.constant 2.000000e-01 : f32
    %10 = vector.broadcast %cst_5 : f32 to vector<32x128xf32>
    %11 = arith.mulf %10, %7 : vector<32x128xf32>
    %12 = arith.select %9, %7, %11 : vector<32x128xi1>, vector<32x128xf32>
    %13 = arith.truncf %12 : vector<32x128xf32> to vector<32x128xbf16>
    %c0_6 = arith.constant 0 : index
    %c0_7 = arith.constant 0 : index
    %14 = vector.load %arg4[%c0_6, %c0_7] : memref<32x128xbf16, #tpu.memory_space<vmem>>, vector<32x128xbf16>
    tpu.vector_store %arg4[%c0_6, %c0_7], %13 {strides = array<i32>} : memref<32x128xbf16, #tpu.memory_space<vmem>>, vector<32x128xbf16>,
    return
  }
  func.func @transform_0(%arg0: i32) -> (i32, i32) {
    %c0_i32 = arith.constant 0 : i32
    %c0_i32_0 = arith.constant 0 : i32
    return %c0_i32, %arg0 : i32, i32
  }
  func.func @transform_1(%arg0: i32) -> (i32, i32) {
    %c0_i32 = arith.constant 0 : i32
    %c0_i32_0 = arith.constant 0 : i32
    %c0_i32_1 = arith.constant 0 : i32
    return %c0_i32, %c0_i32_0 : i32, i32
  }
  func.func @transform_2(%arg0: i32) -> (i32, i32) {
    %c0_i32 = arith.constant 0 : i32
    %c0_i32_0 = arith.constant 0 : i32
    %c0_i32_1 = arith.constant 0 : i32
    return %c0_i32, %c0_i32_0 : i32, i32
  }
  func.func @transform_3(%arg0: i32) -> (i32, i32) {
    %c0_i32 = arith.constant 0 : i32
    %c0_i32_0 = arith.constant 0 : i32
    return %c0_i32, %arg0 : i32, i32
  }
}

module attributes {stable_mosaic.version = 11 : i64} {
  func.func @_conv_stats_kernel(%arg0: i32, %arg1: memref<128x512xbf16, #tpu.memory_space<vmem>>, %arg2: memref<64x512xbf16, #tpu.memory_space<vmem>>, %arg3: memref<64x128xbf16, #tpu.memory_space<vmem>>, %arg4: memref<64x1xf32, #tpu.memory_space<vmem>>, %arg5: memref<64x1xf32, #tpu.memory_space<vmem>>) attributes {dimension_semantics = [#tpu.dimension_semantics<arbitrary>], iteration_bounds = array<i64: 1>, scalar_prefetch = 0 : i64, scratch_operands = 0 : i64, tpu.core_type = #tpu.core_type<tc>, window_params = [{transform_indices = @transform_0, window_bounds = array<i64: 128, 512>}, {pipeline_mode = #tpu.pipeline_mode<synchronous>, transform_indices = @transform_1, window_bounds = array<i64: 64, 512>}, {transform_indices = @transform_2, window_bounds = array<i64: 64, 128>}, {pipeline_mode = #tpu.pipeline_mode<synchronous>, transform_indices = @transform_3, window_bounds = array<i64: 64, 1>}, {pipeline_mode = #tpu.pipeline_mode<synchronous>, transform_indices = @transform_4, window_bounds = array<i64: 64, 1>}]} {
    %c0_i32 = arith.constant 0 : i32
    %0 = arith.cmpi eq, %arg0, %c0_i32 : i32
    %1 = arith.extui %0 : i1 to i32
    %c0_i32_0 = arith.constant 0 : i32
    %2 = arith.cmpi ne, %1, %c0_i32_0 : i32
    scf.if %2 {
      %cst_16 = arith.constant 0.000000e+00 : f32
      %19 = vector.broadcast %cst_16 : f32 to vector<64x1xf32>
      %c0_17 = arith.constant 0 : index
      %c0_18 = arith.constant 0 : index
      %20 = vector.load %arg4[%c0_17, %c0_18] : memref<64x1xf32, #tpu.memory_space<vmem>>, vector<64x1xf32>
      tpu.vector_store %arg4[%c0_17, %c0_18], %19 {strides = array<i32>} : memref<64x1xf32, #tpu.memory_space<vmem>>, vector<64x1xf32>,
      %cst_19 = arith.constant 0.000000e+00 : f32
      %21 = vector.broadcast %cst_19 : f32 to vector<64x1xf32>
      %c0_20 = arith.constant 0 : index
      %c0_21 = arith.constant 0 : index
      %22 = vector.load %arg5[%c0_20, %c0_21] : memref<64x1xf32, #tpu.memory_space<vmem>>, vector<64x1xf32>
      tpu.vector_store %arg5[%c0_20, %c0_21], %21 {strides = array<i32>} : memref<64x1xf32, #tpu.memory_space<vmem>>, vector<64x1xf32>,
    } else {
    }
    %c0 = arith.constant 0 : index
    %c0_1 = arith.constant 0 : index
    %3 = vector.load %arg2[%c0, %c0_1] : memref<64x512xbf16, #tpu.memory_space<vmem>>, vector<64x512xbf16>
    %c0_2 = arith.constant 0 : index
    %c0_3 = arith.constant 0 : index
    %4 = vector.load %arg1[%c0_2, %c0_3] : memref<128x512xbf16, #tpu.memory_space<vmem>>, vector<128x512xbf16>
    %cst = arith.constant dense<0.000000e+00> : vector<64x128xf32>
    %5 = tpu.matmul %3, %4, %cst {dimension_numbers = #tpu.dot_dimension_numbers<[1], [1], [0], [0], [0, 0, 1, 0], [], []>} : vector<64x512xbf16>, vector<128x512xbf16>, vector<64x128xf32> -> vector<64x128xf32>
    %6 = arith.truncf %5 : vector<64x128xf32> to vector<64x128xbf16>
    %c0_4 = arith.constant 0 : index
    %c0_5 = arith.constant 0 : index
    %7 = vector.load %arg3[%c0_4, %c0_5] : memref<64x128xbf16, #tpu.memory_space<vmem>>, vector<64x128xbf16>
    tpu.vector_store %arg3[%c0_4, %c0_5], %6 {strides = array<i32>} : memref<64x128xbf16, #tpu.memory_space<vmem>>, vector<64x128xbf16>,
    %c0_6 = arith.constant 0 : index
    %c0_7 = arith.constant 0 : index
    %8 = vector.load %arg4[%c0_6, %c0_7] : memref<64x1xf32, #tpu.memory_space<vmem>>, vector<64x1xf32>
    %cst_8 = arith.constant dense<0.000000e+00> : vector<64xf32>
    %9 = vector.multi_reduction <add>, %5, %cst_8 [1] : vector<64x128xf32> to vector<64xf32>
    %10 = vector.shape_cast %9 : vector<64xf32> to vector<64x1xf32>
    %11 = arith.addf %8, %10 : vector<64x1xf32>
    %c0_9 = arith.constant 0 : index
    %c0_10 = arith.constant 0 : index
    %12 = vector.load %arg4[%c0_9, %c0_10] : memref<64x1xf32, #tpu.memory_space<vmem>>, vector<64x1xf32>
    tpu.vector_store %arg4[%c0_9, %c0_10], %11 {strides = array<i32>} : memref<64x1xf32, #tpu.memory_space<vmem>>, vector<64x1xf32>,
    %c0_11 = arith.constant 0 : index
    %c0_12 = arith.constant 0 : index
    %13 = vector.load %arg5[%c0_11, %c0_12] : memref<64x1xf32, #tpu.memory_space<vmem>>, vector<64x1xf32>
    %14 = arith.mulf %5, %5 : vector<64x128xf32>
    %cst_13 = arith.constant dense<0.000000e+00> : vector<64xf32>
    %15 = vector.multi_reduction <add>, %14, %cst_13 [1] : vector<64x128xf32> to vector<64xf32>
    %16 = vector.shape_cast %15 : vector<64xf32> to vector<64x1xf32>
    %17 = arith.addf %13, %16 : vector<64x1xf32>
    %c0_14 = arith.constant 0 : index
    %c0_15 = arith.constant 0 : index
    %18 = vector.load %arg5[%c0_14, %c0_15] : memref<64x1xf32, #tpu.memory_space<vmem>>, vector<64x1xf32>
    tpu.vector_store %arg5[%c0_14, %c0_15], %17 {strides = array<i32>} : memref<64x1xf32, #tpu.memory_space<vmem>>, vector<64x1xf32>,
    return
  }
  func.func @transform_0(%arg0: i32) -> (i32, i32) {
    %c0_i32 = arith.constant 0 : i32
    %c0_i32_0 = arith.constant 0 : i32
    return %arg0, %c0_i32 : i32, i32
  }
  func.func @transform_1(%arg0: i32) -> (i32, i32) {
    %c0_i32 = arith.constant 0 : i32
    %c0_i32_0 = arith.constant 0 : i32
    %c0_i32_1 = arith.constant 0 : i32
    return %c0_i32, %c0_i32_0 : i32, i32
  }
  func.func @transform_2(%arg0: i32) -> (i32, i32) {
    %c0_i32 = arith.constant 0 : i32
    %c0_i32_0 = arith.constant 0 : i32
    return %c0_i32, %arg0 : i32, i32
  }
  func.func @transform_3(%arg0: i32) -> (i32, i32) {
    %c0_i32 = arith.constant 0 : i32
    %c0_i32_0 = arith.constant 0 : i32
    %c0_i32_1 = arith.constant 0 : i32
    return %c0_i32, %c0_i32_0 : i32, i32
  }
  func.func @transform_4(%arg0: i32) -> (i32, i32) {
    %c0_i32 = arith.constant 0 : i32
    %c0_i32_0 = arith.constant 0 : i32
    %c0_i32_1 = arith.constant 0 : i32
    return %c0_i32, %c0_i32_0 : i32, i32
  }
}

module attributes {stable_mosaic.version = 11 : i64} {
  func.func @_bn_act_kernel(%arg0: i32, %arg1: memref<64x128xbf16, #tpu.memory_space<vmem>>, %arg2: memref<64x1xf32, #tpu.memory_space<vmem>>, %arg3: memref<64x1xf32, #tpu.memory_space<vmem>>, %arg4: memref<64x128xbf16, #tpu.memory_space<vmem>>) attributes {dimension_semantics = [#tpu.dimension_semantics<parallel>], iteration_bounds = array<i64: 1>, scalar_prefetch = 0 : i64, scratch_operands = 0 : i64, tpu.core_type = #tpu.core_type<tc>, window_params = [{transform_indices = @transform_0, window_bounds = array<i64: 64, 128>}, {pipeline_mode = #tpu.pipeline_mode<synchronous>, transform_indices = @transform_1, window_bounds = array<i64: 64, 1>}, {pipeline_mode = #tpu.pipeline_mode<synchronous>, transform_indices = @transform_2, window_bounds = array<i64: 64, 1>}, {transform_indices = @transform_3, window_bounds = array<i64: 64, 128>}]} {
    %c0 = arith.constant 0 : index
    %c0_0 = arith.constant 0 : index
    %0 = vector.load %arg1[%c0, %c0_0] : memref<64x128xbf16, #tpu.memory_space<vmem>>, vector<64x128xbf16>
    %1 = arith.extf %0 : vector<64x128xbf16> to vector<64x128xf32>
    %c0_1 = arith.constant 0 : index
    %c0_2 = arith.constant 0 : index
    %2 = vector.load %arg2[%c0_1, %c0_2] : memref<64x1xf32, #tpu.memory_space<vmem>>, vector<64x1xf32>
    %3 = vector.broadcast %2 : vector<64x1xf32> to vector<64x128xf32>
    %4 = arith.mulf %1, %3 : vector<64x128xf32>
    %c0_3 = arith.constant 0 : index
    %c0_4 = arith.constant 0 : index
    %5 = vector.load %arg3[%c0_3, %c0_4] : memref<64x1xf32, #tpu.memory_space<vmem>>, vector<64x1xf32>
    %6 = vector.broadcast %5 : vector<64x1xf32> to vector<64x128xf32>
    %7 = arith.addf %4, %6 : vector<64x128xf32>
    %cst = arith.constant 0.000000e+00 : f32
    %8 = vector.broadcast %cst : f32 to vector<64x128xf32>
    %9 = arith.cmpf oge, %7, %8 : vector<64x128xf32>
    %cst_5 = arith.constant 2.000000e-01 : f32
    %10 = vector.broadcast %cst_5 : f32 to vector<64x128xf32>
    %11 = arith.mulf %10, %7 : vector<64x128xf32>
    %12 = arith.select %9, %7, %11 : vector<64x128xi1>, vector<64x128xf32>
    %13 = arith.truncf %12 : vector<64x128xf32> to vector<64x128xbf16>
    %c0_6 = arith.constant 0 : index
    %c0_7 = arith.constant 0 : index
    %14 = vector.load %arg4[%c0_6, %c0_7] : memref<64x128xbf16, #tpu.memory_space<vmem>>, vector<64x128xbf16>
    tpu.vector_store %arg4[%c0_6, %c0_7], %13 {strides = array<i32>} : memref<64x128xbf16, #tpu.memory_space<vmem>>, vector<64x128xbf16>,
    return
  }
  func.func @transform_0(%arg0: i32) -> (i32, i32) {
    %c0_i32 = arith.constant 0 : i32
    %c0_i32_0 = arith.constant 0 : i32
    return %c0_i32, %arg0 : i32, i32
  }
  func.func @transform_1(%arg0: i32) -> (i32, i32) {
    %c0_i32 = arith.constant 0 : i32
    %c0_i32_0 = arith.constant 0 : i32
    %c0_i32_1 = arith.constant 0 : i32
    return %c0_i32, %c0_i32_0 : i32, i32
  }
  func.func @transform_2(%arg0: i32) -> (i32, i32) {
    %c0_i32 = arith.constant 0 : i32
    %c0_i32_0 = arith.constant 0 : i32
    %c0_i32_1 = arith.constant 0 : i32
    return %c0_i32, %c0_i32_0 : i32, i32
  }
  func.func @transform_3(%arg0: i32) -> (i32, i32) {
    %c0_i32 = arith.constant 0 : i32
    %c0_i32_0 = arith.constant 0 : i32
    return %c0_i32, %arg0 : i32, i32
  }
}

module attributes {stable_mosaic.version = 11 : i64} {
  func.func @_conv_bias_act_kernel(%arg0: i32, %arg1: memref<128x1024xbf16, #tpu.memory_space<vmem>>, %arg2: memref<1x1024xbf16, #tpu.memory_space<vmem>>, %arg3: memref<1x1xf32, #tpu.memory_space<vmem>>, %arg4: memref<1x128xf32, #tpu.memory_space<vmem>>) attributes {dimension_semantics = [#tpu.dimension_semantics<parallel>], iteration_bounds = array<i64: 1>, scalar_prefetch = 0 : i64, scratch_operands = 0 : i64, tpu.core_type = #tpu.core_type<tc>, window_params = [{transform_indices = @transform_0, window_bounds = array<i64: 128, 1024>}, {pipeline_mode = #tpu.pipeline_mode<synchronous>, transform_indices = @transform_1, window_bounds = array<i64: 1, 1024>}, {pipeline_mode = #tpu.pipeline_mode<synchronous>, transform_indices = @transform_2, window_bounds = array<i64: 1, 1>}, {transform_indices = @transform_3, window_bounds = array<i64: 1, 128>}]} {
    %c0 = arith.constant 0 : index
    %c0_0 = arith.constant 0 : index
    %0 = vector.load %arg2[%c0, %c0_0] : memref<1x1024xbf16, #tpu.memory_space<vmem>>, vector<1x1024xbf16>
    %c0_1 = arith.constant 0 : index
    %c0_2 = arith.constant 0 : index
    %1 = vector.load %arg1[%c0_1, %c0_2] : memref<128x1024xbf16, #tpu.memory_space<vmem>>, vector<128x1024xbf16>
    %cst = arith.constant dense<0.000000e+00> : vector<1x128xf32>
    %2 = tpu.matmul %0, %1, %cst {dimension_numbers = #tpu.dot_dimension_numbers<[1], [1], [0], [0], [0, 0, 1, 0], [], []>} : vector<1x1024xbf16>, vector<128x1024xbf16>, vector<1x128xf32> -> vector<1x128xf32>
    %c0_3 = arith.constant 0 : index
    %c0_4 = arith.constant 0 : index
    %3 = vector.load %arg3[%c0_3, %c0_4] : memref<1x1xf32, #tpu.memory_space<vmem>>, vector<1x1xf32>
    %4 = vector.broadcast %3 : vector<1x1xf32> to vector<1x128xf32>
    %5 = arith.addf %2, %4 : vector<1x128xf32>
    %c0_5 = arith.constant 0 : index
    %c0_6 = arith.constant 0 : index
    %6 = vector.load %arg4[%c0_5, %c0_6] : memref<1x128xf32, #tpu.memory_space<vmem>>, vector<1x128xf32>
    tpu.vector_store %arg4[%c0_5, %c0_6], %5 {strides = array<i32>} : memref<1x128xf32, #tpu.memory_space<vmem>>, vector<1x128xf32>,
    return
  }
  func.func @transform_0(%arg0: i32) -> (i32, i32) {
    %c0_i32 = arith.constant 0 : i32
    %c0_i32_0 = arith.constant 0 : i32
    return %arg0, %c0_i32 : i32, i32
  }
  func.func @transform_1(%arg0: i32) -> (i32, i32) {
    %c0_i32 = arith.constant 0 : i32
    %c0_i32_0 = arith.constant 0 : i32
    %c0_i32_1 = arith.constant 0 : i32
    return %c0_i32, %c0_i32_0 : i32, i32
  }
  func.func @transform_2(%arg0: i32) -> (i32, i32) {
    %c0_i32 = arith.constant 0 : i32
    %c0_i32_0 = arith.constant 0 : i32
    %c0_i32_1 = arith.constant 0 : i32
    return %c0_i32, %c0_i32_0 : i32, i32
  }
  func.func @transform_3(%arg0: i32) -> (i32, i32) {
    %c0_i32 = arith.constant 0 : i32
    %c0_i32_0 = arith.constant 0 : i32
    return %c0_i32, %arg0 : i32, i32
  }
}

</mosaic_0001>

<llo_original>
// kernel: reverse
$region0: #{reverse}
  #allocation0 [shape = 's32[1]{0}', space=sflag, size = 0x4, scoped, tag = 'scoped memory for reverse']
  %s0 = inlined_call_operand.vmem [shape: bf16[4,4,64,1024], index: 0, kind: input, shape index: {}]
  %s1 = inlined_call_operand.vmem [shape: bf16[4,4,64,1024], index: 1, kind: output, shape index: {}]
  %s2 = scalar_lea.vmem %s0, 3840
  %v3 = vld [vmem:[%s2] sm:$0xf]
  %v4 = vunpack.c.l.bf16 %v3
  %v5 = vunpack.c.h.bf16 %v3
  %s6 = scalar_lea.vmem %s0, 2816
  %v7 = vld [vmem:[%s6] sm:$0xf]
  %v8 = vunpack.c.l.bf16 %v7
  %v9 = vunpack.c.h.bf16 %v7
  %s10 = scalar_lea.vmem %s1, 1024
  %s11 = scalar_lea.vmem %s0, 1792
  %v12 = vld [vmem:[%s11] sm:$0xf]
  %v13 = vunpack.c.l.bf16 %v12
  %v14 = vunpack.c.h.bf16 %v12
  %s15 = scalar_lea.vmem %s1, 2048
  %s16 = scalar_lea.vmem %s0, 768
  %v17 = vld [vmem:[%s16] sm:$0xf]
  %v18 = vunpack.c.l.bf16 %v17
  %v19 = vunpack.c.h.bf16 %v17
  %s20 = scalar_lea.vmem %s1, 3072
  %s21 = scalar_lea.vmem %s0, 3584
  %v22 = vld [vmem:[%s21] sm:$0xf]
  %v23 = vunpack.c.l.bf16 %v22
  %v24 = vunpack.c.h.bf16 %v22
  %s25 = scalar_lea.vmem %s1, 256
  %s26 = scalar_lea.vmem %s0, 2560
  %v27 = vld [vmem:[%s26] sm:$0xf]
  %v28 = vunpack.c.l.bf16 %v27
  %v29 = vunpack.c.h.bf16 %v27
  %s30 = scalar_lea.vmem %s1, 1280
  %s31 = scalar_lea.vmem %s0, 1536
  %v32 = vld [vmem:[%s31] sm:$0xf]
  %v33 = vunpack.c.l.bf16 %v32
  %v34 = vunpack.c.h.bf16 %v32
  %s35 = scalar_lea.vmem %s1, 2304
  %s36 = scalar_lea.vmem %s0, 512
  %v37 = vld [vmem:[%s36] sm:$0xf]
  %v38 = vunpack.c.l.bf16 %v37
  %v39 = vunpack.c.h.bf16 %v37
  %s40 = scalar_lea.vmem %s1, 3328
  %s41 = scalar_lea.vmem %s0, 3328
  %v42 = vld [vmem:[%s41] sm:$0xf]
  %v43 = vunpack.c.l.bf16 %v42
  %v44 = vunpack.c.h.bf16 %v42
  %s45 = scalar_lea.vmem %s1, 512
  %s46 = scalar_lea.vmem %s0, 2304
  %v47 = vld [vmem:[%s46] sm:$0xf]
  %v48 = vunpack.c.l.bf16 %v47
  %v49 = vunpack.c.h.bf16 %v47
  %s50 = scalar_lea.vmem %s1, 1536
  %s51 = scalar_lea.vmem %s0, 1280
  %v52 = vld [vmem:[%s51] sm:$0xf]
  %v53 = vunpack.c.l.bf16 %v52
  %v54 = vunpack.c.h.bf16 %v52
  %s55 = scalar_lea.vmem %s1, 2560
  %s56 = scalar_lea.vmem %s0, 256
  %v57 = vld [vmem:[%s56] sm:$0xf]
  %v58 = vunpack.c.l.bf16 %v57
  %v59 = vunpack.c.h.bf16 %v57
  %s60 = scalar_lea.vmem %s1, 3584
  %s61 = scalar_lea.vmem %s0, 3072
  %v62 = vld [vmem:[%s61] sm:$0xf]
  %v63 = vunpack.c.l.bf16 %v62
  %v64 = vunpack.c.h.bf16 %v62
  %s65 = scalar_lea.vmem %s1, 768
  %s66 = scalar_lea.vmem %s0, 2048
  %v67 = vld [vmem:[%s66] sm:$0xf]
  %v68 = vunpack.c.l.bf16 %v67
  %v69 = vunpack.c.h.bf16 %v67
  %s70 = scalar_lea.vmem %s1, 1792
  %s71 = scalar_lea.vmem %s0, 1024
  %v72 = vld [vmem:[%s71] sm:$0xf]
  %v73 = vunpack.c.l.bf16 %v72
  %v74 = vunpack.c.h.bf16 %v72
  %s75 = scalar_lea.vmem %s1, 2816
  %v76 = vld [vmem:[%s0] sm:$0xf]
  %v77 = vunpack.c.l.bf16 %v76
  %v78 = vunpack.c.h.bf16 %v76
  %s79 = scalar_lea.vmem %s1, 3840
  %s80 = scalar_lea.vmem %s0, 3872
  %v81 = vld [vmem:[%s80] sm:$0xf]
  %v82 = vunpack.c.l.bf16 %v81
  %v83 = vunpack.c.h.bf16 %v81
  %s84 = scalar_lea.vmem %s1, 32
  %s85 = scalar_lea.vmem %s0, 2848
  %v86 = vld [vmem:[%s85] sm:$0xf]
  %v87 = vunpack.c.l.bf16 %v86
  %v88 = vunpack.c.h.bf16 %v86
  %s89 = scalar_lea.vmem %s1, 1056
  %s90 = scalar_lea.vmem %s0, 1824
  %v91 = vld [vmem:[%s90] sm:$0xf]
  %v92 = vunpack.c.l.bf16 %v91
  %v93 = vunpack.c.h.bf16 %v91
  %s94 = scalar_lea.vmem %s1, 2080
  %s95 = scalar_lea.vmem %s0, 800
  %v96 = vld [vmem:[%s95] sm:$0xf]
  %v97 = vunpack.c.l.bf16 %v96
  %v98 = vunpack.c.h.bf16 %v96
  %s99 = scalar_lea.vmem %s1, 3104
  %s100 = scalar_lea.vmem %s0, 3616
  %v101 = vld [vmem:[%s100] sm:$0xf]
  %v102 = vunpack.c.l.bf16 %v101
  %v103 = vunpack.c.h.bf16 %v101
  %s104 = scalar_lea.vmem %s1, 288
  %s105 = scalar_lea.vmem %s0, 2592
  %v106 = vld [vmem:[%s105] sm:$0xf]
  %v107 = vunpack.c.l.bf16 %v106
  %v108 = vunpack.c.h.bf16 %v106
  %s109 = scalar_lea.vmem %s1, 1312
  %s110 = scalar_lea.vmem %s0, 1568
  %v111 = vld [vmem:[%s110] sm:$0xf]
  %v112 = vunpack.c.l.bf16 %v111
  %v113 = vunpack.c.h.bf16 %v111
  %s114 = scalar_lea.vmem %s1, 2336
  %s115 = scalar_lea.vmem %s0, 544
  %v116 = vld [vmem:[%s115] sm:$0xf]
  %v117 = vunpack.c.l.bf16 %v116
  %v118 = vunpack.c.h.bf16 %v116
  %s119 = scalar_lea.vmem %s1, 3360
  %s120 = scalar_lea.vmem %s0, 3360
  %v121 = vld [vmem:[%s120] sm:$0xf]
  %v122 = vunpack.c.l.bf16 %v121
  %v123 = vunpack.c.h.bf16 %v121
  %s124 = scalar_lea.vmem %s1, 544
  %s125 = scalar_lea.vmem %s0, 2336
  %v126 = vld [vmem:[%s125] sm:$0xf]
  %v127 = vunpack.c.l.bf16 %v126
  %v128 = vunpack.c.h.bf16 %v126
  %s129 = scalar_lea.vmem %s1, 1568
  %s130 = scalar_lea.vmem %s0, 1312
  %v131 = vld [vmem:[%s130] sm:$0xf]
  %v132 = vunpack.c.l.bf16 %v131
  %v133 = vunpack.c.h.bf16 %v131
  %s134 = scalar_lea.vmem %s1, 2592
  %s135 = scalar_lea.vmem %s0, 288
  %v136 = vld [vmem:[%s135] sm:$0xf]
  %v137 = vunpack.c.l.bf16 %v136
  %v138 = vunpack.c.h.bf16 %v136
  %s139 = scalar_lea.vmem %s1, 3616
  %s140 = scalar_lea.vmem %s0, 3104
  %v141 = vld [vmem:[%s140] sm:$0xf]
  %v142 = vunpack.c.l.bf16 %v141
  %v143 = vunpack.c.h.bf16 %v141
  %s144 = scalar_lea.vmem %s1, 800
  %s145 = scalar_lea.vmem %s0, 2080
  %v146 = vld [vmem:[%s145] sm:$0xf]
  %v147 = vunpack.c.l.bf16 %v146
  %v148 = vunpack.c.h.bf16 %v146
  %s149 = scalar_lea.vmem %s1, 1824
  %s150 = scalar_lea.vmem %s0, 1056
  %v151 = vld [vmem:[%s150] sm:$0xf]
  %v152 = vunpack.c.l.bf16 %v151
  %v153 = vunpack.c.h.bf16 %v151
  %s154 = scalar_lea.vmem %s1, 2848
  %s155 = scalar_lea.vmem %s0, 32
  %v156 = vld [vmem:[%s155] sm:$0xf]
  %v157 = vunpack.c.l.bf16 %v156
  %v158 = vunpack.c.h.bf16 %v156
  %s159 = scalar_lea.vmem %s1, 3872
  %s160 = scalar_lea.vmem %s0, 3904
  %v161 = vld [vmem:[%s160] sm:$0xf]
  %v162 = vunpack.c.l.bf16 %v161
  %v163 = vunpack.c.h.bf16 %v161
  %s164 = scalar_lea.vmem %s1, 64
  %s165 = scalar_lea.vmem %s0, 2880
  %v166 = vld [vmem:[%s165] sm:$0xf]
  %v167 = vunpack.c.l.bf16 %v166
  %v168 = vunpack.c.h.bf16 %v166
  %s169 = scalar_lea.vmem %s1, 1088
  %s170 = scalar_lea.vmem %s0, 1856
  %v171 = vld [vmem:[%s170] sm:$0xf]
  %v172 = vunpack.c.l.bf16 %v171
  %v173 = vunpack.c.h.bf16 %v171
  %s174 = scalar_lea.vmem %s1, 2112
  %s175 = scalar_lea.vmem %s0, 832
  %v176 = vld [vmem:[%s175] sm:$0xf]
  %v177 = vunpack.c.l.bf16 %v176
  %v178 = vunpack.c.h.bf16 %v176
  %s179 = scalar_lea.vmem %s1, 3136
  %s180 = scalar_lea.vmem %s0, 3648
  %v181 = vld [vmem:[%s180] sm:$0xf]
  %v182 = vunpack.c.l.bf16 %v181
  %v183 = vunpack.c.h.bf16 %v181
  %s184 = scalar_lea.vmem %s1, 320
  %s185 = scalar_lea.vmem %s0, 2624
  %v186 = vld [vmem:[%s185] sm:$0xf]
  %v187 = vunpack.c.l.bf16 %v186
  %v188 = vunpack.c.h.bf16 %v186
  %s189 = scalar_lea.vmem %s1, 1344
  %s190 = scalar_lea.vmem %s0, 1600
  %v191 = vld [vmem:[%s190] sm:$0xf]
  %v192 = vunpack.c.l.bf16 %v191
  %v193 = vunpack.c.h.bf16 %v191
  %s194 = scalar_lea.vmem %s1, 2368
  %s195 = scalar_lea.vmem %s0, 576
  %v196 = vld [vmem:[%s195] sm:$0xf]
  %v197 = vunpack.c.l.bf16 %v196
  %v198 = vunpack.c.h.bf16 %v196
  %s199 = scalar_lea.vmem %s1, 3392
  %s200 = scalar_lea.vmem %s0, 3392
  %v201 = vld [vmem:[%s200] sm:$0xf]
  %v202 = vunpack.c.l.bf16 %v201
  %v203 = vunpack.c.h.bf16 %v201
  %s204 = scalar_lea.vmem %s1, 576
  %s205 = scalar_lea.vmem %s0, 2368
  %v206 = vld [vmem:[%s205] sm:$0xf]
  %v207 = vunpack.c.l.bf16 %v206
  %v208 = vunpack.c.h.bf16 %v206
  %s209 = scalar_lea.vmem %s1, 1600
  %s210 = scalar_lea.vmem %s0, 1344
  %v211 = vld [vmem:[%s210] sm:$0xf]
  %v212 = vunpack.c.l.bf16 %v211
  %v213 = vunpack.c.h.bf16 %v211
  %s214 = scalar_lea.vmem %s1, 2624
  %s215 = scalar_lea.vmem %s0, 320
  %v216 = vld [vmem:[%s215] sm:$0xf]
  %v217 = vunpack.c.l.bf16 %v216
  %v218 = vunpack.c.h.bf16 %v216
  %s219 = scalar_lea.vmem %s1, 3648
  %s220 = scalar_lea.vmem %s0, 3136
  %v221 = vld [vmem:[%s220] sm:$0xf]
  %v222 = vunpack.c.l.bf16 %v221
  %v223 = vunpack.c.h.bf16 %v221
  %s224 = scalar_lea.vmem %s1, 832
  %s225 = scalar_lea.vmem %s0, 2112
  %v226 = vld [vmem:[%s225] sm:$0xf]
  %v227 = vunpack.c.l.bf16 %v226
  %v228 = vunpack.c.h.bf16 %v226
  %s229 = scalar_lea.vmem %s1, 1856
  %s230 = scalar_lea.vmem %s0, 1088
  %v231 = vld [vmem:[%s230] sm:$0xf]
  %v232 = vunpack.c.l.bf16 %v231
  %v233 = vunpack.c.h.bf16 %v231
  %s234 = scalar_lea.vmem %s1, 2880
  %s235 = scalar_lea.vmem %s0, 64
  %v236 = vld [vmem:[%s235] sm:$0xf]
  %v237 = vunpack.c.l.bf16 %v236
  %v238 = vunpack.c.h.bf16 %v236
  %s239 = scalar_lea.vmem %s1, 3904
  %s240 = scalar_lea.vmem %s0, 3936
  %v241 = vld [vmem:[%s240] sm:$0xf]
  %v242 = vunpack.c.l.bf16 %v241
  %v243 = vunpack.c.h.bf16 %v241
  %s244 = scalar_lea.vmem %s1, 96
  %s245 = scalar_lea.vmem %s0, 2912
  %v246 = vld [vmem:[%s245] sm:$0xf]
  %v247 = vunpack.c.l.bf16 %v246
  %v248 = vunpack.c.h.bf16 %v246
  %s249 = scalar_lea.vmem %s1, 1120
  %s250 = scalar_lea.vmem %s0, 1888
  %v251 = vld [vmem:[%s250] sm:$0xf]
  %v252 = vunpack.c.l.bf16 %v251
  %v253 = vunpack.c.h.bf16 %v251
  %s254 = scalar_lea.vmem %s1, 2144
  %s255 = scalar_lea.vmem %s0, 864
  %v256 = vld [vmem:[%s255] sm:$0xf]
  %v257 = vunpack.c.l.bf16 %v256
  %v258 = vunpack.c.h.bf16 %v256
  %s259 = scalar_lea.vmem %s1, 3168
  %s260 = scalar_lea.vmem %s0, 3680
  %v261 = vld [vmem:[%s260] sm:$0xf]
  %v262 = vunpack.c.l.bf16 %v261
  %v263 = vunpack.c.h.bf16 %v261
  %s264 = scalar_lea.vmem %s1, 352
  %s265 = scalar_lea.vmem %s0, 2656
  %v266 = vld [vmem:[%s265] sm:$0xf]
  %v267 = vunpack.c.l.bf16 %v266
  %v268 = vunpack.c.h.bf16 %v266
  %s269 = scalar_lea.vmem %s1, 1376
  %s270 = scalar_lea.vmem %s0, 1632
  %v271 = vld [vmem:[%s270] sm:$0xf]
  %v272 = vunpack.c.l.bf16 %v271
  %v273 = vunpack.c.h.bf16 %v271
  %s274 = scalar_lea.vmem %s1, 2400
  %s275 = scalar_lea.vmem %s0, 608
  %v276 = vld [vmem:[%s275] sm:$0xf]
  %v277 = vunpack.c.l.bf16 %v276
  %v278 = vunpack.c.h.bf16 %v276
  %s279 = scalar_lea.vmem %s1, 3424
  %s280 = scalar_lea.vmem %s0, 3424
  %v281 = vld [vmem:[%s280] sm:$0xf]
  %v282 = vunpack.c.l.bf16 %v281
  %v283 = vunpack.c.h.bf16 %v281
  %s284 = scalar_lea.vmem %s1, 608
  %s285 = scalar_lea.vmem %s0, 2400
  %v286 = vld [vmem:[%s285] sm:$0xf]
  %v287 = vunpack.c.l.bf16 %v286
  %v288 = vunpack.c.h.bf16 %v286
  %s289 = scalar_lea.vmem %s1, 1632
  %s290 = scalar_lea.vmem %s0, 1376
  %v291 = vld [vmem:[%s290] sm:$0xf]
  %v292 = vunpack.c.l.bf16 %v291
  %v293 = vunpack.c.h.bf16 %v291
  %s294 = scalar_lea.vmem %s1, 2656
  %s295 = scalar_lea.vmem %s0, 352
  %v296 = vld [vmem:[%s295] sm:$0xf]
  %v297 = vunpack.c.l.bf16 %v296
  %v298 = vunpack.c.h.bf16 %v296
  %s299 = scalar_lea.vmem %s1, 3680
  %s300 = scalar_lea.vmem %s0, 3168
  %v301 = vld [vmem:[%s300] sm:$0xf]
  %v302 = vunpack.c.l.bf16 %v301
  %v303 = vunpack.c.h.bf16 %v301
  %s304 = scalar_lea.vmem %s1, 864
  %s305 = scalar_lea.vmem %s0, 2144
  %v306 = vld [vmem:[%s305] sm:$0xf]
  %v307 = vunpack.c.l.bf16 %v306
  %v308 = vunpack.c.h.bf16 %v306
  %s309 = scalar_lea.vmem %s1, 1888
  %s310 = scalar_lea.vmem %s0, 1120
  %v311 = vld [vmem:[%s310] sm:$0xf]
  %v312 = vunpack.c.l.bf16 %v311
  %v313 = vunpack.c.h.bf16 %v311
  %s314 = scalar_lea.vmem %s1, 2912
  %s315 = scalar_lea.vmem %s0, 96
  %v316 = vld [vmem:[%s315] sm:$0xf]
  %v317 = vunpack.c.l.bf16 %v316
  %v318 = vunpack.c.h.bf16 %v316
  %s319 = scalar_lea.vmem %s1, 3936
  %s320 = scalar_lea.vmem %s0, 3968
  %v321 = vld [vmem:[%s320] sm:$0xf]
  %v322 = vunpack.c.l.bf16 %v321
  %v323 = vunpack.c.h.bf16 %v321
  %s324 = scalar_lea.vmem %s1, 128
  %s325 = scalar_lea.vmem %s0, 2944
  %v326 = vld [vmem:[%s325] sm:$0xf]
  %v327 = vunpack.c.l.bf16 %v326
  %v328 = vunpack.c.h.bf16 %v326
  %s329 = scalar_lea.vmem %s1, 1152
  %s330 = scalar_lea.vmem %s0, 1920
  %v331 = vld [vmem:[%s330] sm:$0xf]
  %v332 = vunpack.c.l.bf16 %v331
  %v333 = vunpack.c.h.bf16 %v331
  %s334 = scalar_lea.vmem %s1, 2176
  %s335 = scalar_lea.vmem %s0, 896
  %v336 = vld [vmem:[%s335] sm:$0xf]
  %v337 = vunpack.c.l.bf16 %v336
  %v338 = vunpack.c.h.bf16 %v336
  %s339 = scalar_lea.vmem %s1, 3200
  %s340 = scalar_lea.vmem %s0, 3712
  %v341 = vld [vmem:[%s340] sm:$0xf]
  %v342 = vunpack.c.l.bf16 %v341
  %v343 = vunpack.c.h.bf16 %v341
  %s344 = scalar_lea.vmem %s1, 384
  %s345 = scalar_lea.vmem %s0, 2688
  %v346 = vld [vmem:[%s345] sm:$0xf]
  %v347 = vunpack.c.l.bf16 %v346
  %v348 = vunpack.c.h.bf16 %v346
  %s349 = scalar_lea.vmem %s1, 1408
  %s350 = scalar_lea.vmem %s0, 1664
  %v351 = vld [vmem:[%s350] sm:$0xf]
  %v352 = vunpack.c.l.bf16 %v351
  %v353 = vunpack.c.h.bf16 %v351
  %s354 = scalar_lea.vmem %s1, 2432
  %s355 = scalar_lea.vmem %s0, 640
  %v356 = vld [vmem:[%s355] sm:$0xf]
  %v357 = vunpack.c.l.bf16 %v356
  %v358 = vunpack.c.h.bf16 %v356
  %s359 = scalar_lea.vmem %s1, 3456
  %s360 = scalar_lea.vmem %s0, 3456
  %v361 = vld [vmem:[%s360] sm:$0xf]
  %v362 = vunpack.c.l.bf16 %v361
  %v363 = vunpack.c.h.bf16 %v361
  %s364 = scalar_lea.vmem %s1, 640
  %s365 = scalar_lea.vmem %s0, 2432
  %v366 = vld [vmem:[%s365] sm:$0xf]
  %v367 = vunpack.c.l.bf16 %v366
  %v368 = vunpack.c.h.bf16 %v366
  %s369 = scalar_lea.vmem %s1, 1664
  %s370 = scalar_lea.vmem %s0, 1408
  %v371 = vld [vmem:[%s370] sm:$0xf]
  %v372 = vunpack.c.l.bf16 %v371
  %v373 = vunpack.c.h.bf16 %v371
  %s374 = scalar_lea.vmem %s1, 2688
  %s375 = scalar_lea.vmem %s0, 384
  %v376 = vld [vmem:[%s375] sm:$0xf]
  %v377 = vunpack.c.l.bf16 %v376
  %v378 = vunpack.c.h.bf16 %v376
  %s379 = scalar_lea.vmem %s1, 3712
  %s380 = scalar_lea.vmem %s0, 3200
  %v381 = vld [vmem:[%s380] sm:$0xf]
  %v382 = vunpack.c.l.bf16 %v381
  %v383 = vunpack.c.h.bf16 %v381
  %s384 = scalar_lea.vmem %s1, 896
  %s385 = scalar_lea.vmem %s0, 2176
  %v386 = vld [vmem:[%s385] sm:$0xf]
  %v387 = vunpack.c.l.bf16 %v386
  %v388 = vunpack.c.h.bf16 %v386
  %s389 = scalar_lea.vmem %s1, 1920
  %s390 = scalar_lea.vmem %s0, 1152
  %v391 = vld [vmem:[%s390] sm:$0xf]
  %v392 = vunpack.c.l.bf16 %v391
  %v393 = vunpack.c.h.bf16 %v391
  %s394 = scalar_lea.vmem %s1, 2944
  %s395 = scalar_lea.vmem %s0, 128
  %v396 = vld [vmem:[%s395] sm:$0xf]
  %v397 = vunpack.c.l.bf16 %v396
  %v398 = vunpack.c.h.bf16 %v396
  %s399 = scalar_lea.vmem %s1, 3968
  %s400 = scalar_lea.vmem %s0, 4000
  %v401 = vld [vmem:[%s400] sm:$0xf]
  %v402 = vunpack.c.l.bf16 %v401
  %v403 = vunpack.c.h.bf16 %v401
  %s404 = scalar_lea.vmem %s1, 160
  %s405 = scalar_lea.vmem %s0, 2976
  %v406 = vld [vmem:[%s405] sm:$0xf]
  %v407 = vunpack.c.l.bf16 %v406
  %v408 = vunpack.c.h.bf16 %v406
  %s409 = scalar_lea.vmem %s1, 1184
  %s410 = scalar_lea.vmem %s0, 1952
  %v411 = vld [vmem:[%s410] sm:$0xf]
  %v412 = vunpack.c.l.bf16 %v411
  %v413 = vunpack.c.h.bf16 %v411
  %s414 = scalar_lea.vmem %s1, 2208
  %s415 = scalar_lea.vmem %s0, 928
  %v416 = vld [vmem:[%s415] sm:$0xf]
  %v417 = vunpack.c.l.bf16 %v416
  %v418 = vunpack.c.h.bf16 %v416
  %s419 = scalar_lea.vmem %s1, 3232
  %s420 = scalar_lea.vmem %s0, 3744
  %v421 = vld [vmem:[%s420] sm:$0xf]
  %v422 = vunpack.c.l.bf16 %v421
  %v423 = vunpack.c.h.bf16 %v421
  %s424 = scalar_lea.vmem %s1, 416
  %s425 = scalar_lea.vmem %s0, 2720
  %v426 = vld [vmem:[%s425] sm:$0xf]
  %v427 = vunpack.c.l.bf16 %v426
  %v428 = vunpack.c.h.bf16 %v426
  %s429 = scalar_lea.vmem %s1, 1440
  %s430 = scalar_lea.vmem %s0, 1696
  %v431 = vld [vmem:[%s430] sm:$0xf]
  %v432 = vunpack.c.l.bf16 %v431
  %v433 = vunpack.c.h.bf16 %v431
  %s434 = scalar_lea.vmem %s1, 2464
  %s435 = scalar_lea.vmem %s0, 672
  %v436 = vld [vmem:[%s435] sm:$0xf]
  %v437 = vunpack.c.l.bf16 %v436
  %v438 = vunpack.c.h.bf16 %v436
  %s439 = scalar_lea.vmem %s1, 3488
  %s440 = scalar_lea.vmem %s0, 3488
  %v441 = vld [vmem:[%s440] sm:$0xf]
  %v442 = vunpack.c.l.bf16 %v441
  %v443 = vunpack.c.h.bf16 %v441
  %s444 = scalar_lea.vmem %s1, 672
  %s445 = scalar_lea.vmem %s0, 2464
  %v446 = vld [vmem:[%s445] sm:$0xf]
  %v447 = vunpack.c.l.bf16 %v446
  %v448 = vunpack.c.h.bf16 %v446
  %s449 = scalar_lea.vmem %s1, 1696
  %s450 = scalar_lea.vmem %s0, 1440
  %v451 = vld [vmem:[%s450] sm:$0xf]
  %v452 = vunpack.c.l.bf16 %v451
  %v453 = vunpack.c.h.bf16 %v451
  %s454 = scalar_lea.vmem %s1, 2720
  %s455 = scalar_lea.vmem %s0, 416
  %v456 = vld [vmem:[%s455] sm:$0xf]
  %v457 = vunpack.c.l.bf16 %v456
  %v458 = vunpack.c.h.bf16 %v456
  %s459 = scalar_lea.vmem %s1, 3744
  %s460 = scalar_lea.vmem %s0, 3232
  %v461 = vld [vmem:[%s460] sm:$0xf]
  %v462 = vunpack.c.l.bf16 %v461
  %v463 = vunpack.c.h.bf16 %v461
  %s464 = scalar_lea.vmem %s1, 928
  %s465 = scalar_lea.vmem %s0, 2208
  %v466 = vld [vmem:[%s465] sm:$0xf]
  %v467 = vunpack.c.l.bf16 %v466
  %v468 = vunpack.c.h.bf16 %v466
  %s469 = scalar_lea.vmem %s1, 1952
  %s470 = scalar_lea.vmem %s0, 1184
  %v471 = vld [vmem:[%s470] sm:$0xf]
  %v472 = vunpack.c.l.bf16 %v471
  %v473 = vunpack.c.h.bf16 %v471
  %s474 = scalar_lea.vmem %s1, 2976
  %s475 = scalar_lea.vmem %s0, 160
  %v476 = vld [vmem:[%s475] sm:$0xf]
  %v477 = vunpack.c.l.bf16 %v476
  %v478 = vunpack.c.h.bf16 %v476
  %s479 = scalar_lea.vmem %s1, 4000
  %s480 = scalar_lea.vmem %s0, 4032
  %v481 = vld [vmem:[%s480] sm:$0xf]
  %v482 = vunpack.c.l.bf16 %v481
  %v483 = vunpack.c.h.bf16 %v481
  %s484 = scalar_lea.vmem %s1, 192
  %s485 = scalar_lea.vmem %s0, 3008
  %v486 = vld [vmem:[%s485] sm:$0xf]
  %v487 = vunpack.c.l.bf16 %v486
  %v488 = vunpack.c.h.bf16 %v486
  %s489 = scalar_lea.vmem %s1, 1216
  %s490 = scalar_lea.vmem %s0, 1984
  %v491 = vld [vmem:[%s490] sm:$0xf]
  %v492 = vunpack.c.l.bf16 %v491
  %v493 = vunpack.c.h.bf16 %v491
  %s494 = scalar_lea.vmem %s1, 2240
  %s495 = scalar_lea.vmem %s0, 960
  %v496 = vld [vmem:[%s495] sm:$0xf]
  %v497 = vunpack.c.l.bf16 %v496
  %v498 = vunpack.c.h.bf16 %v496
  %s499 = scalar_lea.vmem %s1, 3264
  %s500 = scalar_lea.vmem %s0, 3776
  %v501 = vld [vmem:[%s500] sm:$0xf]
  %v502 = vunpack.c.l.bf16 %v501
  %v503 = vunpack.c.h.bf16 %v501
  %s504 = scalar_lea.vmem %s1, 448
  %s505 = scalar_lea.vmem %s0, 2752
  %v506 = vld [vmem:[%s505] sm:$0xf]
  %v507 = vunpack.c.l.bf16 %v506
  %v508 = vunpack.c.h.bf16 %v506
  %s509 = scalar_lea.vmem %s1, 1472
  %s510 = scalar_lea.vmem %s0, 1728
  %v511 = vld [vmem:[%s510] sm:$0xf]
  %v512 = vunpack.c.l.bf16 %v511
  %v513 = vunpack.c.h.bf16 %v511
  %s514 = scalar_lea.vmem %s1, 2496
  %s515 = scalar_lea.vmem %s0, 704
  %v516 = vld [vmem:[%s515] sm:$0xf]
  %v517 = vunpack.c.l.bf16 %v516
  %v518 = vunpack.c.h.bf16 %v516
  %s519 = scalar_lea.vmem %s1, 3520
  %s520 = scalar_lea.vmem %s0, 3520
  %v521 = vld [vmem:[%s520] sm:$0xf]
  %v522 = vunpack.c.l.bf16 %v521
  %v523 = vunpack.c.h.bf16 %v521
  %s524 = scalar_lea.vmem %s1, 704
  %s525 = scalar_lea.vmem %s0, 2496
  %v526 = vld [vmem:[%s525] sm:$0xf]
  %v527 = vunpack.c.l.bf16 %v526
  %v528 = vunpack.c.h.bf16 %v526
  %s529 = scalar_lea.vmem %s1, 1728
  %s530 = scalar_lea.vmem %s0, 1472
  %v531 = vld [vmem:[%s530] sm:$0xf]
  %v532 = vunpack.c.l.bf16 %v531
  %v533 = vunpack.c.h.bf16 %v531
  %s534 = scalar_lea.vmem %s1, 2752
  %s535 = scalar_lea.vmem %s0, 448
  %v536 = vld [vmem:[%s535] sm:$0xf]
  %v537 = vunpack.c.l.bf16 %v536
  %v538 = vunpack.c.h.bf16 %v536
  %s539 = scalar_lea.vmem %s1, 3776
  %s540 = scalar_lea.vmem %s0, 3264
  %v541 = vld [vmem:[%s540] sm:$0xf]
  %v542 = vunpack.c.l.bf16 %v541
  %v543 = vunpack.c.h.bf16 %v541
  %s544 = scalar_lea.vmem %s1, 960
  %s545 = scalar_lea.vmem %s0, 2240
  %v546 = vld [vmem:[%s545] sm:$0xf]
  %v547 = vunpack.c.l.bf16 %v546
  %v548 = vunpack.c.h.bf16 %v546
  %s549 = scalar_lea.vmem %s1, 1984
  %s550 = scalar_lea.vmem %s0, 1216
  %v551 = vld [vmem:[%s550] sm:$0xf]
  %v552 = vunpack.c.l.bf16 %v551
  %v553 = vunpack.c.h.bf16 %v551
  %s554 = scalar_lea.vmem %s1, 3008
  %s555 = scalar_lea.vmem %s0, 192
  %v556 = vld [vmem:[%s555] sm:$0xf]
  %v557 = vunpack.c.l.bf16 %v556
  %v558 = vunpack.c.h.bf16 %v556
  %s559 = scalar_lea.vmem %s1, 4032
  %s560 = scalar_lea.vmem %s0, 4064
  %v561 = vld [vmem:[%s560] sm:$0xf]
  %v562 = vunpack.c.l.bf16 %v561
  %v563 = vunpack.c.h.bf16 %v561
  %s564 = scalar_lea.vmem %s1, 224
  %s565 = scalar_lea.vmem %s0, 3040
  %v566 = vld [vmem:[%s565] sm:$0xf]
  %v567 = vunpack.c.l.bf16 %v566
  %v568 = vunpack.c.h.bf16 %v566
  %s569 = scalar_lea.vmem %s1, 1248
  %s570 = scalar_lea.vmem %s0, 2016
  %v571 = vld [vmem:[%s570] sm:$0xf]
  %v572 = vunpack.c.l.bf16 %v571
  %v573 = vunpack.c.h.bf16 %v571
  %s574 = scalar_lea.vmem %s1, 2272
  %s575 = scalar_lea.vmem %s0, 992
  %v576 = vld [vmem:[%s575] sm:$0xf]
  %v577 = vunpack.c.l.bf16 %v576
  %v578 = vunpack.c.h.bf16 %v576
  %s579 = scalar_lea.vmem %s1, 3296
  %s580 = scalar_lea.vmem %s0, 3808
  %v581 = vld [vmem:[%s580] sm:$0xf]
  %v582 = vunpack.c.l.bf16 %v581
  %v583 = vunpack.c.h.bf16 %v581
  %s584 = scalar_lea.vmem %s1, 480
  %s585 = scalar_lea.vmem %s0, 2784
  %v586 = vld [vmem:[%s585] sm:$0xf]
  %v587 = vunpack.c.l.bf16 %v586
  %v588 = vunpack.c.h.bf16 %v586
  %s589 = scalar_lea.vmem %s1, 1504
  %s590 = scalar_lea.vmem %s0, 1760
  %v591 = vld [vmem:[%s590] sm:$0xf]
  %v592 = vunpack.c.l.bf16 %v591
  %v593 = vunpack.c.h.bf16 %v591
  %s594 = scalar_lea.vmem %s1, 2528
  %s595 = scalar_lea.vmem %s0, 736
  %v596 = vld [vmem:[%s595] sm:$0xf]
  %v597 = vunpack.c.l.bf16 %v596
  %v598 = vunpack.c.h.bf16 %v596
  %s599 = scalar_lea.vmem %s1, 3552
  %s600 = scalar_lea.vmem %s0, 3552
  %v601 = vld [vmem:[%s600] sm:$0xf]
  %v602 = vunpack.c.l.bf16 %v601
  %v603 = vunpack.c.h.bf16 %v601
  %s604 = scalar_lea.vmem %s1, 736
  %s605 = scalar_lea.vmem %s0, 2528
  %v606 = vld [vmem:[%s605] sm:$0xf]
  %v607 = vunpack.c.l.bf16 %v606
  %v608 = vunpack.c.h.bf16 %v606
  %s609 = scalar_lea.vmem %s1, 1760
  %s610 = scalar_lea.vmem %s0, 1504
  %v611 = vld [vmem:[%s610] sm:$0xf]
  %v612 = vunpack.c.l.bf16 %v611
  %v613 = vunpack.c.h.bf16 %v611
  %s614 = scalar_lea.vmem %s1, 2784
  %s615 = scalar_lea.vmem %s0, 480
  %v616 = vld [vmem:[%s615] sm:$0xf]
  %v617 = vunpack.c.l.bf16 %v616
  %v618 = vunpack.c.h.bf16 %v616
  %s619 = scalar_lea.vmem %s1, 3808
  %s620 = scalar_lea.vmem %s0, 3296
  %v621 = vld [vmem:[%s620] sm:$0xf]
  %v622 = vunpack.c.l.bf16 %v621
  %v623 = vunpack.c.h.bf16 %v621
  %s624 = scalar_lea.vmem %s1, 992
  %s625 = scalar_lea.vmem %s0, 2272
  %v626 = vld [vmem:[%s625] sm:$0xf]
  %v627 = vunpack.c.l.bf16 %v626
  %v628 = vunpack.c.h.bf16 %v626
  %s629 = scalar_lea.vmem %s1, 2016
  %s630 = scalar_lea.vmem %s0, 1248
  %v631 = vld [vmem:[%s630] sm:$0xf]
  %v632 = vunpack.c.l.bf16 %v631
  %v633 = vunpack.c.h.bf16 %v631
  %s634 = scalar_lea.vmem %s1, 3040
  %s635 = scalar_lea.vmem %s0, 224
  %v636 = vld [vmem:[%s635] sm:$0xf]
  %v637 = vunpack.c.l.bf16 %v636
  %v638 = vunpack.c.h.bf16 %v636
  %s639 = scalar_lea.vmem %s1, 4064
  %s640 = scalar_lea.vmem %s0, 3844
  %v641 = vld [vmem:[%s640] sm:$0xf]
  %v642 = vunpack.c.l.bf16 %v641
  %v643 = vunpack.c.h.bf16 %v641
  %s644 = scalar_lea.vmem %s1, 4
  %s646 = ssub.s32 0, 4
  %s647 = scalar_lea.vmem %s644, %s646
  %v648 = vpack.c.bf16 %v642, %v4
  %649 = vst [vmem:[%s647] sm:$0xff] %v648
  %s650 = scalar_lea.vmem %s0, 2820
  %v651 = vld [vmem:[%s650] sm:$0xf]
  %v652 = vunpack.c.l.bf16 %v651
  %v653 = vunpack.c.h.bf16 %v651
  %s654 = scalar_lea.vmem %s1, 1028
  %s656 = ssub.s32 0, 4
  %s657 = scalar_lea.vmem %s654, %s656
  %v658 = vpack.c.bf16 %v652, %v8
  %659 = vst [vmem:[%s657] sm:$0xff] %v658
  %s660 = scalar_lea.vmem %s0, 1796
  %v661 = vld [vmem:[%s660] sm:$0xf]
  %v662 = vunpack.c.l.bf16 %v661
  %v663 = vunpack.c.h.bf16 %v661
  %s664 = scalar_lea.vmem %s1, 2052
  %s666 = ssub.s32 0, 4
  %s667 = scalar_lea.vmem %s664, %s666
  %v668 = vpack.c.bf16 %v662, %v13
  %669 = vst [vmem:[%s667] sm:$0xff] %v668
  %s670 = scalar_lea.vmem %s0, 772
  %v671 = vld [vmem:[%s670] sm:$0xf]
  %v672 = vunpack.c.l.bf16 %v671
  %v673 = vunpack.c.h.bf16 %v671
  %s674 = scalar_lea.vmem %s1, 3076
  %s676 = ssub.s32 0, 4
  %s677 = scalar_lea.vmem %s674, %s676
  %v678 = vpack.c.bf16 %v672, %v18
  %679 = vst [vmem:[%s677] sm:$0xff] %v678
  %s680 = scalar_lea.vmem %s0, 3588
  %v681 = vld [vmem:[%s680] sm:$0xf]
  %v682 = vunpack.c.l.bf16 %v681
  %v683 = vunpack.c.h.bf16 %v681
  %s684 = scalar_lea.vmem %s1, 260
  %s686 = ssub.s32 0, 4
  %s687 = scalar_lea.vmem %s684, %s686
  %v688 = vpack.c.bf16 %v682, %v23
  %689 = vst [vmem:[%s687] sm:$0xff] %v688
  %s690 = scalar_lea.vmem %s0, 2564
  %v691 = vld [vmem:[%s690] sm:$0xf]
  %v692 = vunpack.c.l.bf16 %v691
  %v693 = vunpack.c.h.bf16 %v691
  %s694 = scalar_lea.vmem %s1, 1284
  %s696 = ssub.s32 0, 4
  %s697 = scalar_lea.vmem %s694, %s696
  %v698 = vpack.c.bf16 %v692, %v28
  %699 = vst [vmem:[%s697] sm:$0xff] %v698
  %s700 = scalar_lea.vmem %s0, 1540
  %v701 = vld [vmem:[%s700] sm:$0xf]
  %v702 = vunpack.c.l.bf16 %v701
  %v703 = vunpack.c.h.bf16 %v701
  %s704 = scalar_lea.vmem %s1, 2308
  %s706 = ssub.s32 0, 4
  %s707 = scalar_lea.vmem %s704, %s706
  %v708 = vpack.c.bf16 %v702, %v33
  %709 = vst [vmem:[%s707] sm:$0xff] %v708
  %s710 = scalar_lea.vmem %s0, 516
  %v711 = vld [vmem:[%s710] sm:$0xf]
  %v712 = vunpack.c.l.bf16 %v711
  %v713 = vunpack.c.h.bf16 %v711
  %s714 = scalar_lea.vmem %s1, 3332
  %s716 = ssub.s32 0, 4
  %s717 = scalar_lea.vmem %s714, %s716
  %v718 = vpack.c.bf16 %v712, %v38
  %719 = vst [vmem:[%s717] sm:$0xff] %v718
  %s720 = scalar_lea.vmem %s0, 3332
  %v721 = vld [vmem:[%s720] sm:$0xf]
  %v722 = vunpack.c.l.bf16 %v721
  %v723 = vunpack.c.h.bf16 %v721
  %s724 = scalar_lea.vmem %s1, 516
  %s726 = ssub.s32 0, 4
  %s727 = scalar_lea.vmem %s724, %s726
  %v728 = vpack.c.bf16 %v722, %v43
  %729 = vst [vmem:[%s727] sm:$0xff] %v728
  %s730 = scalar_lea.vmem %s0, 2308
  %v731 = vld [vmem:[%s730] sm:$0xf]
  %v732 = vunpack.c.l.bf16 %v731
  %v733 = vunpack.c.h.bf16 %v731
  %s734 = scalar_lea.vmem %s1, 1540
  %s736 = ssub.s32 0, 4
  %s737 = scalar_lea.vmem %s734, %s736
  %v738 = vpack.c.bf16 %v732, %v48
  %739 = vst [vmem:[%s737] sm:$0xff] %v738
  %s740 = scalar_lea.vmem %s0, 1284
  %v741 = vld [vmem:[%s740] sm:$0xf]
  %v742 = vunpack.c.l.bf16 %v741
  %v743 = vunpack.c.h.bf16 %v741
  %s744 = scalar_lea.vmem %s1, 2564
  %s746 = ssub.s32 0, 4
  %s747 = scalar_lea.vmem %s744, %s746
  %v748 = vpack.c.bf16 %v742, %v53
  %749 = vst [vmem:[%s747] sm:$0xff] %v748
  %s750 = scalar_lea.vmem %s0, 260
  %v751 = vld [vmem:[%s750] sm:$0xf]
  %v752 = vunpack.c.l.bf16 %v751
  %v753 = vunpack.c.h.bf16 %v751
  %s754 = scalar_lea.vmem %s1, 3588
  %s756 = ssub.s32 0, 4
  %s757 = scalar_lea.vmem %s754, %s756
  %v758 = vpack.c.bf16 %v752, %v58
  %759 = vst [vmem:[%s757] sm:$0xff] %v758
  %s760 = scalar_lea.vmem %s0, 3076
  %v761 = vld [vmem:[%s760] sm:$0xf]
  %v762 = vunpack.c.l.bf16 %v761
  %v763 = vunpack.c.h.bf16 %v761
  %s764 = scalar_lea.vmem %s1, 772
  %s766 = ssub.s32 0, 4
  %s767 = scalar_lea.vmem %s764, %s766
  %v768 = vpack.c.bf16 %v762, %v63
  %769 = vst [vmem:[%s767] sm:$0xff] %v768
  %s770 = scalar_lea.vmem %s0, 2052
  %v771 = vld [vmem:[%s770] sm:$0xf]
  %v772 = vunpack.c.l.bf16 %v771
  %v773 = vunpack.c.h.bf16 %v771
  %s774 = scalar_lea.vmem %s1, 1796
  %s776 = ssub.s32 0, 4
  %s777 = scalar_lea.vmem %s774, %s776
  %v778 = vpack.c.bf16 %v772, %v68
  %779 = vst [vmem:[%s777] sm:$0xff] %v778
  %s780 = scalar_lea.vmem %s0, 1028
  %v781 = vld [vmem:[%s780] sm:$0xf]
  %v782 = vunpack.c.l.bf16 %v781
  %v783 = vunpack.c.h.bf16 %v781
  %s784 = scalar_lea.vmem %s1, 2820
  %s786 = ssub.s32 0, 4
  %s787 = scalar_lea.vmem %s784, %s786
  %v788 = vpack.c.bf16 %v782, %v73
  %789 = vst [vmem:[%s787] sm:$0xff] %v788
  %s790 = scalar_lea.vmem %s0, 4
  %v791 = vld [vmem:[%s790] sm:$0xf]
  %v792 = vunpack.c.l.bf16 %v791
  %v793 = vunpack.c.h.bf16 %v791
  %s794 = scalar_lea.vmem %s1, 3844
  %s796 = ssub.s32 0, 4
  %s797 = scalar_lea.vmem %s794, %s796
  %v798 = vpack.c.bf16 %v792, %v77
  %799 = vst [vmem:[%s797] sm:$0xff] %v798
  %s800 = scalar_lea.vmem %s0, 3876
  %v801 = vld [vmem:[%s800] sm:$0xf]
  %v802 = vunpack.c.l.bf16 %v801
  %v803 = vunpack.c.h.bf16 %v801
  %s804 = scalar_lea.vmem %s1, 36
  %s806 = ssub.s32 0, 4
  %s807 = scalar_lea.vmem %s804, %s806
  %v808 = vpack.c.bf16 %v802, %v82
  %809 = vst [vmem:[%s807] sm:$0xff] %v808
  %s810 = scalar_lea.vmem %s0, 2852
  %v811 = vld [vmem:[%s810] sm:$0xf]
  %v812 = vunpack.c.l.bf16 %v811
  %v813 = vunpack.c.h.bf16 %v811
  %s814 = scalar_lea.vmem %s1, 1060
  %s816 = ssub.s32 0, 4
  %s817 = scalar_lea.vmem %s814, %s816
  %v818 = vpack.c.bf16 %v812, %v87
  %819 = vst [vmem:[%s817] sm:$0xff] %v818
  %s820 = scalar_lea.vmem %s0, 1828
  %v821 = vld [vmem:[%s820] sm:$0xf]
  %v822 = vunpack.c.l.bf16 %v821
  %v823 = vunpack.c.h.bf16 %v821
  %s824 = scalar_lea.vmem %s1, 2084
  %s826 = ssub.s32 0, 4
  %s827 = scalar_lea.vmem %s824, %s826
  %v828 = vpack.c.bf16 %v822, %v92
  %829 = vst [vmem:[%s827] sm:$0xff] %v828
  %s830 = scalar_lea.vmem %s0, 804
  %v831 = vld [vmem:[%s830] sm:$0xf]
  %v832 = vunpack.c.l.bf16 %v831
  %v833 = vunpack.c.h.bf16 %v831
  %s834 = scalar_lea.vmem %s1, 3108
  %s836 = ssub.s32 0, 4
  %s837 = scalar_lea.vmem %s834, %s836
  %v838 = vpack.c.bf16 %v832, %v97
  %839 = vst [vmem:[%s837] sm:$0xff] %v838
  %s840 = scalar_lea.vmem %s0, 3620
  %v841 = vld [vmem:[%s840] sm:$0xf]
  %v842 = vunpack.c.l.bf16 %v841
  %v843 = vunpack.c.h.bf16 %v841
  %s844 = scalar_lea.vmem %s1, 292
  %s846 = ssub.s32 0, 4
  %s847 = scalar_lea.vmem %s844, %s846
  %v848 = vpack.c.bf16 %v842, %v102
  %849 = vst [vmem:[%s847] sm:$0xff] %v848
  %s850 = scalar_lea.vmem %s0, 2596
  %v851 = vld [vmem:[%s850] sm:$0xf]
  %v852 = vunpack.c.l.bf16 %v851
  %v853 = vunpack.c.h.bf16 %v851
  %s854 = scalar_lea.vmem %s1, 1316
  %s856 = ssub.s32 0, 4
  %s857 = scalar_lea.vmem %s854, %s856
  %v858 = vpack.c.bf16 %v852, %v107
  %859 = vst [vmem:[%s857] sm:$0xff] %v858
  %s860 = scalar_lea.vmem %s0, 1572
  %v861 = vld [vmem:[%s860] sm:$0xf]
  %v862 = vunpack.c.l.bf16 %v861
  %v863 = vunpack.c.h.bf16 %v861
  %s864 = scalar_lea.vmem %s1, 2340
  %s866 = ssub.s32 0, 4
  %s867 = scalar_lea.vmem %s864, %s866
  %v868 = vpack.c.bf16 %v862, %v112
  %869 = vst [vmem:[%s867] sm:$0xff] %v868
  %s870 = scalar_lea.vmem %s0, 548
  %v871 = vld [vmem:[%s870] sm:$0xf]
  %v872 = vunpack.c.l.bf16 %v871
  %v873 = vunpack.c.h.bf16 %v871
  %s874 = scalar_lea.vmem %s1, 3364
  %s876 = ssub.s32 0, 4
  %s877 = scalar_lea.vmem %s874, %s876
  %v878 = vpack.c.bf16 %v872, %v117
  %879 = vst [vmem:[%s877] sm:$0xff] %v878
  %s880 = scalar_lea.vmem %s0, 3364
  %v881 = vld [vmem:[%s880] sm:$0xf]
  %v882 = vunpack.c.l.bf16 %v881
  %v883 = vunpack.c.h.bf16 %v881
  %s884 = scalar_lea.vmem %s1, 548
  %s886 = ssub.s32 0, 4
  %s887 = scalar_lea.vmem %s884, %s886
  %v888 = vpack.c.bf16 %v882, %v122
  %889 = vst [vmem:[%s887] sm:$0xff] %v888
  %s890 = scalar_lea.vmem %s0, 2340
  %v891 = vld [vmem:[%s890] sm:$0xf]
  %v892 = vunpack.c.l.bf16 %v891
  %v893 = vunpack.c.h.bf16 %v891
  %s894 = scalar_lea.vmem %s1, 1572
  %s896 = ssub.s32 0, 4
  %s897 = scalar_lea.vmem %s894, %s896
  %v898 = vpack.c.bf16 %v892, %v127
  %899 = vst [vmem:[%s897] sm:$0xff] %v898
  %s900 = scalar_lea.vmem %s0, 1316
  %v901 = vld [vmem:[%s900] sm:$0xf]
  %v902 = vunpack.c.l.bf16 %v901
  %v903 = vunpack.c.h.bf16 %v901
  %s904 = scalar_lea.vmem %s1, 2596
  %s906 = ssub.s32 0, 4
  %s907 = scalar_lea.vmem %s904, %s906
  %v908 = vpack.c.bf16 %v902, %v132
  %909 = vst [vmem:[%s907] sm:$0xff] %v908
  %s910 = scalar_lea.vmem %s0, 292
  %v911 = vld [vmem:[%s910] sm:$0xf]
  %v912 = vunpack.c.l.bf16 %v911
  %v913 = vunpack.c.h.bf16 %v911
  %s914 = scalar_lea.vmem %s1, 3620
  %s916 = ssub.s32 0, 4
  %s917 = scalar_lea.vmem %s914, %s916
  %v918 = vpack.c.bf16 %v912, %v137
  %919 = vst [vmem:[%s917] sm:$0xff] %v918
  %s920 = scalar_lea.vmem %s0, 3108
  %v921 = vld [vmem:[%s920] sm:$0xf]
  %v922 = vunpack.c.l.bf16 %v921
  %v923 = vunpack.c.h.bf16 %v921
  %s924 = scalar_lea.vmem %s1, 804
  %s926 = ssub.s32 0, 4
  %s927 = scalar_lea.vmem %s924, %s926
  %v928 = vpack.c.bf16 %v922, %v142
  %929 = vst [vmem:[%s927] sm:$0xff] %v928
  %s930 = scalar_lea.vmem %s0, 2084
  %v931 = vld [vmem:[%s930] sm:$0xf]
  %v932 = vunpack.c.l.bf16 %v931
  %v933 = vunpack.c.h.bf16 %v931
  %s934 = scalar_lea.vmem %s1, 1828
  %s936 = ssub.s32 0, 4
  %s937 = scalar_lea.vmem %s934, %s936
  %v938 = vpack.c.bf16 %v932, %v147
  %939 = vst [vmem:[%s937] sm:$0xff] %v938
  %s940 = scalar_lea.vmem %s0, 1060
  %v941 = vld [vmem:[%s940] sm:$0xf]
  %v942 = vunpack.c.l.bf16 %v941
  %v943 = vunpack.c.h.bf16 %v941
  %s944 = scalar_lea.vmem %s1, 2852
  %s946 = ssub.s32 0, 4
  %s947 = scalar_lea.vmem %s944, %s946
  %v948 = vpack.c.bf16 %v942, %v152
  %949 = vst [vmem:[%s947] sm:$0xff] %v948
  %s950 = scalar_lea.vmem %s0, 36
  %v951 = vld [vmem:[%s950] sm:$0xf]
  %v952 = vunpack.c.l.bf16 %v951
  %v953 = vunpack.c.h.bf16 %v951
  %s954 = scalar_lea.vmem %s1, 3876
  %s956 = ssub.s32 0, 4
  %s957 = scalar_lea.vmem %s954, %s956
  %v958 = vpack.c.bf16 %v952, %v157
  %959 = vst [vmem:[%s957] sm:$0xff] %v958
  %s960 = scalar_lea.vmem %s0, 3908
  %v961 = vld [vmem:[%s960] sm:$0xf]
  %v962 = vunpack.c.l.bf16 %v961
  %v963 = vunpack.c.h.bf16 %v961
  %s964 = scalar_lea.vmem %s1, 68
  %s966 = ssub.s32 0, 4
  %s967 = scalar_lea.vmem %s964, %s966
  %v968 = vpack.c.bf16 %v962, %v162
  %969 = vst [vmem:[%s967] sm:$0xff] %v968
  %s970 = scalar_lea.vmem %s0, 2884
  %v971 = vld [vmem:[%s970] sm:$0xf]
  %v972 = vunpack.c.l.bf16 %v971
  %v973 = vunpack.c.h.bf16 %v971
  %s974 = scalar_lea.vmem %s1, 1092
  %s976 = ssub.s32 0, 4
  %s977 = scalar_lea.vmem %s974, %s976
  %v978 = vpack.c.bf16 %v972, %v167
  %979 = vst [vmem:[%s977] sm:$0xff] %v978
  %s980 = scalar_lea.vmem %s0, 1860
  %v981 = vld [vmem:[%s980] sm:$0xf]
  %v982 = vunpack.c.l.bf16 %v981
  %v983 = vunpack.c.h.bf16 %v981
  %s984 = scalar_lea.vmem %s1, 2116
  %s986 = ssub.s32 0, 4
  %s987 = scalar_lea.vmem %s984, %s986
  %v988 = vpack.c.bf16 %v982, %v172
  %989 = vst [vmem:[%s987] sm:$0xff] %v988
  %s990 = scalar_lea.vmem %s0, 836
  %v991 = vld [vmem:[%s990] sm:$0xf]
  %v992 = vunpack.c.l.bf16 %v991
  %v993 = vunpack.c.h.bf16 %v991
  %s994 = scalar_lea.vmem %s1, 3140
  %s996 = ssub.s32 0, 4
  %s997 = scalar_lea.vmem %s994, %s996
  %v998 = vpack.c.bf16 %v992, %v177
  %999 = vst [vmem:[%s997] sm:$0xff] %v998
  %s1000 = scalar_lea.vmem %s0, 3652
  %v1001 = vld [vmem:[%s1000] sm:$0xf]
  %v1002 = vunpack.c.l.bf16 %v1001
  %v1003 = vunpack.c.h.bf16 %v1001
  %s1004 = scalar_lea.vmem %s1, 324
  %s1006 = ssub.s32 0, 4
  %s1007 = scalar_lea.vmem %s1004, %s1006
  %v1008 = vpack.c.bf16 %v1002, %v182
  %1009 = vst [vmem:[%s1007] sm:$0xff] %v1008
  %s1010 = scalar_lea.vmem %s0, 2628
  %v1011 = vld [vmem:[%s1010] sm:$0xf]
  %v1012 = vunpack.c.l.bf16 %v1011
  %v1013 = vunpack.c.h.bf16 %v1011
  %s1014 = scalar_lea.vmem %s1, 1348
  %s1016 = ssub.s32 0, 4
  %s1017 = scalar_lea.vmem %s1014, %s1016
  %v1018 = vpack.c.bf16 %v1012, %v187
  %1019 = vst [vmem:[%s1017] sm:$0xff] %v1018
  %s1020 = scalar_lea.vmem %s0, 1604
  %v1021 = vld [vmem:[%s1020] sm:$0xf]
  %v1022 = vunpack.c.l.bf16 %v1021
  %v1023 = vunpack.c.h.bf16 %v1021
  %s1024 = scalar_lea.vmem %s1, 2372
  %s1026 = ssub.s32 0, 4
  %s1027 = scalar_lea.vmem %s1024, %s1026
  %v1028 = vpack.c.bf16 %v1022, %v192
  %1029 = vst [vmem:[%s1027] sm:$0xff] %v1028
  %s1030 = scalar_lea.vmem %s0, 580
  %v1031 = vld [vmem:[%s1030] sm:$0xf]
  %v1032 = vunpack.c.l.bf16 %v1031
  %v1033 = vunpack.c.h.bf16 %v1031
  %s1034 = scalar_lea.vmem %s1, 3396
  %s1036 = ssub.s32 0, 4
  %s1037 = scalar_lea.vmem %s1034, %s1036
  %v1038 = vpack.c.bf16 %v1032, %v197
  %1039 = vst [vmem:[%s1037] sm:$0xff] %v1038
  %s1040 = scalar_lea.vmem %s0, 3396
  %v1041 = vld [vmem:[%s1040] sm:$0xf]
  %v1042 = vunpack.c.l.bf16 %v1041
  %v1043 = vunpack.c.h.bf16 %v1041
  %s1044 = scalar_lea.vmem %s1, 580
  %s1046 = ssub.s32 0, 4
  %s1047 = scalar_lea.vmem %s1044, %s1046
  %v1048 = vpack.c.bf16 %v1042, %v202
  %1049 = vst [vmem:[%s1047] sm:$0xff] %v1048
  %s1050 = scalar_lea.vmem %s0, 2372
  %v1051 = vld [vmem:[%s1050] sm:$0xf]
  %v1052 = vunpack.c.l.bf16 %v1051
  %v1053 = vunpack.c.h.bf16 %v1051
  %s1054 = scalar_lea.vmem %s1, 1604
  %s1056 = ssub.s32 0, 4
  %s1057 = scalar_lea.vmem %s1054, %s1056
  %v1058 = vpack.c.bf16 %v1052, %v207
  %1059 = vst [vmem:[%s1057] sm:$0xff] %v1058
  %s1060 = scalar_lea.vmem %s0, 1348
  %v1061 = vld [vmem:[%s1060] sm:$0xf]
  %v1062 = vunpack.c.l.bf16 %v1061
  %v1063 = vunpack.c.h.bf16 %v1061
  %s1064 = scalar_lea.vmem %s1, 2628
  %s1066 = ssub.s32 0, 4
  %s1067 = scalar_lea.vmem %s1064, %s1066
  %v1068 = vpack.c.bf16 %v1062, %v212
  %1069 = vst [vmem:[%s1067] sm:$0xff] %v1068
  %s1070 = scalar_lea.vmem %s0, 324
  %v1071 = vld [vmem:[%s1070] sm:$0xf]
  %v1072 = vunpack.c.l.bf16 %v1071
  %v1073 = vunpack.c.h.bf16 %v1071
  %s1074 = scalar_lea.vmem %s1, 3652
  %s1076 = ssub.s32 0, 4
  %s1077 = scalar_lea.vmem %s1074, %s1076
  %v1078 = vpack.c.bf16 %v1072, %v217
  %1079 = vst [vmem:[%s1077] sm:$0xff] %v1078
  %s1080 = scalar_lea.vmem %s0, 3140
  %v1081 = vld [vmem:[%s1080] sm:$0xf]
  %v1082 = vunpack.c.l.bf16 %v1081
  %v1083 = vunpack.c.h.bf16 %v1081
  %s1084 = scalar_lea.vmem %s1, 836
  %s1086 = ssub.s32 0, 4
  %s1087 = scalar_lea.vmem %s1084, %s1086
  %v1088 = vpack.c.bf16 %v1082, %v222
  %1089 = vst [vmem:[%s1087] sm:$0xff] %v1088
  %s1090 = scalar_lea.vmem %s0, 2116
  %v1091 = vld [vmem:[%s1090] sm:$0xf]
  %v1092 = vunpack.c.l.bf16 %v1091
  %v1093 = vunpack.c.h.bf16 %v1091
  %s1094 = scalar_lea.vmem %s1, 1860
  %s1096 = ssub.s32 0, 4
  %s1097 = scalar_lea.vmem %s1094, %s1096
  %v1098 = vpack.c.bf16 %v1092, %v227
  %1099 = vst [vmem:[%s1097] sm:$0xff] %v1098
  %s1100 = scalar_lea.vmem %s0, 1092
  %v1101 = vld [vmem:[%s1100] sm:$0xf]
  %v1102 = vunpack.c.l.bf16 %v1101
  %v1103 = vunpack.c.h.bf16 %v1101
  %s1104 = scalar_lea.vmem %s1, 2884
  %s1106 = ssub.s32 0, 4
  %s1107 = scalar_lea.vmem %s1104, %s1106
  %v1108 = vpack.c.bf16 %v1102, %v232
  %1109 = vst [vmem:[%s1107] sm:$0xff] %v1108
  %s1110 = scalar_lea.vmem %s0, 68
  %v1111 = vld [vmem:[%s1110] sm:$0xf]
  %v1112 = vunpack.c.l.bf16 %v1111
  %v1113 = vunpack.c.h.bf16 %v1111
  %s1114 = scalar_lea.vmem %s1, 3908
  %s1116 = ssub.s32 0, 4
  %s1117 = scalar_lea.vmem %s1114, %s1116
  %v1118 = vpack.c.bf16 %v1112, %v237
  %1119 = vst [vmem:[%s1117] sm:$0xff] %v1118
  %s1120 = scalar_lea.vmem %s0, 3940
  %v1121 = vld [vmem:[%s1120] sm:$0xf]
  %v1122 = vunpack.c.l.bf16 %v1121
  %v1123 = vunpack.c.h.bf16 %v1121
  %s1124 = scalar_lea.vmem %s1, 100
  %s1126 = ssub.s32 0, 4
  %s1127 = scalar_lea.vmem %s1124, %s1126
  %v1128 = vpack.c.bf16 %v1122, %v242
  %1129 = vst [vmem:[%s1127] sm:$0xff] %v1128
  %s1130 = scalar_lea.vmem %s0, 2916
  %v1131 = vld [vmem:[%s1130] sm:$0xf]
  %v1132 = vunpack.c.l.bf16 %v1131
  %v1133 = vunpack.c.h.bf16 %v1131
  %s1134 = scalar_lea.vmem %s1, 1124
  %s1136 = ssub.s32 0, 4
  %s1137 = scalar_lea.vmem %s1134, %s1136
  %v1138 = vpack.c.bf16 %v1132, %v247
  %1139 = vst [vmem:[%s1137] sm:$0xff] %v1138
  %s1140 = scalar_lea.vmem %s0, 1892
  %v1141 = vld [vmem:[%s1140] sm:$0xf]
  %v1142 = vunpack.c.l.bf16 %v1141
  %v1143 = vunpack.c.h.bf16 %v1141
  %s1144 = scalar_lea.vmem %s1, 2148
  %s1146 = ssub.s32 0, 4
  %s1147 = scalar_lea.vmem %s1144, %s1146
  %v1148 = vpack.c.bf16 %v1142, %v252
  %1149 = vst [vmem:[%s1147] sm:$0xff] %v1148
  %s1150 = scalar_lea.vmem %s0, 868
  %v1151 = vld [vmem:[%s1150] sm:$0xf]
  %v1152 = vunpack.c.l.bf16 %v1151
  %v1153 = vunpack.c.h.bf16 %v1151
  %s1154 = scalar_lea.vmem %s1, 3172
  %s1156 = ssub.s32 0, 4
  %s1157 = scalar_lea.vmem %s1154, %s1156
  %v1158 = vpack.c.bf16 %v1152, %v257
  %1159 = vst [vmem:[%s1157] sm:$0xff] %v1158
  %s1160 = scalar_lea.vmem %s0, 3684
  %v1161 = vld [vmem:[%s1160] sm:$0xf]
  %v1162 = vunpack.c.l.bf16 %v1161
  %v1163 = vunpack.c.h.bf16 %v1161
  %s1164 = scalar_lea.vmem %s1, 356
  %s1166 = ssub.s32 0, 4
  %s1167 = scalar_lea.vmem %s1164, %s1166
  %v1168 = vpack.c.bf16 %v1162, %v262
  %1169 = vst [vmem:[%s1167] sm:$0xff] %v1168
  %s1170 = scalar_lea.vmem %s0, 2660
  %v1171 = vld [vmem:[%s1170] sm:$0xf]
  %v1172 = vunpack.c.l.bf16 %v1171
  %v1173 = vunpack.c.h.bf16 %v1171
  %s1174 = scalar_lea.vmem %s1, 1380
  %s1176 = ssub.s32 0, 4
  %s1177 = scalar_lea.vmem %s1174, %s1176
  %v1178 = vpack.c.bf16 %v1172, %v267
  %1179 = vst [vmem:[%s1177] sm:$0xff] %v1178
  %s1180 = scalar_lea.vmem %s0, 1636
  %v1181 = vld [vmem:[%s1180] sm:$0xf]
  %v1182 = vunpack.c.l.bf16 %v1181
  %v1183 = vunpack.c.h.bf16 %v1181
  %s1184 = scalar_lea.vmem %s1, 2404
  %s1186 = ssub.s32 0, 4
  %s1187 = scalar_lea.vmem %s1184, %s1186
  %v1188 = vpack.c.bf16 %v1182, %v272
  %1189 = vst [vmem:[%s1187] sm:$0xff] %v1188
  %s1190 = scalar_lea.vmem %s0, 612
  %v1191 = vld [vmem:[%s1190] sm:$0xf]
  %v1192 = vunpack.c.l.bf16 %v1191
  %v1193 = vunpack.c.h.bf16 %v1191
  %s1194 = scalar_lea.vmem %s1, 3428
  %s1196 = ssub.s32 0, 4
  %s1197 = scalar_lea.vmem %s1194, %s1196
  %v1198 = vpack.c.bf16 %v1192, %v277
  %1199 = vst [vmem:[%s1197] sm:$0xff] %v1198
  %s1200 = scalar_lea.vmem %s0, 3428
  %v1201 = vld [vmem:[%s1200] sm:$0xf]
  %v1202 = vunpack.c.l.bf16 %v1201
  %v1203 = vunpack.c.h.bf16 %v1201
  %s1204 = scalar_lea.vmem %s1, 612
  %s1206 = ssub.s32 0, 4
  %s1207 = scalar_lea.vmem %s1204, %s1206
  %v1208 = vpack.c.bf16 %v1202, %v282
  %1209 = vst [vmem:[%s1207] sm:$0xff] %v1208
  %s1210 = scalar_lea.vmem %s0, 2404
  %v1211 = vld [vmem:[%s1210] sm:$0xf]
  %v1212 = vunpack.c.l.bf16 %v1211
  %v1213 = vunpack.c.h.bf16 %v1211
  %s1214 = scalar_lea.vmem %s1, 1636
  %s1216 = ssub.s32 0, 4
  %s1217 = scalar_lea.vmem %s1214, %s1216
  %v1218 = vpack.c.bf16 %v1212, %v287
  %1219 = vst [vmem:[%s1217] sm:$0xff] %v1218
  %s1220 = scalar_lea.vmem %s0, 1380
  %v1221 = vld [vmem:[%s1220] sm:$0xf]
  %v1222 = vunpack.c.l.bf16 %v1221
  %v1223 = vunpack.c.h.bf16 %v1221
  %s1224 = scalar_lea.vmem %s1, 2660
  %s1226 = ssub.s32 0, 4
  %s1227 = scalar_lea.vmem %s1224, %s1226
  %v1228 = vpack.c.bf16 %v1222, %v292
  %1229 = vst [vmem:[%s1227] sm:$0xff] %v1228
  %s1230 = scalar_lea.vmem %s0, 356
  %v1231 = vld [vmem:[%s1230] sm:$0xf]
  %v1232 = vunpack.c.l.bf16 %v1231
  %v1233 = vunpack.c.h.bf16 %v1231
  %s1234 = scalar_lea.vmem %s1, 3684
  %s1236 = ssub.s32 0, 4
  %s1237 = scalar_lea.vmem %s1234, %s1236
  %v1238 = vpack.c.bf16 %v1232, %v297
  %1239 = vst [vmem:[%s1237] sm:$0xff] %v1238
  %s1240 = scalar_lea.vmem %s0, 3172
  %v1241 = vld [vmem:[%s1240] sm:$0xf]
  %v1242 = vunpack.c.l.bf16 %v1241
  %v1243 = vunpack.c.h.bf16 %v1241
  %s1244 = scalar_lea.vmem %s1, 868
  %s1246 = ssub.s32 0, 4
  %s1247 = scalar_lea.vmem %s1244, %s1246
  %v1248 = vpack.c.bf16 %v1242, %v302
  %1249 = vst [vmem:[%s1247] sm:$0xff] %v1248
  %s1250 = scalar_lea.vmem %s0, 2148
  %v1251 = vld [vmem:[%s1250] sm:$0xf]
  %v1252 = vunpack.c.l.bf16 %v1251
  %v1253 = vunpack.c.h.bf16 %v1251
  %s1254 = scalar_lea.vmem %s1, 1892
  %s1256 = ssub.s32 0, 4
  %s1257 = scalar_lea.vmem %s1254, %s1256
  %v1258 = vpack.c.bf16 %v1252, %v307
  %1259 = vst [vmem:[%s1257] sm:$0xff] %v1258
  %s1260 = scalar_lea.vmem %s0, 1124
  %v1261 = vld [vmem:[%s1260] sm:$0xf]
  %v1262 = vunpack.c.l.bf16 %v1261
  %v1263 = vunpack.c.h.bf16 %v1261
  %s1264 = scalar_lea.vmem %s1, 2916
  %s1266 = ssub.s32 0, 4
  %s1267 = scalar_lea.vmem %s1264, %s1266
  %v1268 = vpack.c.bf16 %v1262, %v312
  %1269 = vst [vmem:[%s1267] sm:$0xff] %v1268
  %s1270 = scalar_lea.vmem %s0, 100
  %v1271 = vld [vmem:[%s1270] sm:$0xf]
  %v1272 = vunpack.c.l.bf16 %v1271
  %v1273 = vunpack.c.h.bf16 %v1271
  %s1274 = scalar_lea.vmem %s1, 3940
  %s1276 = ssub.s32 0, 4
  %s1277 = scalar_lea.vmem %s1274, %s1276
  %v1278 = vpack.c.bf16 %v1272, %v317
  %1279 = vst [vmem:[%s1277] sm:$0xff] %v1278
  %s1280 = scalar_lea.vmem %s0, 3972
  %v1281 = vld [vmem:[%s1280] sm:$0xf]
  %v1282 = vunpack.c.l.bf16 %v1281
  %v1283 = vunpack.c.h.bf16 %v1281
  %s1284 = scalar_lea.vmem %s1, 132
  %s1286 = ssub.s32 0, 4
  %s1287 = scalar_lea.vmem %s1284, %s1286
  %v1288 = vpack.c.bf16 %v1282, %v322
  %1289 = vst [vmem:[%s1287] sm:$0xff] %v1288
  %s1290 = scalar_lea.vmem %s0, 2948
  %v1291 = vld [vmem:[%s1290] sm:$0xf]
  %v1292 = vunpack.c.l.bf16 %v1291
  %v1293 = vunpack.c.h.bf16 %v1291
  %s1294 = scalar_lea.vmem %s1, 1156
  %s1296 = ssub.s32 0, 4
  %s1297 = scalar_lea.vmem %s1294, %s1296
  %v1298 = vpack.c.bf16 %v1292, %v327
  %1299 = vst [vmem:[%s1297] sm:$0xff] %v1298
  %s1300 = scalar_lea.vmem %s0, 1924
  %v1301 = vld [vmem:[%s1300] sm:$0xf]
  %v1302 = vunpack.c.l.bf16 %v1301
  %v1303 = vunpack.c.h.bf16 %v1301
  %s1304 = scalar_lea.vmem %s1, 2180
  %s1306 = ssub.s32 0, 4
  %s1307 = scalar_lea.vmem %s1304, %s1306
  %v1308 = vpack.c.bf16 %v1302, %v332
  %1309 = vst [vmem:[%s1307] sm:$0xff] %v1308
  %s1310 = scalar_lea.vmem %s0, 900
  %v1311 = vld [vmem:[%s1310] sm:$0xf]
  %v1312 = vunpack.c.l.bf16 %v1311
  %v1313 = vunpack.c.h.bf16 %v1311
  %s1314 = scalar_lea.vmem %s1, 3204
  %s1316 = ssub.s32 0, 4
  %s1317 = scalar_lea.vmem %s1314, %s1316
  %v1318 = vpack.c.bf16 %v1312, %v337
  %1319 = vst [vmem:[%s1317] sm:$0xff] %v1318
  %s1320 = scalar_lea.vmem %s0, 3716
  %v1321 = vld [vmem:[%s1320] sm:$0xf]
  %v1322 = vunpack.c.l.bf16 %v1321
  %v1323 = vunpack.c.h.bf16 %v1321
  %s1324 = scalar_lea.vmem %s1, 388
  %s1326 = ssub.s32 0, 4
  %s1327 = scalar_lea.vmem %s1324, %s1326
  %v1328 = vpack.c.bf16 %v1322, %v342
  %1329 = vst [vmem:[%s1327] sm:$0xff] %v1328
  %s1330 = scalar_lea.vmem %s0, 2692
  %v1331 = vld [vmem:[%s1330] sm:$0xf]
  %v1332 = vunpack.c.l.bf16 %v1331
  %v1333 = vunpack.c.h.bf16 %v1331
  %s1334 = scalar_lea.vmem %s1, 1412
  %s1336 = ssub.s32 0, 4
  %s1337 = scalar_lea.vmem %s1334, %s1336
  %v1338 = vpack.c.bf16 %v1332, %v347
  %1339 = vst [vmem:[%s1337] sm:$0xff] %v1338
  %s1340 = scalar_lea.vmem %s0, 1668
  %v1341 = vld [vmem:[%s1340] sm:$0xf]
  %v1342 = vunpack.c.l.bf16 %v1341
  %v1343 = vunpack.c.h.bf16 %v1341
  %s1344 = scalar_lea.vmem %s1, 2436
  %s1346 = ssub.s32 0, 4
  %s1347 = scalar_lea.vmem %s1344, %s1346
  %v1348 = vpack.c.bf16 %v1342, %v352
  %1349 = vst [vmem:[%s1347] sm:$0xff] %v1348
  %s1350 = scalar_lea.vmem %s0, 644
  %v1351 = vld [vmem:[%s1350] sm:$0xf]
  %v1352 = vunpack.c.l.bf16 %v1351
  %v1353 = vunpack.c.h.bf16 %v1351
  %s1354 = scalar_lea.vmem %s1, 3460
  %s1356 = ssub.s32 0, 4
  %s1357 = scalar_lea.vmem %s1354, %s1356
  %v1358 = vpack.c.bf16 %v1352, %v357
  %1359 = vst [vmem:[%s1357] sm:$0xff] %v1358
  %s1360 = scalar_lea.vmem %s0, 3460
  %v1361 = vld [vmem:[%s1360] sm:$0xf]
  %v1362 = vunpack.c.l.bf16 %v1361
  %v1363 = vunpack.c.h.bf16 %v1361
  %s1364 = scalar_lea.vmem %s1, 644
  %s1366 = ssub.s32 0, 4
  %s1367 = scalar_lea.vmem %s1364, %s1366
  %v1368 = vpack.c.bf16 %v1362, %v362
  %1369 = vst [vmem:[%s1367] sm:$0xff] %v1368
  %s1370 = scalar_lea.vmem %s0, 2436
  %v1371 = vld [vmem:[%s1370] sm:$0xf]
  %v1372 = vunpack.c.l.bf16 %v1371
  %v1373 = vunpack.c.h.bf16 %v1371
  %s1374 = scalar_lea.vmem %s1, 1668
  %s1376 = ssub.s32 0, 4
  %s1377 = scalar_lea.vmem %s1374, %s1376
  %v1378 = vpack.c.bf16 %v1372, %v367
  %1379 = vst [vmem:[%s1377] sm:$0xff] %v1378
  %s1380 = scalar_lea.vmem %s0, 1412
  %v1381 = vld [vmem:[%s1380] sm:$0xf]
  %v1382 = vunpack.c.l.bf16 %v1381
  %v1383 = vunpack.c.h.bf16 %v1381
  %s1384 = scalar_lea.vmem %s1, 2692
  %s1386 = ssub.s32 0, 4
  %s1387 = scalar_lea.vmem %s1384, %s1386
  %v1388 = vpack.c.bf16 %v1382, %v372
  %1389 = vst [vmem:[%s1387] sm:$0xff] %v1388
  %s1390 = scalar_lea.vmem %s0, 388
  %v1391 = vld [vmem:[%s1390] sm:$0xf]
  %v1392 = vunpack.c.l.bf16 %v1391
  %v1393 = vunpack.c.h.bf16 %v1391
  %s1394 = scalar_lea.vmem %s1, 3716
  %s1396 = ssub.s32 0, 4
  %s1397 = scalar_lea.vmem %s1394, %s1396
  %v1398 = vpack.c.bf16 %v1392, %v377
  %1399 = vst [vmem:[%s1397] sm:$0xff] %v1398
  %s1400 = scalar_lea.vmem %s0, 3204
  %v1401 = vld [vmem:[%s1400] sm:$0xf]
  %v1402 = vunpack.c.l.bf16 %v1401
  %v1403 = vunpack.c.h.bf16 %v1401
  %s1404 = scalar_lea.vmem %s1, 900
  %s1406 = ssub.s32 0, 4
  %s1407 = scalar_lea.vmem %s1404, %s1406
  %v1408 = vpack.c.bf16 %v1402, %v382
  %1409 = vst [vmem:[%s1407] sm:$0xff] %v1408
  %s1410 = scalar_lea.vmem %s0, 2180
  %v1411 = vld [vmem:[%s1410] sm:$0xf]
  %v1412 = vunpack.c.l.bf16 %v1411
  %v1413 = vunpack.c.h.bf16 %v1411
  %s1414 = scalar_lea.vmem %s1, 1924
  %s1416 = ssub.s32 0, 4
  %s1417 = scalar_lea.vmem %s1414, %s1416
  %v1418 = vpack.c.bf16 %v1412, %v387
  %1419 = vst [vmem:[%s1417] sm:$0xff] %v1418
  %s1420 = scalar_lea.vmem %s0, 1156
  %v1421 = vld [vmem:[%s1420] sm:$0xf]
  %v1422 = vunpack.c.l.bf16 %v1421
  %v1423 = vunpack.c.h.bf16 %v1421
  %s1424 = scalar_lea.vmem %s1, 2948
  %s1426 = ssub.s32 0, 4
  %s1427 = scalar_lea.vmem %s1424, %s1426
  %v1428 = vpack.c.bf16 %v1422, %v392
  %1429 = vst [vmem:[%s1427] sm:$0xff] %v1428
  %s1430 = scalar_lea.vmem %s0, 132
  %v1431 = vld [vmem:[%s1430] sm:$0xf]
  %v1432 = vunpack.c.l.bf16 %v1431
  %v1433 = vunpack.c.h.bf16 %v1431
  %s1434 = scalar_lea.vmem %s1, 3972
  %s1436 = ssub.s32 0, 4
  %s1437 = scalar_lea.vmem %s1434, %s1436
  %v1438 = vpack.c.bf16 %v1432, %v397
  %1439 = vst [vmem:[%s1437] sm:$0xff] %v1438
  %s1440 = scalar_lea.vmem %s0, 4004
  %v1441 = vld [vmem:[%s1440] sm:$0xf]
  %v1442 = vunpack.c.l.bf16 %v1441
  %v1443 = vunpack.c.h.bf16 %v1441
  %s1444 = scalar_lea.vmem %s1, 164
  %s1446 = ssub.s32 0, 4
  %s1447 = scalar_lea.vmem %s1444, %s1446
  %v1448 = vpack.c.bf16 %v1442, %v402
  %1449 = vst [vmem:[%s1447] sm:$0xff] %v1448
  %s1450 = scalar_lea.vmem %s0, 2980
  %v1451 = vld [vmem:[%s1450] sm:$0xf]
  %v1452 = vunpack.c.l.bf16 %v1451
  %v1453 = vunpack.c.h.bf16 %v1451
  %s1454 = scalar_lea.vmem %s1, 1188
  %s1456 = ssub.s32 0, 4
  %s1457 = scalar_lea.vmem %s1454, %s1456
  %v1458 = vpack.c.bf16 %v1452, %v407
  %1459 = vst [vmem:[%s1457] sm:$0xff] %v1458
  %s1460 = scalar_lea.vmem %s0, 1956
  %v1461 = vld [vmem:[%s1460] sm:$0xf]
  %v1462 = vunpack.c.l.bf16 %v1461
  %v1463 = vunpack.c.h.bf16 %v1461
  %s1464 = scalar_lea.vmem %s1, 2212
  %s1466 = ssub.s32 0, 4
  %s1467 = scalar_lea.vmem %s1464, %s1466
  %v1468 = vpack.c.bf16 %v1462, %v412
  %1469 = vst [vmem:[%s1467] sm:$0xff] %v1468
  %s1470 = scalar_lea.vmem %s0, 932
  %v1471 = vld [vmem:[%s1470] sm:$0xf]
  %v1472 = vunpack.c.l.bf16 %v1471
  %v1473 = vunpack.c.h.bf16 %v1471
  %s1474 = scalar_lea.vmem %s1, 3236
  %s1476 = ssub.s32 0, 4
  %s1477 = scalar_lea.vmem %s1474, %s1476
  %v1478 = vpack.c.bf16 %v1472, %v417
  %1479 = vst [vmem:[%s1477] sm:$0xff] %v1478
  %s1480 = scalar_lea.vmem %s0, 3748
  %v1481 = vld [vmem:[%s1480] sm:$0xf]
  %v1482 = vunpack.c.l.bf16 %v1481
  %v1483 = vunpack.c.h.bf16 %v1481
  %s1484 = scalar_lea.vmem %s1, 420
  %s1486 = ssub.s32 0, 4
  %s1487 = scalar_lea.vmem %s1484, %s1486
  %v1488 = vpack.c.bf16 %v1482, %v422
  %1489 = vst [vmem:[%s1487] sm:$0xff] %v1488
  %s1490 = scalar_lea.vmem %s0, 2724
  %v1491 = vld [vmem:[%s1490] sm:$0xf]
  %v1492 = vunpack.c.l.bf16 %v1491
  %v1493 = vunpack.c.h.bf16 %v1491
  %s1494 = scalar_lea.vmem %s1, 1444
  %s1496 = ssub.s32 0, 4
  %s1497 = scalar_lea.vmem %s1494, %s1496
  %v1498 = vpack.c.bf16 %v1492, %v427
  %1499 = vst [vmem:[%s1497] sm:$0xff] %v1498
  %s1500 = scalar_lea.vmem %s0, 1700
  %v1501 = vld [vmem:[%s1500] sm:$0xf]
  %v1502 = vunpack.c.l.bf16 %v1501
  %v1503 = vunpack.c.h.bf16 %v1501
  %s1504 = scalar_lea.vmem %s1, 2468
  %s1506 = ssub.s32 0, 4
  %s1507 = scalar_lea.vmem %s1504, %s1506
  %v1508 = vpack.c.bf16 %v1502, %v432
  %1509 = vst [vmem:[%s1507] sm:$0xff] %v1508
  %s1510 = scalar_lea.vmem %s0, 676
  %v1511 = vld [vmem:[%s1510] sm:$0xf]
  %v1512 = vunpack.c.l.bf16 %v1511
  %v1513 = vunpack.c.h.bf16 %v1511
  %s1514 = scalar_lea.vmem %s1, 3492
  %s1516 = ssub.s32 0, 4
  %s1517 = scalar_lea.vmem %s1514, %s1516
  %v1518 = vpack.c.bf16 %v1512, %v437
  %1519 = vst [vmem:[%s1517] sm:$0xff] %v1518
  %s1520 = scalar_lea.vmem %s0, 3492
  %v1521 = vld [vmem:[%s1520] sm:$0xf]
  %v1522 = vunpack.c.l.bf16 %v1521
  %v1523 = vunpack.c.h.bf16 %v1521
  %s1524 = scalar_lea.vmem %s1, 676
  %s1526 = ssub.s32 0, 4
  %s1527 = scalar_lea.vmem %s1524, %s1526
  %v1528 = vpack.c.bf16 %v1522, %v442
  %1529 = vst [vmem:[%s1527] sm:$0xff] %v1528
  %s1530 = scalar_lea.vmem %s0, 2468
  %v1531 = vld [vmem:[%s1530] sm:$0xf]
  %v1532 = vunpack.c.l.bf16 %v1531
  %v1533 = vunpack.c.h.bf16 %v1531
  %s1534 = scalar_lea.vmem %s1, 1700
  %s1536 = ssub.s32 0, 4
  %s1537 = scalar_lea.vmem %s1534, %s1536
  %v1538 = vpack.c.bf16 %v1532, %v447
  %1539 = vst [vmem:[%s1537] sm:$0xff] %v1538
  %s1540 = scalar_lea.vmem %s0, 1444
  %v1541 = vld [vmem:[%s1540] sm:$0xf]
  %v1542 = vunpack.c.l.bf16 %v1541
  %v1543 = vunpack.c.h.bf16 %v1541
  %s1544 = scalar_lea.vmem %s1, 2724
  %s1546 = ssub.s32 0, 4
  %s1547 = scalar_lea.vmem %s1544, %s1546
  %v1548 = vpack.c.bf16 %v1542, %v452
  %1549 = vst [vmem:[%s1547] sm:$0xff] %v1548
  %s1550 = scalar_lea.vmem %s0, 420
  %v1551 = vld [vmem:[%s1550] sm:$0xf]
  %v1552 = vunpack.c.l.bf16 %v1551
  %v1553 = vunpack.c.h.bf16 %v1551
  %s1554 = scalar_lea.vmem %s1, 3748
  %s1556 = ssub.s32 0, 4
  %s1557 = scalar_lea.vmem %s1554, %s1556
  %v1558 = vpack.c.bf16 %v1552, %v457
  %1559 = vst [vmem:[%s1557] sm:$0xff] %v1558
  %s1560 = scalar_lea.vmem %s0, 3236
  %v1561 = vld [vmem:[%s1560] sm:$0xf]
  %v1562 = vunpack.c.l.bf16 %v1561
  %v1563 = vunpack.c.h.bf16 %v1561
  %s1564 = scalar_lea.vmem %s1, 932
  %s1566 = ssub.s32 0, 4
  %s1567 = scalar_lea.vmem %s1564, %s1566
  %v1568 = vpack.c.bf16 %v1562, %v462
  %1569 = vst [vmem:[%s1567] sm:$0xff] %v1568
  %s1570 = scalar_lea.vmem %s0, 2212
  %v1571 = vld [vmem:[%s1570] sm:$0xf]
  %v1572 = vunpack.c.l.bf16 %v1571
  %v1573 = vunpack.c.h.bf16 %v1571
  %s1574 = scalar_lea.vmem %s1, 1956
  %s1576 = ssub.s32 0, 4
  %s1577 = scalar_lea.vmem %s1574, %s1576
  %v1578 = vpack.c.bf16 %v1572, %v467
  %1579 = vst [vmem:[%s1577] sm:$0xff] %v1578
  %s1580 = scalar_lea.vmem %s0, 1188
  %v1581 = vld [vmem:[%s1580] sm:$0xf]
  %v1582 = vunpack.c.l.bf16 %v1581
  %v1583 = vunpack.c.h.bf16 %v1581
  %s1584 = scalar_lea.vmem %s1, 2980
  %s1586 = ssub.s32 0, 4
  %s1587 = scalar_lea.vmem %s1584, %s1586
  %v1588 = vpack.c.bf16 %v1582, %v472
  %1589 = vst [vmem:[%s1587] sm:$0xff] %v1588
  %s1590 = scalar_lea.vmem %s0, 164
  %v1591 = vld [vmem:[%s1590] sm:$0xf]
  %v1592 = vunpack.c.l.bf16 %v1591
  %v1593 = vunpack.c.h.bf16 %v1591
  %s1594 = scalar_lea.vmem %s1, 4004
  %s1596 = ssub.s32 0, 4
  %s1597 = scalar_lea.vmem %s1594, %s1596
  %v1598 = vpack.c.bf16 %v1592, %v477
  %1599 = vst [vmem:[%s1597] sm:$0xff] %v1598
  %s1600 = scalar_lea.vmem %s0, 4036
  %v1601 = vld [vmem:[%s1600] sm:$0xf]
  %v1602 = vunpack.c.l.bf16 %v1601
  %v1603 = vunpack.c.h.bf16 %v1601
  %s1604 = scalar_lea.vmem %s1, 196
  %s1606 = ssub.s32 0, 4
  %s1607 = scalar_lea.vmem %s1604, %s1606
  %v1608 = vpack.c.bf16 %v1602, %v482
  %1609 = vst [vmem:[%s1607] sm:$0xff] %v1608
  %s1610 = scalar_lea.vmem %s0, 3012
  %v1611 = vld [vmem:[%s1610] sm:$0xf]
  %v1612 = vunpack.c.l.bf16 %v1611
  %v1613 = vunpack.c.h.bf16 %v1611
  %s1614 = scalar_lea.vmem %s1, 1220
  %s1616 = ssub.s32 0, 4
  %s1617 = scalar_lea.vmem %s1614, %s1616
  %v1618 = vpack.c.bf16 %v1612, %v487
  %1619 = vst [vmem:[%s1617] sm:$0xff] %v1618
  %s1620 = scalar_lea.vmem %s0, 1988
  %v1621 = vld [vmem:[%s1620] sm:$0xf]
  %v1622 = vunpack.c.l.bf16 %v1621
  %v1623 = vunpack.c.h.bf16 %v1621
  %s1624 = scalar_lea.vmem %s1, 2244
  %s1626 = ssub.s32 0, 4
  %s1627 = scalar_lea.vmem %s1624, %s1626
  %v1628 = vpack.c.bf16 %v1622, %v492
  %1629 = vst [vmem:[%s1627] sm:$0xff] %v1628
  %s1630 = scalar_lea.vmem %s0, 964
  %v1631 = vld [vmem:[%s1630] sm:$0xf]
  %v1632 = vunpack.c.l.bf16 %v1631
  %v1633 = vunpack.c.h.bf16 %v1631
  %s1634 = scalar_lea.vmem %s1, 3268
  %s1636 = ssub.s32 0, 4
  %s1637 = scalar_lea.vmem %s1634, %s1636
  %v1638 = vpack.c.bf16 %v1632, %v497
  %1639 = vst [vmem:[%s1637] sm:$0xff] %v1638
  %s1640 = scalar_lea.vmem %s0, 3780
  %v1641 = vld [vmem:[%s1640] sm:$0xf]
  %v1642 = vunpack.c.l.bf16 %v1641
  %v1643 = vunpack.c.h.bf16 %v1641
  %s1644 = scalar_lea.vmem %s1, 452
  %s1646 = ssub.s32 0, 4
  %s1647 = scalar_lea.vmem %s1644, %s1646
  %v1648 = vpack.c.bf16 %v1642, %v502
  %1649 = vst [vmem:[%s1647] sm:$0xff] %v1648
  %s1650 = scalar_lea.vmem %s0, 2756
  %v1651 = vld [vmem:[%s1650] sm:$0xf]
  %v1652 = vunpack.c.l.bf16 %v1651
  %v1653 = vunpack.c.h.bf16 %v1651
  %s1654 = scalar_lea.vmem %s1, 1476
  %s1656 = ssub.s32 0, 4
  %s1657 = scalar_lea.vmem %s1654, %s1656
  %v1658 = vpack.c.bf16 %v1652, %v507
  %1659 = vst [vmem:[%s1657] sm:$0xff] %v1658
  %s1660 = scalar_lea.vmem %s0, 1732
  %v1661 = vld [vmem:[%s1660] sm:$0xf]
  %v1662 = vunpack.c.l.bf16 %v1661
  %v1663 = vunpack.c.h.bf16 %v1661
  %s1664 = scalar_lea.vmem %s1, 2500
  %s1666 = ssub.s32 0, 4
  %s1667 = scalar_lea.vmem %s1664, %s1666
  %v1668 = vpack.c.bf16 %v1662, %v512
  %1669 = vst [vmem:[%s1667] sm:$0xff] %v1668
  %s1670 = scalar_lea.vmem %s0, 708
  %v1671 = vld [vmem:[%s1670] sm:$0xf]
  %v1672 = vunpack.c.l.bf16 %v1671
  %v1673 = vunpack.c.h.bf16 %v1671
  %s1674 = scalar_lea.vmem %s1, 3524
  %s1676 = ssub.s32 0, 4
  %s1677 = scalar_lea.vmem %s1674, %s1676
  %v1678 = vpack.c.bf16 %v1672, %v517
  %1679 = vst [vmem:[%s1677] sm:$0xff] %v1678
  %s1680 = scalar_lea.vmem %s0, 3524
  %v1681 = vld [vmem:[%s1680] sm:$0xf]
  %v1682 = vunpack.c.l.bf16 %v1681
  %v1683 = vunpack.c.h.bf16 %v1681
  %s1684 = scalar_lea.vmem %s1, 708
  %s1686 = ssub.s32 0, 4
  %s1687 = scalar_lea.vmem %s1684, %s1686
  %v1688 = vpack.c.bf16 %v1682, %v522
  %1689 = vst [vmem:[%s1687] sm:$0xff] %v1688
  %s1690 = scalar_lea.vmem %s0, 2500
  %v1691 = vld [vmem:[%s1690] sm:$0xf]
  %v1692 = vunpack.c.l.bf16 %v1691
  %v1693 = vunpack.c.h.bf16 %v1691
  %s1694 = scalar_lea.vmem %s1, 1732
  %s1696 = ssub.s32 0, 4
  %s1697 = scalar_lea.vmem %s1694, %s1696
  %v1698 = vpack.c.bf16 %v1692, %v527
  %1699 = vst [vmem:[%s1697] sm:$0xff] %v1698
  %s1700 = scalar_lea.vmem %s0, 1476
  %v1701 = vld [vmem:[%s1700] sm:$0xf]
  %v1702 = vunpack.c.l.bf16 %v1701
  %v1703 = vunpack.c.h.bf16 %v1701
  %s1704 = scalar_lea.vmem %s1, 2756
  %s1706 = ssub.s32 0, 4
  %s1707 = scalar_lea.vmem %s1704, %s1706
  %v1708 = vpack.c.bf16 %v1702, %v532
  %1709 = vst [vmem:[%s1707] sm:$0xff] %v1708
  %s1710 = scalar_lea.vmem %s0, 452
  %v1711 = vld [vmem:[%s1710] sm:$0xf]
  %v1712 = vunpack.c.l.bf16 %v1711
  %v1713 = vunpack.c.h.bf16 %v1711
  %s1714 = scalar_lea.vmem %s1, 3780
  %s1716 = ssub.s32 0, 4
  %s1717 = scalar_lea.vmem %s1714, %s1716
  %v1718 = vpack.c.bf16 %v1712, %v537
  %1719 = vst [vmem:[%s1717] sm:$0xff] %v1718
  %s1720 = scalar_lea.vmem %s0, 3268
  %v1721 = vld [vmem:[%s1720] sm:$0xf]
  %v1722 = vunpack.c.l.bf16 %v1721
  %v1723 = vunpack.c.h.bf16 %v1721
  %s1724 = scalar_lea.vmem %s1, 964
  %s1726 = ssub.s32 0, 4
  %s1727 = scalar_lea.vmem %s1724, %s1726
  %v1728 = vpack.c.bf16 %v1722, %v542
  %1729 = vst [vmem:[%s1727] sm:$0xff] %v1728
  %s1730 = scalar_lea.vmem %s0, 2244
  %v1731 = vld [vmem:[%s1730] sm:$0xf]
  %v1732 = vunpack.c.l.bf16 %v1731
  %v1733 = vunpack.c.h.bf16 %v1731
  %s1734 = scalar_lea.vmem %s1, 1988
  %s1736 = ssub.s32 0, 4
  %s1737 = scalar_lea.vmem %s1734, %s1736
  %v1738 = vpack.c.bf16 %v1732, %v547
  %1739 = vst [vmem:[%s1737] sm:$0xff] %v1738
  %s1740 = scalar_lea.vmem %s0, 1220
  %v1741 = vld [vmem:[%s1740] sm:$0xf]
  %v1742 = vunpack.c.l.bf16 %v1741
  %v1743 = vunpack.c.h.bf16 %v1741
  %s1744 = scalar_lea.vmem %s1, 3012
  %s1746 = ssub.s32 0, 4
  %s1747 = scalar_lea.vmem %s1744, %s1746
  %v1748 = vpack.c.bf16 %v1742, %v552
  %1749 = vst [vmem:[%s1747] sm:$0xff] %v1748
  %s1750 = scalar_lea.vmem %s0, 196
  %v1751 = vld [vmem:[%s1750] sm:$0xf]
  %v1752 = vunpack.c.l.bf16 %v1751
  %v1753 = vunpack.c.h.bf16 %v1751
  %s1754 = scalar_lea.vmem %s1, 4036
  %s1756 = ssub.s32 0, 4
  %s1757 = scalar_lea.vmem %s1754, %s1756
  %v1758 = vpack.c.bf16 %v1752, %v557
  %1759 = vst [vmem:[%s1757] sm:$0xff] %v1758
  %s1760 = scalar_lea.vmem %s0, 4068
  %v1761 = vld [vmem:[%s1760] sm:$0xf]
  %v1762 = vunpack.c.l.bf16 %v1761
  %v1763 = vunpack.c.h.bf16 %v1761
  %s1764 = scalar_lea.vmem %s1, 228
  %s1766 = ssub.s32 0, 4
  %s1767 = scalar_lea.vmem %s1764, %s1766
  %v1768 = vpack.c.bf16 %v1762, %v562
  %1769 = vst [vmem:[%s1767] sm:$0xff] %v1768
  %s1770 = scalar_lea.vmem %s0, 3044
  %v1771 = vld [vmem:[%s1770] sm:$0xf]
  %v1772 = vunpack.c.l.bf16 %v1771
  %v1773 = vunpack.c.h.bf16 %v1771
  %s1774 = scalar_lea.vmem %s1, 1252
  %s1776 = ssub.s32 0, 4
  %s1777 = scalar_lea.vmem %s1774, %s1776
  %v1778 = vpack.c.bf16 %v1772, %v567
  %1779 = vst [vmem:[%s1777] sm:$0xff] %v1778
  %s1780 = scalar_lea.vmem %s0, 2020
  %v1781 = vld [vmem:[%s1780] sm:$0xf]
  %v1782 = vunpack.c.l.bf16 %v1781
  %v1783 = vunpack.c.h.bf16 %v1781
  %s1784 = scalar_lea.vmem %s1, 2276
  %s1786 = ssub.s32 0, 4
  %s1787 = scalar_lea.vmem %s1784, %s1786
  %v1788 = vpack.c.bf16 %v1782, %v572
  %1789 = vst [vmem:[%s1787] sm:$0xff] %v1788
  %s1790 = scalar_lea.vmem %s0, 996
  %v1791 = vld [vmem:[%s1790] sm:$0xf]
  %v1792 = vunpack.c.l.bf16 %v1791
  %v1793 = vunpack.c.h.bf16 %v1791
  %s1794 = scalar_lea.vmem %s1, 3300
  %s1796 = ssub.s32 0, 4
  %s1797 = scalar_lea.vmem %s1794, %s1796
  %v1798 = vpack.c.bf16 %v1792, %v577
  %1799 = vst [vmem:[%s1797] sm:$0xff] %v1798
  %s1800 = scalar_lea.vmem %s0, 3812
  %v1801 = vld [vmem:[%s1800] sm:$0xf]
  %v1802 = vunpack.c.l.bf16 %v1801
  %v1803 = vunpack.c.h.bf16 %v1801
  %s1804 = scalar_lea.vmem %s1, 484
  %s1806 = ssub.s32 0, 4
  %s1807 = scalar_lea.vmem %s1804, %s1806
  %v1808 = vpack.c.bf16 %v1802, %v582
  %1809 = vst [vmem:[%s1807] sm:$0xff] %v1808
  %s1810 = scalar_lea.vmem %s0, 2788
  %v1811 = vld [vmem:[%s1810] sm:$0xf]
  %v1812 = vunpack.c.l.bf16 %v1811
  %v1813 = vunpack.c.h.bf16 %v1811
  %s1814 = scalar_lea.vmem %s1, 1508
  %s1816 = ssub.s32 0, 4
  %s1817 = scalar_lea.vmem %s1814, %s1816
  %v1818 = vpack.c.bf16 %v1812, %v587
  %1819 = vst [vmem:[%s1817] sm:$0xff] %v1818
  %s1820 = scalar_lea.vmem %s0, 1764
  %v1821 = vld [vmem:[%s1820] sm:$0xf]
  %v1822 = vunpack.c.l.bf16 %v1821
  %v1823 = vunpack.c.h.bf16 %v1821
  %s1824 = scalar_lea.vmem %s1, 2532
  %s1826 = ssub.s32 0, 4
  %s1827 = scalar_lea.vmem %s1824, %s1826
  %v1828 = vpack.c.bf16 %v1822, %v592
  %1829 = vst [vmem:[%s1827] sm:$0xff] %v1828
  %s1830 = scalar_lea.vmem %s0, 740
  %v1831 = vld [vmem:[%s1830] sm:$0xf]
  %v1832 = vunpack.c.l.bf16 %v1831
  %v1833 = vunpack.c.h.bf16 %v1831
  %s1834 = scalar_lea.vmem %s1, 3556
  %s1836 = ssub.s32 0, 4
  %s1837 = scalar_lea.vmem %s1834, %s1836
  %v1838 = vpack.c.bf16 %v1832, %v597
  %1839 = vst [vmem:[%s1837] sm:$0xff] %v1838
  %s1840 = scalar_lea.vmem %s0, 3556
  %v1841 = vld [vmem:[%s1840] sm:$0xf]
  %v1842 = vunpack.c.l.bf16 %v1841
  %v1843 = vunpack.c.h.bf16 %v1841
  %s1844 = scalar_lea.vmem %s1, 740
  %s1846 = ssub.s32 0, 4
  %s1847 = scalar_lea.vmem %s1844, %s1846
  %v1848 = vpack.c.bf16 %v1842, %v602
  %1849 = vst [vmem:[%s1847] sm:$0xff] %v1848
  %s1850 = scalar_lea.vmem %s0, 2532
  %v1851 = vld [vmem:[%s1850] sm:$0xf]
  %v1852 = vunpack.c.l.bf16 %v1851
  %v1853 = vunpack.c.h.bf16 %v1851
  %s1854 = scalar_lea.vmem %s1, 1764
  %s1856 = ssub.s32 0, 4
  %s1857 = scalar_lea.vmem %s1854, %s1856
  %v1858 = vpack.c.bf16 %v1852, %v607
  %1859 = vst [vmem:[%s1857] sm:$0xff] %v1858
  %s1860 = scalar_lea.vmem %s0, 1508
  %v1861 = vld [vmem:[%s1860] sm:$0xf]
  %v1862 = vunpack.c.l.bf16 %v1861
  %v1863 = vunpack.c.h.bf16 %v1861
  %s1864 = scalar_lea.vmem %s1, 2788
  %s1866 = ssub.s32 0, 4
  %s1867 = scalar_lea.vmem %s1864, %s1866
  %v1868 = vpack.c.bf16 %v1862, %v612
  %1869 = vst [vmem:[%s1867] sm:$0xff] %v1868
  %s1870 = scalar_lea.vmem %s0, 484
  %v1871 = vld [vmem:[%s1870] sm:$0xf]
  %v1872 = vunpack.c.l.bf16 %v1871
  %v1873 = vunpack.c.h.bf16 %v1871
  %s1874 = scalar_lea.vmem %s1, 3812
  %s1876 = ssub.s32 0, 4
  %s1877 = scalar_lea.vmem %s1874, %s1876
  %v1878 = vpack.c.bf16 %v1872, %v617
  %1879 = vst [vmem:[%s1877] sm:$0xff] %v1878
  %s1880 = scalar_lea.vmem %s0, 3300
  %v1881 = vld [vmem:[%s1880] sm:$0xf]
  %v1882 = vunpack.c.l.bf16 %v1881
  %v1883 = vunpack.c.h.bf16 %v1881
  %s1884 = scalar_lea.vmem %s1, 996
  %s1886 = ssub.s32 0, 4
  %s1887 = scalar_lea.vmem %s1884, %s1886
  %v1888 = vpack.c.bf16 %v1882, %v622
  %1889 = vst [vmem:[%s1887] sm:$0xff] %v1888
  %s1890 = scalar_lea.vmem %s0, 2276
  %v1891 = vld [vmem:[%s1890] sm:$0xf]
  %v1892 = vunpack.c.l.bf16 %v1891
  %v1893 = vunpack.c.h.bf16 %v1891
  %s1894 = scalar_lea.vmem %s1, 2020
  %s1896 = ssub.s32 0, 4
  %s1897 = scalar_lea.vmem %s1894, %s1896
  %v1898 = vpack.c.bf16 %v1892, %v627
  %1899 = vst [vmem:[%s1897] sm:$0xff] %v1898
  %s1900 = scalar_lea.vmem %s0, 1252
  %v1901 = vld [vmem:[%s1900] sm:$0xf]
  %v1902 = vunpack.c.l.bf16 %v1901
  %v1903 = vunpack.c.h.bf16 %v1901
  %s1904 = scalar_lea.vmem %s1, 3044
  %s1906 = ssub.s32 0, 4
  %s1907 = scalar_lea.vmem %s1904, %s1906
  %v1908 = vpack.c.bf16 %v1902, %v632
  %1909 = vst [vmem:[%s1907] sm:$0xff] %v1908
  %s1910 = scalar_lea.vmem %s0, 228
  %v1911 = vld [vmem:[%s1910] sm:$0xf]
  %v1912 = vunpack.c.l.bf16 %v1911
  %v1913 = vunpack.c.h.bf16 %v1911
  %s1914 = scalar_lea.vmem %s1, 4068
  %s1916 = ssub.s32 0, 4
  %s1917 = scalar_lea.vmem %s1914, %s1916
  %v1918 = vpack.c.bf16 %v1912, %v637
  %1919 = vst [vmem:[%s1917] sm:$0xff] %v1918
  %s1920 = scalar_lea.vmem %s0, 3848
  %v1921 = vld [vmem:[%s1920] sm:$0xf]
  %v1922 = vunpack.c.l.bf16 %v1921
  %v1923 = vunpack.c.h.bf16 %v1921
  %s1924 = scalar_lea.vmem %s1, 8
  %s1925 = scalar_lea.vmem %s0, 2824
  %v1926 = vld [vmem:[%s1925] sm:$0xf]
  %v1927 = vunpack.c.l.bf16 %v1926
  %v1928 = vunpack.c.h.bf16 %v1926
  %s1929 = scalar_lea.vmem %s1, 1032
  %s1930 = scalar_lea.vmem %s0, 1800
  %v1931 = vld [vmem:[%s1930] sm:$0xf]
  %v1932 = vunpack.c.l.bf16 %v1931
  %v1933 = vunpack.c.h.bf16 %v1931
  %s1934 = scalar_lea.vmem %s1, 2056
  %s1935 = scalar_lea.vmem %s0, 776
  %v1936 = vld [vmem:[%s1935] sm:$0xf]
  %v1937 = vunpack.c.l.bf16 %v1936
  %v1938 = vunpack.c.h.bf16 %v1936
  %s1939 = scalar_lea.vmem %s1, 3080
  %s1940 = scalar_lea.vmem %s0, 3592
  %v1941 = vld [vmem:[%s1940] sm:$0xf]
  %v1942 = vunpack.c.l.bf16 %v1941
  %v1943 = vunpack.c.h.bf16 %v1941
  %s1944 = scalar_lea.vmem %s1, 264
  %s1945 = scalar_lea.vmem %s0, 2568
  %v1946 = vld [vmem:[%s1945] sm:$0xf]
  %v1947 = vunpack.c.l.bf16 %v1946
  %v1948 = vunpack.c.h.bf16 %v1946
  %s1949 = scalar_lea.vmem %s1, 1288
  %s1950 = scalar_lea.vmem %s0, 1544
  %v1951 = vld [vmem:[%s1950] sm:$0xf]
  %v1952 = vunpack.c.l.bf16 %v1951
  %v1953 = vunpack.c.h.bf16 %v1951
  %s1954 = scalar_lea.vmem %s1, 2312
  %s1955 = scalar_lea.vmem %s0, 520
  %v1956 = vld [vmem:[%s1955] sm:$0xf]
  %v1957 = vunpack.c.l.bf16 %v1956
  %v1958 = vunpack.c.h.bf16 %v1956
  %s1959 = scalar_lea.vmem %s1, 3336
  %s1960 = scalar_lea.vmem %s0, 3336
  %v1961 = vld [vmem:[%s1960] sm:$0xf]
  %v1962 = vunpack.c.l.bf16 %v1961
  %v1963 = vunpack.c.h.bf16 %v1961
  %s1964 = scalar_lea.vmem %s1, 520
  %s1965 = scalar_lea.vmem %s0, 2312
  %v1966 = vld [vmem:[%s1965] sm:$0xf]
  %v1967 = vunpack.c.l.bf16 %v1966
  %v1968 = vunpack.c.h.bf16 %v1966
  %s1969 = scalar_lea.vmem %s1, 1544
  %s1970 = scalar_lea.vmem %s0, 1288
  %v1971 = vld [vmem:[%s1970] sm:$0xf]
  %v1972 = vunpack.c.l.bf16 %v1971
  %v1973 = vunpack.c.h.bf16 %v1971
  %s1974 = scalar_lea.vmem %s1, 2568
  %s1975 = scalar_lea.vmem %s0, 264
  %v1976 = vld [vmem:[%s1975] sm:$0xf]
  %v1977 = vunpack.c.l.bf16 %v1976
  %v1978 = vunpack.c.h.bf16 %v1976
  %s1979 = scalar_lea.vmem %s1, 3592
  %s1980 = scalar_lea.vmem %s0, 3080
  %v1981 = vld [vmem:[%s1980] sm:$0xf]
  %v1982 = vunpack.c.l.bf16 %v1981
  %v1983 = vunpack.c.h.bf16 %v1981
  %s1984 = scalar_lea.vmem %s1, 776
  %s1985 = scalar_lea.vmem %s0, 2056
  %v1986 = vld [vmem:[%s1985] sm:$0xf]
  %v1987 = vunpack.c.l.bf16 %v1986
  %v1988 = vunpack.c.h.bf16 %v1986
  %s1989 = scalar_lea.vmem %s1, 1800
  %s1990 = scalar_lea.vmem %s0, 1032
  %v1991 = vld [vmem:[%s1990] sm:$0xf]
  %v1992 = vunpack.c.l.bf16 %v1991
  %v1993 = vunpack.c.h.bf16 %v1991
  %s1994 = scalar_lea.vmem %s1, 2824
  %s1995 = scalar_lea.vmem %s0, 8
  %v1996 = vld [vmem:[%s1995] sm:$0xf]
  %v1997 = vunpack.c.l.bf16 %v1996
  %v1998 = vunpack.c.h.bf16 %v1996
  %s1999 = scalar_lea.vmem %s1, 3848
  %s2000 = scalar_lea.vmem %s0, 3880
  %v2001 = vld [vmem:[%s2000] sm:$0xf]
  %v2002 = vunpack.c.l.bf16 %v2001
  %v2003 = vunpack.c.h.bf16 %v2001
  %s2004 = scalar_lea.vmem %s1, 40
  %s2005 = scalar_lea.vmem %s0, 2856
  %v2006 = vld [vmem:[%s2005] sm:$0xf]
  %v2007 = vunpack.c.l.bf16 %v2006
  %v2008 = vunpack.c.h.bf16 %v2006
  %s2009 = scalar_lea.vmem %s1, 1064
  %s2010 = scalar_lea.vmem %s0, 1832
  %v2011 = vld [vmem:[%s2010] sm:$0xf]
  %v2012 = vunpack.c.l.bf16 %v2011
  %v2013 = vunpack.c.h.bf16 %v2011
  %s2014 = scalar_lea.vmem %s1, 2088
  %s2015 = scalar_lea.vmem %s0, 808
  %v2016 = vld [vmem:[%s2015] sm:$0xf]
  %v2017 = vunpack.c.l.bf16 %v2016
  %v2018 = vunpack.c.h.bf16 %v2016
  %s2019 = scalar_lea.vmem %s1, 3112
  %s2020 = scalar_lea.vmem %s0, 3624
  %v2021 = vld [vmem:[%s2020] sm:$0xf]
  %v2022 = vunpack.c.l.bf16 %v2021
  %v2023 = vunpack.c.h.bf16 %v2021
  %s2024 = scalar_lea.vmem %s1, 296
  %s2025 = scalar_lea.vmem %s0, 2600
  %v2026 = vld [vmem:[%s2025] sm:$0xf]
  %v2027 = vunpack.c.l.bf16 %v2026
  %v2028 = vunpack.c.h.bf16 %v2026
  %s2029 = scalar_lea.vmem %s1, 1320
  %s2030 = scalar_lea.vmem %s0, 1576
  %v2031 = vld [vmem:[%s2030] sm:$0xf]
  %v2032 = vunpack.c.l.bf16 %v2031
  %v2033 = vunpack.c.h.bf16 %v2031
  %s2034 = scalar_lea.vmem %s1, 2344
  %s2035 = scalar_lea.vmem %s0, 552
  %v2036 = vld [vmem:[%s2035] sm:$0xf]
  %v2037 = vunpack.c.l.bf16 %v2036
  %v2038 = vunpack.c.h.bf16 %v2036
  %s2039 = scalar_lea.vmem %s1, 3368
  %s2040 = scalar_lea.vmem %s0, 3368
  %v2041 = vld [vmem:[%s2040] sm:$0xf]
  %v2042 = vunpack.c.l.bf16 %v2041
  %v2043 = vunpack.c.h.bf16 %v2041
  %s2044 = scalar_lea.vmem %s1, 552
  %s2045 = scalar_lea.vmem %s0, 2344
  %v2046 = vld [vmem:[%s2045] sm:$0xf]
  %v2047 = vunpack.c.l.bf16 %v2046
  %v2048 = vunpack.c.h.bf16 %v2046
  %s2049 = scalar_lea.vmem %s1, 1576
  %s2050 = scalar_lea.vmem %s0, 1320
  %v2051 = vld [vmem:[%s2050] sm:$0xf]
  %v2052 = vunpack.c.l.bf16 %v2051
  %v2053 = vunpack.c.h.bf16 %v2051
  %s2054 = scalar_lea.vmem %s1, 2600
  %s2055 = scalar_lea.vmem %s0, 296
  %v2056 = vld [vmem:[%s2055] sm:$0xf]
  %v2057 = vunpack.c.l.bf16 %v2056
  %v2058 = vunpack.c.h.bf16 %v2056
  %s2059 = scalar_lea.vmem %s1, 3624
  %s2060 = scalar_lea.vmem %s0, 3112
  %v2061 = vld [vmem:[%s2060] sm:$0xf]
  %v2062 = vunpack.c.l.bf16 %v2061
  %v2063 = vunpack.c.h.bf16 %v2061
  %s2064 = scalar_lea.vmem %s1, 808
  %s2065 = scalar_lea.vmem %s0, 2088
  %v2066 = vld [vmem:[%s2065] sm:$0xf]
  %v2067 = vunpack.c.l.bf16 %v2066
  %v2068 = vunpack.c.h.bf16 %v2066
  %s2069 = scalar_lea.vmem %s1, 1832
  %s2070 = scalar_lea.vmem %s0, 1064
  %v2071 = vld [vmem:[%s2070] sm:$0xf]
  %v2072 = vunpack.c.l.bf16 %v2071
  %v2073 = vunpack.c.h.bf16 %v2071
  %s2074 = scalar_lea.vmem %s1, 2856
  %s2075 = scalar_lea.vmem %s0, 40
  %v2076 = vld [vmem:[%s2075] sm:$0xf]
  %v2077 = vunpack.c.l.bf16 %v2076
  %v2078 = vunpack.c.h.bf16 %v2076
  %s2079 = scalar_lea.vmem %s1, 3880
  %s2080 = scalar_lea.vmem %s0, 3912
  %v2081 = vld [vmem:[%s2080] sm:$0xf]
  %v2082 = vunpack.c.l.bf16 %v2081
  %v2083 = vunpack.c.h.bf16 %v2081
  %s2084 = scalar_lea.vmem %s1, 72
  %s2085 = scalar_lea.vmem %s0, 2888
  %v2086 = vld [vmem:[%s2085] sm:$0xf]
  %v2087 = vunpack.c.l.bf16 %v2086
  %v2088 = vunpack.c.h.bf16 %v2086
  %s2089 = scalar_lea.vmem %s1, 1096
  %s2090 = scalar_lea.vmem %s0, 1864
  %v2091 = vld [vmem:[%s2090] sm:$0xf]
  %v2092 = vunpack.c.l.bf16 %v2091
  %v2093 = vunpack.c.h.bf16 %v2091
  %s2094 = scalar_lea.vmem %s1, 2120
  %s2095 = scalar_lea.vmem %s0, 840
  %v2096 = vld [vmem:[%s2095] sm:$0xf]
  %v2097 = vunpack.c.l.bf16 %v2096
  %v2098 = vunpack.c.h.bf16 %v2096
  %s2099 = scalar_lea.vmem %s1, 3144
  %s2100 = scalar_lea.vmem %s0, 3656
  %v2101 = vld [vmem:[%s2100] sm:$0xf]
  %v2102 = vunpack.c.l.bf16 %v2101
  %v2103 = vunpack.c.h.bf16 %v2101
  %s2104 = scalar_lea.vmem %s1, 328
  %s2105 = scalar_lea.vmem %s0, 2632
  %v2106 = vld [vmem:[%s2105] sm:$0xf]
  %v2107 = vunpack.c.l.bf16 %v2106
  %v2108 = vunpack.c.h.bf16 %v2106
  %s2109 = scalar_lea.vmem %s1, 1352
  %s2110 = scalar_lea.vmem %s0, 1608
  %v2111 = vld [vmem:[%s2110] sm:$0xf]
  %v2112 = vunpack.c.l.bf16 %v2111
  %v2113 = vunpack.c.h.bf16 %v2111
  %s2114 = scalar_lea.vmem %s1, 2376
  %s2115 = scalar_lea.vmem %s0, 584
  %v2116 = vld [vmem:[%s2115] sm:$0xf]
  %v2117 = vunpack.c.l.bf16 %v2116
  %v2118 = vunpack.c.h.bf16 %v2116
  %s2119 = scalar_lea.vmem %s1, 3400
  %s2120 = scalar_lea.vmem %s0, 3400
  %v2121 = vld [vmem:[%s2120] sm:$0xf]
  %v2122 = vunpack.c.l.bf16 %v2121
  %v2123 = vunpack.c.h.bf16 %v2121
  %s2124 = scalar_lea.vmem %s1, 584
  %s2125 = scalar_lea.vmem %s0, 2376
  %v2126 = vld [vmem:[%s2125] sm:$0xf]
  %v2127 = vunpack.c.l.bf16 %v2126
  %v2128 = vunpack.c.h.bf16 %v2126
  %s2129 = scalar_lea.vmem %s1, 1608
  %s2130 = scalar_lea.vmem %s0, 1352
  %v2131 = vld [vmem:[%s2130] sm:$0xf]
  %v2132 = vunpack.c.l.bf16 %v2131
  %v2133 = vunpack.c.h.bf16 %v2131
  %s2134 = scalar_lea.vmem %s1, 2632
  %s2135 = scalar_lea.vmem %s0, 328
  %v2136 = vld [vmem:[%s2135] sm:$0xf]
  %v2137 = vunpack.c.l.bf16 %v2136
  %v2138 = vunpack.c.h.bf16 %v2136
  %s2139 = scalar_lea.vmem %s1, 3656
  %s2140 = scalar_lea.vmem %s0, 3144
  %v2141 = vld [vmem:[%s2140] sm:$0xf]
  %v2142 = vunpack.c.l.bf16 %v2141
  %v2143 = vunpack.c.h.bf16 %v2141
  %s2144 = scalar_lea.vmem %s1, 840
  %s2145 = scalar_lea.vmem %s0, 2120
  %v2146 = vld [vmem:[%s2145] sm:$0xf]
  %v2147 = vunpack.c.l.bf16 %v2146
  %v2148 = vunpack.c.h.bf16 %v2146
  %s2149 = scalar_lea.vmem %s1, 1864
  %s2150 = scalar_lea.vmem %s0, 1096
  %v2151 = vld [vmem:[%s2150] sm:$0xf]
  %v2152 = vunpack.c.l.bf16 %v2151
  %v2153 = vunpack.c.h.bf16 %v2151
  %s2154 = scalar_lea.vmem %s1, 2888
  %s2155 = scalar_lea.vmem %s0, 72
  %v2156 = vld [vmem:[%s2155] sm:$0xf]
  %v2157 = vunpack.c.l.bf16 %v2156
  %v2158 = vunpack.c.h.bf16 %v2156
  %s2159 = scalar_lea.vmem %s1, 3912
  %s2160 = scalar_lea.vmem %s0, 3944
  %v2161 = vld [vmem:[%s2160] sm:$0xf]
  %v2162 = vunpack.c.l.bf16 %v2161
  %v2163 = vunpack.c.h.bf16 %v2161
  %s2164 = scalar_lea.vmem %s1, 104
  %s2165 = scalar_lea.vmem %s0, 2920
  %v2166 = vld [vmem:[%s2165] sm:$0xf]
  %v2167 = vunpack.c.l.bf16 %v2166
  %v2168 = vunpack.c.h.bf16 %v2166
  %s2169 = scalar_lea.vmem %s1, 1128
  %s2170 = scalar_lea.vmem %s0, 1896
  %v2171 = vld [vmem:[%s2170] sm:$0xf]
  %v2172 = vunpack.c.l.bf16 %v2171
  %v2173 = vunpack.c.h.bf16 %v2171
  %s2174 = scalar_lea.vmem %s1, 2152
  %s2175 = scalar_lea.vmem %s0, 872
  %v2176 = vld [vmem:[%s2175] sm:$0xf]
  %v2177 = vunpack.c.l.bf16 %v2176
  %v2178 = vunpack.c.h.bf16 %v2176
  %s2179 = scalar_lea.vmem %s1, 3176
  %s2180 = scalar_lea.vmem %s0, 3688
  %v2181 = vld [vmem:[%s2180] sm:$0xf]
  %v2182 = vunpack.c.l.bf16 %v2181
  %v2183 = vunpack.c.h.bf16 %v2181
  %s2184 = scalar_lea.vmem %s1, 360
  %s2185 = scalar_lea.vmem %s0, 2664
  %v2186 = vld [vmem:[%s2185] sm:$0xf]
  %v2187 = vunpack.c.l.bf16 %v2186
  %v2188 = vunpack.c.h.bf16 %v2186
  %s2189 = scalar_lea.vmem %s1, 1384
  %s2190 = scalar_lea.vmem %s0, 1640
  %v2191 = vld [vmem:[%s2190] sm:$0xf]
  %v2192 = vunpack.c.l.bf16 %v2191
  %v2193 = vunpack.c.h.bf16 %v2191
  %s2194 = scalar_lea.vmem %s1, 2408
  %s2195 = scalar_lea.vmem %s0, 616
  %v2196 = vld [vmem:[%s2195] sm:$0xf]
  %v2197 = vunpack.c.l.bf16 %v2196
  %v2198 = vunpack.c.h.bf16 %v2196
  %s2199 = scalar_lea.vmem %s1, 3432
  %s2200 = scalar_lea.vmem %s0, 3432
  %v2201 = vld [vmem:[%s2200] sm:$0xf]
  %v2202 = vunpack.c.l.bf16 %v2201
  %v2203 = vunpack.c.h.bf16 %v2201
  %s2204 = scalar_lea.vmem %s1, 616
  %s2205 = scalar_lea.vmem %s0, 2408
  %v2206 = vld [vmem:[%s2205] sm:$0xf]
  %v2207 = vunpack.c.l.bf16 %v2206
  %v2208 = vunpack.c.h.bf16 %v2206
  %s2209 = scalar_lea.vmem %s1, 1640
  %s2210 = scalar_lea.vmem %s0, 1384
  %v2211 = vld [vmem:[%s2210] sm:$0xf]
  %v2212 = vunpack.c.l.bf16 %v2211
  %v2213 = vunpack.c.h.bf16 %v2211
  %s2214 = scalar_lea.vmem %s1, 2664
  %s2215 = scalar_lea.vmem %s0, 360
  %v2216 = vld [vmem:[%s2215] sm:$0xf]
  %v2217 = vunpack.c.l.bf16 %v2216
  %v2218 = vunpack.c.h.bf16 %v2216
  %s2219 = scalar_lea.vmem %s1, 3688
  %s2220 = scalar_lea.vmem %s0, 3176
  %v2221 = vld [vmem:[%s2220] sm:$0xf]
  %v2222 = vunpack.c.l.bf16 %v2221
  %v2223 = vunpack.c.h.bf16 %v2221
  %s2224 = scalar_lea.vmem %s1, 872
  %s2225 = scalar_lea.vmem %s0, 2152
  %v2226 = vld [vmem:[%s2225] sm:$0xf]
  %v2227 = vunpack.c.l.bf16 %v2226
  %v2228 = vunpack.c.h.bf16 %v2226
  %s2229 = scalar_lea.vmem %s1, 1896
  %s2230 = scalar_lea.vmem %s0, 1128
  %v2231 = vld [vmem:[%s2230] sm:$0xf]
  %v2232 = vunpack.c.l.bf16 %v2231
  %v2233 = vunpack.c.h.bf16 %v2231
  %s2234 = scalar_lea.vmem %s1, 2920
  %s2235 = scalar_lea.vmem %s0, 104
  %v2236 = vld [vmem:[%s2235] sm:$0xf]
  %v2237 = vunpack.c.l.bf16 %v2236
  %v2238 = vunpack.c.h.bf16 %v2236
  %s2239 = scalar_lea.vmem %s1, 3944
  %s2240 = scalar_lea.vmem %s0, 3976
  %v2241 = vld [vmem:[%s2240] sm:$0xf]
  %v2242 = vunpack.c.l.bf16 %v2241
  %v2243 = vunpack.c.h.bf16 %v2241
  %s2244 = scalar_lea.vmem %s1, 136
  %s2245 = scalar_lea.vmem %s0, 2952
  %v2246 = vld [vmem:[%s2245] sm:$0xf]
  %v2247 = vunpack.c.l.bf16 %v2246
  %v2248 = vunpack.c.h.bf16 %v2246
  %s2249 = scalar_lea.vmem %s1, 1160
  %s2250 = scalar_lea.vmem %s0, 1928
  %v2251 = vld [vmem:[%s2250] sm:$0xf]
  %v2252 = vunpack.c.l.bf16 %v2251
  %v2253 = vunpack.c.h.bf16 %v2251
  %s2254 = scalar_lea.vmem %s1, 2184
  %s2255 = scalar_lea.vmem %s0, 904
  %v2256 = vld [vmem:[%s2255] sm:$0xf]
  %v2257 = vunpack.c.l.bf16 %v2256
  %v2258 = vunpack.c.h.bf16 %v2256
  %s2259 = scalar_lea.vmem %s1, 3208
  %s2260 = scalar_lea.vmem %s0, 3720
  %v2261 = vld [vmem:[%s2260] sm:$0xf]
  %v2262 = vunpack.c.l.bf16 %v2261
  %v2263 = vunpack.c.h.bf16 %v2261
  %s2264 = scalar_lea.vmem %s1, 392
  %s2265 = scalar_lea.vmem %s0, 2696
  %v2266 = vld [vmem:[%s2265] sm:$0xf]
  %v2267 = vunpack.c.l.bf16 %v2266
  %v2268 = vunpack.c.h.bf16 %v2266
  %s2269 = scalar_lea.vmem %s1, 1416
  %s2270 = scalar_lea.vmem %s0, 1672
  %v2271 = vld [vmem:[%s2270] sm:$0xf]
  %v2272 = vunpack.c.l.bf16 %v2271
  %v2273 = vunpack.c.h.bf16 %v2271
  %s2274 = scalar_lea.vmem %s1, 2440
  %s2275 = scalar_lea.vmem %s0, 648
  %v2276 = vld [vmem:[%s2275] sm:$0xf]
  %v2277 = vunpack.c.l.bf16 %v2276
  %v2278 = vunpack.c.h.bf16 %v2276
  %s2279 = scalar_lea.vmem %s1, 3464
  %s2280 = scalar_lea.vmem %s0, 3464
  %v2281 = vld [vmem:[%s2280] sm:$0xf]
  %v2282 = vunpack.c.l.bf16 %v2281
  %v2283 = vunpack.c.h.bf16 %v2281
  %s2284 = scalar_lea.vmem %s1, 648
  %s2285 = scalar_lea.vmem %s0, 2440
  %v2286 = vld [vmem:[%s2285] sm:$0xf]
  %v2287 = vunpack.c.l.bf16 %v2286
  %v2288 = vunpack.c.h.bf16 %v2286
  %s2289 = scalar_lea.vmem %s1, 1672
  %s2290 = scalar_lea.vmem %s0, 1416
  %v2291 = vld [vmem:[%s2290] sm:$0xf]
  %v2292 = vunpack.c.l.bf16 %v2291
  %v2293 = vunpack.c.h.bf16 %v2291
  %s2294 = scalar_lea.vmem %s1, 2696
  %s2295 = scalar_lea.vmem %s0, 392
  %v2296 = vld [vmem:[%s2295] sm:$0xf]
  %v2297 = vunpack.c.l.bf16 %v2296
  %v2298 = vunpack.c.h.bf16 %v2296
  %s2299 = scalar_lea.vmem %s1, 3720
  %s2300 = scalar_lea.vmem %s0, 3208
  %v2301 = vld [vmem:[%s2300] sm:$0xf]
  %v2302 = vunpack.c.l.bf16 %v2301
  %v2303 = vunpack.c.h.bf16 %v2301
  %s2304 = scalar_lea.vmem %s1, 904
  %s2305 = scalar_lea.vmem %s0, 2184
  %v2306 = vld [vmem:[%s2305] sm:$0xf]
  %v2307 = vunpack.c.l.bf16 %v2306
  %v2308 = vunpack.c.h.bf16 %v2306
  %s2309 = scalar_lea.vmem %s1, 1928
  %s2310 = scalar_lea.vmem %s0, 1160
  %v2311 = vld [vmem:[%s2310] sm:$0xf]
  %v2312 = vunpack.c.l.bf16 %v2311
  %v2313 = vunpack.c.h.bf16 %v2311
  %s2314 = scalar_lea.vmem %s1, 2952
  %s2315 = scalar_lea.vmem %s0, 136
  %v2316 = vld [vmem:[%s2315] sm:$0xf]
  %v2317 = vunpack.c.l.bf16 %v2316
  %v2318 = vunpack.c.h.bf16 %v2316
  %s2319 = scalar_lea.vmem %s1, 3976
  %s2320 = scalar_lea.vmem %s0, 4008
  %v2321 = vld [vmem:[%s2320] sm:$0xf]
  %v2322 = vunpack.c.l.bf16 %v2321
  %v2323 = vunpack.c.h.bf16 %v2321
  %s2324 = scalar_lea.vmem %s1, 168
  %s2325 = scalar_lea.vmem %s0, 2984
  %v2326 = vld [vmem:[%s2325] sm:$0xf]
  %v2327 = vunpack.c.l.bf16 %v2326
  %v2328 = vunpack.c.h.bf16 %v2326
  %s2329 = scalar_lea.vmem %s1, 1192
  %s2330 = scalar_lea.vmem %s0, 1960
  %v2331 = vld [vmem:[%s2330] sm:$0xf]
  %v2332 = vunpack.c.l.bf16 %v2331
  %v2333 = vunpack.c.h.bf16 %v2331
  %s2334 = scalar_lea.vmem %s1, 2216
  %s2335 = scalar_lea.vmem %s0, 936
  %v2336 = vld [vmem:[%s2335] sm:$0xf]
  %v2337 = vunpack.c.l.bf16 %v2336
  %v2338 = vunpack.c.h.bf16 %v2336
  %s2339 = scalar_lea.vmem %s1, 3240
  %s2340 = scalar_lea.vmem %s0, 3752
  %v2341 = vld [vmem:[%s2340] sm:$0xf]
  %v2342 = vunpack.c.l.bf16 %v2341
  %v2343 = vunpack.c.h.bf16 %v2341
  %s2344 = scalar_lea.vmem %s1, 424
  %s2345 = scalar_lea.vmem %s0, 2728
  %v2346 = vld [vmem:[%s2345] sm:$0xf]
  %v2347 = vunpack.c.l.bf16 %v2346
  %v2348 = vunpack.c.h.bf16 %v2346
  %s2349 = scalar_lea.vmem %s1, 1448
  %s2350 = scalar_lea.vmem %s0, 1704
  %v2351 = vld [vmem:[%s2350] sm:$0xf]
  %v2352 = vunpack.c.l.bf16 %v2351
  %v2353 = vunpack.c.h.bf16 %v2351
  %s2354 = scalar_lea.vmem %s1, 2472
  %s2355 = scalar_lea.vmem %s0, 680
  %v2356 = vld [vmem:[%s2355] sm:$0xf]
  %v2357 = vunpack.c.l.bf16 %v2356
  %v2358 = vunpack.c.h.bf16 %v2356
  %s2359 = scalar_lea.vmem %s1, 3496
  %s2360 = scalar_lea.vmem %s0, 3496
  %v2361 = vld [vmem:[%s2360] sm:$0xf]
  %v2362 = vunpack.c.l.bf16 %v2361
  %v2363 = vunpack.c.h.bf16 %v2361
  %s2364 = scalar_lea.vmem %s1, 680
  %s2365 = scalar_lea.vmem %s0, 2472
  %v2366 = vld [vmem:[%s2365] sm:$0xf]
  %v2367 = vunpack.c.l.bf16 %v2366
  %v2368 = vunpack.c.h.bf16 %v2366
  %s2369 = scalar_lea.vmem %s1, 1704
  %s2370 = scalar_lea.vmem %s0, 1448
  %v2371 = vld [vmem:[%s2370] sm:$0xf]
  %v2372 = vunpack.c.l.bf16 %v2371
  %v2373 = vunpack.c.h.bf16 %v2371
  %s2374 = scalar_lea.vmem %s1, 2728
  %s2375 = scalar_lea.vmem %s0, 424
  %v2376 = vld [vmem:[%s2375] sm:$0xf]
  %v2377 = vunpack.c.l.bf16 %v2376
  %v2378 = vunpack.c.h.bf16 %v2376
  %s2379 = scalar_lea.vmem %s1, 3752
  %s2380 = scalar_lea.vmem %s0, 3240
  %v2381 = vld [vmem:[%s2380] sm:$0xf]
  %v2382 = vunpack.c.l.bf16 %v2381
  %v2383 = vunpack.c.h.bf16 %v2381
  %s2384 = scalar_lea.vmem %s1, 936
  %s2385 = scalar_lea.vmem %s0, 2216
  %v2386 = vld [vmem:[%s2385] sm:$0xf]
  %v2387 = vunpack.c.l.bf16 %v2386
  %v2388 = vunpack.c.h.bf16 %v2386
  %s2389 = scalar_lea.vmem %s1, 1960
  %s2390 = scalar_lea.vmem %s0, 1192
  %v2391 = vld [vmem:[%s2390] sm:$0xf]
  %v2392 = vunpack.c.l.bf16 %v2391
  %v2393 = vunpack.c.h.bf16 %v2391
  %s2394 = scalar_lea.vmem %s1, 2984
  %s2395 = scalar_lea.vmem %s0, 168
  %v2396 = vld [vmem:[%s2395] sm:$0xf]
  %v2397 = vunpack.c.l.bf16 %v2396
  %v2398 = vunpack.c.h.bf16 %v2396
  %s2399 = scalar_lea.vmem %s1, 4008
  %s2400 = scalar_lea.vmem %s0, 4040
  %v2401 = vld [vmem:[%s2400] sm:$0xf]
  %v2402 = vunpack.c.l.bf16 %v2401
  %v2403 = vunpack.c.h.bf16 %v2401
  %s2404 = scalar_lea.vmem %s1, 200
  %s2405 = scalar_lea.vmem %s0, 3016
  %v2406 = vld [vmem:[%s2405] sm:$0xf]
  %v2407 = vunpack.c.l.bf16 %v2406
  %v2408 = vunpack.c.h.bf16 %v2406
  %s2409 = scalar_lea.vmem %s1, 1224
  %s2410 = scalar_lea.vmem %s0, 1992
  %v2411 = vld [vmem:[%s2410] sm:$0xf]
  %v2412 = vunpack.c.l.bf16 %v2411
  %v2413 = vunpack.c.h.bf16 %v2411
  %s2414 = scalar_lea.vmem %s1, 2248
  %s2415 = scalar_lea.vmem %s0, 968
  %v2416 = vld [vmem:[%s2415] sm:$0xf]
  %v2417 = vunpack.c.l.bf16 %v2416
  %v2418 = vunpack.c.h.bf16 %v2416
  %s2419 = scalar_lea.vmem %s1, 3272
  %s2420 = scalar_lea.vmem %s0, 3784
  %v2421 = vld [vmem:[%s2420] sm:$0xf]
  %v2422 = vunpack.c.l.bf16 %v2421
  %v2423 = vunpack.c.h.bf16 %v2421
  %s2424 = scalar_lea.vmem %s1, 456
  %s2425 = scalar_lea.vmem %s0, 2760
  %v2426 = vld [vmem:[%s2425] sm:$0xf]
  %v2427 = vunpack.c.l.bf16 %v2426
  %v2428 = vunpack.c.h.bf16 %v2426
  %s2429 = scalar_lea.vmem %s1, 1480
  %s2430 = scalar_lea.vmem %s0, 1736
  %v2431 = vld [vmem:[%s2430] sm:$0xf]
  %v2432 = vunpack.c.l.bf16 %v2431
  %v2433 = vunpack.c.h.bf16 %v2431
  %s2434 = scalar_lea.vmem %s1, 2504
  %s2435 = scalar_lea.vmem %s0, 712
  %v2436 = vld [vmem:[%s2435] sm:$0xf]
  %v2437 = vunpack.c.l.bf16 %v2436
  %v2438 = vunpack.c.h.bf16 %v2436
  %s2439 = scalar_lea.vmem %s1, 3528
  %s2440 = scalar_lea.vmem %s0, 3528
  %v2441 = vld [vmem:[%s2440] sm:$0xf]
  %v2442 = vunpack.c.l.bf16 %v2441
  %v2443 = vunpack.c.h.bf16 %v2441
  %s2444 = scalar_lea.vmem %s1, 712
  %s2445 = scalar_lea.vmem %s0, 2504
  %v2446 = vld [vmem:[%s2445] sm:$0xf]
  %v2447 = vunpack.c.l.bf16 %v2446
  %v2448 = vunpack.c.h.bf16 %v2446
  %s2449 = scalar_lea.vmem %s1, 1736
  %s2450 = scalar_lea.vmem %s0, 1480
  %v2451 = vld [vmem:[%s2450] sm:$0xf]
  %v2452 = vunpack.c.l.bf16 %v2451
  %v2453 = vunpack.c.h.bf16 %v2451
  %s2454 = scalar_lea.vmem %s1, 2760
  %s2455 = scalar_lea.vmem %s0, 456
  %v2456 = vld [vmem:[%s2455] sm:$0xf]
  %v2457 = vunpack.c.l.bf16 %v2456
  %v2458 = vunpack.c.h.bf16 %v2456
  %s2459 = scalar_lea.vmem %s1, 3784
  %s2460 = scalar_lea.vmem %s0, 3272
  %v2461 = vld [vmem:[%s2460] sm:$0xf]
  %v2462 = vunpack.c.l.bf16 %v2461
  %v2463 = vunpack.c.h.bf16 %v2461
  %s2464 = scalar_lea.vmem %s1, 968
  %s2465 = scalar_lea.vmem %s0, 2248
  %v2466 = vld [vmem:[%s2465] sm:$0xf]
  %v2467 = vunpack.c.l.bf16 %v2466
  %v2468 = vunpack.c.h.bf16 %v2466
  %s2469 = scalar_lea.vmem %s1, 1992
  %s2470 = scalar_lea.vmem %s0, 1224
  %v2471 = vld [vmem:[%s2470] sm:$0xf]
  %v2472 = vunpack.c.l.bf16 %v2471
  %v2473 = vunpack.c.h.bf16 %v2471
  %s2474 = scalar_lea.vmem %s1, 3016
  %s2475 = scalar_lea.vmem %s0, 200
  %v2476 = vld [vmem:[%s2475] sm:$0xf]
  %v2477 = vunpack.c.l.bf16 %v2476
  %v2478 = vunpack.c.h.bf16 %v2476
  %s2479 = scalar_lea.vmem %s1, 4040
  %s2480 = scalar_lea.vmem %s0, 4072
  %v2481 = vld [vmem:[%s2480] sm:$0xf]
  %v2482 = vunpack.c.l.bf16 %v2481
  %v2483 = vunpack.c.h.bf16 %v2481
  %s2484 = scalar_lea.vmem %s1, 232
  %s2485 = scalar_lea.vmem %s0, 3048
  %v2486 = vld [vmem:[%s2485] sm:$0xf]
  %v2487 = vunpack.c.l.bf16 %v2486
  %v2488 = vunpack.c.h.bf16 %v2486
  %s2489 = scalar_lea.vmem %s1, 1256
  %s2490 = scalar_lea.vmem %s0, 2024
  %v2491 = vld [vmem:[%s2490] sm:$0xf]
  %v2492 = vunpack.c.l.bf16 %v2491
  %v2493 = vunpack.c.h.bf16 %v2491
  %s2494 = scalar_lea.vmem %s1, 2280
  %s2495 = scalar_lea.vmem %s0, 1000
  %v2496 = vld [vmem:[%s2495] sm:$0xf]
  %v2497 = vunpack.c.l.bf16 %v2496
  %v2498 = vunpack.c.h.bf16 %v2496
  %s2499 = scalar_lea.vmem %s1, 3304
  %s2500 = scalar_lea.vmem %s0, 3816
  %v2501 = vld [vmem:[%s2500] sm:$0xf]
  %v2502 = vunpack.c.l.bf16 %v2501
  %v2503 = vunpack.c.h.bf16 %v2501
  %s2504 = scalar_lea.vmem %s1, 488
  %s2505 = scalar_lea.vmem %s0, 2792
  %v2506 = vld [vmem:[%s2505] sm:$0xf]
  %v2507 = vunpack.c.l.bf16 %v2506
  %v2508 = vunpack.c.h.bf16 %v2506
  %s2509 = scalar_lea.vmem %s1, 1512
  %s2510 = scalar_lea.vmem %s0, 1768
  %v2511 = vld [vmem:[%s2510] sm:$0xf]
  %v2512 = vunpack.c.l.bf16 %v2511
  %v2513 = vunpack.c.h.bf16 %v2511
  %s2514 = scalar_lea.vmem %s1, 2536
  %s2515 = scalar_lea.vmem %s0, 744
  %v2516 = vld [vmem:[%s2515] sm:$0xf]
  %v2517 = vunpack.c.l.bf16 %v2516
  %v2518 = vunpack.c.h.bf16 %v2516
  %s2519 = scalar_lea.vmem %s1, 3560
  %s2520 = scalar_lea.vmem %s0, 3560
  %v2521 = vld [vmem:[%s2520] sm:$0xf]
  %v2522 = vunpack.c.l.bf16 %v2521
  %v2523 = vunpack.c.h.bf16 %v2521
  %s2524 = scalar_lea.vmem %s1, 744
  %s2525 = scalar_lea.vmem %s0, 2536
  %v2526 = vld [vmem:[%s2525] sm:$0xf]
  %v2527 = vunpack.c.l.bf16 %v2526
  %v2528 = vunpack.c.h.bf16 %v2526
  %s2529 = scalar_lea.vmem %s1, 1768
  %s2530 = scalar_lea.vmem %s0, 1512
  %v2531 = vld [vmem:[%s2530] sm:$0xf]
  %v2532 = vunpack.c.l.bf16 %v2531
  %v2533 = vunpack.c.h.bf16 %v2531
  %s2534 = scalar_lea.vmem %s1, 2792
  %s2535 = scalar_lea.vmem %s0, 488
  %v2536 = vld [vmem:[%s2535] sm:$0xf]
  %v2537 = vunpack.c.l.bf16 %v2536
  %v2538 = vunpack.c.h.bf16 %v2536
  %s2539 = scalar_lea.vmem %s1, 3816
  %s2540 = scalar_lea.vmem %s0, 3304
  %v2541 = vld [vmem:[%s2540] sm:$0xf]
  %v2542 = vunpack.c.l.bf16 %v2541
  %v2543 = vunpack.c.h.bf16 %v2541
  %s2544 = scalar_lea.vmem %s1, 1000
  %s2545 = scalar_lea.vmem %s0, 2280
  %v2546 = vld [vmem:[%s2545] sm:$0xf]
  %v2547 = vunpack.c.l.bf16 %v2546
  %v2548 = vunpack.c.h.bf16 %v2546
  %s2549 = scalar_lea.vmem %s1, 2024
  %s2550 = scalar_lea.vmem %s0, 1256
  %v2551 = vld [vmem:[%s2550] sm:$0xf]
  %v2552 = vunpack.c.l.bf16 %v2551
  %v2553 = vunpack.c.h.bf16 %v2551
  %s2554 = scalar_lea.vmem %s1, 3048
  %s2555 = scalar_lea.vmem %s0, 232
  %v2556 = vld [vmem:[%s2555] sm:$0xf]
  %v2557 = vunpack.c.l.bf16 %v2556
  %v2558 = vunpack.c.h.bf16 %v2556
  %s2559 = scalar_lea.vmem %s1, 4072
  %s2560 = scalar_lea.vmem %s0, 3852
  %v2561 = vld [vmem:[%s2560] sm:$0xf]
  %v2562 = vunpack.c.l.bf16 %v2561
  %v2563 = vunpack.c.h.bf16 %v2561
  %s2564 = scalar_lea.vmem %s1, 12
  %s2566 = ssub.s32 0, 4
  %s2567 = scalar_lea.vmem %s2564, %s2566
  %v2568 = vpack.c.bf16 %v2562, %v1922
  %2569 = vst [vmem:[%s2567] sm:$0xff] %v2568
  %s2570 = scalar_lea.vmem %s0, 2828
  %v2571 = vld [vmem:[%s2570] sm:$0xf]
  %v2572 = vunpack.c.l.bf16 %v2571
  %v2573 = vunpack.c.h.bf16 %v2571
  %s2574 = scalar_lea.vmem %s1, 1036
  %s2576 = ssub.s32 0, 4
  %s2577 = scalar_lea.vmem %s2574, %s2576
  %v2578 = vpack.c.bf16 %v2572, %v1927
  %2579 = vst [vmem:[%s2577] sm:$0xff] %v2578
  %s2580 = scalar_lea.vmem %s0, 1804
  %v2581 = vld [vmem:[%s2580] sm:$0xf]
  %v2582 = vunpack.c.l.bf16 %v2581
  %v2583 = vunpack.c.h.bf16 %v2581
  %s2584 = scalar_lea.vmem %s1, 2060
  %s2586 = ssub.s32 0, 4
  %s2587 = scalar_lea.vmem %s2584, %s2586
  %v2588 = vpack.c.bf16 %v2582, %v1932
  %2589 = vst [vmem:[%s2587] sm:$0xff] %v2588
  %s2590 = scalar_lea.vmem %s0, 780
  %v2591 = vld [vmem:[%s2590] sm:$0xf]
  %v2592 = vunpack.c.l.bf16 %v2591
  %v2593 = vunpack.c.h.bf16 %v2591
  %s2594 = scalar_lea.vmem %s1, 3084
  %s2596 = ssub.s32 0, 4
  %s2597 = scalar_lea.vmem %s2594, %s2596
  %v2598 = vpack.c.bf16 %v2592, %v1937
  %2599 = vst [vmem:[%s2597] sm:$0xff] %v2598
  %s2600 = scalar_lea.vmem %s0, 3596
  %v2601 = vld [vmem:[%s2600] sm:$0xf]
  %v2602 = vunpack.c.l.bf16 %v2601
  %v2603 = vunpack.c.h.bf16 %v2601
  %s2604 = scalar_lea.vmem %s1, 268
  %s2606 = ssub.s32 0, 4
  %s2607 = scalar_lea.vmem %s2604, %s2606
  %v2608 = vpack.c.bf16 %v2602, %v1942
  %2609 = vst [vmem:[%s2607] sm:$0xff] %v2608
  %s2610 = scalar_lea.vmem %s0, 2572
  %v2611 = vld [vmem:[%s2610] sm:$0xf]
  %v2612 = vunpack.c.l.bf16 %v2611
  %v2613 = vunpack.c.h.bf16 %v2611
  %s2614 = scalar_lea.vmem %s1, 1292
  %s2616 = ssub.s32 0, 4
  %s2617 = scalar_lea.vmem %s2614, %s2616
  %v2618 = vpack.c.bf16 %v2612, %v1947
  %2619 = vst [vmem:[%s2617] sm:$0xff] %v2618
  %s2620 = scalar_lea.vmem %s0, 1548
  %v2621 = vld [vmem:[%s2620] sm:$0xf]
  %v2622 = vunpack.c.l.bf16 %v2621
  %v2623 = vunpack.c.h.bf16 %v2621
  %s2624 = scalar_lea.vmem %s1, 2316
  %s2626 = ssub.s32 0, 4
  %s2627 = scalar_lea.vmem %s2624, %s2626
  %v2628 = vpack.c.bf16 %v2622, %v1952
  %2629 = vst [vmem:[%s2627] sm:$0xff] %v2628
  %s2630 = scalar_lea.vmem %s0, 524
  %v2631 = vld [vmem:[%s2630] sm:$0xf]
  %v2632 = vunpack.c.l.bf16 %v2631
  %v2633 = vunpack.c.h.bf16 %v2631
  %s2634 = scalar_lea.vmem %s1, 3340
  %s2636 = ssub.s32 0, 4
  %s2637 = scalar_lea.vmem %s2634, %s2636
  %v2638 = vpack.c.bf16 %v2632, %v1957
  %2639 = vst [vmem:[%s2637] sm:$0xff] %v2638
  %s2640 = scalar_lea.vmem %s0, 3340
  %v2641 = vld [vmem:[%s2640] sm:$0xf]
  %v2642 = vunpack.c.l.bf16 %v2641
  %v2643 = vunpack.c.h.bf16 %v2641
  %s2644 = scalar_lea.vmem %s1, 524
  %s2646 = ssub.s32 0, 4
  %s2647 = scalar_lea.vmem %s2644, %s2646
  %v2648 = vpack.c.bf16 %v2642, %v1962
  %2649 = vst [vmem:[%s2647] sm:$0xff] %v2648
  %s2650 = scalar_lea.vmem %s0, 2316
  %v2651 = vld [vmem:[%s2650] sm:$0xf]
  %v2652 = vunpack.c.l.bf16 %v2651
  %v2653 = vunpack.c.h.bf16 %v2651
  %s2654 = scalar_lea.vmem %s1, 1548
  %s2656 = ssub.s32 0, 4
  %s2657 = scalar_lea.vmem %s2654, %s2656
  %v2658 = vpack.c.bf16 %v2652, %v1967
  %2659 = vst [vmem:[%s2657] sm:$0xff] %v2658
  %s2660 = scalar_lea.vmem %s0, 1292
  %v2661 = vld [vmem:[%s2660] sm:$0xf]
  %v2662 = vunpack.c.l.bf16 %v2661
  %v2663 = vunpack.c.h.bf16 %v2661
  %s2664 = scalar_lea.vmem %s1, 2572
  %s2666 = ssub.s32 0, 4
  %s2667 = scalar_lea.vmem %s2664, %s2666
  %v2668 = vpack.c.bf16 %v2662, %v1972
  %2669 = vst [vmem:[%s2667] sm:$0xff] %v2668
  %s2670 = scalar_lea.vmem %s0, 268
  %v2671 = vld [vmem:[%s2670] sm:$0xf]
  %v2672 = vunpack.c.l.bf16 %v2671
  %v2673 = vunpack.c.h.bf16 %v2671
  %s2674 = scalar_lea.vmem %s1, 3596
  %s2676 = ssub.s32 0, 4
  %s2677 = scalar_lea.vmem %s2674, %s2676
  %v2678 = vpack.c.bf16 %v2672, %v1977
  %2679 = vst [vmem:[%s2677] sm:$0xff] %v2678
  %s2680 = scalar_lea.vmem %s0, 3084
  %v2681 = vld [vmem:[%s2680] sm:$0xf]
  %v2682 = vunpack.c.l.bf16 %v2681
  %v2683 = vunpack.c.h.bf16 %v2681
  %s2684 = scalar_lea.vmem %s1, 780
  %s2686 = ssub.s32 0, 4
  %s2687 = scalar_lea.vmem %s2684, %s2686
  %v2688 = vpack.c.bf16 %v2682, %v1982
  %2689 = vst [vmem:[%s2687] sm:$0xff] %v2688
  %s2690 = scalar_lea.vmem %s0, 2060
  %v2691 = vld [vmem:[%s2690] sm:$0xf]
  %v2692 = vunpack.c.l.bf16 %v2691
  %v2693 = vunpack.c.h.bf16 %v2691
  %s2694 = scalar_lea.vmem %s1, 1804
  %s2696 = ssub.s32 0, 4
  %s2697 = scalar_lea.vmem %s2694, %s2696
  %v2698 = vpack.c.bf16 %v2692, %v1987
  %2699 = vst [vmem:[%s2697] sm:$0xff] %v2698
  %s2700 = scalar_lea.vmem %s0, 1036
  %v2701 = vld [vmem:[%s2700] sm:$0xf]
  %v2702 = vunpack.c.l.bf16 %v2701
  %v2703 = vunpack.c.h.bf16 %v2701
  %s2704 = scalar_lea.vmem %s1, 2828
  %s2706 = ssub.s32 0, 4
  %s2707 = scalar_lea.vmem %s2704, %s2706
  %v2708 = vpack.c.bf16 %v2702, %v1992
  %2709 = vst [vmem:[%s2707] sm:$0xff] %v2708
  %s2710 = scalar_lea.vmem %s0, 12
  %v2711 = vld [vmem:[%s2710] sm:$0xf]
  %v2712 = vunpack.c.l.bf16 %v2711
  %v2713 = vunpack.c.h.bf16 %v2711
  %s2714 = scalar_lea.vmem %s1, 3852
  %s2716 = ssub.s32 0, 4
  %s2717 = scalar_lea.vmem %s2714, %s2716
  %v2718 = vpack.c.bf16 %v2712, %v1997
  %2719 = vst [vmem:[%s2717] sm:$0xff] %v2718
  %s2720 = scalar_lea.vmem %s0, 3884
  %v2721 = vld [vmem:[%s2720] sm:$0xf]
  %v2722 = vunpack.c.l.bf16 %v2721
  %v2723 = vunpack.c.h.bf16 %v2721
  %s2724 = scalar_lea.vmem %s1, 44
  %s2726 = ssub.s32 0, 4
  %s2727 = scalar_lea.vmem %s2724, %s2726
  %v2728 = vpack.c.bf16 %v2722, %v2002
  %2729 = vst [vmem:[%s2727] sm:$0xff] %v2728
  %s2730 = scalar_lea.vmem %s0, 2860
  %v2731 = vld [vmem:[%s2730] sm:$0xf]
  %v2732 = vunpack.c.l.bf16 %v2731
  %v2733 = vunpack.c.h.bf16 %v2731
  %s2734 = scalar_lea.vmem %s1, 1068
  %s2736 = ssub.s32 0, 4
  %s2737 = scalar_lea.vmem %s2734, %s2736
  %v2738 = vpack.c.bf16 %v2732, %v2007
  %2739 = vst [vmem:[%s2737] sm:$0xff] %v2738
  %s2740 = scalar_lea.vmem %s0, 1836
  %v2741 = vld [vmem:[%s2740] sm:$0xf]
  %v2742 = vunpack.c.l.bf16 %v2741
  %v2743 = vunpack.c.h.bf16 %v2741
  %s2744 = scalar_lea.vmem %s1, 2092
  %s2746 = ssub.s32 0, 4
  %s2747 = scalar_lea.vmem %s2744, %s2746
  %v2748 = vpack.c.bf16 %v2742, %v2012
  %2749 = vst [vmem:[%s2747] sm:$0xff] %v2748
  %s2750 = scalar_lea.vmem %s0, 812
  %v2751 = vld [vmem:[%s2750] sm:$0xf]
  %v2752 = vunpack.c.l.bf16 %v2751
  %v2753 = vunpack.c.h.bf16 %v2751
  %s2754 = scalar_lea.vmem %s1, 3116
  %s2756 = ssub.s32 0, 4
  %s2757 = scalar_lea.vmem %s2754, %s2756
  %v2758 = vpack.c.bf16 %v2752, %v2017
  %2759 = vst [vmem:[%s2757] sm:$0xff] %v2758
  %s2760 = scalar_lea.vmem %s0, 3628
  %v2761 = vld [vmem:[%s2760] sm:$0xf]
  %v2762 = vunpack.c.l.bf16 %v2761
  %v2763 = vunpack.c.h.bf16 %v2761
  %s2764 = scalar_lea.vmem %s1, 300
  %s2766 = ssub.s32 0, 4
  %s2767 = scalar_lea.vmem %s2764, %s2766
  %v2768 = vpack.c.bf16 %v2762, %v2022
  %2769 = vst [vmem:[%s2767] sm:$0xff] %v2768
  %s2770 = scalar_lea.vmem %s0, 2604
  %v2771 = vld [vmem:[%s2770] sm:$0xf]
  %v2772 = vunpack.c.l.bf16 %v2771
  %v2773 = vunpack.c.h.bf16 %v2771
  %s2774 = scalar_lea.vmem %s1, 1324
  %s2776 = ssub.s32 0, 4
  %s2777 = scalar_lea.vmem %s2774, %s2776
  %v2778 = vpack.c.bf16 %v2772, %v2027
  %2779 = vst [vmem:[%s2777] sm:$0xff] %v2778
  %s2780 = scalar_lea.vmem %s0, 1580
  %v2781 = vld [vmem:[%s2780] sm:$0xf]
  %v2782 = vunpack.c.l.bf16 %v2781
  %v2783 = vunpack.c.h.bf16 %v2781
  %s2784 = scalar_lea.vmem %s1, 2348
  %s2786 = ssub.s32 0, 4
  %s2787 = scalar_lea.vmem %s2784, %s2786
  %v2788 = vpack.c.bf16 %v2782, %v2032
  %2789 = vst [vmem:[%s2787] sm:$0xff] %v2788
  %s2790 = scalar_lea.vmem %s0, 556
  %v2791 = vld [vmem:[%s2790] sm:$0xf]
  %v2792 = vunpack.c.l.bf16 %v2791
  %v2793 = vunpack.c.h.bf16 %v2791
  %s2794 = scalar_lea.vmem %s1, 3372
  %s2796 = ssub.s32 0, 4
  %s2797 = scalar_lea.vmem %s2794, %s2796
  %v2798 = vpack.c.bf16 %v2792, %v2037
  %2799 = vst [vmem:[%s2797] sm:$0xff] %v2798
  %s2800 = scalar_lea.vmem %s0, 3372
  %v2801 = vld [vmem:[%s2800] sm:$0xf]
  %v2802 = vunpack.c.l.bf16 %v2801
  %v2803 = vunpack.c.h.bf16 %v2801
  %s2804 = scalar_lea.vmem %s1, 556
  %s2806 = ssub.s32 0, 4
  %s2807 = scalar_lea.vmem %s2804, %s2806
  %v2808 = vpack.c.bf16 %v2802, %v2042
  %2809 = vst [vmem:[%s2807] sm:$0xff] %v2808
  %s2810 = scalar_lea.vmem %s0, 2348
  %v2811 = vld [vmem:[%s2810] sm:$0xf]
  %v2812 = vunpack.c.l.bf16 %v2811
  %v2813 = vunpack.c.h.bf16 %v2811
  %s2814 = scalar_lea.vmem %s1, 1580
  %s2816 = ssub.s32 0, 4
  %s2817 = scalar_lea.vmem %s2814, %s2816
  %v2818 = vpack.c.bf16 %v2812, %v2047
  %2819 = vst [vmem:[%s2817] sm:$0xff] %v2818
  %s2820 = scalar_lea.vmem %s0, 1324
  %v2821 = vld [vmem:[%s2820] sm:$0xf]
  %v2822 = vunpack.c.l.bf16 %v2821
  %v2823 = vunpack.c.h.bf16 %v2821
  %s2824 = scalar_lea.vmem %s1, 2604
  %s2826 = ssub.s32 0, 4
  %s2827 = scalar_lea.vmem %s2824, %s2826
  %v2828 = vpack.c.bf16 %v2822, %v2052
  %2829 = vst [vmem:[%s2827] sm:$0xff] %v2828
  %s2830 = scalar_lea.vmem %s0, 300
  %v2831 = vld [vmem:[%s2830] sm:$0xf]
  %v2832 = vunpack.c.l.bf16 %v2831
  %v2833 = vunpack.c.h.bf16 %v2831
  %s2834 = scalar_lea.vmem %s1, 3628
  %s2836 = ssub.s32 0, 4
  %s2837 = scalar_lea.vmem %s2834, %s2836
  %v2838 = vpack.c.bf16 %v2832, %v2057
  %2839 = vst [vmem:[%s2837] sm:$0xff] %v2838
  %s2840 = scalar_lea.vmem %s0, 3116
  %v2841 = vld [vmem:[%s2840] sm:$0xf]
  %v2842 = vunpack.c.l.bf16 %v2841
  %v2843 = vunpack.c.h.bf16 %v2841
  %s2844 = scalar_lea.vmem %s1, 812
  %s2846 = ssub.s32 0, 4
  %s2847 = scalar_lea.vmem %s2844, %s2846
  %v2848 = vpack.c.bf16 %v2842, %v2062
  %2849 = vst [vmem:[%s2847] sm:$0xff] %v2848
  %s2850 = scalar_lea.vmem %s0, 2092
  %v2851 = vld [vmem:[%s2850] sm:$0xf]
  %v2852 = vunpack.c.l.bf16 %v2851
  %v2853 = vunpack.c.h.bf16 %v2851
  %s2854 = scalar_lea.vmem %s1, 1836
  %s2856 = ssub.s32 0, 4
  %s2857 = scalar_lea.vmem %s2854, %s2856
  %v2858 = vpack.c.bf16 %v2852, %v2067
  %2859 = vst [vmem:[%s2857] sm:$0xff] %v2858
  %s2860 = scalar_lea.vmem %s0, 1068
  %v2861 = vld [vmem:[%s2860] sm:$0xf]
  %v2862 = vunpack.c.l.bf16 %v2861
  %v2863 = vunpack.c.h.bf16 %v2861
  %s2864 = scalar_lea.vmem %s1, 2860
  %s2866 = ssub.s32 0, 4
  %s2867 = scalar_lea.vmem %s2864, %s2866
  %v2868 = vpack.c.bf16 %v2862, %v2072
  %2869 = vst [vmem:[%s2867] sm:$0xff] %v2868
  %s2870 = scalar_lea.vmem %s0, 44
  %v2871 = vld [vmem:[%s2870] sm:$0xf]
  %v2872 = vunpack.c.l.bf16 %v2871
  %v2873 = vunpack.c.h.bf16 %v2871
  %s2874 = scalar_lea.vmem %s1, 3884
  %s2876 = ssub.s32 0, 4
  %s2877 = scalar_lea.vmem %s2874, %s2876
  %v2878 = vpack.c.bf16 %v2872, %v2077
  %2879 = vst [vmem:[%s2877] sm:$0xff] %v2878
  %s2880 = scalar_lea.vmem %s0, 3916
  %v2881 = vld [vmem:[%s2880] sm:$0xf]
  %v2882 = vunpack.c.l.bf16 %v2881
  %v2883 = vunpack.c.h.bf16 %v2881
  %s2884 = scalar_lea.vmem %s1, 76
  %s2886 = ssub.s32 0, 4
  %s2887 = scalar_lea.vmem %s2884, %s2886
  %v2888 = vpack.c.bf16 %v2882, %v2082
  %2889 = vst [vmem:[%s2887] sm:$0xff] %v2888
  %s2890 = scalar_lea.vmem %s0, 2892
  %v2891 = vld [vmem:[%s2890] sm:$0xf]
  %v2892 = vunpack.c.l.bf16 %v2891
  %v2893 = vunpack.c.h.bf16 %v2891
  %s2894 = scalar_lea.vmem %s1, 1100
  %s2896 = ssub.s32 0, 4
  %s2897 = scalar_lea.vmem %s2894, %s2896
  %v2898 = vpack.c.bf16 %v2892, %v2087
  %2899 = vst [vmem:[%s2897] sm:$0xff] %v2898
  %s2900 = scalar_lea.vmem %s0, 1868
  %v2901 = vld [vmem:[%s2900] sm:$0xf]
  %v2902 = vunpack.c.l.bf16 %v2901
  %v2903 = vunpack.c.h.bf16 %v2901
  %s2904 = scalar_lea.vmem %s1, 2124
  %s2906 = ssub.s32 0, 4
  %s2907 = scalar_lea.vmem %s2904, %s2906
  %v2908 = vpack.c.bf16 %v2902, %v2092
  %2909 = vst [vmem:[%s2907] sm:$0xff] %v2908
  %s2910 = scalar_lea.vmem %s0, 844
  %v2911 = vld [vmem:[%s2910] sm:$0xf]
  %v2912 = vunpack.c.l.bf16 %v2911
  %v2913 = vunpack.c.h.bf16 %v2911
  %s2914 = scalar_lea.vmem %s1, 3148
  %s2916 = ssub.s32 0, 4
  %s2917 = scalar_lea.vmem %s2914, %s2916
  %v2918 = vpack.c.bf16 %v2912, %v2097
  %2919 = vst [vmem:[%s2917] sm:$0xff] %v2918
  %s2920 = scalar_lea.vmem %s0, 3660
  %v2921 = vld [vmem:[%s2920] sm:$0xf]
  %v2922 = vunpack.c.l.bf16 %v2921
  %v2923 = vunpack.c.h.bf16 %v2921
  %s2924 = scalar_lea.vmem %s1, 332
  %s2926 = ssub.s32 0, 4
  %s2927 = scalar_lea.vmem %s2924, %s2926
  %v2928 = vpack.c.bf16 %v2922, %v2102
  %2929 = vst [vmem:[%s2927] sm:$0xff] %v2928
  %s2930 = scalar_lea.vmem %s0, 2636
  %v2931 = vld [vmem:[%s2930] sm:$0xf]
  %v2932 = vunpack.c.l.bf16 %v2931
  %v2933 = vunpack.c.h.bf16 %v2931
  %s2934 = scalar_lea.vmem %s1, 1356
  %s2936 = ssub.s32 0, 4
  %s2937 = scalar_lea.vmem %s2934, %s2936
  %v2938 = vpack.c.bf16 %v2932, %v2107
  %2939 = vst [vmem:[%s2937] sm:$0xff] %v2938
  %s2940 = scalar_lea.vmem %s0, 1612
  %v2941 = vld [vmem:[%s2940] sm:$0xf]
  %v2942 = vunpack.c.l.bf16 %v2941
  %v2943 = vunpack.c.h.bf16 %v2941
  %s2944 = scalar_lea.vmem %s1, 2380
  %s2946 = ssub.s32 0, 4
  %s2947 = scalar_lea.vmem %s2944, %s2946
  %v2948 = vpack.c.bf16 %v2942, %v2112
  %2949 = vst [vmem:[%s2947] sm:$0xff] %v2948
  %s2950 = scalar_lea.vmem %s0, 588
  %v2951 = vld [vmem:[%s2950] sm:$0xf]
  %v2952 = vunpack.c.l.bf16 %v2951
  %v2953 = vunpack.c.h.bf16 %v2951
  %s2954 = scalar_lea.vmem %s1, 3404
  %s2956 = ssub.s32 0, 4
  %s2957 = scalar_lea.vmem %s2954, %s2956
  %v2958 = vpack.c.bf16 %v2952, %v2117
  %2959 = vst [vmem:[%s2957] sm:$0xff] %v2958
  %s2960 = scalar_lea.vmem %s0, 3404
  %v2961 = vld [vmem:[%s2960] sm:$0xf]
  %v2962 = vunpack.c.l.bf16 %v2961
  %v2963 = vunpack.c.h.bf16 %v2961
  %s2964 = scalar_lea.vmem %s1, 588
  %s2966 = ssub.s32 0, 4
  %s2967 = scalar_lea.vmem %s2964, %s2966
  %v2968 = vpack.c.bf16 %v2962, %v2122
  %2969 = vst [vmem:[%s2967] sm:$0xff] %v2968
  %s2970 = scalar_lea.vmem %s0, 2380
  %v2971 = vld [vmem:[%s2970] sm:$0xf]
  %v2972 = vunpack.c.l.bf16 %v2971
  %v2973 = vunpack.c.h.bf16 %v2971
  %s2974 = scalar_lea.vmem %s1, 1612
  %s2976 = ssub.s32 0, 4
  %s2977 = scalar_lea.vmem %s2974, %s2976
  %v2978 = vpack.c.bf16 %v2972, %v2127
  %2979 = vst [vmem:[%s2977] sm:$0xff] %v2978
  %s2980 = scalar_lea.vmem %s0, 1356
  %v2981 = vld [vmem:[%s2980] sm:$0xf]
  %v2982 = vunpack.c.l.bf16 %v2981
  %v2983 = vunpack.c.h.bf16 %v2981
  %s2984 = scalar_lea.vmem %s1, 2636
  %s2986 = ssub.s32 0, 4
  %s2987 = scalar_lea.vmem %s2984, %s2986
  %v2988 = vpack.c.bf16 %v2982, %v2132
  %2989 = vst [vmem:[%s2987] sm:$0xff] %v2988
  %s2990 = scalar_lea.vmem %s0, 332
  %v2991 = vld [vmem:[%s2990] sm:$0xf]
  %v2992 = vunpack.c.l.bf16 %v2991
  %v2993 = vunpack.c.h.bf16 %v2991
  %s2994 = scalar_lea.vmem %s1, 3660
  %s2996 = ssub.s32 0, 4
  %s2997 = scalar_lea.vmem %s2994, %s2996
  %v2998 = vpack.c.bf16 %v2992, %v2137
  %2999 = vst [vmem:[%s2997] sm:$0xff] %v2998
  %s3000 = scalar_lea.vmem %s0, 3148
  %v3001 = vld [vmem:[%s3000] sm:$0xf]
  %v3002 = vunpack.c.l.bf16 %v3001
  %v3003 = vunpack.c.h.bf16 %v3001
  %s3004 = scalar_lea.vmem %s1, 844
  %s3006 = ssub.s32 0, 4
  %s3007 = scalar_lea.vmem %s3004, %s3006
  %v3008 = vpack.c.bf16 %v3002, %v2142
  %3009 = vst [vmem:[%s3007] sm:$0xff] %v3008
  %s3010 = scalar_lea.vmem %s0, 2124
  %v3011 = vld [vmem:[%s3010] sm:$0xf]
  %v3012 = vunpack.c.l.bf16 %v3011
  %v3013 = vunpack.c.h.bf16 %v3011
  %s3014 = scalar_lea.vmem %s1, 1868
  %s3016 = ssub.s32 0, 4
  %s3017 = scalar_lea.vmem %s3014, %s3016
  %v3018 = vpack.c.bf16 %v3012, %v2147
  %3019 = vst [vmem:[%s3017] sm:$0xff] %v3018
  %s3020 = scalar_lea.vmem %s0, 1100
  %v3021 = vld [vmem:[%s3020] sm:$0xf]
  %v3022 = vunpack.c.l.bf16 %v3021
  %v3023 = vunpack.c.h.bf16 %v3021
  %s3024 = scalar_lea.vmem %s1, 2892
  %s3026 = ssub.s32 0, 4
  %s3027 = scalar_lea.vmem %s3024, %s3026
  %v3028 = vpack.c.bf16 %v3022, %v2152
  %3029 = vst [vmem:[%s3027] sm:$0xff] %v3028
  %s3030 = scalar_lea.vmem %s0, 76
  %v3031 = vld [vmem:[%s3030] sm:$0xf]
  %v3032 = vunpack.c.l.bf16 %v3031
  %v3033 = vunpack.c.h.bf16 %v3031
  %s3034 = scalar_lea.vmem %s1, 3916
  %s3036 = ssub.s32 0, 4
  %s3037 = scalar_lea.vmem %s3034, %s3036
  %v3038 = vpack.c.bf16 %v3032, %v2157
  %3039 = vst [vmem:[%s3037] sm:$0xff] %v3038
  %s3040 = scalar_lea.vmem %s0, 3948
  %v3041 = vld [vmem:[%s3040] sm:$0xf]
  %v3042 = vunpack.c.l.bf16 %v3041
  %v3043 = vunpack.c.h.bf16 %v3041
  %s3044 = scalar_lea.vmem %s1, 108
  %s3046 = ssub.s32 0, 4
  %s3047 = scalar_lea.vmem %s3044, %s3046
  %v3048 = vpack.c.bf16 %v3042, %v2162
  %3049 = vst [vmem:[%s3047] sm:$0xff] %v3048
  %s3050 = scalar_lea.vmem %s0, 2924
  %v3051 = vld [vmem:[%s3050] sm:$0xf]
  %v3052 = vunpack.c.l.bf16 %v3051
  %v3053 = vunpack.c.h.bf16 %v3051
  %s3054 = scalar_lea.vmem %s1, 1132
  %s3056 = ssub.s32 0, 4
  %s3057 = scalar_lea.vmem %s3054, %s3056
  %v3058 = vpack.c.bf16 %v3052, %v2167
  %3059 = vst [vmem:[%s3057] sm:$0xff] %v3058
  %s3060 = scalar_lea.vmem %s0, 1900
  %v3061 = vld [vmem:[%s3060] sm:$0xf]
  %v3062 = vunpack.c.l.bf16 %v3061
  %v3063 = vunpack.c.h.bf16 %v3061
  %s3064 = scalar_lea.vmem %s1, 2156
  %s3066 = ssub.s32 0, 4
  %s3067 = scalar_lea.vmem %s3064, %s3066
  %v3068 = vpack.c.bf16 %v3062, %v2172
  %3069 = vst [vmem:[%s3067] sm:$0xff] %v3068
  %s3070 = scalar_lea.vmem %s0, 876
  %v3071 = vld [vmem:[%s3070] sm:$0xf]
  %v3072 = vunpack.c.l.bf16 %v3071
  %v3073 = vunpack.c.h.bf16 %v3071
  %s3074 = scalar_lea.vmem %s1, 3180
  %s3076 = ssub.s32 0, 4
  %s3077 = scalar_lea.vmem %s3074, %s3076
  %v3078 = vpack.c.bf16 %v3072, %v2177
  %3079 = vst [vmem:[%s3077] sm:$0xff] %v3078
  %s3080 = scalar_lea.vmem %s0, 3692
  %v3081 = vld [vmem:[%s3080] sm:$0xf]
  %v3082 = vunpack.c.l.bf16 %v3081
  %v3083 = vunpack.c.h.bf16 %v3081
  %s3084 = scalar_lea.vmem %s1, 364
  %s3086 = ssub.s32 0, 4
  %s3087 = scalar_lea.vmem %s3084, %s3086
  %v3088 = vpack.c.bf16 %v3082, %v2182
  %3089 = vst [vmem:[%s3087] sm:$0xff] %v3088
  %s3090 = scalar_lea.vmem %s0, 2668
  %v3091 = vld [vmem:[%s3090] sm:$0xf]
  %v3092 = vunpack.c.l.bf16 %v3091
  %v3093 = vunpack.c.h.bf16 %v3091
  %s3094 = scalar_lea.vmem %s1, 1388
  %s3096 = ssub.s32 0, 4
  %s3097 = scalar_lea.vmem %s3094, %s3096
  %v3098 = vpack.c.bf16 %v3092, %v2187
  %3099 = vst [vmem:[%s3097] sm:$0xff] %v3098
  %s3100 = scalar_lea.vmem %s0, 1644
  %v3101 = vld [vmem:[%s3100] sm:$0xf]
  %v3102 = vunpack.c.l.bf16 %v3101
  %v3103 = vunpack.c.h.bf16 %v3101
  %s3104 = scalar_lea.vmem %s1, 2412
  %s3106 = ssub.s32 0, 4
  %s3107 = scalar_lea.vmem %s3104, %s3106
  %v3108 = vpack.c.bf16 %v3102, %v2192
  %3109 = vst [vmem:[%s3107] sm:$0xff] %v3108
  %s3110 = scalar_lea.vmem %s0, 620
  %v3111 = vld [vmem:[%s3110] sm:$0xf]
  %v3112 = vunpack.c.l.bf16 %v3111
  %v3113 = vunpack.c.h.bf16 %v3111
  %s3114 = scalar_lea.vmem %s1, 3436
  %s3116 = ssub.s32 0, 4
  %s3117 = scalar_lea.vmem %s3114, %s3116
  %v3118 = vpack.c.bf16 %v3112, %v2197
  %3119 = vst [vmem:[%s3117] sm:$0xff] %v3118
  %s3120 = scalar_lea.vmem %s0, 3436
  %v3121 = vld [vmem:[%s3120] sm:$0xf]
  %v3122 = vunpack.c.l.bf16 %v3121
  %v3123 = vunpack.c.h.bf16 %v3121
  %s3124 = scalar_lea.vmem %s1, 620
  %s3126 = ssub.s32 0, 4
  %s3127 = scalar_lea.vmem %s3124, %s3126
  %v3128 = vpack.c.bf16 %v3122, %v2202
  %3129 = vst [vmem:[%s3127] sm:$0xff] %v3128
  %s3130 = scalar_lea.vmem %s0, 2412
  %v3131 = vld [vmem:[%s3130] sm:$0xf]
  %v3132 = vunpack.c.l.bf16 %v3131
  %v3133 = vunpack.c.h.bf16 %v3131
  %s3134 = scalar_lea.vmem %s1, 1644
  %s3136 = ssub.s32 0, 4
  %s3137 = scalar_lea.vmem %s3134, %s3136
  %v3138 = vpack.c.bf16 %v3132, %v2207
  %3139 = vst [vmem:[%s3137] sm:$0xff] %v3138
  %s3140 = scalar_lea.vmem %s0, 1388
  %v3141 = vld [vmem:[%s3140] sm:$0xf]
  %v3142 = vunpack.c.l.bf16 %v3141
  %v3143 = vunpack.c.h.bf16 %v3141
  %s3144 = scalar_lea.vmem %s1, 2668
  %s3146 = ssub.s32 0, 4
  %s3147 = scalar_lea.vmem %s3144, %s3146
  %v3148 = vpack.c.bf16 %v3142, %v2212
  %3149 = vst [vmem:[%s3147] sm:$0xff] %v3148
  %s3150 = scalar_lea.vmem %s0, 364
  %v3151 = vld [vmem:[%s3150] sm:$0xf]
  %v3152 = vunpack.c.l.bf16 %v3151
  %v3153 = vunpack.c.h.bf16 %v3151
  %s3154 = scalar_lea.vmem %s1, 3692
  %s3156 = ssub.s32 0, 4
  %s3157 = scalar_lea.vmem %s3154, %s3156
  %v3158 = vpack.c.bf16 %v3152, %v2217
  %3159 = vst [vmem:[%s3157] sm:$0xff] %v3158
  %s3160 = scalar_lea.vmem %s0, 3180
  %v3161 = vld [vmem:[%s3160] sm:$0xf]
  %v3162 = vunpack.c.l.bf16 %v3161
  %v3163 = vunpack.c.h.bf16 %v3161
  %s3164 = scalar_lea.vmem %s1, 876
  %s3166 = ssub.s32 0, 4
  %s3167 = scalar_lea.vmem %s3164, %s3166
  %v3168 = vpack.c.bf16 %v3162, %v2222
  %3169 = vst [vmem:[%s3167] sm:$0xff] %v3168
  %s3170 = scalar_lea.vmem %s0, 2156
  %v3171 = vld [vmem:[%s3170] sm:$0xf]
  %v3172 = vunpack.c.l.bf16 %v3171
  %v3173 = vunpack.c.h.bf16 %v3171
  %s3174 = scalar_lea.vmem %s1, 1900
  %s3176 = ssub.s32 0, 4
  %s3177 = scalar_lea.vmem %s3174, %s3176
  %v3178 = vpack.c.bf16 %v3172, %v2227
  %3179 = vst [vmem:[%s3177] sm:$0xff] %v3178
  %s3180 = scalar_lea.vmem %s0, 1132
  %v3181 = vld [vmem:[%s3180] sm:$0xf]
  %v3182 = vunpack.c.l.bf16 %v3181
  %v3183 = vunpack.c.h.bf16 %v3181
  %s3184 = scalar_lea.vmem %s1, 2924
  %s3186 = ssub.s32 0, 4
  %s3187 = scalar_lea.vmem %s3184, %s3186
  %v3188 = vpack.c.bf16 %v3182, %v2232
  %3189 = vst [vmem:[%s3187] sm:$0xff] %v3188
  %s3190 = scalar_lea.vmem %s0, 108
  %v3191 = vld [vmem:[%s3190] sm:$0xf]
  %v3192 = vunpack.c.l.bf16 %v3191
  %v3193 = vunpack.c.h.bf16 %v3191
  %s3194 = scalar_lea.vmem %s1, 3948
  %s3196 = ssub.s32 0, 4
  %s3197 = scalar_lea.vmem %s3194, %s3196
  %v3198 = vpack.c.bf16 %v3192, %v2237
  %3199 = vst [vmem:[%s3197] sm:$0xff] %v3198
  %s3200 = scalar_lea.vmem %s0, 3980
  %v3201 = vld [vmem:[%s3200] sm:$0xf]
  %v3202 = vunpack.c.l.bf16 %v3201
  %v3203 = vunpack.c.h.bf16 %v3201
  %s3204 = scalar_lea.vmem %s1, 140
  %s3206 = ssub.s32 0, 4
  %s3207 = scalar_lea.vmem %s3204, %s3206
  %v3208 = vpack.c.bf16 %v3202, %v2242
  %3209 = vst [vmem:[%s3207] sm:$0xff] %v3208
  %s3210 = scalar_lea.vmem %s0, 2956
  %v3211 = vld [vmem:[%s3210] sm:$0xf]
  %v3212 = vunpack.c.l.bf16 %v3211
  %v3213 = vunpack.c.h.bf16 %v3211
  %s3214 = scalar_lea.vmem %s1, 1164
  %s3216 = ssub.s32 0, 4
  %s3217 = scalar_lea.vmem %s3214, %s3216
  %v3218 = vpack.c.bf16 %v3212, %v2247
  %3219 = vst [vmem:[%s3217] sm:$0xff] %v3218
  %s3220 = scalar_lea.vmem %s0, 1932
  %v3221 = vld [vmem:[%s3220] sm:$0xf]
  %v3222 = vunpack.c.l.bf16 %v3221
  %v3223 = vunpack.c.h.bf16 %v3221
  %s3224 = scalar_lea.vmem %s1, 2188
  %s3226 = ssub.s32 0, 4
  %s3227 = scalar_lea.vmem %s3224, %s3226
  %v3228 = vpack.c.bf16 %v3222, %v2252
  %3229 = vst [vmem:[%s3227] sm:$0xff] %v3228
  %s3230 = scalar_lea.vmem %s0, 908
  %v3231 = vld [vmem:[%s3230] sm:$0xf]
  %v3232 = vunpack.c.l.bf16 %v3231
  %v3233 = vunpack.c.h.bf16 %v3231
  %s3234 = scalar_lea.vmem %s1, 3212
  %s3236 = ssub.s32 0, 4
  %s3237 = scalar_lea.vmem %s3234, %s3236
  %v3238 = vpack.c.bf16 %v3232, %v2257
  %3239 = vst [vmem:[%s3237] sm:$0xff] %v3238
  %s3240 = scalar_lea.vmem %s0, 3724
  %v3241 = vld [vmem:[%s3240] sm:$0xf]
  %v3242 = vunpack.c.l.bf16 %v3241
  %v3243 = vunpack.c.h.bf16 %v3241
  %s3244 = scalar_lea.vmem %s1, 396
  %s3246 = ssub.s32 0, 4
  %s3247 = scalar_lea.vmem %s3244, %s3246
  %v3248 = vpack.c.bf16 %v3242, %v2262
  %3249 = vst [vmem:[%s3247] sm:$0xff] %v3248
  %s3250 = scalar_lea.vmem %s0, 2700
  %v3251 = vld [vmem:[%s3250] sm:$0xf]
  %v3252 = vunpack.c.l.bf16 %v3251
  %v3253 = vunpack.c.h.bf16 %v3251
  %s3254 = scalar_lea.vmem %s1, 1420
  %s3256 = ssub.s32 0, 4
  %s3257 = scalar_lea.vmem %s3254, %s3256
  %v3258 = vpack.c.bf16 %v3252, %v2267
  %3259 = vst [vmem:[%s3257] sm:$0xff] %v3258
  %s3260 = scalar_lea.vmem %s0, 1676
  %v3261 = vld [vmem:[%s3260] sm:$0xf]
  %v3262 = vunpack.c.l.bf16 %v3261
  %v3263 = vunpack.c.h.bf16 %v3261
  %s3264 = scalar_lea.vmem %s1, 2444
  %s3266 = ssub.s32 0, 4
  %s3267 = scalar_lea.vmem %s3264, %s3266
  %v3268 = vpack.c.bf16 %v3262, %v2272
  %3269 = vst [vmem:[%s3267] sm:$0xff] %v3268
  %s3270 = scalar_lea.vmem %s0, 652
  %v3271 = vld [vmem:[%s3270] sm:$0xf]
  %v3272 = vunpack.c.l.bf16 %v3271
  %v3273 = vunpack.c.h.bf16 %v3271
  %s3274 = scalar_lea.vmem %s1, 3468
  %s3276 = ssub.s32 0, 4
  %s3277 = scalar_lea.vmem %s3274, %s3276
  %v3278 = vpack.c.bf16 %v3272, %v2277
  %3279 = vst [vmem:[%s3277] sm:$0xff] %v3278
  %s3280 = scalar_lea.vmem %s0, 3468
  %v3281 = vld [vmem:[%s3280] sm:$0xf]
  %v3282 = vunpack.c.l.bf16 %v3281
  %v3283 = vunpack.c.h.bf16 %v3281
  %s3284 = scalar_lea.vmem %s1, 652
  %s3286 = ssub.s32 0, 4
  %s3287 = scalar_lea.vmem %s3284, %s3286
  %v3288 = vpack.c.bf16 %v3282, %v2282
  %3289 = vst [vmem:[%s3287] sm:$0xff] %v3288
  %s3290 = scalar_lea.vmem %s0, 2444
  %v3291 = vld [vmem:[%s3290] sm:$0xf]
  %v3292 = vunpack.c.l.bf16 %v3291
  %v3293 = vunpack.c.h.bf16 %v3291
  %s3294 = scalar_lea.vmem %s1, 1676
  %s3296 = ssub.s32 0, 4
  %s3297 = scalar_lea.vmem %s3294, %s3296
  %v3298 = vpack.c.bf16 %v3292, %v2287
  %3299 = vst [vmem:[%s3297] sm:$0xff] %v3298
  %s3300 = scalar_lea.vmem %s0, 1420
  %v3301 = vld [vmem:[%s3300] sm:$0xf]
  %v3302 = vunpack.c.l.bf16 %v3301
  %v3303 = vunpack.c.h.bf16 %v3301
  %s3304 = scalar_lea.vmem %s1, 2700
  %s3306 = ssub.s32 0, 4
  %s3307 = scalar_lea.vmem %s3304, %s3306
  %v3308 = vpack.c.bf16 %v3302, %v2292
  %3309 = vst [vmem:[%s3307] sm:$0xff] %v3308
  %s3310 = scalar_lea.vmem %s0, 396
  %v3311 = vld [vmem:[%s3310] sm:$0xf]
  %v3312 = vunpack.c.l.bf16 %v3311
  %v3313 = vunpack.c.h.bf16 %v3311
  %s3314 = scalar_lea.vmem %s1, 3724
  %s3316 = ssub.s32 0, 4
  %s3317 = scalar_lea.vmem %s3314, %s3316
  %v3318 = vpack.c.bf16 %v3312, %v2297
  %3319 = vst [vmem:[%s3317] sm:$0xff] %v3318
  %s3320 = scalar_lea.vmem %s0, 3212
  %v3321 = vld [vmem:[%s3320] sm:$0xf]
  %v3322 = vunpack.c.l.bf16 %v3321
  %v3323 = vunpack.c.h.bf16 %v3321
  %s3324 = scalar_lea.vmem %s1, 908
  %s3326 = ssub.s32 0, 4
  %s3327 = scalar_lea.vmem %s3324, %s3326
  %v3328 = vpack.c.bf16 %v3322, %v2302
  %3329 = vst [vmem:[%s3327] sm:$0xff] %v3328
  %s3330 = scalar_lea.vmem %s0, 2188
  %v3331 = vld [vmem:[%s3330] sm:$0xf]
  %v3332 = vunpack.c.l.bf16 %v3331
  %v3333 = vunpack.c.h.bf16 %v3331
  %s3334 = scalar_lea.vmem %s1, 1932
  %s3336 = ssub.s32 0, 4
  %s3337 = scalar_lea.vmem %s3334, %s3336
  %v3338 = vpack.c.bf16 %v3332, %v2307
  %3339 = vst [vmem:[%s3337] sm:$0xff] %v3338
  %s3340 = scalar_lea.vmem %s0, 1164
  %v3341 = vld [vmem:[%s3340] sm:$0xf]
  %v3342 = vunpack.c.l.bf16 %v3341
  %v3343 = vunpack.c.h.bf16 %v3341
  %s3344 = scalar_lea.vmem %s1, 2956
  %s3346 = ssub.s32 0, 4
  %s3347 = scalar_lea.vmem %s3344, %s3346
  %v3348 = vpack.c.bf16 %v3342, %v2312
  %3349 = vst [vmem:[%s3347] sm:$0xff] %v3348
  %s3350 = scalar_lea.vmem %s0, 140
  %v3351 = vld [vmem:[%s3350] sm:$0xf]
  %v3352 = vunpack.c.l.bf16 %v3351
  %v3353 = vunpack.c.h.bf16 %v3351
  %s3354 = scalar_lea.vmem %s1, 3980
  %s3356 = ssub.s32 0, 4
  %s3357 = scalar_lea.vmem %s3354, %s3356
  %v3358 = vpack.c.bf16 %v3352, %v2317
  %3359 = vst [vmem:[%s3357] sm:$0xff] %v3358
  %s3360 = scalar_lea.vmem %s0, 4012
  %v3361 = vld [vmem:[%s3360] sm:$0xf]
  %v3362 = vunpack.c.l.bf16 %v3361
  %v3363 = vunpack.c.h.bf16 %v3361
  %s3364 = scalar_lea.vmem %s1, 172
  %s3366 = ssub.s32 0, 4
  %s3367 = scalar_lea.vmem %s3364, %s3366
  %v3368 = vpack.c.bf16 %v3362, %v2322
  %3369 = vst [vmem:[%s3367] sm:$0xff] %v3368
  %s3370 = scalar_lea.vmem %s0, 2988
  %v3371 = vld [vmem:[%s3370] sm:$0xf]
  %v3372 = vunpack.c.l.bf16 %v3371
  %v3373 = vunpack.c.h.bf16 %v3371
  %s3374 = scalar_lea.vmem %s1, 1196
  %s3376 = ssub.s32 0, 4
  %s3377 = scalar_lea.vmem %s3374, %s3376
  %v3378 = vpack.c.bf16 %v3372, %v2327
  %3379 = vst [vmem:[%s3377] sm:$0xff] %v3378
  %s3380 = scalar_lea.vmem %s0, 1964
  %v3381 = vld [vmem:[%s3380] sm:$0xf]
  %v3382 = vunpack.c.l.bf16 %v3381
  %v3383 = vunpack.c.h.bf16 %v3381
  %s3384 = scalar_lea.vmem %s1, 2220
  %s3386 = ssub.s32 0, 4
  %s3387 = scalar_lea.vmem %s3384, %s3386
  %v3388 = vpack.c.bf16 %v3382, %v2332
  %3389 = vst [vmem:[%s3387] sm:$0xff] %v3388
  %s3390 = scalar_lea.vmem %s0, 940
  %v3391 = vld [vmem:[%s3390] sm:$0xf]
  %v3392 = vunpack.c.l.bf16 %v3391
  %v3393 = vunpack.c.h.bf16 %v3391
  %s3394 = scalar_lea.vmem %s1, 3244
  %s3396 = ssub.s32 0, 4
  %s3397 = scalar_lea.vmem %s3394, %s3396
  %v3398 = vpack.c.bf16 %v3392, %v2337
  %3399 = vst [vmem:[%s3397] sm:$0xff] %v3398
  %s3400 = scalar_lea.vmem %s0, 3756
  %v3401 = vld [vmem:[%s3400] sm:$0xf]
  %v3402 = vunpack.c.l.bf16 %v3401
  %v3403 = vunpack.c.h.bf16 %v3401
  %s3404 = scalar_lea.vmem %s1, 428
  %s3406 = ssub.s32 0, 4
  %s3407 = scalar_lea.vmem %s3404, %s3406
  %v3408 = vpack.c.bf16 %v3402, %v2342
  %3409 = vst [vmem:[%s3407] sm:$0xff] %v3408
  %s3410 = scalar_lea.vmem %s0, 2732
  %v3411 = vld [vmem:[%s3410] sm:$0xf]
  %v3412 = vunpack.c.l.bf16 %v3411
  %v3413 = vunpack.c.h.bf16 %v3411
  %s3414 = scalar_lea.vmem %s1, 1452
  %s3416 = ssub.s32 0, 4
  %s3417 = scalar_lea.vmem %s3414, %s3416
  %v3418 = vpack.c.bf16 %v3412, %v2347
  %3419 = vst [vmem:[%s3417] sm:$0xff] %v3418
  %s3420 = scalar_lea.vmem %s0, 1708
  %v3421 = vld [vmem:[%s3420] sm:$0xf]
  %v3422 = vunpack.c.l.bf16 %v3421
  %v3423 = vunpack.c.h.bf16 %v3421
  %s3424 = scalar_lea.vmem %s1, 2476
  %s3426 = ssub.s32 0, 4
  %s3427 = scalar_lea.vmem %s3424, %s3426
  %v3428 = vpack.c.bf16 %v3422, %v2352
  %3429 = vst [vmem:[%s3427] sm:$0xff] %v3428
  %s3430 = scalar_lea.vmem %s0, 684
  %v3431 = vld [vmem:[%s3430] sm:$0xf]
  %v3432 = vunpack.c.l.bf16 %v3431
  %v3433 = vunpack.c.h.bf16 %v3431
  %s3434 = scalar_lea.vmem %s1, 3500
  %s3436 = ssub.s32 0, 4
  %s3437 = scalar_lea.vmem %s3434, %s3436
  %v3438 = vpack.c.bf16 %v3432, %v2357
  %3439 = vst [vmem:[%s3437] sm:$0xff] %v3438
  %s3440 = scalar_lea.vmem %s0, 3500
  %v3441 = vld [vmem:[%s3440] sm:$0xf]
  %v3442 = vunpack.c.l.bf16 %v3441
  %v3443 = vunpack.c.h.bf16 %v3441
  %s3444 = scalar_lea.vmem %s1, 684
  %s3446 = ssub.s32 0, 4
  %s3447 = scalar_lea.vmem %s3444, %s3446
  %v3448 = vpack.c.bf16 %v3442, %v2362
  %3449 = vst [vmem:[%s3447] sm:$0xff] %v3448
  %s3450 = scalar_lea.vmem %s0, 2476
  %v3451 = vld [vmem:[%s3450] sm:$0xf]
  %v3452 = vunpack.c.l.bf16 %v3451
  %v3453 = vunpack.c.h.bf16 %v3451
  %s3454 = scalar_lea.vmem %s1, 1708
  %s3456 = ssub.s32 0, 4
  %s3457 = scalar_lea.vmem %s3454, %s3456
  %v3458 = vpack.c.bf16 %v3452, %v2367
  %3459 = vst [vmem:[%s3457] sm:$0xff] %v3458
  %s3460 = scalar_lea.vmem %s0, 1452
  %v3461 = vld [vmem:[%s3460] sm:$0xf]
  %v3462 = vunpack.c.l.bf16 %v3461
  %v3463 = vunpack.c.h.bf16 %v3461
  %s3464 = scalar_lea.vmem %s1, 2732
  %s3466 = ssub.s32 0, 4
  %s3467 = scalar_lea.vmem %s3464, %s3466
  %v3468 = vpack.c.bf16 %v3462, %v2372
  %3469 = vst [vmem:[%s3467] sm:$0xff] %v3468
  %s3470 = scalar_lea.vmem %s0, 428
  %v3471 = vld [vmem:[%s3470] sm:$0xf]
  %v3472 = vunpack.c.l.bf16 %v3471
  %v3473 = vunpack.c.h.bf16 %v3471
  %s3474 = scalar_lea.vmem %s1, 3756
  %s3476 = ssub.s32 0, 4
  %s3477 = scalar_lea.vmem %s3474, %s3476
  %v3478 = vpack.c.bf16 %v3472, %v2377
  %3479 = vst [vmem:[%s3477] sm:$0xff] %v3478
  %s3480 = scalar_lea.vmem %s0, 3244
  %v3481 = vld [vmem:[%s3480] sm:$0xf]
  %v3482 = vunpack.c.l.bf16 %v3481
  %v3483 = vunpack.c.h.bf16 %v3481
  %s3484 = scalar_lea.vmem %s1, 940
  %s3486 = ssub.s32 0, 4
  %s3487 = scalar_lea.vmem %s3484, %s3486
  %v3488 = vpack.c.bf16 %v3482, %v2382
  %3489 = vst [vmem:[%s3487] sm:$0xff] %v3488
  %s3490 = scalar_lea.vmem %s0, 2220
  %v3491 = vld [vmem:[%s3490] sm:$0xf]
  %v3492 = vunpack.c.l.bf16 %v3491
  %v3493 = vunpack.c.h.bf16 %v3491
  %s3494 = scalar_lea.vmem %s1, 1964
  %s3496 = ssub.s32 0, 4
  %s3497 = scalar_lea.vmem %s3494, %s3496
  %v3498 = vpack.c.bf16 %v3492, %v2387
  %3499 = vst [vmem:[%s3497] sm:$0xff] %v3498
  %s3500 = scalar_lea.vmem %s0, 1196
  %v3501 = vld [vmem:[%s3500] sm:$0xf]
  %v3502 = vunpack.c.l.bf16 %v3501
  %v3503 = vunpack.c.h.bf16 %v3501
  %s3504 = scalar_lea.vmem %s1, 2988
  %s3506 = ssub.s32 0, 4
  %s3507 = scalar_lea.vmem %s3504, %s3506
  %v3508 = vpack.c.bf16 %v3502, %v2392
  %3509 = vst [vmem:[%s3507] sm:$0xff] %v3508
  %s3510 = scalar_lea.vmem %s0, 172
  %v3511 = vld [vmem:[%s3510] sm:$0xf]
  %v3512 = vunpack.c.l.bf16 %v3511
  %v3513 = vunpack.c.h.bf16 %v3511
  %s3514 = scalar_lea.vmem %s1, 4012
  %s3516 = ssub.s32 0, 4
  %s3517 = scalar_lea.vmem %s3514, %s3516
  %v3518 = vpack.c.bf16 %v3512, %v2397
  %3519 = vst [vmem:[%s3517] sm:$0xff] %v3518
  %s3520 = scalar_lea.vmem %s0, 4044
  %v3521 = vld [vmem:[%s3520] sm:$0xf]
  %v3522 = vunpack.c.l.bf16 %v3521
  %v3523 = vunpack.c.h.bf16 %v3521
  %s3524 = scalar_lea.vmem %s1, 204
  %s3526 = ssub.s32 0, 4
  %s3527 = scalar_lea.vmem %s3524, %s3526
  %v3528 = vpack.c.bf16 %v3522, %v2402
  %3529 = vst [vmem:[%s3527] sm:$0xff] %v3528
  %s3530 = scalar_lea.vmem %s0, 3020
  %v3531 = vld [vmem:[%s3530] sm:$0xf]
  %v3532 = vunpack.c.l.bf16 %v3531
  %v3533 = vunpack.c.h.bf16 %v3531
  %s3534 = scalar_lea.vmem %s1, 1228
  %s3536 = ssub.s32 0, 4
  %s3537 = scalar_lea.vmem %s3534, %s3536
  %v3538 = vpack.c.bf16 %v3532, %v2407
  %3539 = vst [vmem:[%s3537] sm:$0xff] %v3538
  %s3540 = scalar_lea.vmem %s0, 1996
  %v3541 = vld [vmem:[%s3540] sm:$0xf]
  %v3542 = vunpack.c.l.bf16 %v3541
  %v3543 = vunpack.c.h.bf16 %v3541
  %s3544 = scalar_lea.vmem %s1, 2252
  %s3546 = ssub.s32 0, 4
  %s3547 = scalar_lea.vmem %s3544, %s3546
  %v3548 = vpack.c.bf16 %v3542, %v2412
  %3549 = vst [vmem:[%s3547] sm:$0xff] %v3548
  %s3550 = scalar_lea.vmem %s0, 972
  %v3551 = vld [vmem:[%s3550] sm:$0xf]
  %v3552 = vunpack.c.l.bf16 %v3551
  %v3553 = vunpack.c.h.bf16 %v3551
  %s3554 = scalar_lea.vmem %s1, 3276
  %s3556 = ssub.s32 0, 4
  %s3557 = scalar_lea.vmem %s3554, %s3556
  %v3558 = vpack.c.bf16 %v3552, %v2417
  %3559 = vst [vmem:[%s3557] sm:$0xff] %v3558
  %s3560 = scalar_lea.vmem %s0, 3788
  %v3561 = vld [vmem:[%s3560] sm:$0xf]
  %v3562 = vunpack.c.l.bf16 %v3561
  %v3563 = vunpack.c.h.bf16 %v3561
  %s3564 = scalar_lea.vmem %s1, 460
  %s3566 = ssub.s32 0, 4
  %s3567 = scalar_lea.vmem %s3564, %s3566
  %v3568 = vpack.c.bf16 %v3562, %v2422
  %3569 = vst [vmem:[%s3567] sm:$0xff] %v3568
  %s3570 = scalar_lea.vmem %s0, 2764
  %v3571 = vld [vmem:[%s3570] sm:$0xf]
  %v3572 = vunpack.c.l.bf16 %v3571
  %v3573 = vunpack.c.h.bf16 %v3571
  %s3574 = scalar_lea.vmem %s1, 1484
  %s3576 = ssub.s32 0, 4
  %s3577 = scalar_lea.vmem %s3574, %s3576
  %v3578 = vpack.c.bf16 %v3572, %v2427
  %3579 = vst [vmem:[%s3577] sm:$0xff] %v3578
  %s3580 = scalar_lea.vmem %s0, 1740
  %v3581 = vld [vmem:[%s3580] sm:$0xf]
  %v3582 = vunpack.c.l.bf16 %v3581
  %v3583 = vunpack.c.h.bf16 %v3581
  %s3584 = scalar_lea.vmem %s1, 2508
  %s3586 = ssub.s32 0, 4
  %s3587 = scalar_lea.vmem %s3584, %s3586
  %v3588 = vpack.c.bf16 %v3582, %v2432
  %3589 = vst [vmem:[%s3587] sm:$0xff] %v3588
  %s3590 = scalar_lea.vmem %s0, 716
  %v3591 = vld [vmem:[%s3590] sm:$0xf]
  %v3592 = vunpack.c.l.bf16 %v3591
  %v3593 = vunpack.c.h.bf16 %v3591
  %s3594 = scalar_lea.vmem %s1, 3532
  %s3596 = ssub.s32 0, 4
  %s3597 = scalar_lea.vmem %s3594, %s3596
  %v3598 = vpack.c.bf16 %v3592, %v2437
  %3599 = vst [vmem:[%s3597] sm:$0xff] %v3598
  %s3600 = scalar_lea.vmem %s0, 3532
  %v3601 = vld [vmem:[%s3600] sm:$0xf]
  %v3602 = vunpack.c.l.bf16 %v3601
  %v3603 = vunpack.c.h.bf16 %v3601
  %s3604 = scalar_lea.vmem %s1, 716
  %s3606 = ssub.s32 0, 4
  %s3607 = scalar_lea.vmem %s3604, %s3606
  %v3608 = vpack.c.bf16 %v3602, %v2442
  %3609 = vst [vmem:[%s3607] sm:$0xff] %v3608
  %s3610 = scalar_lea.vmem %s0, 2508
  %v3611 = vld [vmem:[%s3610] sm:$0xf]
  %v3612 = vunpack.c.l.bf16 %v3611
  %v3613 = vunpack.c.h.bf16 %v3611
  %s3614 = scalar_lea.vmem %s1, 1740
  %s3616 = ssub.s32 0, 4
  %s3617 = scalar_lea.vmem %s3614, %s3616
  %v3618 = vpack.c.bf16 %v3612, %v2447
  %3619 = vst [vmem:[%s3617] sm:$0xff] %v3618
  %s3620 = scalar_lea.vmem %s0, 1484
  %v3621 = vld [vmem:[%s3620] sm:$0xf]
  %v3622 = vunpack.c.l.bf16 %v3621
  %v3623 = vunpack.c.h.bf16 %v3621
  %s3624 = scalar_lea.vmem %s1, 2764
  %s3626 = ssub.s32 0, 4
  %s3627 = scalar_lea.vmem %s3624, %s3626
  %v3628 = vpack.c.bf16 %v3622, %v2452
  %3629 = vst [vmem:[%s3627] sm:$0xff] %v3628
  %s3630 = scalar_lea.vmem %s0, 460
  %v3631 = vld [vmem:[%s3630] sm:$0xf]
  %v3632 = vunpack.c.l.bf16 %v3631
  %v3633 = vunpack.c.h.bf16 %v3631
  %s3634 = scalar_lea.vmem %s1, 3788
  %s3636 = ssub.s32 0, 4
  %s3637 = scalar_lea.vmem %s3634, %s3636
  %v3638 = vpack.c.bf16 %v3632, %v2457
  %3639 = vst [vmem:[%s3637] sm:$0xff] %v3638
  %s3640 = scalar_lea.vmem %s0, 3276
  %v3641 = vld [vmem:[%s3640] sm:$0xf]
  %v3642 = vunpack.c.l.bf16 %v3641
  %v3643 = vunpack.c.h.bf16 %v3641
  %s3644 = scalar_lea.vmem %s1, 972
  %s3646 = ssub.s32 0, 4
  %s3647 = scalar_lea.vmem %s3644, %s3646
  %v3648 = vpack.c.bf16 %v3642, %v2462
  %3649 = vst [vmem:[%s3647] sm:$0xff] %v3648
  %s3650 = scalar_lea.vmem %s0, 2252
  %v3651 = vld [vmem:[%s3650] sm:$0xf]
  %v3652 = vunpack.c.l.bf16 %v3651
  %v3653 = vunpack.c.h.bf16 %v3651
  %s3654 = scalar_lea.vmem %s1, 1996
  %s3656 = ssub.s32 0, 4
  %s3657 = scalar_lea.vmem %s3654, %s3656
  %v3658 = vpack.c.bf16 %v3652, %v2467
  %3659 = vst [vmem:[%s3657] sm:$0xff] %v3658
  %s3660 = scalar_lea.vmem %s0, 1228
  %v3661 = vld [vmem:[%s3660] sm:$0xf]
  %v3662 = vunpack.c.l.bf16 %v3661
  %v3663 = vunpack.c.h.bf16 %v3661
  %s3664 = scalar_lea.vmem %s1, 3020
  %s3666 = ssub.s32 0, 4
  %s3667 = scalar_lea.vmem %s3664, %s3666
  %v3668 = vpack.c.bf16 %v3662, %v2472
  %3669 = vst [vmem:[%s3667] sm:$0xff] %v3668
  %s3670 = scalar_lea.vmem %s0, 204
  %v3671 = vld [vmem:[%s3670] sm:$0xf]
  %v3672 = vunpack.c.l.bf16 %v3671
  %v3673 = vunpack.c.h.bf16 %v3671
  %s3674 = scalar_lea.vmem %s1, 4044
  %s3676 = ssub.s32 0, 4
  %s3677 = scalar_lea.vmem %s3674, %s3676
  %v3678 = vpack.c.bf16 %v3672, %v2477
  %3679 = vst [vmem:[%s3677] sm:$0xff] %v3678
  %s3680 = scalar_lea.vmem %s0, 4076
  %v3681 = vld [vmem:[%s3680] sm:$0xf]
  %v3682 = vunpack.c.l.bf16 %v3681
  %v3683 = vunpack.c.h.bf16 %v3681
  %s3684 = scalar_lea.vmem %s1, 236
  %s3686 = ssub.s32 0, 4
  %s3687 = scalar_lea.vmem %s3684, %s3686
  %v3688 = vpack.c.bf16 %v3682, %v2482
  %3689 = vst [vmem:[%s3687] sm:$0xff] %v3688
  %s3690 = scalar_lea.vmem %s0, 3052
  %v3691 = vld [vmem:[%s3690] sm:$0xf]
  %v3692 = vunpack.c.l.bf16 %v3691
  %v3693 = vunpack.c.h.bf16 %v3691
  %s3694 = scalar_lea.vmem %s1, 1260
  %s3696 = ssub.s32 0, 4
  %s3697 = scalar_lea.vmem %s3694, %s3696
  %v3698 = vpack.c.bf16 %v3692, %v2487
  %3699 = vst [vmem:[%s3697] sm:$0xff] %v3698
  %s3700 = scalar_lea.vmem %s0, 2028
  %v3701 = vld [vmem:[%s3700] sm:$0xf]
  %v3702 = vunpack.c.l.bf16 %v3701
  %v3703 = vunpack.c.h.bf16 %v3701
  %s3704 = scalar_lea.vmem %s1, 2284
  %s3706 = ssub.s32 0, 4
  %s3707 = scalar_lea.vmem %s3704, %s3706
  %v3708 = vpack.c.bf16 %v3702, %v2492
  %3709 = vst [vmem:[%s3707] sm:$0xff] %v3708
  %s3710 = scalar_lea.vmem %s0, 1004
  %v3711 = vld [vmem:[%s3710] sm:$0xf]
  %v3712 = vunpack.c.l.bf16 %v3711
  %v3713 = vunpack.c.h.bf16 %v3711
  %s3714 = scalar_lea.vmem %s1, 3308
  %s3716 = ssub.s32 0, 4
  %s3717 = scalar_lea.vmem %s3714, %s3716
  %v3718 = vpack.c.bf16 %v3712, %v2497
  %3719 = vst [vmem:[%s3717] sm:$0xff] %v3718
  %s3720 = scalar_lea.vmem %s0, 3820
  %v3721 = vld [vmem:[%s3720] sm:$0xf]
  %v3722 = vunpack.c.l.bf16 %v3721
  %v3723 = vunpack.c.h.bf16 %v3721
  %s3724 = scalar_lea.vmem %s1, 492
  %s3726 = ssub.s32 0, 4
  %s3727 = scalar_lea.vmem %s3724, %s3726
  %v3728 = vpack.c.bf16 %v3722, %v2502
  %3729 = vst [vmem:[%s3727] sm:$0xff] %v3728
  %s3730 = scalar_lea.vmem %s0, 2796
  %v3731 = vld [vmem:[%s3730] sm:$0xf]
  %v3732 = vunpack.c.l.bf16 %v3731
  %v3733 = vunpack.c.h.bf16 %v3731
  %s3734 = scalar_lea.vmem %s1, 1516
  %s3736 = ssub.s32 0, 4
  %s3737 = scalar_lea.vmem %s3734, %s3736
  %v3738 = vpack.c.bf16 %v3732, %v2507
  %3739 = vst [vmem:[%s3737] sm:$0xff] %v3738
  %s3740 = scalar_lea.vmem %s0, 1772
  %v3741 = vld [vmem:[%s3740] sm:$0xf]
  %v3742 = vunpack.c.l.bf16 %v3741
  %v3743 = vunpack.c.h.bf16 %v3741
  %s3744 = scalar_lea.vmem %s1, 2540
  %s3746 = ssub.s32 0, 4
  %s3747 = scalar_lea.vmem %s3744, %s3746
  %v3748 = vpack.c.bf16 %v3742, %v2512
  %3749 = vst [vmem:[%s3747] sm:$0xff] %v3748
  %s3750 = scalar_lea.vmem %s0, 748
  %v3751 = vld [vmem:[%s3750] sm:$0xf]
  %v3752 = vunpack.c.l.bf16 %v3751
  %v3753 = vunpack.c.h.bf16 %v3751
  %s3754 = scalar_lea.vmem %s1, 3564
  %s3756 = ssub.s32 0, 4
  %s3757 = scalar_lea.vmem %s3754, %s3756
  %v3758 = vpack.c.bf16 %v3752, %v2517
  %3759 = vst [vmem:[%s3757] sm:$0xff] %v3758
  %s3760 = scalar_lea.vmem %s0, 3564
  %v3761 = vld [vmem:[%s3760] sm:$0xf]
  %v3762 = vunpack.c.l.bf16 %v3761
  %v3763 = vunpack.c.h.bf16 %v3761
  %s3764 = scalar_lea.vmem %s1, 748
  %s3766 = ssub.s32 0, 4
  %s3767 = scalar_lea.vmem %s3764, %s3766
  %v3768 = vpack.c.bf16 %v3762, %v2522
  %3769 = vst [vmem:[%s3767] sm:$0xff] %v3768
  %s3770 = scalar_lea.vmem %s0, 2540
  %v3771 = vld [vmem:[%s3770] sm:$0xf]
  %v3772 = vunpack.c.l.bf16 %v3771
  %v3773 = vunpack.c.h.bf16 %v3771
  %s3774 = scalar_lea.vmem %s1, 1772
  %s3776 = ssub.s32 0, 4
  %s3777 = scalar_lea.vmem %s3774, %s3776
  %v3778 = vpack.c.bf16 %v3772, %v2527
  %3779 = vst [vmem:[%s3777] sm:$0xff] %v3778
  %s3780 = scalar_lea.vmem %s0, 1516
  %v3781 = vld [vmem:[%s3780] sm:$0xf]
  %v3782 = vunpack.c.l.bf16 %v3781
  %v3783 = vunpack.c.h.bf16 %v3781
  %s3784 = scalar_lea.vmem %s1, 2796
  %s3786 = ssub.s32 0, 4
  %s3787 = scalar_lea.vmem %s3784, %s3786
  %v3788 = vpack.c.bf16 %v3782, %v2532
  %3789 = vst [vmem:[%s3787] sm:$0xff] %v3788
  %s3790 = scalar_lea.vmem %s0, 492
  %v3791 = vld [vmem:[%s3790] sm:$0xf]
  %v3792 = vunpack.c.l.bf16 %v3791
  %v3793 = vunpack.c.h.bf16 %v3791
  %s3794 = scalar_lea.vmem %s1, 3820
  %s3796 = ssub.s32 0, 4
  %s3797 = scalar_lea.vmem %s3794, %s3796
  %v3798 = vpack.c.bf16 %v3792, %v2537
  %3799 = vst [vmem:[%s3797] sm:$0xff] %v3798
  %s3800 = scalar_lea.vmem %s0, 3308
  %v3801 = vld [vmem:[%s3800] sm:$0xf]
  %v3802 = vunpack.c.l.bf16 %v3801
  %v3803 = vunpack.c.h.bf16 %v3801
  %s3804 = scalar_lea.vmem %s1, 1004
  %s3806 = ssub.s32 0, 4
  %s3807 = scalar_lea.vmem %s3804, %s3806
  %v3808 = vpack.c.bf16 %v3802, %v2542
  %3809 = vst [vmem:[%s3807] sm:$0xff] %v3808
  %s3810 = scalar_lea.vmem %s0, 2284
  %v3811 = vld [vmem:[%s3810] sm:$0xf]
  %v3812 = vunpack.c.l.bf16 %v3811
  %v3813 = vunpack.c.h.bf16 %v3811
  %s3814 = scalar_lea.vmem %s1, 2028
  %s3816 = ssub.s32 0, 4
  %s3817 = scalar_lea.vmem %s3814, %s3816
  %v3818 = vpack.c.bf16 %v3812, %v2547
  %3819 = vst [vmem:[%s3817] sm:$0xff] %v3818
  %s3820 = scalar_lea.vmem %s0, 1260
  %v3821 = vld [vmem:[%s3820] sm:$0xf]
  %v3822 = vunpack.c.l.bf16 %v3821
  %v3823 = vunpack.c.h.bf16 %v3821
  %s3824 = scalar_lea.vmem %s1, 3052
  %s3826 = ssub.s32 0, 4
  %s3827 = scalar_lea.vmem %s3824, %s3826
  %v3828 = vpack.c.bf16 %v3822, %v2552
  %3829 = vst [vmem:[%s3827] sm:$0xff] %v3828
  %s3830 = scalar_lea.vmem %s0, 236
  %v3831 = vld [vmem:[%s3830] sm:$0xf]
  %v3832 = vunpack.c.l.bf16 %v3831
  %v3833 = vunpack.c.h.bf16 %v3831
  %s3834 = scalar_lea.vmem %s1, 4076
  %s3836 = ssub.s32 0, 4
  %s3837 = scalar_lea.vmem %s3834, %s3836
  %v3838 = vpack.c.bf16 %v3832, %v2557
  %3839 = vst [vmem:[%s3837] sm:$0xff] %v3838
  %s3840 = scalar_lea.vmem %s0, 3856
  %v3841 = vld [vmem:[%s3840] sm:$0xf]
  %v3842 = vunpack.c.l.bf16 %v3841
  %v3843 = vunpack.c.h.bf16 %v3841
  %s3844 = scalar_lea.vmem %s1, 16
  %s3845 = scalar_lea.vmem %s0, 2832
  %v3846 = vld [vmem:[%s3845] sm:$0xf]
  %v3847 = vunpack.c.l.bf16 %v3846
  %v3848 = vunpack.c.h.bf16 %v3846
  %s3849 = scalar_lea.vmem %s1, 1040
  %s3850 = scalar_lea.vmem %s0, 1808
  %v3851 = vld [vmem:[%s3850] sm:$0xf]
  %v3852 = vunpack.c.l.bf16 %v3851
  %v3853 = vunpack.c.h.bf16 %v3851
  %s3854 = scalar_lea.vmem %s1, 2064
  %s3855 = scalar_lea.vmem %s0, 784
  %v3856 = vld [vmem:[%s3855] sm:$0xf]
  %v3857 = vunpack.c.l.bf16 %v3856
  %v3858 = vunpack.c.h.bf16 %v3856
  %s3859 = scalar_lea.vmem %s1, 3088
  %s3860 = scalar_lea.vmem %s0, 3600
  %v3861 = vld [vmem:[%s3860] sm:$0xf]
  %v3862 = vunpack.c.l.bf16 %v3861
  %v3863 = vunpack.c.h.bf16 %v3861
  %s3864 = scalar_lea.vmem %s1, 272
  %s3865 = scalar_lea.vmem %s0, 2576
  %v3866 = vld [vmem:[%s3865] sm:$0xf]
  %v3867 = vunpack.c.l.bf16 %v3866
  %v3868 = vunpack.c.h.bf16 %v3866
  %s3869 = scalar_lea.vmem %s1, 1296
  %s3870 = scalar_lea.vmem %s0, 1552
  %v3871 = vld [vmem:[%s3870] sm:$0xf]
  %v3872 = vunpack.c.l.bf16 %v3871
  %v3873 = vunpack.c.h.bf16 %v3871
  %s3874 = scalar_lea.vmem %s1, 2320
  %s3875 = scalar_lea.vmem %s0, 528
  %v3876 = vld [vmem:[%s3875] sm:$0xf]
  %v3877 = vunpack.c.l.bf16 %v3876
  %v3878 = vunpack.c.h.bf16 %v3876
  %s3879 = scalar_lea.vmem %s1, 3344
  %s3880 = scalar_lea.vmem %s0, 3344
  %v3881 = vld [vmem:[%s3880] sm:$0xf]
  %v3882 = vunpack.c.l.bf16 %v3881
  %v3883 = vunpack.c.h.bf16 %v3881
  %s3884 = scalar_lea.vmem %s1, 528
  %s3885 = scalar_lea.vmem %s0, 2320
  %v3886 = vld [vmem:[%s3885] sm:$0xf]
  %v3887 = vunpack.c.l.bf16 %v3886
  %v3888 = vunpack.c.h.bf16 %v3886
  %s3889 = scalar_lea.vmem %s1, 1552
  %s3890 = scalar_lea.vmem %s0, 1296
  %v3891 = vld [vmem:[%s3890] sm:$0xf]
  %v3892 = vunpack.c.l.bf16 %v3891
  %v3893 = vunpack.c.h.bf16 %v3891
  %s3894 = scalar_lea.vmem %s1, 2576
  %s3895 = scalar_lea.vmem %s0, 272
  %v3896 = vld [vmem:[%s3895] sm:$0xf]
  %v3897 = vunpack.c.l.bf16 %v3896
  %v3898 = vunpack.c.h.bf16 %v3896
  %s3899 = scalar_lea.vmem %s1, 3600
  %s3900 = scalar_lea.vmem %s0, 3088
  %v3901 = vld [vmem:[%s3900] sm:$0xf]
  %v3902 = vunpack.c.l.bf16 %v3901
  %v3903 = vunpack.c.h.bf16 %v3901
  %s3904 = scalar_lea.vmem %s1, 784
  %s3905 = scalar_lea.vmem %s0, 2064
  %v3906 = vld [vmem:[%s3905] sm:$0xf]
  %v3907 = vunpack.c.l.bf16 %v3906
  %v3908 = vunpack.c.h.bf16 %v3906
  %s3909 = scalar_lea.vmem %s1, 1808
  %s3910 = scalar_lea.vmem %s0, 1040
  %v3911 = vld [vmem:[%s3910] sm:$0xf]
  %v3912 = vunpack.c.l.bf16 %v3911
  %v3913 = vunpack.c.h.bf16 %v3911
  %s3914 = scalar_lea.vmem %s1, 2832
  %s3915 = scalar_lea.vmem %s0, 16
  %v3916 = vld [vmem:[%s3915] sm:$0xf]
  %v3917 = vunpack.c.l.bf16 %v3916
  %v3918 = vunpack.c.h.bf16 %v3916
  %s3919 = scalar_lea.vmem %s1, 3856
  %s3920 = scalar_lea.vmem %s0, 3888
  %v3921 = vld [vmem:[%s3920] sm:$0xf]
  %v3922 = vunpack.c.l.bf16 %v3921
  %v3923 = vunpack.c.h.bf16 %v3921
  %s3924 = scalar_lea.vmem %s1, 48
  %s3925 = scalar_lea.vmem %s0, 2864
  %v3926 = vld [vmem:[%s3925] sm:$0xf]
  %v3927 = vunpack.c.l.bf16 %v3926
  %v3928 = vunpack.c.h.bf16 %v3926
  %s3929 = scalar_lea.vmem %s1, 1072
  %s3930 = scalar_lea.vmem %s0, 1840
  %v3931 = vld [vmem:[%s3930] sm:$0xf]
  %v3932 = vunpack.c.l.bf16 %v3931
  %v3933 = vunpack.c.h.bf16 %v3931
  %s3934 = scalar_lea.vmem %s1, 2096
  %s3935 = scalar_lea.vmem %s0, 816
  %v3936 = vld [vmem:[%s3935] sm:$0xf]
  %v3937 = vunpack.c.l.bf16 %v3936
  %v3938 = vunpack.c.h.bf16 %v3936
  %s3939 = scalar_lea.vmem %s1, 3120
  %s3940 = scalar_lea.vmem %s0, 3632
  %v3941 = vld [vmem:[%s3940] sm:$0xf]
  %v3942 = vunpack.c.l.bf16 %v3941
  %v3943 = vunpack.c.h.bf16 %v3941
  %s3944 = scalar_lea.vmem %s1, 304
  %s3945 = scalar_lea.vmem %s0, 2608
  %v3946 = vld [vmem:[%s3945] sm:$0xf]
  %v3947 = vunpack.c.l.bf16 %v3946
  %v3948 = vunpack.c.h.bf16 %v3946
  %s3949 = scalar_lea.vmem %s1, 1328
  %s3950 = scalar_lea.vmem %s0, 1584
  %v3951 = vld [vmem:[%s3950] sm:$0xf]
  %v3952 = vunpack.c.l.bf16 %v3951
  %v3953 = vunpack.c.h.bf16 %v3951
  %s3954 = scalar_lea.vmem %s1, 2352
  %s3955 = scalar_lea.vmem %s0, 560
  %v3956 = vld [vmem:[%s3955] sm:$0xf]
  %v3957 = vunpack.c.l.bf16 %v3956
  %v3958 = vunpack.c.h.bf16 %v3956
  %s3959 = scalar_lea.vmem %s1, 3376
  %s3960 = scalar_lea.vmem %s0, 3376
  %v3961 = vld [vmem:[%s3960] sm:$0xf]
  %v3962 = vunpack.c.l.bf16 %v3961
  %v3963 = vunpack.c.h.bf16 %v3961
  %s3964 = scalar_lea.vmem %s1, 560
  %s3965 = scalar_lea.vmem %s0, 2352
  %v3966 = vld [vmem:[%s3965] sm:$0xf]
  %v3967 = vunpack.c.l.bf16 %v3966
  %v3968 = vunpack.c.h.bf16 %v3966
  %s3969 = scalar_lea.vmem %s1, 1584
  %s3970 = scalar_lea.vmem %s0, 1328
  %v3971 = vld [vmem:[%s3970] sm:$0xf]
  %v3972 = vunpack.c.l.bf16 %v3971
  %v3973 = vunpack.c.h.bf16 %v3971
  %s3974 = scalar_lea.vmem %s1, 2608
  %s3975 = scalar_lea.vmem %s0, 304
  %v3976 = vld [vmem:[%s3975] sm:$0xf]
  %v3977 = vunpack.c.l.bf16 %v3976
  %v3978 = vunpack.c.h.bf16 %v3976
  %s3979 = scalar_lea.vmem %s1, 3632
  %s3980 = scalar_lea.vmem %s0, 3120
  %v3981 = vld [vmem:[%s3980] sm:$0xf]
  %v3982 = vunpack.c.l.bf16 %v3981
  %v3983 = vunpack.c.h.bf16 %v3981
  %s3984 = scalar_lea.vmem %s1, 816
  %s3985 = scalar_lea.vmem %s0, 2096
  %v3986 = vld [vmem:[%s3985] sm:$0xf]
  %v3987 = vunpack.c.l.bf16 %v3986
  %v3988 = vunpack.c.h.bf16 %v3986
  %s3989 = scalar_lea.vmem %s1, 1840
  %s3990 = scalar_lea.vmem %s0, 1072
  %v3991 = vld [vmem:[%s3990] sm:$0xf]
  %v3992 = vunpack.c.l.bf16 %v3991
  %v3993 = vunpack.c.h.bf16 %v3991
  %s3994 = scalar_lea.vmem %s1, 2864
  %s3995 = scalar_lea.vmem %s0, 48
  %v3996 = vld [vmem:[%s3995] sm:$0xf]
  %v3997 = vunpack.c.l.bf16 %v3996
  %v3998 = vunpack.c.h.bf16 %v3996
  %s3999 = scalar_lea.vmem %s1, 3888
  %s4000 = scalar_lea.vmem %s0, 3920
  %v4001 = vld [vmem:[%s4000] sm:$0xf]
  %v4002 = vunpack.c.l.bf16 %v4001
  %v4003 = vunpack.c.h.bf16 %v4001
  %s4004 = scalar_lea.vmem %s1, 80
  %s4005 = scalar_lea.vmem %s0, 2896
  %v4006 = vld [vmem:[%s4005] sm:$0xf]
  %v4007 = vunpack.c.l.bf16 %v4006
  %v4008 = vunpack.c.h.bf16 %v4006
  %s4009 = scalar_lea.vmem %s1, 1104
  %s4010 = scalar_lea.vmem %s0, 1872
  %v4011 = vld [vmem:[%s4010] sm:$0xf]
  %v4012 = vunpack.c.l.bf16 %v4011
  %v4013 = vunpack.c.h.bf16 %v4011
  %s4014 = scalar_lea.vmem %s1, 2128
  %s4015 = scalar_lea.vmem %s0, 848
  %v4016 = vld [vmem:[%s4015] sm:$0xf]
  %v4017 = vunpack.c.l.bf16 %v4016
  %v4018 = vunpack.c.h.bf16 %v4016
  %s4019 = scalar_lea.vmem %s1, 3152
  %s4020 = scalar_lea.vmem %s0, 3664
  %v4021 = vld [vmem:[%s4020] sm:$0xf]
  %v4022 = vunpack.c.l.bf16 %v4021
  %v4023 = vunpack.c.h.bf16 %v4021
  %s4024 = scalar_lea.vmem %s1, 336
  %s4025 = scalar_lea.vmem %s0, 2640
  %v4026 = vld [vmem:[%s4025] sm:$0xf]
  %v4027 = vunpack.c.l.bf16 %v4026
  %v4028 = vunpack.c.h.bf16 %v4026
  %s4029 = scalar_lea.vmem %s1, 1360
  %s4030 = scalar_lea.vmem %s0, 1616
  %v4031 = vld [vmem:[%s4030] sm:$0xf]
  %v4032 = vunpack.c.l.bf16 %v4031
  %v4033 = vunpack.c.h.bf16 %v4031
  %s4034 = scalar_lea.vmem %s1, 2384
  %s4035 = scalar_lea.vmem %s0, 592
  %v4036 = vld [vmem:[%s4035] sm:$0xf]
  %v4037 = vunpack.c.l.bf16 %v4036
  %v4038 = vunpack.c.h.bf16 %v4036
  %s4039 = scalar_lea.vmem %s1, 3408
  %s4040 = scalar_lea.vmem %s0, 3408
  %v4041 = vld [vmem:[%s4040] sm:$0xf]
  %v4042 = vunpack.c.l.bf16 %v4041
  %v4043 = vunpack.c.h.bf16 %v4041
  %s4044 = scalar_lea.vmem %s1, 592
  %s4045 = scalar_lea.vmem %s0, 2384
  %v4046 = vld [vmem:[%s4045] sm:$0xf]
  %v4047 = vunpack.c.l.bf16 %v4046
  %v4048 = vunpack.c.h.bf16 %v4046
  %s4049 = scalar_lea.vmem %s1, 1616
  %s4050 = scalar_lea.vmem %s0, 1360
  %v4051 = vld [vmem:[%s4050] sm:$0xf]
  %v4052 = vunpack.c.l.bf16 %v4051
  %v4053 = vunpack.c.h.bf16 %v4051
  %s4054 = scalar_lea.vmem %s1, 2640
  %s4055 = scalar_lea.vmem %s0, 336
  %v4056 = vld [vmem:[%s4055] sm:$0xf]
  %v4057 = vunpack.c.l.bf16 %v4056
  %v4058 = vunpack.c.h.bf16 %v4056
  %s4059 = scalar_lea.vmem %s1, 3664
  %s4060 = scalar_lea.vmem %s0, 3152
  %v4061 = vld [vmem:[%s4060] sm:$0xf]
  %v4062 = vunpack.c.l.bf16 %v4061
  %v4063 = vunpack.c.h.bf16 %v4061
  %s4064 = scalar_lea.vmem %s1, 848
  %s4065 = scalar_lea.vmem %s0, 2128
  %v4066 = vld [vmem:[%s4065] sm:$0xf]
  %v4067 = vunpack.c.l.bf16 %v4066
  %v4068 = vunpack.c.h.bf16 %v4066
  %s4069 = scalar_lea.vmem %s1, 1872
  %s4070 = scalar_lea.vmem %s0, 1104
  %v4071 = vld [vmem:[%s4070] sm:$0xf]
  %v4072 = vunpack.c.l.bf16 %v4071
  %v4073 = vunpack.c.h.bf16 %v4071
  %s4074 = scalar_lea.vmem %s1, 2896
  %s4075 = scalar_lea.vmem %s0, 80
  %v4076 = vld [vmem:[%s4075] sm:$0xf]
  %v4077 = vunpack.c.l.bf16 %v4076
  %v4078 = vunpack.c.h.bf16 %v4076
  %s4079 = scalar_lea.vmem %s1, 3920
  %s4080 = scalar_lea.vmem %s0, 3952
  %v4081 = vld [vmem:[%s4080] sm:$0xf]
  %v4082 = vunpack.c.l.bf16 %v4081
  %v4083 = vunpack.c.h.bf16 %v4081
  %s4084 = scalar_lea.vmem %s1, 112
  %s4085 = scalar_lea.vmem %s0, 2928
  %v4086 = vld [vmem:[%s4085] sm:$0xf]
  %v4087 = vunpack.c.l.bf16 %v4086
  %v4088 = vunpack.c.h.bf16 %v4086
  %s4089 = scalar_lea.vmem %s1, 1136
  %s4090 = scalar_lea.vmem %s0, 1904
  %v4091 = vld [vmem:[%s4090] sm:$0xf]
  %v4092 = vunpack.c.l.bf16 %v4091
  %v4093 = vunpack.c.h.bf16 %v4091
  %s4094 = scalar_lea.vmem %s1, 2160
  %s4095 = scalar_lea.vmem %s0, 880
  %v4096 = vld [vmem:[%s4095] sm:$0xf]
  %v4097 = vunpack.c.l.bf16 %v4096
  %v4098 = vunpack.c.h.bf16 %v4096
  %s4099 = scalar_lea.vmem %s1, 3184
  %s4100 = scalar_lea.vmem %s0, 3696
  %v4101 = vld [vmem:[%s4100] sm:$0xf]
  %v4102 = vunpack.c.l.bf16 %v4101
  %v4103 = vunpack.c.h.bf16 %v4101
  %s4104 = scalar_lea.vmem %s1, 368
  %s4105 = scalar_lea.vmem %s0, 2672
  %v4106 = vld [vmem:[%s4105] sm:$0xf]
  %v4107 = vunpack.c.l.bf16 %v4106
  %v4108 = vunpack.c.h.bf16 %v4106
  %s4109 = scalar_lea.vmem %s1, 1392
  %s4110 = scalar_lea.vmem %s0, 1648
  %v4111 = vld [vmem:[%s4110] sm:$0xf]
  %v4112 = vunpack.c.l.bf16 %v4111
  %v4113 = vunpack.c.h.bf16 %v4111
  %s4114 = scalar_lea.vmem %s1, 2416
  %s4115 = scalar_lea.vmem %s0, 624
  %v4116 = vld [vmem:[%s4115] sm:$0xf]
  %v4117 = vunpack.c.l.bf16 %v4116
  %v4118 = vunpack.c.h.bf16 %v4116
  %s4119 = scalar_lea.vmem %s1, 3440
  %s4120 = scalar_lea.vmem %s0, 3440
  %v4121 = vld [vmem:[%s4120] sm:$0xf]
  %v4122 = vunpack.c.l.bf16 %v4121
  %v4123 = vunpack.c.h.bf16 %v4121
  %s4124 = scalar_lea.vmem %s1, 624
  %s4125 = scalar_lea.vmem %s0, 2416
  %v4126 = vld [vmem:[%s4125] sm:$0xf]
  %v4127 = vunpack.c.l.bf16 %v4126
  %v4128 = vunpack.c.h.bf16 %v4126
  %s4129 = scalar_lea.vmem %s1, 1648
  %s4130 = scalar_lea.vmem %s0, 1392
  %v4131 = vld [vmem:[%s4130] sm:$0xf]
  %v4132 = vunpack.c.l.bf16 %v4131
  %v4133 = vunpack.c.h.bf16 %v4131
  %s4134 = scalar_lea.vmem %s1, 2672
  %s4135 = scalar_lea.vmem %s0, 368
  %v4136 = vld [vmem:[%s4135] sm:$0xf]
  %v4137 = vunpack.c.l.bf16 %v4136
  %v4138 = vunpack.c.h.bf16 %v4136
  %s4139 = scalar_lea.vmem %s1, 3696
  %s4140 = scalar_lea.vmem %s0, 3184
  %v4141 = vld [vmem:[%s4140] sm:$0xf]
  %v4142 = vunpack.c.l.bf16 %v4141
  %v4143 = vunpack.c.h.bf16 %v4141
  %s4144 = scalar_lea.vmem %s1, 880
  %s4145 = scalar_lea.vmem %s0, 2160
  %v4146 = vld [vmem:[%s4145] sm:$0xf]
  %v4147 = vunpack.c.l.bf16 %v4146
  %v4148 = vunpack.c.h.bf16 %v4146
  %s4149 = scalar_lea.vmem %s1, 1904
  %s4150 = scalar_lea.vmem %s0, 1136
  %v4151 = vld [vmem:[%s4150] sm:$0xf]
  %v4152 = vunpack.c.l.bf16 %v4151
  %v4153 = vunpack.c.h.bf16 %v4151
  %s4154 = scalar_lea.vmem %s1, 2928
  %s4155 = scalar_lea.vmem %s0, 112
  %v4156 = vld [vmem:[%s4155] sm:$0xf]
  %v4157 = vunpack.c.l.bf16 %v4156
  %v4158 = vunpack.c.h.bf16 %v4156
  %s4159 = scalar_lea.vmem %s1, 3952
  %s4160 = scalar_lea.vmem %s0, 3984
  %v4161 = vld [vmem:[%s4160] sm:$0xf]
  %v4162 = vunpack.c.l.bf16 %v4161
  %v4163 = vunpack.c.h.bf16 %v4161
  %s4164 = scalar_lea.vmem %s1, 144
  %s4165 = scalar_lea.vmem %s0, 2960
  %v4166 = vld [vmem:[%s4165] sm:$0xf]
  %v4167 = vunpack.c.l.bf16 %v4166
  %v4168 = vunpack.c.h.bf16 %v4166
  %s4169 = scalar_lea.vmem %s1, 1168
  %s4170 = scalar_lea.vmem %s0, 1936
  %v4171 = vld [vmem:[%s4170] sm:$0xf]
  %v4172 = vunpack.c.l.bf16 %v4171
  %v4173 = vunpack.c.h.bf16 %v4171
  %s4174 = scalar_lea.vmem %s1, 2192
  %s4175 = scalar_lea.vmem %s0, 912
  %v4176 = vld [vmem:[%s4175] sm:$0xf]
  %v4177 = vunpack.c.l.bf16 %v4176
  %v4178 = vunpack.c.h.bf16 %v4176
  %s4179 = scalar_lea.vmem %s1, 3216
  %s4180 = scalar_lea.vmem %s0, 3728
  %v4181 = vld [vmem:[%s4180] sm:$0xf]
  %v4182 = vunpack.c.l.bf16 %v4181
  %v4183 = vunpack.c.h.bf16 %v4181
  %s4184 = scalar_lea.vmem %s1, 400
  %s4185 = scalar_lea.vmem %s0, 2704
  %v4186 = vld [vmem:[%s4185] sm:$0xf]
  %v4187 = vunpack.c.l.bf16 %v4186
  %v4188 = vunpack.c.h.bf16 %v4186
  %s4189 = scalar_lea.vmem %s1, 1424
  %s4190 = scalar_lea.vmem %s0, 1680
  %v4191 = vld [vmem:[%s4190] sm:$0xf]
  %v4192 = vunpack.c.l.bf16 %v4191
  %v4193 = vunpack.c.h.bf16 %v4191
  %s4194 = scalar_lea.vmem %s1, 2448
  %s4195 = scalar_lea.vmem %s0, 656
  %v4196 = vld [vmem:[%s4195] sm:$0xf]
  %v4197 = vunpack.c.l.bf16 %v4196
  %v4198 = vunpack.c.h.bf16 %v4196
  %s4199 = scalar_lea.vmem %s1, 3472
  %s4200 = scalar_lea.vmem %s0, 3472
  %v4201 = vld [vmem:[%s4200] sm:$0xf]
  %v4202 = vunpack.c.l.bf16 %v4201
  %v4203 = vunpack.c.h.bf16 %v4201
  %s4204 = scalar_lea.vmem %s1, 656
  %s4205 = scalar_lea.vmem %s0, 2448
  %v4206 = vld [vmem:[%s4205] sm:$0xf]
  %v4207 = vunpack.c.l.bf16 %v4206
  %v4208 = vunpack.c.h.bf16 %v4206
  %s4209 = scalar_lea.vmem %s1, 1680
  %s4210 = scalar_lea.vmem %s0, 1424
  %v4211 = vld [vmem:[%s4210] sm:$0xf]
  %v4212 = vunpack.c.l.bf16 %v4211
  %v4213 = vunpack.c.h.bf16 %v4211
  %s4214 = scalar_lea.vmem %s1, 2704
  %s4215 = scalar_lea.vmem %s0, 400
  %v4216 = vld [vmem:[%s4215] sm:$0xf]
  %v4217 = vunpack.c.l.bf16 %v4216
  %v4218 = vunpack.c.h.bf16 %v4216
  %s4219 = scalar_lea.vmem %s1, 3728
  %s4220 = scalar_lea.vmem %s0, 3216
  %v4221 = vld [vmem:[%s4220] sm:$0xf]
  %v4222 = vunpack.c.l.bf16 %v4221
  %v4223 = vunpack.c.h.bf16 %v4221
  %s4224 = scalar_lea.vmem %s1, 912
  %s4225 = scalar_lea.vmem %s0, 2192
  %v4226 = vld [vmem:[%s4225] sm:$0xf]
  %v4227 = vunpack.c.l.bf16 %v4226
  %v4228 = vunpack.c.h.bf16 %v4226
  %s4229 = scalar_lea.vmem %s1, 1936
  %s4230 = scalar_lea.vmem %s0, 1168
  %v4231 = vld [vmem:[%s4230] sm:$0xf]
  %v4232 = vunpack.c.l.bf16 %v4231
  %v4233 = vunpack.c.h.bf16 %v4231
  %s4234 = scalar_lea.vmem %s1, 2960
  %s4235 = scalar_lea.vmem %s0, 144
  %v4236 = vld [vmem:[%s4235] sm:$0xf]
  %v4237 = vunpack.c.l.bf16 %v4236
  %v4238 = vunpack.c.h.bf16 %v4236
  %s4239 = scalar_lea.vmem %s1, 3984
  %s4240 = scalar_lea.vmem %s0, 4016
  %v4241 = vld [vmem:[%s4240] sm:$0xf]
  %v4242 = vunpack.c.l.bf16 %v4241
  %v4243 = vunpack.c.h.bf16 %v4241
  %s4244 = scalar_lea.vmem %s1, 176
  %s4245 = scalar_lea.vmem %s0, 2992
  %v4246 = vld [vmem:[%s4245] sm:$0xf]
  %v4247 = vunpack.c.l.bf16 %v4246
  %v4248 = vunpack.c.h.bf16 %v4246
  %s4249 = scalar_lea.vmem %s1, 1200
  %s4250 = scalar_lea.vmem %s0, 1968
  %v4251 = vld [vmem:[%s4250] sm:$0xf]
  %v4252 = vunpack.c.l.bf16 %v4251
  %v4253 = vunpack.c.h.bf16 %v4251
  %s4254 = scalar_lea.vmem %s1, 2224
  %s4255 = scalar_lea.vmem %s0, 944
  %v4256 = vld [vmem:[%s4255] sm:$0xf]
  %v4257 = vunpack.c.l.bf16 %v4256
  %v4258 = vunpack.c.h.bf16 %v4256
  %s4259 = scalar_lea.vmem %s1, 3248
  %s4260 = scalar_lea.vmem %s0, 3760
  %v4261 = vld [vmem:[%s4260] sm:$0xf]
  %v4262 = vunpack.c.l.bf16 %v4261
  %v4263 = vunpack.c.h.bf16 %v4261
  %s4264 = scalar_lea.vmem %s1, 432
  %s4265 = scalar_lea.vmem %s0, 2736
  %v4266 = vld [vmem:[%s4265] sm:$0xf]
  %v4267 = vunpack.c.l.bf16 %v4266
  %v4268 = vunpack.c.h.bf16 %v4266
  %s4269 = scalar_lea.vmem %s1, 1456
  %s4270 = scalar_lea.vmem %s0, 1712
  %v4271 = vld [vmem:[%s4270] sm:$0xf]
  %v4272 = vunpack.c.l.bf16 %v4271
  %v4273 = vunpack.c.h.bf16 %v4271
  %s4274 = scalar_lea.vmem %s1, 2480
  %s4275 = scalar_lea.vmem %s0, 688
  %v4276 = vld [vmem:[%s4275] sm:$0xf]
  %v4277 = vunpack.c.l.bf16 %v4276
  %v4278 = vunpack.c.h.bf16 %v4276
  %s4279 = scalar_lea.vmem %s1, 3504
  %s4280 = scalar_lea.vmem %s0, 3504
  %v4281 = vld [vmem:[%s4280] sm:$0xf]
  %v4282 = vunpack.c.l.bf16 %v4281
  %v4283 = vunpack.c.h.bf16 %v4281
  %s4284 = scalar_lea.vmem %s1, 688
  %s4285 = scalar_lea.vmem %s0, 2480
  %v4286 = vld [vmem:[%s4285] sm:$0xf]
  %v4287 = vunpack.c.l.bf16 %v4286
  %v4288 = vunpack.c.h.bf16 %v4286
  %s4289 = scalar_lea.vmem %s1, 1712
  %s4290 = scalar_lea.vmem %s0, 1456
  %v4291 = vld [vmem:[%s4290] sm:$0xf]
  %v4292 = vunpack.c.l.bf16 %v4291
  %v4293 = vunpack.c.h.bf16 %v4291
  %s4294 = scalar_lea.vmem %s1, 2736
  %s4295 = scalar_lea.vmem %s0, 432
  %v4296 = vld [vmem:[%s4295] sm:$0xf]
  %v4297 = vunpack.c.l.bf16 %v4296
  %v4298 = vunpack.c.h.bf16 %v4296
  %s4299 = scalar_lea.vmem %s1, 3760
  %s4300 = scalar_lea.vmem %s0, 3248
  %v4301 = vld [vmem:[%s4300] sm:$0xf]
  %v4302 = vunpack.c.l.bf16 %v4301
  %v4303 = vunpack.c.h.bf16 %v4301
  %s4304 = scalar_lea.vmem %s1, 944
  %s4305 = scalar_lea.vmem %s0, 2224
  %v4306 = vld [vmem:[%s4305] sm:$0xf]
  %v4307 = vunpack.c.l.bf16 %v4306
  %v4308 = vunpack.c.h.bf16 %v4306
  %s4309 = scalar_lea.vmem %s1, 1968
  %s4310 = scalar_lea.vmem %s0, 1200
  %v4311 = vld [vmem:[%s4310] sm:$0xf]
  %v4312 = vunpack.c.l.bf16 %v4311
  %v4313 = vunpack.c.h.bf16 %v4311
  %s4314 = scalar_lea.vmem %s1, 2992
  %s4315 = scalar_lea.vmem %s0, 176
  %v4316 = vld [vmem:[%s4315] sm:$0xf]
  %v4317 = vunpack.c.l.bf16 %v4316
  %v4318 = vunpack.c.h.bf16 %v4316
  %s4319 = scalar_lea.vmem %s1, 4016
  %s4320 = scalar_lea.vmem %s0, 4048
  %v4321 = vld [vmem:[%s4320] sm:$0xf]
  %v4322 = vunpack.c.l.bf16 %v4321
  %v4323 = vunpack.c.h.bf16 %v4321
  %s4324 = scalar_lea.vmem %s1, 208
  %s4325 = scalar_lea.vmem %s0, 3024
  %v4326 = vld [vmem:[%s4325] sm:$0xf]
  %v4327 = vunpack.c.l.bf16 %v4326
  %v4328 = vunpack.c.h.bf16 %v4326
  %s4329 = scalar_lea.vmem %s1, 1232
  %s4330 = scalar_lea.vmem %s0, 2000
  %v4331 = vld [vmem:[%s4330] sm:$0xf]
  %v4332 = vunpack.c.l.bf16 %v4331
  %v4333 = vunpack.c.h.bf16 %v4331
  %s4334 = scalar_lea.vmem %s1, 2256
  %s4335 = scalar_lea.vmem %s0, 976
  %v4336 = vld [vmem:[%s4335] sm:$0xf]
  %v4337 = vunpack.c.l.bf16 %v4336
  %v4338 = vunpack.c.h.bf16 %v4336
  %s4339 = scalar_lea.vmem %s1, 3280
  %s4340 = scalar_lea.vmem %s0, 3792
  %v4341 = vld [vmem:[%s4340] sm:$0xf]
  %v4342 = vunpack.c.l.bf16 %v4341
  %v4343 = vunpack.c.h.bf16 %v4341
  %s4344 = scalar_lea.vmem %s1, 464
  %s4345 = scalar_lea.vmem %s0, 2768
  %v4346 = vld [vmem:[%s4345] sm:$0xf]
  %v4347 = vunpack.c.l.bf16 %v4346
  %v4348 = vunpack.c.h.bf16 %v4346
  %s4349 = scalar_lea.vmem %s1, 1488
  %s4350 = scalar_lea.vmem %s0, 1744
  %v4351 = vld [vmem:[%s4350] sm:$0xf]
  %v4352 = vunpack.c.l.bf16 %v4351
  %v4353 = vunpack.c.h.bf16 %v4351
  %s4354 = scalar_lea.vmem %s1, 2512
  %s4355 = scalar_lea.vmem %s0, 720
  %v4356 = vld [vmem:[%s4355] sm:$0xf]
  %v4357 = vunpack.c.l.bf16 %v4356
  %v4358 = vunpack.c.h.bf16 %v4356
  %s4359 = scalar_lea.vmem %s1, 3536
  %s4360 = scalar_lea.vmem %s0, 3536
  %v4361 = vld [vmem:[%s4360] sm:$0xf]
  %v4362 = vunpack.c.l.bf16 %v4361
  %v4363 = vunpack.c.h.bf16 %v4361
  %s4364 = scalar_lea.vmem %s1, 720
  %s4365 = scalar_lea.vmem %s0, 2512
  %v4366 = vld [vmem:[%s4365] sm:$0xf]
  %v4367 = vunpack.c.l.bf16 %v4366
  %v4368 = vunpack.c.h.bf16 %v4366
  %s4369 = scalar_lea.vmem %s1, 1744
  %s4370 = scalar_lea.vmem %s0, 1488
  %v4371 = vld [vmem:[%s4370] sm:$0xf]
  %v4372 = vunpack.c.l.bf16 %v4371
  %v4373 = vunpack.c.h.bf16 %v4371
  %s4374 = scalar_lea.vmem %s1, 2768
  %s4375 = scalar_lea.vmem %s0, 464
  %v4376 = vld [vmem:[%s4375] sm:$0xf]
  %v4377 = vunpack.c.l.bf16 %v4376
  %v4378 = vunpack.c.h.bf16 %v4376
  %s4379 = scalar_lea.vmem %s1, 3792
  %s4380 = scalar_lea.vmem %s0, 3280
  %v4381 = vld [vmem:[%s4380] sm:$0xf]
  %v4382 = vunpack.c.l.bf16 %v4381
  %v4383 = vunpack.c.h.bf16 %v4381
  %s4384 = scalar_lea.vmem %s1, 976
  %s4385 = scalar_lea.vmem %s0, 2256
  %v4386 = vld [vmem:[%s4385] sm:$0xf]
  %v4387 = vunpack.c.l.bf16 %v4386
  %v4388 = vunpack.c.h.bf16 %v4386
  %s4389 = scalar_lea.vmem %s1, 2000
  %s4390 = scalar_lea.vmem %s0, 1232
  %v4391 = vld [vmem:[%s4390] sm:$0xf]
  %v4392 = vunpack.c.l.bf16 %v4391
  %v4393 = vunpack.c.h.bf16 %v4391
  %s4394 = scalar_lea.vmem %s1, 3024
  %s4395 = scalar_lea.vmem %s0, 208
  %v4396 = vld [vmem:[%s4395] sm:$0xf]
  %v4397 = vunpack.c.l.bf16 %v4396
  %v4398 = vunpack.c.h.bf16 %v4396
  %s4399 = scalar_lea.vmem %s1, 4048
  %s4400 = scalar_lea.vmem %s0, 4080
  %v4401 = vld [vmem:[%s4400] sm:$0xf]
  %v4402 = vunpack.c.l.bf16 %v4401
  %v4403 = vunpack.c.h.bf16 %v4401
  %s4404 = scalar_lea.vmem %s1, 240
  %s4405 = scalar_lea.vmem %s0, 3056
  %v4406 = vld [vmem:[%s4405] sm:$0xf]
  %v4407 = vunpack.c.l.bf16 %v4406
  %v4408 = vunpack.c.h.bf16 %v4406
  %s4409 = scalar_lea.vmem %s1, 1264
  %s4410 = scalar_lea.vmem %s0, 2032
  %v4411 = vld [vmem:[%s4410] sm:$0xf]
  %v4412 = vunpack.c.l.bf16 %v4411
  %v4413 = vunpack.c.h.bf16 %v4411
  %s4414 = scalar_lea.vmem %s1, 2288
  %s4415 = scalar_lea.vmem %s0, 1008
  %v4416 = vld [vmem:[%s4415] sm:$0xf]
  %v4417 = vunpack.c.l.bf16 %v4416
  %v4418 = vunpack.c.h.bf16 %v4416
  %s4419 = scalar_lea.vmem %s1, 3312
  %s4420 = scalar_lea.vmem %s0, 3824
  %v4421 = vld [vmem:[%s4420] sm:$0xf]
  %v4422 = vunpack.c.l.bf16 %v4421
  %v4423 = vunpack.c.h.bf16 %v4421
  %s4424 = scalar_lea.vmem %s1, 496
  %s4425 = scalar_lea.vmem %s0, 2800
  %v4426 = vld [vmem:[%s4425] sm:$0xf]
  %v4427 = vunpack.c.l.bf16 %v4426
  %v4428 = vunpack.c.h.bf16 %v4426
  %s4429 = scalar_lea.vmem %s1, 1520
  %s4430 = scalar_lea.vmem %s0, 1776
  %v4431 = vld [vmem:[%s4430] sm:$0xf]
  %v4432 = vunpack.c.l.bf16 %v4431
  %v4433 = vunpack.c.h.bf16 %v4431
  %s4434 = scalar_lea.vmem %s1, 2544
  %s4435 = scalar_lea.vmem %s0, 752
  %v4436 = vld [vmem:[%s4435] sm:$0xf]
  %v4437 = vunpack.c.l.bf16 %v4436
  %v4438 = vunpack.c.h.bf16 %v4436
  %s4439 = scalar_lea.vmem %s1, 3568
  %s4440 = scalar_lea.vmem %s0, 3568
  %v4441 = vld [vmem:[%s4440] sm:$0xf]
  %v4442 = vunpack.c.l.bf16 %v4441
  %v4443 = vunpack.c.h.bf16 %v4441
  %s4444 = scalar_lea.vmem %s1, 752
  %s4445 = scalar_lea.vmem %s0, 2544
  %v4446 = vld [vmem:[%s4445] sm:$0xf]
  %v4447 = vunpack.c.l.bf16 %v4446
  %v4448 = vunpack.c.h.bf16 %v4446
  %s4449 = scalar_lea.vmem %s1, 1776
  %s4450 = scalar_lea.vmem %s0, 1520
  %v4451 = vld [vmem:[%s4450] sm:$0xf]
  %v4452 = vunpack.c.l.bf16 %v4451
  %v4453 = vunpack.c.h.bf16 %v4451
  %s4454 = scalar_lea.vmem %s1, 2800
  %s4455 = scalar_lea.vmem %s0, 496
  %v4456 = vld [vmem:[%s4455] sm:$0xf]
  %v4457 = vunpack.c.l.bf16 %v4456
  %v4458 = vunpack.c.h.bf16 %v4456
  %s4459 = scalar_lea.vmem %s1, 3824
  %s4460 = scalar_lea.vmem %s0, 3312
  %v4461 = vld [vmem:[%s4460] sm:$0xf]
  %v4462 = vunpack.c.l.bf16 %v4461
  %v4463 = vunpack.c.h.bf16 %v4461
  %s4464 = scalar_lea.vmem %s1, 1008
  %s4465 = scalar_lea.vmem %s0, 2288
  %v4466 = vld [vmem:[%s4465] sm:$0xf]
  %v4467 = vunpack.c.l.bf16 %v4466
  %v4468 = vunpack.c.h.bf16 %v4466
  %s4469 = scalar_lea.vmem %s1, 2032
  %s4470 = scalar_lea.vmem %s0, 1264
  %v4471 = vld [vmem:[%s4470] sm:$0xf]
  %v4472 = vunpack.c.l.bf16 %v4471
  %v4473 = vunpack.c.h.bf16 %v4471
  %s4474 = scalar_lea.vmem %s1, 3056
  %s4475 = scalar_lea.vmem %s0, 240
  %v4476 = vld [vmem:[%s4475] sm:$0xf]
  %v4477 = vunpack.c.l.bf16 %v4476
  %v4478 = vunpack.c.h.bf16 %v4476
  %s4479 = scalar_lea.vmem %s1, 4080
  %s4480 = scalar_lea.vmem %s0, 3860
  %v4481 = vld [vmem:[%s4480] sm:$0xf]
  %v4482 = vunpack.c.l.bf16 %v4481
  %v4483 = vunpack.c.h.bf16 %v4481
  %s4484 = scalar_lea.vmem %s1, 20
  %s4486 = ssub.s32 0, 4
  %s4487 = scalar_lea.vmem %s4484, %s4486
  %v4488 = vpack.c.bf16 %v4482, %v3842
  %4489 = vst [vmem:[%s4487] sm:$0xff] %v4488
  %s4490 = scalar_lea.vmem %s0, 2836
  %v4491 = vld [vmem:[%s4490] sm:$0xf]
  %v4492 = vunpack.c.l.bf16 %v4491
  %v4493 = vunpack.c.h.bf16 %v4491
  %s4494 = scalar_lea.vmem %s1, 1044
  %s4496 = ssub.s32 0, 4
  %s4497 = scalar_lea.vmem %s4494, %s4496
  %v4498 = vpack.c.bf16 %v4492, %v3847
  %4499 = vst [vmem:[%s4497] sm:$0xff] %v4498
  %s4500 = scalar_lea.vmem %s0, 1812
  %v4501 = vld [vmem:[%s4500] sm:$0xf]
  %v4502 = vunpack.c.l.bf16 %v4501
  %v4503 = vunpack.c.h.bf16 %v4501
  %s4504 = scalar_lea.vmem %s1, 2068
  %s4506 = ssub.s32 0, 4
  %s4507 = scalar_lea.vmem %s4504, %s4506
  %v4508 = vpack.c.bf16 %v4502, %v3852
  %4509 = vst [vmem:[%s4507] sm:$0xff] %v4508
  %s4510 = scalar_lea.vmem %s0, 788
  %v4511 = vld [vmem:[%s4510] sm:$0xf]
  %v4512 = vunpack.c.l.bf16 %v4511
  %v4513 = vunpack.c.h.bf16 %v4511
  %s4514 = scalar_lea.vmem %s1, 3092
  %s4516 = ssub.s32 0, 4
  %s4517 = scalar_lea.vmem %s4514, %s4516
  %v4518 = vpack.c.bf16 %v4512, %v3857
  %4519 = vst [vmem:[%s4517] sm:$0xff] %v4518
  %s4520 = scalar_lea.vmem %s0, 3604
  %v4521 = vld [vmem:[%s4520] sm:$0xf]
  %v4522 = vunpack.c.l.bf16 %v4521
  %v4523 = vunpack.c.h.bf16 %v4521
  %s4524 = scalar_lea.vmem %s1, 276
  %s4526 = ssub.s32 0, 4
  %s4527 = scalar_lea.vmem %s4524, %s4526
  %v4528 = vpack.c.bf16 %v4522, %v3862
  %4529 = vst [vmem:[%s4527] sm:$0xff] %v4528
  %s4530 = scalar_lea.vmem %s0, 2580
  %v4531 = vld [vmem:[%s4530] sm:$0xf]
  %v4532 = vunpack.c.l.bf16 %v4531
  %v4533 = vunpack.c.h.bf16 %v4531
  %s4534 = scalar_lea.vmem %s1, 1300
  %s4536 = ssub.s32 0, 4
  %s4537 = scalar_lea.vmem %s4534, %s4536
  %v4538 = vpack.c.bf16 %v4532, %v3867
  %4539 = vst [vmem:[%s4537] sm:$0xff] %v4538
  %s4540 = scalar_lea.vmem %s0, 1556
  %v4541 = vld [vmem:[%s4540] sm:$0xf]
  %v4542 = vunpack.c.l.bf16 %v4541
  %v4543 = vunpack.c.h.bf16 %v4541
  %s4544 = scalar_lea.vmem %s1, 2324
  %s4546 = ssub.s32 0, 4
  %s4547 = scalar_lea.vmem %s4544, %s4546
  %v4548 = vpack.c.bf16 %v4542, %v3872
  %4549 = vst [vmem:[%s4547] sm:$0xff] %v4548
  %s4550 = scalar_lea.vmem %s0, 532
  %v4551 = vld [vmem:[%s4550] sm:$0xf]
  %v4552 = vunpack.c.l.bf16 %v4551
  %v4553 = vunpack.c.h.bf16 %v4551
  %s4554 = scalar_lea.vmem %s1, 3348
  %s4556 = ssub.s32 0, 4
  %s4557 = scalar_lea.vmem %s4554, %s4556
  %v4558 = vpack.c.bf16 %v4552, %v3877
  %4559 = vst [vmem:[%s4557] sm:$0xff] %v4558
  %s4560 = scalar_lea.vmem %s0, 3348
  %v4561 = vld [vmem:[%s4560] sm:$0xf]
  %v4562 = vunpack.c.l.bf16 %v4561
  %v4563 = vunpack.c.h.bf16 %v4561
  %s4564 = scalar_lea.vmem %s1, 532
  %s4566 = ssub.s32 0, 4
  %s4567 = scalar_lea.vmem %s4564, %s4566
  %v4568 = vpack.c.bf16 %v4562, %v3882
  %4569 = vst [vmem:[%s4567] sm:$0xff] %v4568
  %s4570 = scalar_lea.vmem %s0, 2324
  %v4571 = vld [vmem:[%s4570] sm:$0xf]
  %v4572 = vunpack.c.l.bf16 %v4571
  %v4573 = vunpack.c.h.bf16 %v4571
  %s4574 = scalar_lea.vmem %s1, 1556
  %s4576 = ssub.s32 0, 4
  %s4577 = scalar_lea.vmem %s4574, %s4576
  %v4578 = vpack.c.bf16 %v4572, %v3887
  %4579 = vst [vmem:[%s4577] sm:$0xff] %v4578
  %s4580 = scalar_lea.vmem %s0, 1300
  %v4581 = vld [vmem:[%s4580] sm:$0xf]
  %v4582 = vunpack.c.l.bf16 %v4581
  %v4583 = vunpack.c.h.bf16 %v4581
  %s4584 = scalar_lea.vmem %s1, 2580
  %s4586 = ssub.s32 0, 4
  %s4587 = scalar_lea.vmem %s4584, %s4586
  %v4588 = vpack.c.bf16 %v4582, %v3892
  %4589 = vst [vmem:[%s4587] sm:$0xff] %v4588
  %s4590 = scalar_lea.vmem %s0, 276
  %v4591 = vld [vmem:[%s4590] sm:$0xf]
  %v4592 = vunpack.c.l.bf16 %v4591
  %v4593 = vunpack.c.h.bf16 %v4591
  %s4594 = scalar_lea.vmem %s1, 3604
  %s4596 = ssub.s32 0, 4
  %s4597 = scalar_lea.vmem %s4594, %s4596
  %v4598 = vpack.c.bf16 %v4592, %v3897
  %4599 = vst [vmem:[%s4597] sm:$0xff] %v4598
  %s4600 = scalar_lea.vmem %s0, 3092
  %v4601 = vld [vmem:[%s4600] sm:$0xf]
  %v4602 = vunpack.c.l.bf16 %v4601
  %v4603 = vunpack.c.h.bf16 %v4601
  %s4604 = scalar_lea.vmem %s1, 788
  %s4606 = ssub.s32 0, 4
  %s4607 = scalar_lea.vmem %s4604, %s4606
  %v4608 = vpack.c.bf16 %v4602, %v3902
  %4609 = vst [vmem:[%s4607] sm:$0xff] %v4608
  %s4610 = scalar_lea.vmem %s0, 2068
  %v4611 = vld [vmem:[%s4610] sm:$0xf]
  %v4612 = vunpack.c.l.bf16 %v4611
  %v4613 = vunpack.c.h.bf16 %v4611
  %s4614 = scalar_lea.vmem %s1, 1812
  %s4616 = ssub.s32 0, 4
  %s4617 = scalar_lea.vmem %s4614, %s4616
  %v4618 = vpack.c.bf16 %v4612, %v3907
  %4619 = vst [vmem:[%s4617] sm:$0xff] %v4618
  %s4620 = scalar_lea.vmem %s0, 1044
  %v4621 = vld [vmem:[%s4620] sm:$0xf]
  %v4622 = vunpack.c.l.bf16 %v4621
  %v4623 = vunpack.c.h.bf16 %v4621
  %s4624 = scalar_lea.vmem %s1, 2836
  %s4626 = ssub.s32 0, 4
  %s4627 = scalar_lea.vmem %s4624, %s4626
  %v4628 = vpack.c.bf16 %v4622, %v3912
  %4629 = vst [vmem:[%s4627] sm:$0xff] %v4628
  %s4630 = scalar_lea.vmem %s0, 20
  %v4631 = vld [vmem:[%s4630] sm:$0xf]
  %v4632 = vunpack.c.l.bf16 %v4631
  %v4633 = vunpack.c.h.bf16 %v4631
  %s4634 = scalar_lea.vmem %s1, 3860
  %s4636 = ssub.s32 0, 4
  %s4637 = scalar_lea.vmem %s4634, %s4636
  %v4638 = vpack.c.bf16 %v4632, %v3917
  %4639 = vst [vmem:[%s4637] sm:$0xff] %v4638
  %s4640 = scalar_lea.vmem %s0, 3892
  %v4641 = vld [vmem:[%s4640] sm:$0xf]
  %v4642 = vunpack.c.l.bf16 %v4641
  %v4643 = vunpack.c.h.bf16 %v4641
  %s4644 = scalar_lea.vmem %s1, 52
  %s4646 = ssub.s32 0, 4
  %s4647 = scalar_lea.vmem %s4644, %s4646
  %v4648 = vpack.c.bf16 %v4642, %v3922
  %4649 = vst [vmem:[%s4647] sm:$0xff] %v4648
  %s4650 = scalar_lea.vmem %s0, 2868
  %v4651 = vld [vmem:[%s4650] sm:$0xf]
  %v4652 = vunpack.c.l.bf16 %v4651
  %v4653 = vunpack.c.h.bf16 %v4651
  %s4654 = scalar_lea.vmem %s1, 1076
  %s4656 = ssub.s32 0, 4
  %s4657 = scalar_lea.vmem %s4654, %s4656
  %v4658 = vpack.c.bf16 %v4652, %v3927
  %4659 = vst [vmem:[%s4657] sm:$0xff] %v4658
  %s4660 = scalar_lea.vmem %s0, 1844
  %v4661 = vld [vmem:[%s4660] sm:$0xf]
  %v4662 = vunpack.c.l.bf16 %v4661
  %v4663 = vunpack.c.h.bf16 %v4661
  %s4664 = scalar_lea.vmem %s1, 2100
  %s4666 = ssub.s32 0, 4
  %s4667 = scalar_lea.vmem %s4664, %s4666
  %v4668 = vpack.c.bf16 %v4662, %v3932
  %4669 = vst [vmem:[%s4667] sm:$0xff] %v4668
  %s4670 = scalar_lea.vmem %s0, 820
  %v4671 = vld [vmem:[%s4670] sm:$0xf]
  %v4672 = vunpack.c.l.bf16 %v4671
  %v4673 = vunpack.c.h.bf16 %v4671
  %s4674 = scalar_lea.vmem %s1, 3124
  %s4676 = ssub.s32 0, 4
  %s4677 = scalar_lea.vmem %s4674, %s4676
  %v4678 = vpack.c.bf16 %v4672, %v3937
  %4679 = vst [vmem:[%s4677] sm:$0xff] %v4678
  %s4680 = scalar_lea.vmem %s0, 3636
  %v4681 = vld [vmem:[%s4680] sm:$0xf]
  %v4682 = vunpack.c.l.bf16 %v4681
  %v4683 = vunpack.c.h.bf16 %v4681
  %s4684 = scalar_lea.vmem %s1, 308
  %s4686 = ssub.s32 0, 4
  %s4687 = scalar_lea.vmem %s4684, %s4686
  %v4688 = vpack.c.bf16 %v4682, %v3942
  %4689 = vst [vmem:[%s4687] sm:$0xff] %v4688
  %s4690 = scalar_lea.vmem %s0, 2612
  %v4691 = vld [vmem:[%s4690] sm:$0xf]
  %v4692 = vunpack.c.l.bf16 %v4691
  %v4693 = vunpack.c.h.bf16 %v4691
  %s4694 = scalar_lea.vmem %s1, 1332
  %s4696 = ssub.s32 0, 4
  %s4697 = scalar_lea.vmem %s4694, %s4696
  %v4698 = vpack.c.bf16 %v4692, %v3947
  %4699 = vst [vmem:[%s4697] sm:$0xff] %v4698
  %s4700 = scalar_lea.vmem %s0, 1588
  %v4701 = vld [vmem:[%s4700] sm:$0xf]
  %v4702 = vunpack.c.l.bf16 %v4701
  %v4703 = vunpack.c.h.bf16 %v4701
  %s4704 = scalar_lea.vmem %s1, 2356
  %s4706 = ssub.s32 0, 4
  %s4707 = scalar_lea.vmem %s4704, %s4706
  %v4708 = vpack.c.bf16 %v4702, %v3952
  %4709 = vst [vmem:[%s4707] sm:$0xff] %v4708
  %s4710 = scalar_lea.vmem %s0, 564
  %v4711 = vld [vmem:[%s4710] sm:$0xf]
  %v4712 = vunpack.c.l.bf16 %v4711
  %v4713 = vunpack.c.h.bf16 %v4711
  %s4714 = scalar_lea.vmem %s1, 3380
  %s4716 = ssub.s32 0, 4
  %s4717 = scalar_lea.vmem %s4714, %s4716
  %v4718 = vpack.c.bf16 %v4712, %v3957
  %4719 = vst [vmem:[%s4717] sm:$0xff] %v4718
  %s4720 = scalar_lea.vmem %s0, 3380
  %v4721 = vld [vmem:[%s4720] sm:$0xf]
  %v4722 = vunpack.c.l.bf16 %v4721
  %v4723 = vunpack.c.h.bf16 %v4721
  %s4724 = scalar_lea.vmem %s1, 564
  %s4726 = ssub.s32 0, 4
  %s4727 = scalar_lea.vmem %s4724, %s4726
  %v4728 = vpack.c.bf16 %v4722, %v3962
  %4729 = vst [vmem:[%s4727] sm:$0xff] %v4728
  %s4730 = scalar_lea.vmem %s0, 2356
  %v4731 = vld [vmem:[%s4730] sm:$0xf]
  %v4732 = vunpack.c.l.bf16 %v4731
  %v4733 = vunpack.c.h.bf16 %v4731
  %s4734 = scalar_lea.vmem %s1, 1588
  %s4736 = ssub.s32 0, 4
  %s4737 = scalar_lea.vmem %s4734, %s4736
  %v4738 = vpack.c.bf16 %v4732, %v3967
  %4739 = vst [vmem:[%s4737] sm:$0xff] %v4738
  %s4740 = scalar_lea.vmem %s0, 1332
  %v4741 = vld [vmem:[%s4740] sm:$0xf]
  %v4742 = vunpack.c.l.bf16 %v4741
  %v4743 = vunpack.c.h.bf16 %v4741
  %s4744 = scalar_lea.vmem %s1, 2612
  %s4746 = ssub.s32 0, 4
  %s4747 = scalar_lea.vmem %s4744, %s4746
  %v4748 = vpack.c.bf16 %v4742, %v3972
  %4749 = vst [vmem:[%s4747] sm:$0xff] %v4748
  %s4750 = scalar_lea.vmem %s0, 308
  %v4751 = vld [vmem:[%s4750] sm:$0xf]
  %v4752 = vunpack.c.l.bf16 %v4751
  %v4753 = vunpack.c.h.bf16 %v4751
  %s4754 = scalar_lea.vmem %s1, 3636
  %s4756 = ssub.s32 0, 4
  %s4757 = scalar_lea.vmem %s4754, %s4756
  %v4758 = vpack.c.bf16 %v4752, %v3977
  %4759 = vst [vmem:[%s4757] sm:$0xff] %v4758
  %s4760 = scalar_lea.vmem %s0, 3124
  %v4761 = vld [vmem:[%s4760] sm:$0xf]
  %v4762 = vunpack.c.l.bf16 %v4761
  %v4763 = vunpack.c.h.bf16 %v4761
  %s4764 = scalar_lea.vmem %s1, 820
  %s4766 = ssub.s32 0, 4
  %s4767 = scalar_lea.vmem %s4764, %s4766
  %v4768 = vpack.c.bf16 %v4762, %v3982
  %4769 = vst [vmem:[%s4767] sm:$0xff] %v4768
  %s4770 = scalar_lea.vmem %s0, 2100
  %v4771 = vld [vmem:[%s4770] sm:$0xf]
  %v4772 = vunpack.c.l.bf16 %v4771
  %v4773 = vunpack.c.h.bf16 %v4771
  %s4774 = scalar_lea.vmem %s1, 1844
  %s4776 = ssub.s32 0, 4
  %s4777 = scalar_lea.vmem %s4774, %s4776
  %v4778 = vpack.c.bf16 %v4772, %v3987
  %4779 = vst [vmem:[%s4777] sm:$0xff] %v4778
  %s4780 = scalar_lea.vmem %s0, 1076
  %v4781 = vld [vmem:[%s4780] sm:$0xf]
  %v4782 = vunpack.c.l.bf16 %v4781
  %v4783 = vunpack.c.h.bf16 %v4781
  %s4784 = scalar_lea.vmem %s1, 2868
  %s4786 = ssub.s32 0, 4
  %s4787 = scalar_lea.vmem %s4784, %s4786
  %v4788 = vpack.c.bf16 %v4782, %v3992
  %4789 = vst [vmem:[%s4787] sm:$0xff] %v4788
  %s4790 = scalar_lea.vmem %s0, 52
  %v4791 = vld [vmem:[%s4790] sm:$0xf]
  %v4792 = vunpack.c.l.bf16 %v4791
  %v4793 = vunpack.c.h.bf16 %v4791
  %s4794 = scalar_lea.vmem %s1, 3892
  %s4796 = ssub.s32 0, 4
  %s4797 = scalar_lea.vmem %s4794, %s4796
  %v4798 = vpack.c.bf16 %v4792, %v3997
  %4799 = vst [vmem:[%s4797] sm:$0xff] %v4798
  %s4800 = scalar_lea.vmem %s0, 3924
  %v4801 = vld [vmem:[%s4800] sm:$0xf]
  %v4802 = vunpack.c.l.bf16 %v4801
  %v4803 = vunpack.c.h.bf16 %v4801
  %s4804 = scalar_lea.vmem %s1, 84
  %s4806 = ssub.s32 0, 4
  %s4807 = scalar_lea.vmem %s4804, %s4806
  %v4808 = vpack.c.bf16 %v4802, %v4002
  %4809 = vst [vmem:[%s4807] sm:$0xff] %v4808
  %s4810 = scalar_lea.vmem %s0, 2900
  %v4811 = vld [vmem:[%s4810] sm:$0xf]
  %v4812 = vunpack.c.l.bf16 %v4811
  %v4813 = vunpack.c.h.bf16 %v4811
  %s4814 = scalar_lea.vmem %s1, 1108
  %s4816 = ssub.s32 0, 4
  %s4817 = scalar_lea.vmem %s4814, %s4816
  %v4818 = vpack.c.bf16 %v4812, %v4007
  %4819 = vst [vmem:[%s4817] sm:$0xff] %v4818
  %s4820 = scalar_lea.vmem %s0, 1876
  %v4821 = vld [vmem:[%s4820] sm:$0xf]
  %v4822 = vunpack.c.l.bf16 %v4821
  %v4823 = vunpack.c.h.bf16 %v4821
  %s4824 = scalar_lea.vmem %s1, 2132
  %s4826 = ssub.s32 0, 4
  %s4827 = scalar_lea.vmem %s4824, %s4826
  %v4828 = vpack.c.bf16 %v4822, %v4012
  %4829 = vst [vmem:[%s4827] sm:$0xff] %v4828
  %s4830 = scalar_lea.vmem %s0, 852
  %v4831 = vld [vmem:[%s4830] sm:$0xf]
  %v4832 = vunpack.c.l.bf16 %v4831
  %v4833 = vunpack.c.h.bf16 %v4831
  %s4834 = scalar_lea.vmem %s1, 3156
  %s4836 = ssub.s32 0, 4
  %s4837 = scalar_lea.vmem %s4834, %s4836
  %v4838 = vpack.c.bf16 %v4832, %v4017
  %4839 = vst [vmem:[%s4837] sm:$0xff] %v4838
  %s4840 = scalar_lea.vmem %s0, 3668
  %v4841 = vld [vmem:[%s4840] sm:$0xf]
  %v4842 = vunpack.c.l.bf16 %v4841
  %v4843 = vunpack.c.h.bf16 %v4841
  %s4844 = scalar_lea.vmem %s1, 340
  %s4846 = ssub.s32 0, 4
  %s4847 = scalar_lea.vmem %s4844, %s4846
  %v4848 = vpack.c.bf16 %v4842, %v4022
  %4849 = vst [vmem:[%s4847] sm:$0xff] %v4848
  %s4850 = scalar_lea.vmem %s0, 2644
  %v4851 = vld [vmem:[%s4850] sm:$0xf]
  %v4852 = vunpack.c.l.bf16 %v4851
  %v4853 = vunpack.c.h.bf16 %v4851
  %s4854 = scalar_lea.vmem %s1, 1364
  %s4856 = ssub.s32 0, 4
  %s4857 = scalar_lea.vmem %s4854, %s4856
  %v4858 = vpack.c.bf16 %v4852, %v4027
  %4859 = vst [vmem:[%s4857] sm:$0xff] %v4858
  %s4860 = scalar_lea.vmem %s0, 1620
  %v4861 = vld [vmem:[%s4860] sm:$0xf]
  %v4862 = vunpack.c.l.bf16 %v4861
  %v4863 = vunpack.c.h.bf16 %v4861
  %s4864 = scalar_lea.vmem %s1, 2388
  %s4866 = ssub.s32 0, 4
  %s4867 = scalar_lea.vmem %s4864, %s4866
  %v4868 = vpack.c.bf16 %v4862, %v4032
  %4869 = vst [vmem:[%s4867] sm:$0xff] %v4868
  %s4870 = scalar_lea.vmem %s0, 596
  %v4871 = vld [vmem:[%s4870] sm:$0xf]
  %v4872 = vunpack.c.l.bf16 %v4871
  %v4873 = vunpack.c.h.bf16 %v4871
  %s4874 = scalar_lea.vmem %s1, 3412
  %s4876 = ssub.s32 0, 4
  %s4877 = scalar_lea.vmem %s4874, %s4876
  %v4878 = vpack.c.bf16 %v4872, %v4037
  %4879 = vst [vmem:[%s4877] sm:$0xff] %v4878
  %s4880 = scalar_lea.vmem %s0, 3412
  %v4881 = vld [vmem:[%s4880] sm:$0xf]
  %v4882 = vunpack.c.l.bf16 %v4881
  %v4883 = vunpack.c.h.bf16 %v4881
  %s4884 = scalar_lea.vmem %s1, 596
  %s4886 = ssub.s32 0, 4
  %s4887 = scalar_lea.vmem %s4884, %s4886
  %v4888 = vpack.c.bf16 %v4882, %v4042
  %4889 = vst [vmem:[%s4887] sm:$0xff] %v4888
  %s4890 = scalar_lea.vmem %s0, 2388
  %v4891 = vld [vmem:[%s4890] sm:$0xf]
  %v4892 = vunpack.c.l.bf16 %v4891
  %v4893 = vunpack.c.h.bf16 %v4891
  %s4894 = scalar_lea.vmem %s1, 1620
  %s4896 = ssub.s32 0, 4
  %s4897 = scalar_lea.vmem %s4894, %s4896
  %v4898 = vpack.c.bf16 %v4892, %v4047
  %4899 = vst [vmem:[%s4897] sm:$0xff] %v4898
  %s4900 = scalar_lea.vmem %s0, 1364
  %v4901 = vld [vmem:[%s4900] sm:$0xf]
  %v4902 = vunpack.c.l.bf16 %v4901
  %v4903 = vunpack.c.h.bf16 %v4901
  %s4904 = scalar_lea.vmem %s1, 2644
  %s4906 = ssub.s32 0, 4
  %s4907 = scalar_lea.vmem %s4904, %s4906
  %v4908 = vpack.c.bf16 %v4902, %v4052
  %4909 = vst [vmem:[%s4907] sm:$0xff] %v4908
  %s4910 = scalar_lea.vmem %s0, 340
  %v4911 = vld [vmem:[%s4910] sm:$0xf]
  %v4912 = vunpack.c.l.bf16 %v4911
  %v4913 = vunpack.c.h.bf16 %v4911
  %s4914 = scalar_lea.vmem %s1, 3668
  %s4916 = ssub.s32 0, 4
  %s4917 = scalar_lea.vmem %s4914, %s4916
  %v4918 = vpack.c.bf16 %v4912, %v4057
  %4919 = vst [vmem:[%s4917] sm:$0xff] %v4918
  %s4920 = scalar_lea.vmem %s0, 3156
  %v4921 = vld [vmem:[%s4920] sm:$0xf]
  %v4922 = vunpack.c.l.bf16 %v4921
  %v4923 = vunpack.c.h.bf16 %v4921
  %s4924 = scalar_lea.vmem %s1, 852
  %s4926 = ssub.s32 0, 4
  %s4927 = scalar_lea.vmem %s4924, %s4926
  %v4928 = vpack.c.bf16 %v4922, %v4062
  %4929 = vst [vmem:[%s4927] sm:$0xff] %v4928
  %s4930 = scalar_lea.vmem %s0, 2132
  %v4931 = vld [vmem:[%s4930] sm:$0xf]
  %v4932 = vunpack.c.l.bf16 %v4931
  %v4933 = vunpack.c.h.bf16 %v4931
  %s4934 = scalar_lea.vmem %s1, 1876
  %s4936 = ssub.s32 0, 4
  %s4937 = scalar_lea.vmem %s4934, %s4936
  %v4938 = vpack.c.bf16 %v4932, %v4067
  %4939 = vst [vmem:[%s4937] sm:$0xff] %v4938
  %s4940 = scalar_lea.vmem %s0, 1108
  %v4941 = vld [vmem:[%s4940] sm:$0xf]
  %v4942 = vunpack.c.l.bf16 %v4941
  %v4943 = vunpack.c.h.bf16 %v4941
  %s4944 = scalar_lea.vmem %s1, 2900
  %s4946 = ssub.s32 0, 4
  %s4947 = scalar_lea.vmem %s4944, %s4946
  %v4948 = vpack.c.bf16 %v4942, %v4072
  %4949 = vst [vmem:[%s4947] sm:$0xff] %v4948
  %s4950 = scalar_lea.vmem %s0, 84
  %v4951 = vld [vmem:[%s4950] sm:$0xf]
  %v4952 = vunpack.c.l.bf16 %v4951
  %v4953 = vunpack.c.h.bf16 %v4951
  %s4954 = scalar_lea.vmem %s1, 3924
  %s4956 = ssub.s32 0, 4
  %s4957 = scalar_lea.vmem %s4954, %s4956
  %v4958 = vpack.c.bf16 %v4952, %v4077
  %4959 = vst [vmem:[%s4957] sm:$0xff] %v4958
  %s4960 = scalar_lea.vmem %s0, 3956
  %v4961 = vld [vmem:[%s4960] sm:$0xf]
  %v4962 = vunpack.c.l.bf16 %v4961
  %v4963 = vunpack.c.h.bf16 %v4961
  %s4964 = scalar_lea.vmem %s1, 116
  %s4966 = ssub.s32 0, 4
  %s4967 = scalar_lea.vmem %s4964, %s4966
  %v4968 = vpack.c.bf16 %v4962, %v4082
  %4969 = vst [vmem:[%s4967] sm:$0xff] %v4968
  %s4970 = scalar_lea.vmem %s0, 2932
  %v4971 = vld [vmem:[%s4970] sm:$0xf]
  %v4972 = vunpack.c.l.bf16 %v4971
  %v4973 = vunpack.c.h.bf16 %v4971
  %s4974 = scalar_lea.vmem %s1, 1140
  %s4976 = ssub.s32 0, 4
  %s4977 = scalar_lea.vmem %s4974, %s4976
  %v4978 = vpack.c.bf16 %v4972, %v4087
  %4979 = vst [vmem:[%s4977] sm:$0xff] %v4978
  %s4980 = scalar_lea.vmem %s0, 1908
  %v4981 = vld [vmem:[%s4980] sm:$0xf]
  %v4982 = vunpack.c.l.bf16 %v4981
  %v4983 = vunpack.c.h.bf16 %v4981
  %s4984 = scalar_lea.vmem %s1, 2164
  %s4986 = ssub.s32 0, 4
  %s4987 = scalar_lea.vmem %s4984, %s4986
  %v4988 = vpack.c.bf16 %v4982, %v4092
  %4989 = vst [vmem:[%s4987] sm:$0xff] %v4988
  %s4990 = scalar_lea.vmem %s0, 884
  %v4991 = vld [vmem:[%s4990] sm:$0xf]
  %v4992 = vunpack.c.l.bf16 %v4991
  %v4993 = vunpack.c.h.bf16 %v4991
  %s4994 = scalar_lea.vmem %s1, 3188
  %s4996 = ssub.s32 0, 4
  %s4997 = scalar_lea.vmem %s4994, %s4996
  %v4998 = vpack.c.bf16 %v4992, %v4097
  %4999 = vst [vmem:[%s4997] sm:$0xff] %v4998
  %s5000 = scalar_lea.vmem %s0, 3700
  %v5001 = vld [vmem:[%s5000] sm:$0xf]
  %v5002 = vunpack.c.l.bf16 %v5001
  %v5003 = vunpack.c.h.bf16 %v5001
  %s5004 = scalar_lea.vmem %s1, 372
  %s5006 = ssub.s32 0, 4
  %s5007 = scalar_lea.vmem %s5004, %s5006
  %v5008 = vpack.c.bf16 %v5002, %v4102
  %5009 = vst [vmem:[%s5007] sm:$0xff] %v5008
  %s5010 = scalar_lea.vmem %s0, 2676
  %v5011 = vld [vmem:[%s5010] sm:$0xf]
  %v5012 = vunpack.c.l.bf16 %v5011
  %v5013 = vunpack.c.h.bf16 %v5011
  %s5014 = scalar_lea.vmem %s1, 1396
  %s5016 = ssub.s32 0, 4
  %s5017 = scalar_lea.vmem %s5014, %s5016
  %v5018 = vpack.c.bf16 %v5012, %v4107
  %5019 = vst [vmem:[%s5017] sm:$0xff] %v5018
  %s5020 = scalar_lea.vmem %s0, 1652
  %v5021 = vld [vmem:[%s5020] sm:$0xf]
  %v5022 = vunpack.c.l.bf16 %v5021
  %v5023 = vunpack.c.h.bf16 %v5021
  %s5024 = scalar_lea.vmem %s1, 2420
  %s5026 = ssub.s32 0, 4
  %s5027 = scalar_lea.vmem %s5024, %s5026
  %v5028 = vpack.c.bf16 %v5022, %v4112
  %5029 = vst [vmem:[%s5027] sm:$0xff] %v5028
  %s5030 = scalar_lea.vmem %s0, 628
  %v5031 = vld [vmem:[%s5030] sm:$0xf]
  %v5032 = vunpack.c.l.bf16 %v5031
  %v5033 = vunpack.c.h.bf16 %v5031
  %s5034 = scalar_lea.vmem %s1, 3444
  %s5036 = ssub.s32 0, 4
  %s5037 = scalar_lea.vmem %s5034, %s5036
  %v5038 = vpack.c.bf16 %v5032, %v4117
  %5039 = vst [vmem:[%s5037] sm:$0xff] %v5038
  %s5040 = scalar_lea.vmem %s0, 3444
  %v5041 = vld [vmem:[%s5040] sm:$0xf]
  %v5042 = vunpack.c.l.bf16 %v5041
  %v5043 = vunpack.c.h.bf16 %v5041
  %s5044 = scalar_lea.vmem %s1, 628
  %s5046 = ssub.s32 0, 4
  %s5047 = scalar_lea.vmem %s5044, %s5046
  %v5048 = vpack.c.bf16 %v5042, %v4122
  %5049 = vst [vmem:[%s5047] sm:$0xff] %v5048
  %s5050 = scalar_lea.vmem %s0, 2420
  %v5051 = vld [vmem:[%s5050] sm:$0xf]
  %v5052 = vunpack.c.l.bf16 %v5051
  %v5053 = vunpack.c.h.bf16 %v5051
  %s5054 = scalar_lea.vmem %s1, 1652
  %s5056 = ssub.s32 0, 4
  %s5057 = scalar_lea.vmem %s5054, %s5056
  %v5058 = vpack.c.bf16 %v5052, %v4127
  %5059 = vst [vmem:[%s5057] sm:$0xff] %v5058
  %s5060 = scalar_lea.vmem %s0, 1396
  %v5061 = vld [vmem:[%s5060] sm:$0xf]
  %v5062 = vunpack.c.l.bf16 %v5061
  %v5063 = vunpack.c.h.bf16 %v5061
  %s5064 = scalar_lea.vmem %s1, 2676
  %s5066 = ssub.s32 0, 4
  %s5067 = scalar_lea.vmem %s5064, %s5066
  %v5068 = vpack.c.bf16 %v5062, %v4132
  %5069 = vst [vmem:[%s5067] sm:$0xff] %v5068
  %s5070 = scalar_lea.vmem %s0, 372
  %v5071 = vld [vmem:[%s5070] sm:$0xf]
  %v5072 = vunpack.c.l.bf16 %v5071
  %v5073 = vunpack.c.h.bf16 %v5071
  %s5074 = scalar_lea.vmem %s1, 3700
  %s5076 = ssub.s32 0, 4
  %s5077 = scalar_lea.vmem %s5074, %s5076
  %v5078 = vpack.c.bf16 %v5072, %v4137
  %5079 = vst [vmem:[%s5077] sm:$0xff] %v5078
  %s5080 = scalar_lea.vmem %s0, 3188
  %v5081 = vld [vmem:[%s5080] sm:$0xf]
  %v5082 = vunpack.c.l.bf16 %v5081
  %v5083 = vunpack.c.h.bf16 %v5081
  %s5084 = scalar_lea.vmem %s1, 884
  %s5086 = ssub.s32 0, 4
  %s5087 = scalar_lea.vmem %s5084, %s5086
  %v5088 = vpack.c.bf16 %v5082, %v4142
  %5089 = vst [vmem:[%s5087] sm:$0xff] %v5088
  %s5090 = scalar_lea.vmem %s0, 2164
  %v5091 = vld [vmem:[%s5090] sm:$0xf]
  %v5092 = vunpack.c.l.bf16 %v5091
  %v5093 = vunpack.c.h.bf16 %v5091
  %s5094 = scalar_lea.vmem %s1, 1908
  %s5096 = ssub.s32 0, 4
  %s5097 = scalar_lea.vmem %s5094, %s5096
  %v5098 = vpack.c.bf16 %v5092, %v4147
  %5099 = vst [vmem:[%s5097] sm:$0xff] %v5098
  %s5100 = scalar_lea.vmem %s0, 1140
  %v5101 = vld [vmem:[%s5100] sm:$0xf]
  %v5102 = vunpack.c.l.bf16 %v5101
  %v5103 = vunpack.c.h.bf16 %v5101
  %s5104 = scalar_lea.vmem %s1, 2932
  %s5106 = ssub.s32 0, 4
  %s5107 = scalar_lea.vmem %s5104, %s5106
  %v5108 = vpack.c.bf16 %v5102, %v4152
  %5109 = vst [vmem:[%s5107] sm:$0xff] %v5108
  %s5110 = scalar_lea.vmem %s0, 116
  %v5111 = vld [vmem:[%s5110] sm:$0xf]
  %v5112 = vunpack.c.l.bf16 %v5111
  %v5113 = vunpack.c.h.bf16 %v5111
  %s5114 = scalar_lea.vmem %s1, 3956
  %s5116 = ssub.s32 0, 4
  %s5117 = scalar_lea.vmem %s5114, %s5116
  %v5118 = vpack.c.bf16 %v5112, %v4157
  %5119 = vst [vmem:[%s5117] sm:$0xff] %v5118
  %s5120 = scalar_lea.vmem %s0, 3988
  %v5121 = vld [vmem:[%s5120] sm:$0xf]
  %v5122 = vunpack.c.l.bf16 %v5121
  %v5123 = vunpack.c.h.bf16 %v5121
  %s5124 = scalar_lea.vmem %s1, 148
  %s5126 = ssub.s32 0, 4
  %s5127 = scalar_lea.vmem %s5124, %s5126
  %v5128 = vpack.c.bf16 %v5122, %v4162
  %5129 = vst [vmem:[%s5127] sm:$0xff] %v5128
  %s5130 = scalar_lea.vmem %s0, 2964
  %v5131 = vld [vmem:[%s5130] sm:$0xf]
  %v5132 = vunpack.c.l.bf16 %v5131
  %v5133 = vunpack.c.h.bf16 %v5131
  %s5134 = scalar_lea.vmem %s1, 1172
  %s5136 = ssub.s32 0, 4
  %s5137 = scalar_lea.vmem %s5134, %s5136
  %v5138 = vpack.c.bf16 %v5132, %v4167
  %5139 = vst [vmem:[%s5137] sm:$0xff] %v5138
  %s5140 = scalar_lea.vmem %s0, 1940
  %v5141 = vld [vmem:[%s5140] sm:$0xf]
  %v5142 = vunpack.c.l.bf16 %v5141
  %v5143 = vunpack.c.h.bf16 %v5141
  %s5144 = scalar_lea.vmem %s1, 2196
  %s5146 = ssub.s32 0, 4
  %s5147 = scalar_lea.vmem %s5144, %s5146
  %v5148 = vpack.c.bf16 %v5142, %v4172
  %5149 = vst [vmem:[%s5147] sm:$0xff] %v5148
  %s5150 = scalar_lea.vmem %s0, 916
  %v5151 = vld [vmem:[%s5150] sm:$0xf]
  %v5152 = vunpack.c.l.bf16 %v5151
  %v5153 = vunpack.c.h.bf16 %v5151
  %s5154 = scalar_lea.vmem %s1, 3220
  %s5156 = ssub.s32 0, 4
  %s5157 = scalar_lea.vmem %s5154, %s5156
  %v5158 = vpack.c.bf16 %v5152, %v4177
  %5159 = vst [vmem:[%s5157] sm:$0xff] %v5158
  %s5160 = scalar_lea.vmem %s0, 3732
  %v5161 = vld [vmem:[%s5160] sm:$0xf]
  %v5162 = vunpack.c.l.bf16 %v5161
  %v5163 = vunpack.c.h.bf16 %v5161
  %s5164 = scalar_lea.vmem %s1, 404
  %s5166 = ssub.s32 0, 4
  %s5167 = scalar_lea.vmem %s5164, %s5166
  %v5168 = vpack.c.bf16 %v5162, %v4182
  %5169 = vst [vmem:[%s5167] sm:$0xff] %v5168
  %s5170 = scalar_lea.vmem %s0, 2708
  %v5171 = vld [vmem:[%s5170] sm:$0xf]
  %v5172 = vunpack.c.l.bf16 %v5171
  %v5173 = vunpack.c.h.bf16 %v5171
  %s5174 = scalar_lea.vmem %s1, 1428
  %s5176 = ssub.s32 0, 4
  %s5177 = scalar_lea.vmem %s5174, %s5176
  %v5178 = vpack.c.bf16 %v5172, %v4187
  %5179 = vst [vmem:[%s5177] sm:$0xff] %v5178
  %s5180 = scalar_lea.vmem %s0, 1684
  %v5181 = vld [vmem:[%s5180] sm:$0xf]
  %v5182 = vunpack.c.l.bf16 %v5181
  %v5183 = vunpack.c.h.bf16 %v5181
  %s5184 = scalar_lea.vmem %s1, 2452
  %s5186 = ssub.s32 0, 4
  %s5187 = scalar_lea.vmem %s5184, %s5186
  %v5188 = vpack.c.bf16 %v5182, %v4192
  %5189 = vst [vmem:[%s5187] sm:$0xff] %v5188
  %s5190 = scalar_lea.vmem %s0, 660
  %v5191 = vld [vmem:[%s5190] sm:$0xf]
  %v5192 = vunpack.c.l.bf16 %v5191
  %v5193 = vunpack.c.h.bf16 %v5191
  %s5194 = scalar_lea.vmem %s1, 3476
  %s5196 = ssub.s32 0, 4
  %s5197 = scalar_lea.vmem %s5194, %s5196
  %v5198 = vpack.c.bf16 %v5192, %v4197
  %5199 = vst [vmem:[%s5197] sm:$0xff] %v5198
  %s5200 = scalar_lea.vmem %s0, 3476
  %v5201 = vld [vmem:[%s5200] sm:$0xf]
  %v5202 = vunpack.c.l.bf16 %v5201
  %v5203 = vunpack.c.h.bf16 %v5201
  %s5204 = scalar_lea.vmem %s1, 660
  %s5206 = ssub.s32 0, 4
  %s5207 = scalar_lea.vmem %s5204, %s5206
  %v5208 = vpack.c.bf16 %v5202, %v4202
  %5209 = vst [vmem:[%s5207] sm:$0xff] %v5208
  %s5210 = scalar_lea.vmem %s0, 2452
  %v5211 = vld [vmem:[%s5210] sm:$0xf]
  %v5212 = vunpack.c.l.bf16 %v5211
  %v5213 = vunpack.c.h.bf16 %v5211
  %s5214 = scalar_lea.vmem %s1, 1684
  %s5216 = ssub.s32 0, 4
  %s5217 = scalar_lea.vmem %s5214, %s5216
  %v5218 = vpack.c.bf16 %v5212, %v4207
  %5219 = vst [vmem:[%s5217] sm:$0xff] %v5218
  %s5220 = scalar_lea.vmem %s0, 1428
  %v5221 = vld [vmem:[%s5220] sm:$0xf]
  %v5222 = vunpack.c.l.bf16 %v5221
  %v5223 = vunpack.c.h.bf16 %v5221
  %s5224 = scalar_lea.vmem %s1, 2708
  %s5226 = ssub.s32 0, 4
  %s5227 = scalar_lea.vmem %s5224, %s5226
  %v5228 = vpack.c.bf16 %v5222, %v4212
  %5229 = vst [vmem:[%s5227] sm:$0xff] %v5228
  %s5230 = scalar_lea.vmem %s0, 404
  %v5231 = vld [vmem:[%s5230] sm:$0xf]
  %v5232 = vunpack.c.l.bf16 %v5231
  %v5233 = vunpack.c.h.bf16 %v5231
  %s5234 = scalar_lea.vmem %s1, 3732
  %s5236 = ssub.s32 0, 4
  %s5237 = scalar_lea.vmem %s5234, %s5236
  %v5238 = vpack.c.bf16 %v5232, %v4217
  %5239 = vst [vmem:[%s5237] sm:$0xff] %v5238
  %s5240 = scalar_lea.vmem %s0, 3220
  %v5241 = vld [vmem:[%s5240] sm:$0xf]
  %v5242 = vunpack.c.l.bf16 %v5241
  %v5243 = vunpack.c.h.bf16 %v5241
  %s5244 = scalar_lea.vmem %s1, 916
  %s5246 = ssub.s32 0, 4
  %s5247 = scalar_lea.vmem %s5244, %s5246
  %v5248 = vpack.c.bf16 %v5242, %v4222
  %5249 = vst [vmem:[%s5247] sm:$0xff] %v5248
  %s5250 = scalar_lea.vmem %s0, 2196
  %v5251 = vld [vmem:[%s5250] sm:$0xf]
  %v5252 = vunpack.c.l.bf16 %v5251
  %v5253 = vunpack.c.h.bf16 %v5251
  %s5254 = scalar_lea.vmem %s1, 1940
  %s5256 = ssub.s32 0, 4
  %s5257 = scalar_lea.vmem %s5254, %s5256
  %v5258 = vpack.c.bf16 %v5252, %v4227
  %5259 = vst [vmem:[%s5257] sm:$0xff] %v5258
  %s5260 = scalar_lea.vmem %s0, 1172
  %v5261 = vld [vmem:[%s5260] sm:$0xf]
  %v5262 = vunpack.c.l.bf16 %v5261
  %v5263 = vunpack.c.h.bf16 %v5261
  %s5264 = scalar_lea.vmem %s1, 2964
  %s5266 = ssub.s32 0, 4
  %s5267 = scalar_lea.vmem %s5264, %s5266
  %v5268 = vpack.c.bf16 %v5262, %v4232
  %5269 = vst [vmem:[%s5267] sm:$0xff] %v5268
  %s5270 = scalar_lea.vmem %s0, 148
  %v5271 = vld [vmem:[%s5270] sm:$0xf]
  %v5272 = vunpack.c.l.bf16 %v5271
  %v5273 = vunpack.c.h.bf16 %v5271
  %s5274 = scalar_lea.vmem %s1, 3988
  %s5276 = ssub.s32 0, 4
  %s5277 = scalar_lea.vmem %s5274, %s5276
  %v5278 = vpack.c.bf16 %v5272, %v4237
  %5279 = vst [vmem:[%s5277] sm:$0xff] %v5278
  %s5280 = scalar_lea.vmem %s0, 4020
  %v5281 = vld [vmem:[%s5280] sm:$0xf]
  %v5282 = vunpack.c.l.bf16 %v5281
  %v5283 = vunpack.c.h.bf16 %v5281
  %s5284 = scalar_lea.vmem %s1, 180
  %s5286 = ssub.s32 0, 4
  %s5287 = scalar_lea.vmem %s5284, %s5286
  %v5288 = vpack.c.bf16 %v5282, %v4242
  %5289 = vst [vmem:[%s5287] sm:$0xff] %v5288
  %s5290 = scalar_lea.vmem %s0, 2996
  %v5291 = vld [vmem:[%s5290] sm:$0xf]
  %v5292 = vunpack.c.l.bf16 %v5291
  %v5293 = vunpack.c.h.bf16 %v5291
  %s5294 = scalar_lea.vmem %s1, 1204
  %s5296 = ssub.s32 0, 4
  %s5297 = scalar_lea.vmem %s5294, %s5296
  %v5298 = vpack.c.bf16 %v5292, %v4247
  %5299 = vst [vmem:[%s5297] sm:$0xff] %v5298
  %s5300 = scalar_lea.vmem %s0, 1972
  %v5301 = vld [vmem:[%s5300] sm:$0xf]
  %v5302 = vunpack.c.l.bf16 %v5301
  %v5303 = vunpack.c.h.bf16 %v5301
  %s5304 = scalar_lea.vmem %s1, 2228
  %s5306 = ssub.s32 0, 4
  %s5307 = scalar_lea.vmem %s5304, %s5306
  %v5308 = vpack.c.bf16 %v5302, %v4252
  %5309 = vst [vmem:[%s5307] sm:$0xff] %v5308
  %s5310 = scalar_lea.vmem %s0, 948
  %v5311 = vld [vmem:[%s5310] sm:$0xf]
  %v5312 = vunpack.c.l.bf16 %v5311
  %v5313 = vunpack.c.h.bf16 %v5311
  %s5314 = scalar_lea.vmem %s1, 3252
  %s5316 = ssub.s32 0, 4
  %s5317 = scalar_lea.vmem %s5314, %s5316
  %v5318 = vpack.c.bf16 %v5312, %v4257
  %5319 = vst [vmem:[%s5317] sm:$0xff] %v5318
  %s5320 = scalar_lea.vmem %s0, 3764
  %v5321 = vld [vmem:[%s5320] sm:$0xf]
  %v5322 = vunpack.c.l.bf16 %v5321
  %v5323 = vunpack.c.h.bf16 %v5321
  %s5324 = scalar_lea.vmem %s1, 436
  %s5326 = ssub.s32 0, 4
  %s5327 = scalar_lea.vmem %s5324, %s5326
  %v5328 = vpack.c.bf16 %v5322, %v4262
  %5329 = vst [vmem:[%s5327] sm:$0xff] %v5328
  %s5330 = scalar_lea.vmem %s0, 2740
  %v5331 = vld [vmem:[%s5330] sm:$0xf]
  %v5332 = vunpack.c.l.bf16 %v5331
  %v5333 = vunpack.c.h.bf16 %v5331
  %s5334 = scalar_lea.vmem %s1, 1460
  %s5336 = ssub.s32 0, 4
  %s5337 = scalar_lea.vmem %s5334, %s5336
  %v5338 = vpack.c.bf16 %v5332, %v4267
  %5339 = vst [vmem:[%s5337] sm:$0xff] %v5338
  %s5340 = scalar_lea.vmem %s0, 1716
  %v5341 = vld [vmem:[%s5340] sm:$0xf]
  %v5342 = vunpack.c.l.bf16 %v5341
  %v5343 = vunpack.c.h.bf16 %v5341
  %s5344 = scalar_lea.vmem %s1, 2484
  %s5346 = ssub.s32 0, 4
  %s5347 = scalar_lea.vmem %s5344, %s5346
  %v5348 = vpack.c.bf16 %v5342, %v4272
  %5349 = vst [vmem:[%s5347] sm:$0xff] %v5348
  %s5350 = scalar_lea.vmem %s0, 692
  %v5351 = vld [vmem:[%s5350] sm:$0xf]
  %v5352 = vunpack.c.l.bf16 %v5351
  %v5353 = vunpack.c.h.bf16 %v5351
  %s5354 = scalar_lea.vmem %s1, 3508
  %s5356 = ssub.s32 0, 4
  %s5357 = scalar_lea.vmem %s5354, %s5356
  %v5358 = vpack.c.bf16 %v5352, %v4277
  %5359 = vst [vmem:[%s5357] sm:$0xff] %v5358
  %s5360 = scalar_lea.vmem %s0, 3508
  %v5361 = vld [vmem:[%s5360] sm:$0xf]
  %v5362 = vunpack.c.l.bf16 %v5361
  %v5363 = vunpack.c.h.bf16 %v5361
  %s5364 = scalar_lea.vmem %s1, 692
  %s5366 = ssub.s32 0, 4
  %s5367 = scalar_lea.vmem %s5364, %s5366
  %v5368 = vpack.c.bf16 %v5362, %v4282
  %5369 = vst [vmem:[%s5367] sm:$0xff] %v5368
  %s5370 = scalar_lea.vmem %s0, 2484
  %v5371 = vld [vmem:[%s5370] sm:$0xf]
  %v5372 = vunpack.c.l.bf16 %v5371
  %v5373 = vunpack.c.h.bf16 %v5371
  %s5374 = scalar_lea.vmem %s1, 1716
  %s5376 = ssub.s32 0, 4
  %s5377 = scalar_lea.vmem %s5374, %s5376
  %v5378 = vpack.c.bf16 %v5372, %v4287
  %5379 = vst [vmem:[%s5377] sm:$0xff] %v5378
  %s5380 = scalar_lea.vmem %s0, 1460
  %v5381 = vld [vmem:[%s5380] sm:$0xf]
  %v5382 = vunpack.c.l.bf16 %v5381
  %v5383 = vunpack.c.h.bf16 %v5381
  %s5384 = scalar_lea.vmem %s1, 2740
  %s5386 = ssub.s32 0, 4
  %s5387 = scalar_lea.vmem %s5384, %s5386
  %v5388 = vpack.c.bf16 %v5382, %v4292
  %5389 = vst [vmem:[%s5387] sm:$0xff] %v5388
  %s5390 = scalar_lea.vmem %s0, 436
  %v5391 = vld [vmem:[%s5390] sm:$0xf]
  %v5392 = vunpack.c.l.bf16 %v5391
  %v5393 = vunpack.c.h.bf16 %v5391
  %s5394 = scalar_lea.vmem %s1, 3764
  %s5396 = ssub.s32 0, 4
  %s5397 = scalar_lea.vmem %s5394, %s5396
  %v5398 = vpack.c.bf16 %v5392, %v4297
  %5399 = vst [vmem:[%s5397] sm:$0xff] %v5398
  %s5400 = scalar_lea.vmem %s0, 3252
  %v5401 = vld [vmem:[%s5400] sm:$0xf]
  %v5402 = vunpack.c.l.bf16 %v5401
  %v5403 = vunpack.c.h.bf16 %v5401
  %s5404 = scalar_lea.vmem %s1, 948
  %s5406 = ssub.s32 0, 4
  %s5407 = scalar_lea.vmem %s5404, %s5406
  %v5408 = vpack.c.bf16 %v5402, %v4302
  %5409 = vst [vmem:[%s5407] sm:$0xff] %v5408
  %s5410 = scalar_lea.vmem %s0, 2228
  %v5411 = vld [vmem:[%s5410] sm:$0xf]
  %v5412 = vunpack.c.l.bf16 %v5411
  %v5413 = vunpack.c.h.bf16 %v5411
  %s5414 = scalar_lea.vmem %s1, 1972
  %s5416 = ssub.s32 0, 4
  %s5417 = scalar_lea.vmem %s5414, %s5416
  %v5418 = vpack.c.bf16 %v5412, %v4307
  %5419 = vst [vmem:[%s5417] sm:$0xff] %v5418
  %s5420 = scalar_lea.vmem %s0, 1204
  %v5421 = vld [vmem:[%s5420] sm:$0xf]
  %v5422 = vunpack.c.l.bf16 %v5421
  %v5423 = vunpack.c.h.bf16 %v5421
  %s5424 = scalar_lea.vmem %s1, 2996
  %s5426 = ssub.s32 0, 4
  %s5427 = scalar_lea.vmem %s5424, %s5426
  %v5428 = vpack.c.bf16 %v5422, %v4312
  %5429 = vst [vmem:[%s5427] sm:$0xff] %v5428
  %s5430 = scalar_lea.vmem %s0, 180
  %v5431 = vld [vmem:[%s5430] sm:$0xf]
  %v5432 = vunpack.c.l.bf16 %v5431
  %v5433 = vunpack.c.h.bf16 %v5431
  %s5434 = scalar_lea.vmem %s1, 4020
  %s5436 = ssub.s32 0, 4
  %s5437 = scalar_lea.vmem %s5434, %s5436
  %v5438 = vpack.c.bf16 %v5432, %v4317
  %5439 = vst [vmem:[%s5437] sm:$0xff] %v5438
  %s5440 = scalar_lea.vmem %s0, 4052
  %v5441 = vld [vmem:[%s5440] sm:$0xf]
  %v5442 = vunpack.c.l.bf16 %v5441
  %v5443 = vunpack.c.h.bf16 %v5441
  %s5444 = scalar_lea.vmem %s1, 212
  %s5446 = ssub.s32 0, 4
  %s5447 = scalar_lea.vmem %s5444, %s5446
  %v5448 = vpack.c.bf16 %v5442, %v4322
  %5449 = vst [vmem:[%s5447] sm:$0xff] %v5448
  %s5450 = scalar_lea.vmem %s0, 3028
  %v5451 = vld [vmem:[%s5450] sm:$0xf]
  %v5452 = vunpack.c.l.bf16 %v5451
  %v5453 = vunpack.c.h.bf16 %v5451
  %s5454 = scalar_lea.vmem %s1, 1236
  %s5456 = ssub.s32 0, 4
  %s5457 = scalar_lea.vmem %s5454, %s5456
  %v5458 = vpack.c.bf16 %v5452, %v4327
  %5459 = vst [vmem:[%s5457] sm:$0xff] %v5458
  %s5460 = scalar_lea.vmem %s0, 2004
  %v5461 = vld [vmem:[%s5460] sm:$0xf]
  %v5462 = vunpack.c.l.bf16 %v5461
  %v5463 = vunpack.c.h.bf16 %v5461
  %s5464 = scalar_lea.vmem %s1, 2260
  %s5466 = ssub.s32 0, 4
  %s5467 = scalar_lea.vmem %s5464, %s5466
  %v5468 = vpack.c.bf16 %v5462, %v4332
  %5469 = vst [vmem:[%s5467] sm:$0xff] %v5468
  %s5470 = scalar_lea.vmem %s0, 980
  %v5471 = vld [vmem:[%s5470] sm:$0xf]
  %v5472 = vunpack.c.l.bf16 %v5471
  %v5473 = vunpack.c.h.bf16 %v5471
  %s5474 = scalar_lea.vmem %s1, 3284
  %s5476 = ssub.s32 0, 4
  %s5477 = scalar_lea.vmem %s5474, %s5476
  %v5478 = vpack.c.bf16 %v5472, %v4337
  %5479 = vst [vmem:[%s5477] sm:$0xff] %v5478
  %s5480 = scalar_lea.vmem %s0, 3796
  %v5481 = vld [vmem:[%s5480] sm:$0xf]
  %v5482 = vunpack.c.l.bf16 %v5481
  %v5483 = vunpack.c.h.bf16 %v5481
  %s5484 = scalar_lea.vmem %s1, 468
  %s5486 = ssub.s32 0, 4
  %s5487 = scalar_lea.vmem %s5484, %s5486
  %v5488 = vpack.c.bf16 %v5482, %v4342
  %5489 = vst [vmem:[%s5487] sm:$0xff] %v5488
  %s5490 = scalar_lea.vmem %s0, 2772
  %v5491 = vld [vmem:[%s5490] sm:$0xf]
  %v5492 = vunpack.c.l.bf16 %v5491
  %v5493 = vunpack.c.h.bf16 %v5491
  %s5494 = scalar_lea.vmem %s1, 1492
  %s5496 = ssub.s32 0, 4
  %s5497 = scalar_lea.vmem %s5494, %s5496
  %v5498 = vpack.c.bf16 %v5492, %v4347
  %5499 = vst [vmem:[%s5497] sm:$0xff] %v5498
  %s5500 = scalar_lea.vmem %s0, 1748
  %v5501 = vld [vmem:[%s5500] sm:$0xf]
  %v5502 = vunpack.c.l.bf16 %v5501
  %v5503 = vunpack.c.h.bf16 %v5501
  %s5504 = scalar_lea.vmem %s1, 2516
  %s5506 = ssub.s32 0, 4
  %s5507 = scalar_lea.vmem %s5504, %s5506
  %v5508 = vpack.c.bf16 %v5502, %v4352
  %5509 = vst [vmem:[%s5507] sm:$0xff] %v5508
  %s5510 = scalar_lea.vmem %s0, 724
  %v5511 = vld [vmem:[%s5510] sm:$0xf]
  %v5512 = vunpack.c.l.bf16 %v5511
  %v5513 = vunpack.c.h.bf16 %v5511
  %s5514 = scalar_lea.vmem %s1, 3540
  %s5516 = ssub.s32 0, 4
  %s5517 = scalar_lea.vmem %s5514, %s5516
  %v5518 = vpack.c.bf16 %v5512, %v4357
  %5519 = vst [vmem:[%s5517] sm:$0xff] %v5518
  %s5520 = scalar_lea.vmem %s0, 3540
  %v5521 = vld [vmem:[%s5520] sm:$0xf]
  %v5522 = vunpack.c.l.bf16 %v5521
  %v5523 = vunpack.c.h.bf16 %v5521
  %s5524 = scalar_lea.vmem %s1, 724
  %s5526 = ssub.s32 0, 4
  %s5527 = scalar_lea.vmem %s5524, %s5526
  %v5528 = vpack.c.bf16 %v5522, %v4362
  %5529 = vst [vmem:[%s5527] sm:$0xff] %v5528
  %s5530 = scalar_lea.vmem %s0, 2516
  %v5531 = vld [vmem:[%s5530] sm:$0xf]
  %v5532 = vunpack.c.l.bf16 %v5531
  %v5533 = vunpack.c.h.bf16 %v5531
  %s5534 = scalar_lea.vmem %s1, 1748
  %s5536 = ssub.s32 0, 4
  %s5537 = scalar_lea.vmem %s5534, %s5536
  %v5538 = vpack.c.bf16 %v5532, %v4367
  %5539 = vst [vmem:[%s5537] sm:$0xff] %v5538
  %s5540 = scalar_lea.vmem %s0, 1492
  %v5541 = vld [vmem:[%s5540] sm:$0xf]
  %v5542 = vunpack.c.l.bf16 %v5541
  %v5543 = vunpack.c.h.bf16 %v5541
  %s5544 = scalar_lea.vmem %s1, 2772
  %s5546 = ssub.s32 0, 4
  %s5547 = scalar_lea.vmem %s5544, %s5546
  %v5548 = vpack.c.bf16 %v5542, %v4372
  %5549 = vst [vmem:[%s5547] sm:$0xff] %v5548
  %s5550 = scalar_lea.vmem %s0, 468
  %v5551 = vld [vmem:[%s5550] sm:$0xf]
  %v5552 = vunpack.c.l.bf16 %v5551
  %v5553 = vunpack.c.h.bf16 %v5551
  %s5554 = scalar_lea.vmem %s1, 3796
  %s5556 = ssub.s32 0, 4
  %s5557 = scalar_lea.vmem %s5554, %s5556
  %v5558 = vpack.c.bf16 %v5552, %v4377
  %5559 = vst [vmem:[%s5557] sm:$0xff] %v5558
  %s5560 = scalar_lea.vmem %s0, 3284
  %v5561 = vld [vmem:[%s5560] sm:$0xf]
  %v5562 = vunpack.c.l.bf16 %v5561
  %v5563 = vunpack.c.h.bf16 %v5561
  %s5564 = scalar_lea.vmem %s1, 980
  %s5566 = ssub.s32 0, 4
  %s5567 = scalar_lea.vmem %s5564, %s5566
  %v5568 = vpack.c.bf16 %v5562, %v4382
  %5569 = vst [vmem:[%s5567] sm:$0xff] %v5568
  %s5570 = scalar_lea.vmem %s0, 2260
  %v5571 = vld [vmem:[%s5570] sm:$0xf]
  %v5572 = vunpack.c.l.bf16 %v5571
  %v5573 = vunpack.c.h.bf16 %v5571
  %s5574 = scalar_lea.vmem %s1, 2004
  %s5576 = ssub.s32 0, 4
  %s5577 = scalar_lea.vmem %s5574, %s5576
  %v5578 = vpack.c.bf16 %v5572, %v4387
  %5579 = vst [vmem:[%s5577] sm:$0xff] %v5578
  %s5580 = scalar_lea.vmem %s0, 1236
  %v5581 = vld [vmem:[%s5580] sm:$0xf]
  %v5582 = vunpack.c.l.bf16 %v5581
  %v5583 = vunpack.c.h.bf16 %v5581
  %s5584 = scalar_lea.vmem %s1, 3028
  %s5586 = ssub.s32 0, 4
  %s5587 = scalar_lea.vmem %s5584, %s5586
  %v5588 = vpack.c.bf16 %v5582, %v4392
  %5589 = vst [vmem:[%s5587] sm:$0xff] %v5588
  %s5590 = scalar_lea.vmem %s0, 212
  %v5591 = vld [vmem:[%s5590] sm:$0xf]
  %v5592 = vunpack.c.l.bf16 %v5591
  %v5593 = vunpack.c.h.bf16 %v5591
  %s5594 = scalar_lea.vmem %s1, 4052
  %s5596 = ssub.s32 0, 4
  %s5597 = scalar_lea.vmem %s5594, %s5596
  %v5598 = vpack.c.bf16 %v5592, %v4397
  %5599 = vst [vmem:[%s5597] sm:$0xff] %v5598
  %s5600 = scalar_lea.vmem %s0, 4084
  %v5601 = vld [vmem:[%s5600] sm:$0xf]
  %v5602 = vunpack.c.l.bf16 %v5601
  %v5603 = vunpack.c.h.bf16 %v5601
  %s5604 = scalar_lea.vmem %s1, 244
  %s5606 = ssub.s32 0, 4
  %s5607 = scalar_lea.vmem %s5604, %s5606
  %v5608 = vpack.c.bf16 %v5602, %v4402
  %5609 = vst [vmem:[%s5607] sm:$0xff] %v5608
  %s5610 = scalar_lea.vmem %s0, 3060
  %v5611 = vld [vmem:[%s5610] sm:$0xf]
  %v5612 = vunpack.c.l.bf16 %v5611
  %v5613 = vunpack.c.h.bf16 %v5611
  %s5614 = scalar_lea.vmem %s1, 1268
  %s5616 = ssub.s32 0, 4
  %s5617 = scalar_lea.vmem %s5614, %s5616
  %v5618 = vpack.c.bf16 %v5612, %v4407
  %5619 = vst [vmem:[%s5617] sm:$0xff] %v5618
  %s5620 = scalar_lea.vmem %s0, 2036
  %v5621 = vld [vmem:[%s5620] sm:$0xf]
  %v5622 = vunpack.c.l.bf16 %v5621
  %v5623 = vunpack.c.h.bf16 %v5621
  %s5624 = scalar_lea.vmem %s1, 2292
  %s5626 = ssub.s32 0, 4
  %s5627 = scalar_lea.vmem %s5624, %s5626
  %v5628 = vpack.c.bf16 %v5622, %v4412
  %5629 = vst [vmem:[%s5627] sm:$0xff] %v5628
  %s5630 = scalar_lea.vmem %s0, 1012
  %v5631 = vld [vmem:[%s5630] sm:$0xf]
  %v5632 = vunpack.c.l.bf16 %v5631
  %v5633 = vunpack.c.h.bf16 %v5631
  %s5634 = scalar_lea.vmem %s1, 3316
  %s5636 = ssub.s32 0, 4
  %s5637 = scalar_lea.vmem %s5634, %s5636
  %v5638 = vpack.c.bf16 %v5632, %v4417
  %5639 = vst [vmem:[%s5637] sm:$0xff] %v5638
  %s5640 = scalar_lea.vmem %s0, 3828
  %v5641 = vld [vmem:[%s5640] sm:$0xf]
  %v5642 = vunpack.c.l.bf16 %v5641
  %v5643 = vunpack.c.h.bf16 %v5641
  %s5644 = scalar_lea.vmem %s1, 500
  %s5646 = ssub.s32 0, 4
  %s5647 = scalar_lea.vmem %s5644, %s5646
  %v5648 = vpack.c.bf16 %v5642, %v4422
  %5649 = vst [vmem:[%s5647] sm:$0xff] %v5648
  %s5650 = scalar_lea.vmem %s0, 2804
  %v5651 = vld [vmem:[%s5650] sm:$0xf]
  %v5652 = vunpack.c.l.bf16 %v5651
  %v5653 = vunpack.c.h.bf16 %v5651
  %s5654 = scalar_lea.vmem %s1, 1524
  %s5656 = ssub.s32 0, 4
  %s5657 = scalar_lea.vmem %s5654, %s5656
  %v5658 = vpack.c.bf16 %v5652, %v4427
  %5659 = vst [vmem:[%s5657] sm:$0xff] %v5658
  %s5660 = scalar_lea.vmem %s0, 1780
  %v5661 = vld [vmem:[%s5660] sm:$0xf]
  %v5662 = vunpack.c.l.bf16 %v5661
  %v5663 = vunpack.c.h.bf16 %v5661
  %s5664 = scalar_lea.vmem %s1, 2548
  %s5666 = ssub.s32 0, 4
  %s5667 = scalar_lea.vmem %s5664, %s5666
  %v5668 = vpack.c.bf16 %v5662, %v4432
  %5669 = vst [vmem:[%s5667] sm:$0xff] %v5668
  %s5670 = scalar_lea.vmem %s0, 756
  %v5671 = vld [vmem:[%s5670] sm:$0xf]
  %v5672 = vunpack.c.l.bf16 %v5671
  %v5673 = vunpack.c.h.bf16 %v5671
  %s5674 = scalar_lea.vmem %s1, 3572
  %s5676 = ssub.s32 0, 4
  %s5677 = scalar_lea.vmem %s5674, %s5676
  %v5678 = vpack.c.bf16 %v5672, %v4437
  %5679 = vst [vmem:[%s5677] sm:$0xff] %v5678
  %s5680 = scalar_lea.vmem %s0, 3572
  %v5681 = vld [vmem:[%s5680] sm:$0xf]
  %v5682 = vunpack.c.l.bf16 %v5681
  %v5683 = vunpack.c.h.bf16 %v5681
  %s5684 = scalar_lea.vmem %s1, 756
  %s5686 = ssub.s32 0, 4
  %s5687 = scalar_lea.vmem %s5684, %s5686
  %v5688 = vpack.c.bf16 %v5682, %v4442
  %5689 = vst [vmem:[%s5687] sm:$0xff] %v5688
  %s5690 = scalar_lea.vmem %s0, 2548
  %v5691 = vld [vmem:[%s5690] sm:$0xf]
  %v5692 = vunpack.c.l.bf16 %v5691
  %v5693 = vunpack.c.h.bf16 %v5691
  %s5694 = scalar_lea.vmem %s1, 1780
  %s5696 = ssub.s32 0, 4
  %s5697 = scalar_lea.vmem %s5694, %s5696
  %v5698 = vpack.c.bf16 %v5692, %v4447
  %5699 = vst [vmem:[%s5697] sm:$0xff] %v5698
  %s5700 = scalar_lea.vmem %s0, 1524
  %v5701 = vld [vmem:[%s5700] sm:$0xf]
  %v5702 = vunpack.c.l.bf16 %v5701
  %v5703 = vunpack.c.h.bf16 %v5701
  %s5704 = scalar_lea.vmem %s1, 2804
  %s5706 = ssub.s32 0, 4
  %s5707 = scalar_lea.vmem %s5704, %s5706
  %v5708 = vpack.c.bf16 %v5702, %v4452
  %5709 = vst [vmem:[%s5707] sm:$0xff] %v5708
  %s5710 = scalar_lea.vmem %s0, 500
  %v5711 = vld [vmem:[%s5710] sm:$0xf]
  %v5712 = vunpack.c.l.bf16 %v5711
  %v5713 = vunpack.c.h.bf16 %v5711
  %s5714 = scalar_lea.vmem %s1, 3828
  %s5716 = ssub.s32 0, 4
  %s5717 = scalar_lea.vmem %s5714, %s5716
  %v5718 = vpack.c.bf16 %v5712, %v4457
  %5719 = vst [vmem:[%s5717] sm:$0xff] %v5718
  %s5720 = scalar_lea.vmem %s0, 3316
  %v5721 = vld [vmem:[%s5720] sm:$0xf]
  %v5722 = vunpack.c.l.bf16 %v5721
  %v5723 = vunpack.c.h.bf16 %v5721
  %s5724 = scalar_lea.vmem %s1, 1012
  %s5726 = ssub.s32 0, 4
  %s5727 = scalar_lea.vmem %s5724, %s5726
  %v5728 = vpack.c.bf16 %v5722, %v4462
  %5729 = vst [vmem:[%s5727] sm:$0xff] %v5728
  %s5730 = scalar_lea.vmem %s0, 2292
  %v5731 = vld [vmem:[%s5730] sm:$0xf]
  %v5732 = vunpack.c.l.bf16 %v5731
  %v5733 = vunpack.c.h.bf16 %v5731
  %s5734 = scalar_lea.vmem %s1, 2036
  %s5736 = ssub.s32 0, 4
  %s5737 = scalar_lea.vmem %s5734, %s5736
  %v5738 = vpack.c.bf16 %v5732, %v4467
  %5739 = vst [vmem:[%s5737] sm:$0xff] %v5738
  %s5740 = scalar_lea.vmem %s0, 1268
  %v5741 = vld [vmem:[%s5740] sm:$0xf]
  %v5742 = vunpack.c.l.bf16 %v5741
  %v5743 = vunpack.c.h.bf16 %v5741
  %s5744 = scalar_lea.vmem %s1, 3060
  %s5746 = ssub.s32 0, 4
  %s5747 = scalar_lea.vmem %s5744, %s5746
  %v5748 = vpack.c.bf16 %v5742, %v4472
  %5749 = vst [vmem:[%s5747] sm:$0xff] %v5748
  %s5750 = scalar_lea.vmem %s0, 244
  %v5751 = vld [vmem:[%s5750] sm:$0xf]
  %v5752 = vunpack.c.l.bf16 %v5751
  %v5753 = vunpack.c.h.bf16 %v5751
  %s5754 = scalar_lea.vmem %s1, 4084
  %s5756 = ssub.s32 0, 4
  %s5757 = scalar_lea.vmem %s5754, %s5756
  %v5758 = vpack.c.bf16 %v5752, %v4477
  %5759 = vst [vmem:[%s5757] sm:$0xff] %v5758
  %s5760 = scalar_lea.vmem %s0, 3864
  %v5761 = vld [vmem:[%s5760] sm:$0xf]
  %v5762 = vunpack.c.l.bf16 %v5761
  %v5763 = vunpack.c.h.bf16 %v5761
  %s5764 = scalar_lea.vmem %s1, 24
  %s5765 = scalar_lea.vmem %s0, 2840
  %v5766 = vld [vmem:[%s5765] sm:$0xf]
  %v5767 = vunpack.c.l.bf16 %v5766
  %v5768 = vunpack.c.h.bf16 %v5766
  %s5769 = scalar_lea.vmem %s1, 1048
  %s5770 = scalar_lea.vmem %s0, 1816
  %v5771 = vld [vmem:[%s5770] sm:$0xf]
  %v5772 = vunpack.c.l.bf16 %v5771
  %v5773 = vunpack.c.h.bf16 %v5771
  %s5774 = scalar_lea.vmem %s1, 2072
  %s5775 = scalar_lea.vmem %s0, 792
  %v5776 = vld [vmem:[%s5775] sm:$0xf]
  %v5777 = vunpack.c.l.bf16 %v5776
  %v5778 = vunpack.c.h.bf16 %v5776
  %s5779 = scalar_lea.vmem %s1, 3096
  %s5780 = scalar_lea.vmem %s0, 3608
  %v5781 = vld [vmem:[%s5780] sm:$0xf]
  %v5782 = vunpack.c.l.bf16 %v5781
  %v5783 = vunpack.c.h.bf16 %v5781
  %s5784 = scalar_lea.vmem %s1, 280
  %s5785 = scalar_lea.vmem %s0, 2584
  %v5786 = vld [vmem:[%s5785] sm:$0xf]
  %v5787 = vunpack.c.l.bf16 %v5786
  %v5788 = vunpack.c.h.bf16 %v5786
  %s5789 = scalar_lea.vmem %s1, 1304
  %s5790 = scalar_lea.vmem %s0, 1560
  %v5791 = vld [vmem:[%s5790] sm:$0xf]
  %v5792 = vunpack.c.l.bf16 %v5791
  %v5793 = vunpack.c.h.bf16 %v5791
  %s5794 = scalar_lea.vmem %s1, 2328
  %s5795 = scalar_lea.vmem %s0, 536
  %v5796 = vld [vmem:[%s5795] sm:$0xf]
  %v5797 = vunpack.c.l.bf16 %v5796
  %v5798 = vunpack.c.h.bf16 %v5796
  %s5799 = scalar_lea.vmem %s1, 3352
  %s5800 = scalar_lea.vmem %s0, 3352
  %v5801 = vld [vmem:[%s5800] sm:$0xf]
  %v5802 = vunpack.c.l.bf16 %v5801
  %v5803 = vunpack.c.h.bf16 %v5801
  %s5804 = scalar_lea.vmem %s1, 536
  %s5805 = scalar_lea.vmem %s0, 2328
  %v5806 = vld [vmem:[%s5805] sm:$0xf]
  %v5807 = vunpack.c.l.bf16 %v5806
  %v5808 = vunpack.c.h.bf16 %v5806
  %s5809 = scalar_lea.vmem %s1, 1560
  %s5810 = scalar_lea.vmem %s0, 1304
  %v5811 = vld [vmem:[%s5810] sm:$0xf]
  %v5812 = vunpack.c.l.bf16 %v5811
  %v5813 = vunpack.c.h.bf16 %v5811
  %s5814 = scalar_lea.vmem %s1, 2584
  %s5815 = scalar_lea.vmem %s0, 280
  %v5816 = vld [vmem:[%s5815] sm:$0xf]
  %v5817 = vunpack.c.l.bf16 %v5816
  %v5818 = vunpack.c.h.bf16 %v5816
  %s5819 = scalar_lea.vmem %s1, 3608
  %s5820 = scalar_lea.vmem %s0, 3096
  %v5821 = vld [vmem:[%s5820] sm:$0xf]
  %v5822 = vunpack.c.l.bf16 %v5821
  %v5823 = vunpack.c.h.bf16 %v5821
  %s5824 = scalar_lea.vmem %s1, 792
  %s5825 = scalar_lea.vmem %s0, 2072
  %v5826 = vld [vmem:[%s5825] sm:$0xf]
  %v5827 = vunpack.c.l.bf16 %v5826
  %v5828 = vunpack.c.h.bf16 %v5826
  %s5829 = scalar_lea.vmem %s1, 1816
  %s5830 = scalar_lea.vmem %s0, 1048
  %v5831 = vld [vmem:[%s5830] sm:$0xf]
  %v5832 = vunpack.c.l.bf16 %v5831
  %v5833 = vunpack.c.h.bf16 %v5831
  %s5834 = scalar_lea.vmem %s1, 2840
  %s5835 = scalar_lea.vmem %s0, 24
  %v5836 = vld [vmem:[%s5835] sm:$0xf]
  %v5837 = vunpack.c.l.bf16 %v5836
  %v5838 = vunpack.c.h.bf16 %v5836
  %s5839 = scalar_lea.vmem %s1, 3864
  %s5840 = scalar_lea.vmem %s0, 3896
  %v5841 = vld [vmem:[%s5840] sm:$0xf]
  %v5842 = vunpack.c.l.bf16 %v5841
  %v5843 = vunpack.c.h.bf16 %v5841
  %s5844 = scalar_lea.vmem %s1, 56
  %s5845 = scalar_lea.vmem %s0, 2872
  %v5846 = vld [vmem:[%s5845] sm:$0xf]
  %v5847 = vunpack.c.l.bf16 %v5846
  %v5848 = vunpack.c.h.bf16 %v5846
  %s5849 = scalar_lea.vmem %s1, 1080
  %s5850 = scalar_lea.vmem %s0, 1848
  %v5851 = vld [vmem:[%s5850] sm:$0xf]
  %v5852 = vunpack.c.l.bf16 %v5851
  %v5853 = vunpack.c.h.bf16 %v5851
  %s5854 = scalar_lea.vmem %s1, 2104
  %s5855 = scalar_lea.vmem %s0, 824
  %v5856 = vld [vmem:[%s5855] sm:$0xf]
  %v5857 = vunpack.c.l.bf16 %v5856
  %v5858 = vunpack.c.h.bf16 %v5856
  %s5859 = scalar_lea.vmem %s1, 3128
  %s5860 = scalar_lea.vmem %s0, 3640
  %v5861 = vld [vmem:[%s5860] sm:$0xf]
  %v5862 = vunpack.c.l.bf16 %v5861
  %v5863 = vunpack.c.h.bf16 %v5861
  %s5864 = scalar_lea.vmem %s1, 312
  %s5865 = scalar_lea.vmem %s0, 2616
  %v5866 = vld [vmem:[%s5865] sm:$0xf]
  %v5867 = vunpack.c.l.bf16 %v5866
  %v5868 = vunpack.c.h.bf16 %v5866
  %s5869 = scalar_lea.vmem %s1, 1336
  %s5870 = scalar_lea.vmem %s0, 1592
  %v5871 = vld [vmem:[%s5870] sm:$0xf]
  %v5872 = vunpack.c.l.bf16 %v5871
  %v5873 = vunpack.c.h.bf16 %v5871
  %s5874 = scalar_lea.vmem %s1, 2360
  %s5875 = scalar_lea.vmem %s0, 568
  %v5876 = vld [vmem:[%s5875] sm:$0xf]
  %v5877 = vunpack.c.l.bf16 %v5876
  %v5878 = vunpack.c.h.bf16 %v5876
  %s5879 = scalar_lea.vmem %s1, 3384
  %s5880 = scalar_lea.vmem %s0, 3384
  %v5881 = vld [vmem:[%s5880] sm:$0xf]
  %v5882 = vunpack.c.l.bf16 %v5881
  %v5883 = vunpack.c.h.bf16 %v5881
  %s5884 = scalar_lea.vmem %s1, 568
  %s5885 = scalar_lea.vmem %s0, 2360
  %v5886 = vld [vmem:[%s5885] sm:$0xf]
  %v5887 = vunpack.c.l.bf16 %v5886
  %v5888 = vunpack.c.h.bf16 %v5886
  %s5889 = scalar_lea.vmem %s1, 1592
  %s5890 = scalar_lea.vmem %s0, 1336
  %v5891 = vld [vmem:[%s5890] sm:$0xf]
  %v5892 = vunpack.c.l.bf16 %v5891
  %v5893 = vunpack.c.h.bf16 %v5891
  %s5894 = scalar_lea.vmem %s1, 2616
  %s5895 = scalar_lea.vmem %s0, 312
  %v5896 = vld [vmem:[%s5895] sm:$0xf]
  %v5897 = vunpack.c.l.bf16 %v5896
  %v5898 = vunpack.c.h.bf16 %v5896
  %s5899 = scalar_lea.vmem %s1, 3640
  %s5900 = scalar_lea.vmem %s0, 3128
  %v5901 = vld [vmem:[%s5900] sm:$0xf]
  %v5902 = vunpack.c.l.bf16 %v5901
  %v5903 = vunpack.c.h.bf16 %v5901
  %s5904 = scalar_lea.vmem %s1, 824
  %s5905 = scalar_lea.vmem %s0, 2104
  %v5906 = vld [vmem:[%s5905] sm:$0xf]
  %v5907 = vunpack.c.l.bf16 %v5906
  %v5908 = vunpack.c.h.bf16 %v5906
  %s5909 = scalar_lea.vmem %s1, 1848
  %s5910 = scalar_lea.vmem %s0, 1080
  %v5911 = vld [vmem:[%s5910] sm:$0xf]
  %v5912 = vunpack.c.l.bf16 %v5911
  %v5913 = vunpack.c.h.bf16 %v5911
  %s5914 = scalar_lea.vmem %s1, 2872
  %s5915 = scalar_lea.vmem %s0, 56
  %v5916 = vld [vmem:[%s5915] sm:$0xf]
  %v5917 = vunpack.c.l.bf16 %v5916
  %v5918 = vunpack.c.h.bf16 %v5916
  %s5919 = scalar_lea.vmem %s1, 3896
  %s5920 = scalar_lea.vmem %s0, 3928
  %v5921 = vld [vmem:[%s5920] sm:$0xf]
  %v5922 = vunpack.c.l.bf16 %v5921
  %v5923 = vunpack.c.h.bf16 %v5921
  %s5924 = scalar_lea.vmem %s1, 88
  %s5925 = scalar_lea.vmem %s0, 2904
  %v5926 = vld [vmem:[%s5925] sm:$0xf]
  %v5927 = vunpack.c.l.bf16 %v5926
  %v5928 = vunpack.c.h.bf16 %v5926
  %s5929 = scalar_lea.vmem %s1, 1112
  %s5930 = scalar_lea.vmem %s0, 1880
  %v5931 = vld [vmem:[%s5930] sm:$0xf]
  %v5932 = vunpack.c.l.bf16 %v5931
  %v5933 = vunpack.c.h.bf16 %v5931
  %s5934 = scalar_lea.vmem %s1, 2136
  %s5935 = scalar_lea.vmem %s0, 856
  %v5936 = vld [vmem:[%s5935] sm:$0xf]
  %v5937 = vunpack.c.l.bf16 %v5936
  %v5938 = vunpack.c.h.bf16 %v5936
  %s5939 = scalar_lea.vmem %s1, 3160
  %s5940 = scalar_lea.vmem %s0, 3672
  %v5941 = vld [vmem:[%s5940] sm:$0xf]
  %v5942 = vunpack.c.l.bf16 %v5941
  %v5943 = vunpack.c.h.bf16 %v5941
  %s5944 = scalar_lea.vmem %s1, 344
  %s5945 = scalar_lea.vmem %s0, 2648
  %v5946 = vld [vmem:[%s5945] sm:$0xf]
  %v5947 = vunpack.c.l.bf16 %v5946
  %v5948 = vunpack.c.h.bf16 %v5946
  %s5949 = scalar_lea.vmem %s1, 1368
  %s5950 = scalar_lea.vmem %s0, 1624
  %v5951 = vld [vmem:[%s5950] sm:$0xf]
  %v5952 = vunpack.c.l.bf16 %v5951
  %v5953 = vunpack.c.h.bf16 %v5951
  %s5954 = scalar_lea.vmem %s1, 2392
  %s5955 = scalar_lea.vmem %s0, 600
  %v5956 = vld [vmem:[%s5955] sm:$0xf]
  %v5957 = vunpack.c.l.bf16 %v5956
  %v5958 = vunpack.c.h.bf16 %v5956
  %s5959 = scalar_lea.vmem %s1, 3416
  %s5960 = scalar_lea.vmem %s0, 3416
  %v5961 = vld [vmem:[%s5960] sm:$0xf]
  %v5962 = vunpack.c.l.bf16 %v5961
  %v5963 = vunpack.c.h.bf16 %v5961
  %s5964 = scalar_lea.vmem %s1, 600
  %s5965 = scalar_lea.vmem %s0, 2392
  %v5966 = vld [vmem:[%s5965] sm:$0xf]
  %v5967 = vunpack.c.l.bf16 %v5966
  %v5968 = vunpack.c.h.bf16 %v5966
  %s5969 = scalar_lea.vmem %s1, 1624
  %s5970 = scalar_lea.vmem %s0, 1368
  %v5971 = vld [vmem:[%s5970] sm:$0xf]
  %v5972 = vunpack.c.l.bf16 %v5971
  %v5973 = vunpack.c.h.bf16 %v5971
  %s5974 = scalar_lea.vmem %s1, 2648
  %s5975 = scalar_lea.vmem %s0, 344
  %v5976 = vld [vmem:[%s5975] sm:$0xf]
  %v5977 = vunpack.c.l.bf16 %v5976
  %v5978 = vunpack.c.h.bf16 %v5976
  %s5979 = scalar_lea.vmem %s1, 3672
  %s5980 = scalar_lea.vmem %s0, 3160
  %v5981 = vld [vmem:[%s5980] sm:$0xf]
  %v5982 = vunpack.c.l.bf16 %v5981
  %v5983 = vunpack.c.h.bf16 %v5981
  %s5984 = scalar_lea.vmem %s1, 856
  %s5985 = scalar_lea.vmem %s0, 2136
  %v5986 = vld [vmem:[%s5985] sm:$0xf]
  %v5987 = vunpack.c.l.bf16 %v5986
  %v5988 = vunpack.c.h.bf16 %v5986
  %s5989 = scalar_lea.vmem %s1, 1880
  %s5990 = scalar_lea.vmem %s0, 1112
  %v5991 = vld [vmem:[%s5990] sm:$0xf]
  %v5992 = vunpack.c.l.bf16 %v5991
  %v5993 = vunpack.c.h.bf16 %v5991
  %s5994 = scalar_lea.vmem %s1, 2904
  %s5995 = scalar_lea.vmem %s0, 88
  %v5996 = vld [vmem:[%s5995] sm:$0xf]
  %v5997 = vunpack.c.l.bf16 %v5996
  %v5998 = vunpack.c.h.bf16 %v5996
  %s5999 = scalar_lea.vmem %s1, 3928
  %s6000 = scalar_lea.vmem %s0, 3960
  %v6001 = vld [vmem:[%s6000] sm:$0xf]
  %v6002 = vunpack.c.l.bf16 %v6001
  %v6003 = vunpack.c.h.bf16 %v6001
  %s6004 = scalar_lea.vmem %s1, 120
  %s6005 = scalar_lea.vmem %s0, 2936
  %v6006 = vld [vmem:[%s6005] sm:$0xf]
  %v6007 = vunpack.c.l.bf16 %v6006
  %v6008 = vunpack.c.h.bf16 %v6006
  %s6009 = scalar_lea.vmem %s1, 1144
  %s6010 = scalar_lea.vmem %s0, 1912
  %v6011 = vld [vmem:[%s6010] sm:$0xf]
  %v6012 = vunpack.c.l.bf16 %v6011
  %v6013 = vunpack.c.h.bf16 %v6011
  %s6014 = scalar_lea.vmem %s1, 2168
  %s6015 = scalar_lea.vmem %s0, 888
  %v6016 = vld [vmem:[%s6015] sm:$0xf]
  %v6017 = vunpack.c.l.bf16 %v6016
  %v6018 = vunpack.c.h.bf16 %v6016
  %s6019 = scalar_lea.vmem %s1, 3192
  %s6020 = scalar_lea.vmem %s0, 3704
  %v6021 = vld [vmem:[%s6020] sm:$0xf]
  %v6022 = vunpack.c.l.bf16 %v6021
  %v6023 = vunpack.c.h.bf16 %v6021
  %s6024 = scalar_lea.vmem %s1, 376
  %s6025 = scalar_lea.vmem %s0, 2680
  %v6026 = vld [vmem:[%s6025] sm:$0xf]
  %v6027 = vunpack.c.l.bf16 %v6026
  %v6028 = vunpack.c.h.bf16 %v6026
  %s6029 = scalar_lea.vmem %s1, 1400
  %s6030 = scalar_lea.vmem %s0, 1656
  %v6031 = vld [vmem:[%s6030] sm:$0xf]
  %v6032 = vunpack.c.l.bf16 %v6031
  %v6033 = vunpack.c.h.bf16 %v6031
  %s6034 = scalar_lea.vmem %s1, 2424
  %s6035 = scalar_lea.vmem %s0, 632
  %v6036 = vld [vmem:[%s6035] sm:$0xf]
  %v6037 = vunpack.c.l.bf16 %v6036
  %v6038 = vunpack.c.h.bf16 %v6036
  %s6039 = scalar_lea.vmem %s1, 3448
  %s6040 = scalar_lea.vmem %s0, 3448
  %v6041 = vld [vmem:[%s6040] sm:$0xf]
  %v6042 = vunpack.c.l.bf16 %v6041
  %v6043 = vunpack.c.h.bf16 %v6041
  %s6044 = scalar_lea.vmem %s1, 632
  %s6045 = scalar_lea.vmem %s0, 2424
  %v6046 = vld [vmem:[%s6045] sm:$0xf]
  %v6047 = vunpack.c.l.bf16 %v6046
  %v6048 = vunpack.c.h.bf16 %v6046
  %s6049 = scalar_lea.vmem %s1, 1656
  %s6050 = scalar_lea.vmem %s0, 1400
  %v6051 = vld [vmem:[%s6050] sm:$0xf]
  %v6052 = vunpack.c.l.bf16 %v6051
  %v6053 = vunpack.c.h.bf16 %v6051
  %s6054 = scalar_lea.vmem %s1, 2680
  %s6055 = scalar_lea.vmem %s0, 376
  %v6056 = vld [vmem:[%s6055] sm:$0xf]
  %v6057 = vunpack.c.l.bf16 %v6056
  %v6058 = vunpack.c.h.bf16 %v6056
  %s6059 = scalar_lea.vmem %s1, 3704
  %s6060 = scalar_lea.vmem %s0, 3192
  %v6061 = vld [vmem:[%s6060] sm:$0xf]
  %v6062 = vunpack.c.l.bf16 %v6061
  %v6063 = vunpack.c.h.bf16 %v6061
  %s6064 = scalar_lea.vmem %s1, 888
  %s6065 = scalar_lea.vmem %s0, 2168
  %v6066 = vld [vmem:[%s6065] sm:$0xf]
  %v6067 = vunpack.c.l.bf16 %v6066
  %v6068 = vunpack.c.h.bf16 %v6066
  %s6069 = scalar_lea.vmem %s1, 1912
  %s6070 = scalar_lea.vmem %s0, 1144
  %v6071 = vld [vmem:[%s6070] sm:$0xf]
  %v6072 = vunpack.c.l.bf16 %v6071
  %v6073 = vunpack.c.h.bf16 %v6071
  %s6074 = scalar_lea.vmem %s1, 2936
  %s6075 = scalar_lea.vmem %s0, 120
  %v6076 = vld [vmem:[%s6075] sm:$0xf]
  %v6077 = vunpack.c.l.bf16 %v6076
  %v6078 = vunpack.c.h.bf16 %v6076
  %s6079 = scalar_lea.vmem %s1, 3960
  %s6080 = scalar_lea.vmem %s0, 3992
  %v6081 = vld [vmem:[%s6080] sm:$0xf]
  %v6082 = vunpack.c.l.bf16 %v6081
  %v6083 = vunpack.c.h.bf16 %v6081
  %s6084 = scalar_lea.vmem %s1, 152
  %s6085 = scalar_lea.vmem %s0, 2968
  %v6086 = vld [vmem:[%s6085] sm:$0xf]
  %v6087 = vunpack.c.l.bf16 %v6086
  %v6088 = vunpack.c.h.bf16 %v6086
  %s6089 = scalar_lea.vmem %s1, 1176
  %s6090 = scalar_lea.vmem %s0, 1944
  %v6091 = vld [vmem:[%s6090] sm:$0xf]
  %v6092 = vunpack.c.l.bf16 %v6091
  %v6093 = vunpack.c.h.bf16 %v6091
  %s6094 = scalar_lea.vmem %s1, 2200
  %s6095 = scalar_lea.vmem %s0, 920
  %v6096 = vld [vmem:[%s6095] sm:$0xf]
  %v6097 = vunpack.c.l.bf16 %v6096
  %v6098 = vunpack.c.h.bf16 %v6096
  %s6099 = scalar_lea.vmem %s1, 3224
  %s6100 = scalar_lea.vmem %s0, 3736
  %v6101 = vld [vmem:[%s6100] sm:$0xf]
  %v6102 = vunpack.c.l.bf16 %v6101
  %v6103 = vunpack.c.h.bf16 %v6101
  %s6104 = scalar_lea.vmem %s1, 408
  %s6105 = scalar_lea.vmem %s0, 2712
  %v6106 = vld [vmem:[%s6105] sm:$0xf]
  %v6107 = vunpack.c.l.bf16 %v6106
  %v6108 = vunpack.c.h.bf16 %v6106
  %s6109 = scalar_lea.vmem %s1, 1432
  %s6110 = scalar_lea.vmem %s0, 1688
  %v6111 = vld [vmem:[%s6110] sm:$0xf]
  %v6112 = vunpack.c.l.bf16 %v6111
  %v6113 = vunpack.c.h.bf16 %v6111
  %s6114 = scalar_lea.vmem %s1, 2456
  %s6115 = scalar_lea.vmem %s0, 664
  %v6116 = vld [vmem:[%s6115] sm:$0xf]
  %v6117 = vunpack.c.l.bf16 %v6116
  %v6118 = vunpack.c.h.bf16 %v6116
  %s6119 = scalar_lea.vmem %s1, 3480
  %s6120 = scalar_lea.vmem %s0, 3480
  %v6121 = vld [vmem:[%s6120] sm:$0xf]
  %v6122 = vunpack.c.l.bf16 %v6121
  %v6123 = vunpack.c.h.bf16 %v6121
  %s6124 = scalar_lea.vmem %s1, 664
  %s6125 = scalar_lea.vmem %s0, 2456
  %v6126 = vld [vmem:[%s6125] sm:$0xf]
  %v6127 = vunpack.c.l.bf16 %v6126
  %v6128 = vunpack.c.h.bf16 %v6126
  %s6129 = scalar_lea.vmem %s1, 1688
  %s6130 = scalar_lea.vmem %s0, 1432
  %v6131 = vld [vmem:[%s6130] sm:$0xf]
  %v6132 = vunpack.c.l.bf16 %v6131
  %v6133 = vunpack.c.h.bf16 %v6131
  %s6134 = scalar_lea.vmem %s1, 2712
  %s6135 = scalar_lea.vmem %s0, 408
  %v6136 = vld [vmem:[%s6135] sm:$0xf]
  %v6137 = vunpack.c.l.bf16 %v6136
  %v6138 = vunpack.c.h.bf16 %v6136
  %s6139 = scalar_lea.vmem %s1, 3736
  %s6140 = scalar_lea.vmem %s0, 3224
  %v6141 = vld [vmem:[%s6140] sm:$0xf]
  %v6142 = vunpack.c.l.bf16 %v6141
  %v6143 = vunpack.c.h.bf16 %v6141
  %s6144 = scalar_lea.vmem %s1, 920
  %s6145 = scalar_lea.vmem %s0, 2200
  %v6146 = vld [vmem:[%s6145] sm:$0xf]
  %v6147 = vunpack.c.l.bf16 %v6146
  %v6148 = vunpack.c.h.bf16 %v6146
  %s6149 = scalar_lea.vmem %s1, 1944
  %s6150 = scalar_lea.vmem %s0, 1176
  %v6151 = vld [vmem:[%s6150] sm:$0xf]
  %v6152 = vunpack.c.l.bf16 %v6151
  %v6153 = vunpack.c.h.bf16 %v6151
  %s6154 = scalar_lea.vmem %s1, 2968
  %s6155 = scalar_lea.vmem %s0, 152
  %v6156 = vld [vmem:[%s6155] sm:$0xf]
  %v6157 = vunpack.c.l.bf16 %v6156
  %v6158 = vunpack.c.h.bf16 %v6156
  %s6159 = scalar_lea.vmem %s1, 3992
  %s6160 = scalar_lea.vmem %s0, 4024
  %v6161 = vld [vmem:[%s6160] sm:$0xf]
  %v6162 = vunpack.c.l.bf16 %v6161
  %v6163 = vunpack.c.h.bf16 %v6161
  %s6164 = scalar_lea.vmem %s1, 184
  %s6165 = scalar_lea.vmem %s0, 3000
  %v6166 = vld [vmem:[%s6165] sm:$0xf]
  %v6167 = vunpack.c.l.bf16 %v6166
  %v6168 = vunpack.c.h.bf16 %v6166
  %s6169 = scalar_lea.vmem %s1, 1208
  %s6170 = scalar_lea.vmem %s0, 1976
  %v6171 = vld [vmem:[%s6170] sm:$0xf]
  %v6172 = vunpack.c.l.bf16 %v6171
  %v6173 = vunpack.c.h.bf16 %v6171
  %s6174 = scalar_lea.vmem %s1, 2232
  %s6175 = scalar_lea.vmem %s0, 952
  %v6176 = vld [vmem:[%s6175] sm:$0xf]
  %v6177 = vunpack.c.l.bf16 %v6176
  %v6178 = vunpack.c.h.bf16 %v6176
  %s6179 = scalar_lea.vmem %s1, 3256
  %s6180 = scalar_lea.vmem %s0, 3768
  %v6181 = vld [vmem:[%s6180] sm:$0xf]
  %v6182 = vunpack.c.l.bf16 %v6181
  %v6183 = vunpack.c.h.bf16 %v6181
  %s6184 = scalar_lea.vmem %s1, 440
  %s6185 = scalar_lea.vmem %s0, 2744
  %v6186 = vld [vmem:[%s6185] sm:$0xf]
  %v6187 = vunpack.c.l.bf16 %v6186
  %v6188 = vunpack.c.h.bf16 %v6186
  %s6189 = scalar_lea.vmem %s1, 1464
  %s6190 = scalar_lea.vmem %s0, 1720
  %v6191 = vld [vmem:[%s6190] sm:$0xf]
  %v6192 = vunpack.c.l.bf16 %v6191
  %v6193 = vunpack.c.h.bf16 %v6191
  %s6194 = scalar_lea.vmem %s1, 2488
  %s6195 = scalar_lea.vmem %s0, 696
  %v6196 = vld [vmem:[%s6195] sm:$0xf]
  %v6197 = vunpack.c.l.bf16 %v6196
  %v6198 = vunpack.c.h.bf16 %v6196
  %s6199 = scalar_lea.vmem %s1, 3512
  %s6200 = scalar_lea.vmem %s0, 3512
  %v6201 = vld [vmem:[%s6200] sm:$0xf]
  %v6202 = vunpack.c.l.bf16 %v6201
  %v6203 = vunpack.c.h.bf16 %v6201
  %s6204 = scalar_lea.vmem %s1, 696
  %s6205 = scalar_lea.vmem %s0, 2488
  %v6206 = vld [vmem:[%s6205] sm:$0xf]
  %v6207 = vunpack.c.l.bf16 %v6206
  %v6208 = vunpack.c.h.bf16 %v6206
  %s6209 = scalar_lea.vmem %s1, 1720
  %s6210 = scalar_lea.vmem %s0, 1464
  %v6211 = vld [vmem:[%s6210] sm:$0xf]
  %v6212 = vunpack.c.l.bf16 %v6211
  %v6213 = vunpack.c.h.bf16 %v6211
  %s6214 = scalar_lea.vmem %s1, 2744
  %s6215 = scalar_lea.vmem %s0, 440
  %v6216 = vld [vmem:[%s6215] sm:$0xf]
  %v6217 = vunpack.c.l.bf16 %v6216
  %v6218 = vunpack.c.h.bf16 %v6216
  %s6219 = scalar_lea.vmem %s1, 3768
  %s6220 = scalar_lea.vmem %s0, 3256
  %v6221 = vld [vmem:[%s6220] sm:$0xf]
  %v6222 = vunpack.c.l.bf16 %v6221
  %v6223 = vunpack.c.h.bf16 %v6221
  %s6224 = scalar_lea.vmem %s1, 952
  %s6225 = scalar_lea.vmem %s0, 2232
  %v6226 = vld [vmem:[%s6225] sm:$0xf]
  %v6227 = vunpack.c.l.bf16 %v6226
  %v6228 = vunpack.c.h.bf16 %v6226
  %s6229 = scalar_lea.vmem %s1, 1976
  %s6230 = scalar_lea.vmem %s0, 1208
  %v6231 = vld [vmem:[%s6230] sm:$0xf]
  %v6232 = vunpack.c.l.bf16 %v6231
  %v6233 = vunpack.c.h.bf16 %v6231
  %s6234 = scalar_lea.vmem %s1, 3000
  %s6235 = scalar_lea.vmem %s0, 184
  %v6236 = vld [vmem:[%s6235] sm:$0xf]
  %v6237 = vunpack.c.l.bf16 %v6236
  %v6238 = vunpack.c.h.bf16 %v6236
  %s6239 = scalar_lea.vmem %s1, 4024
  %s6240 = scalar_lea.vmem %s0, 4056
  %v6241 = vld [vmem:[%s6240] sm:$0xf]
  %v6242 = vunpack.c.l.bf16 %v6241
  %v6243 = vunpack.c.h.bf16 %v6241
  %s6244 = scalar_lea.vmem %s1, 216
  %s6245 = scalar_lea.vmem %s0, 3032
  %v6246 = vld [vmem:[%s6245] sm:$0xf]
  %v6247 = vunpack.c.l.bf16 %v6246
  %v6248 = vunpack.c.h.bf16 %v6246
  %s6249 = scalar_lea.vmem %s1, 1240
  %s6250 = scalar_lea.vmem %s0, 2008
  %v6251 = vld [vmem:[%s6250] sm:$0xf]
  %v6252 = vunpack.c.l.bf16 %v6251
  %v6253 = vunpack.c.h.bf16 %v6251
  %s6254 = scalar_lea.vmem %s1, 2264
  %s6255 = scalar_lea.vmem %s0, 984
  %v6256 = vld [vmem:[%s6255] sm:$0xf]
  %v6257 = vunpack.c.l.bf16 %v6256
  %v6258 = vunpack.c.h.bf16 %v6256
  %s6259 = scalar_lea.vmem %s1, 3288
  %s6260 = scalar_lea.vmem %s0, 3800
  %v6261 = vld [vmem:[%s6260] sm:$0xf]
  %v6262 = vunpack.c.l.bf16 %v6261
  %v6263 = vunpack.c.h.bf16 %v6261
  %s6264 = scalar_lea.vmem %s1, 472
  %s6265 = scalar_lea.vmem %s0, 2776
  %v6266 = vld [vmem:[%s6265] sm:$0xf]
  %v6267 = vunpack.c.l.bf16 %v6266
  %v6268 = vunpack.c.h.bf16 %v6266
  %s6269 = scalar_lea.vmem %s1, 1496
  %s6270 = scalar_lea.vmem %s0, 1752
  %v6271 = vld [vmem:[%s6270] sm:$0xf]
  %v6272 = vunpack.c.l.bf16 %v6271
  %v6273 = vunpack.c.h.bf16 %v6271
  %s6274 = scalar_lea.vmem %s1, 2520
  %s6275 = scalar_lea.vmem %s0, 728
  %v6276 = vld [vmem:[%s6275] sm:$0xf]
  %v6277 = vunpack.c.l.bf16 %v6276
  %v6278 = vunpack.c.h.bf16 %v6276
  %s6279 = scalar_lea.vmem %s1, 3544
  %s6280 = scalar_lea.vmem %s0, 3544
  %v6281 = vld [vmem:[%s6280] sm:$0xf]
  %v6282 = vunpack.c.l.bf16 %v6281
  %v6283 = vunpack.c.h.bf16 %v6281
  %s6284 = scalar_lea.vmem %s1, 728
  %s6285 = scalar_lea.vmem %s0, 2520
  %v6286 = vld [vmem:[%s6285] sm:$0xf]
  %v6287 = vunpack.c.l.bf16 %v6286
  %v6288 = vunpack.c.h.bf16 %v6286
  %s6289 = scalar_lea.vmem %s1, 1752
  %s6290 = scalar_lea.vmem %s0, 1496
  %v6291 = vld [vmem:[%s6290] sm:$0xf]
  %v6292 = vunpack.c.l.bf16 %v6291
  %v6293 = vunpack.c.h.bf16 %v6291
  %s6294 = scalar_lea.vmem %s1, 2776
  %s6295 = scalar_lea.vmem %s0, 472
  %v6296 = vld [vmem:[%s6295] sm:$0xf]
  %v6297 = vunpack.c.l.bf16 %v6296
  %v6298 = vunpack.c.h.bf16 %v6296
  %s6299 = scalar_lea.vmem %s1, 3800
  %s6300 = scalar_lea.vmem %s0, 3288
  %v6301 = vld [vmem:[%s6300] sm:$0xf]
  %v6302 = vunpack.c.l.bf16 %v6301
  %v6303 = vunpack.c.h.bf16 %v6301
  %s6304 = scalar_lea.vmem %s1, 984
  %s6305 = scalar_lea.vmem %s0, 2264
  %v6306 = vld [vmem:[%s6305] sm:$0xf]
  %v6307 = vunpack.c.l.bf16 %v6306
  %v6308 = vunpack.c.h.bf16 %v6306
  %s6309 = scalar_lea.vmem %s1, 2008
  %s6310 = scalar_lea.vmem %s0, 1240
  %v6311 = vld [vmem:[%s6310] sm:$0xf]
  %v6312 = vunpack.c.l.bf16 %v6311
  %v6313 = vunpack.c.h.bf16 %v6311
  %s6314 = scalar_lea.vmem %s1, 3032
  %s6315 = scalar_lea.vmem %s0, 216
  %v6316 = vld [vmem:[%s6315] sm:$0xf]
  %v6317 = vunpack.c.l.bf16 %v6316
  %v6318 = vunpack.c.h.bf16 %v6316
  %s6319 = scalar_lea.vmem %s1, 4056
  %s6320 = scalar_lea.vmem %s0, 4088
  %v6321 = vld [vmem:[%s6320] sm:$0xf]
  %v6322 = vunpack.c.l.bf16 %v6321
  %v6323 = vunpack.c.h.bf16 %v6321
  %s6324 = scalar_lea.vmem %s1, 248
  %s6325 = scalar_lea.vmem %s0, 3064
  %v6326 = vld [vmem:[%s6325] sm:$0xf]
  %v6327 = vunpack.c.l.bf16 %v6326
  %v6328 = vunpack.c.h.bf16 %v6326
  %s6329 = scalar_lea.vmem %s1, 1272
  %s6330 = scalar_lea.vmem %s0, 2040
  %v6331 = vld [vmem:[%s6330] sm:$0xf]
  %v6332 = vunpack.c.l.bf16 %v6331
  %v6333 = vunpack.c.h.bf16 %v6331
  %s6334 = scalar_lea.vmem %s1, 2296
  %s6335 = scalar_lea.vmem %s0, 1016
  %v6336 = vld [vmem:[%s6335] sm:$0xf]
  %v6337 = vunpack.c.l.bf16 %v6336
  %v6338 = vunpack.c.h.bf16 %v6336
  %s6339 = scalar_lea.vmem %s1, 3320
  %s6340 = scalar_lea.vmem %s0, 3832
  %v6341 = vld [vmem:[%s6340] sm:$0xf]
  %v6342 = vunpack.c.l.bf16 %v6341
  %v6343 = vunpack.c.h.bf16 %v6341
  %s6344 = scalar_lea.vmem %s1, 504
  %s6345 = scalar_lea.vmem %s0, 2808
  %v6346 = vld [vmem:[%s6345] sm:$0xf]
  %v6347 = vunpack.c.l.bf16 %v6346
  %v6348 = vunpack.c.h.bf16 %v6346
  %s6349 = scalar_lea.vmem %s1, 1528
  %s6350 = scalar_lea.vmem %s0, 1784
  %v6351 = vld [vmem:[%s6350] sm:$0xf]
  %v6352 = vunpack.c.l.bf16 %v6351
  %v6353 = vunpack.c.h.bf16 %v6351
  %s6354 = scalar_lea.vmem %s1, 2552
  %s6355 = scalar_lea.vmem %s0, 760
  %v6356 = vld [vmem:[%s6355] sm:$0xf]
  %v6357 = vunpack.c.l.bf16 %v6356
  %v6358 = vunpack.c.h.bf16 %v6356
  %s6359 = scalar_lea.vmem %s1, 3576
  %s6360 = scalar_lea.vmem %s0, 3576
  %v6361 = vld [vmem:[%s6360] sm:$0xf]
  %v6362 = vunpack.c.l.bf16 %v6361
  %v6363 = vunpack.c.h.bf16 %v6361
  %s6364 = scalar_lea.vmem %s1, 760
  %s6365 = scalar_lea.vmem %s0, 2552
  %v6366 = vld [vmem:[%s6365] sm:$0xf]
  %v6367 = vunpack.c.l.bf16 %v6366
  %v6368 = vunpack.c.h.bf16 %v6366
  %s6369 = scalar_lea.vmem %s1, 1784
  %s6370 = scalar_lea.vmem %s0, 1528
  %v6371 = vld [vmem:[%s6370] sm:$0xf]
  %v6372 = vunpack.c.l.bf16 %v6371
  %v6373 = vunpack.c.h.bf16 %v6371
  %s6374 = scalar_lea.vmem %s1, 2808
  %s6375 = scalar_lea.vmem %s0, 504
  %v6376 = vld [vmem:[%s6375] sm:$0xf]
  %v6377 = vunpack.c.l.bf16 %v6376
  %v6378 = vunpack.c.h.bf16 %v6376
  %s6379 = scalar_lea.vmem %s1, 3832
  %s6380 = scalar_lea.vmem %s0, 3320
  %v6381 = vld [vmem:[%s6380] sm:$0xf]
  %v6382 = vunpack.c.l.bf16 %v6381
  %v6383 = vunpack.c.h.bf16 %v6381
  %s6384 = scalar_lea.vmem %s1, 1016
  %s6385 = scalar_lea.vmem %s0, 2296
  %v6386 = vld [vmem:[%s6385] sm:$0xf]
  %v6387 = vunpack.c.l.bf16 %v6386
  %v6388 = vunpack.c.h.bf16 %v6386
  %s6389 = scalar_lea.vmem %s1, 2040
  %s6390 = scalar_lea.vmem %s0, 1272
  %v6391 = vld [vmem:[%s6390] sm:$0xf]
  %v6392 = vunpack.c.l.bf16 %v6391
  %v6393 = vunpack.c.h.bf16 %v6391
  %s6394 = scalar_lea.vmem %s1, 3064
  %s6395 = scalar_lea.vmem %s0, 248
  %v6396 = vld [vmem:[%s6395] sm:$0xf]
  %v6397 = vunpack.c.l.bf16 %v6396
  %v6398 = vunpack.c.h.bf16 %v6396
  %s6399 = scalar_lea.vmem %s1, 4088
  %s6400 = scalar_lea.vmem %s0, 3868
  %v6401 = vld [vmem:[%s6400] sm:$0xf]
  %v6402 = vunpack.c.l.bf16 %v6401
  %v6403 = vunpack.c.h.bf16 %v6401
  %s6404 = scalar_lea.vmem %s1, 28
  %s6406 = ssub.s32 0, 4
  %s6407 = scalar_lea.vmem %s6404, %s6406
  %v6408 = vpack.c.bf16 %v6402, %v5762
  %6409 = vst [vmem:[%s6407] sm:$0xff] %v6408
  %s6410 = scalar_lea.vmem %s0, 2844
  %v6411 = vld [vmem:[%s6410] sm:$0xf]
  %v6412 = vunpack.c.l.bf16 %v6411
  %v6413 = vunpack.c.h.bf16 %v6411
  %s6414 = scalar_lea.vmem %s1, 1052
  %s6416 = ssub.s32 0, 4
  %s6417 = scalar_lea.vmem %s6414, %s6416
  %v6418 = vpack.c.bf16 %v6412, %v5767
  %6419 = vst [vmem:[%s6417] sm:$0xff] %v6418
  %s6420 = scalar_lea.vmem %s0, 1820
  %v6421 = vld [vmem:[%s6420] sm:$0xf]
  %v6422 = vunpack.c.l.bf16 %v6421
  %v6423 = vunpack.c.h.bf16 %v6421
  %s6424 = scalar_lea.vmem %s1, 2076
  %s6426 = ssub.s32 0, 4
  %s6427 = scalar_lea.vmem %s6424, %s6426
  %v6428 = vpack.c.bf16 %v6422, %v5772
  %6429 = vst [vmem:[%s6427] sm:$0xff] %v6428
  %s6430 = scalar_lea.vmem %s0, 796
  %v6431 = vld [vmem:[%s6430] sm:$0xf]
  %v6432 = vunpack.c.l.bf16 %v6431
  %v6433 = vunpack.c.h.bf16 %v6431
  %s6434 = scalar_lea.vmem %s1, 3100
  %s6436 = ssub.s32 0, 4
  %s6437 = scalar_lea.vmem %s6434, %s6436
  %v6438 = vpack.c.bf16 %v6432, %v5777
  %6439 = vst [vmem:[%s6437] sm:$0xff] %v6438
  %s6440 = scalar_lea.vmem %s0, 3612
  %v6441 = vld [vmem:[%s6440] sm:$0xf]
  %v6442 = vunpack.c.l.bf16 %v6441
  %v6443 = vunpack.c.h.bf16 %v6441
  %s6444 = scalar_lea.vmem %s1, 284
  %s6446 = ssub.s32 0, 4
  %s6447 = scalar_lea.vmem %s6444, %s6446
  %v6448 = vpack.c.bf16 %v6442, %v5782
  %6449 = vst [vmem:[%s6447] sm:$0xff] %v6448
  %s6450 = scalar_lea.vmem %s0, 2588
  %v6451 = vld [vmem:[%s6450] sm:$0xf]
  %v6452 = vunpack.c.l.bf16 %v6451
  %v6453 = vunpack.c.h.bf16 %v6451
  %s6454 = scalar_lea.vmem %s1, 1308
  %s6456 = ssub.s32 0, 4
  %s6457 = scalar_lea.vmem %s6454, %s6456
  %v6458 = vpack.c.bf16 %v6452, %v5787
  %6459 = vst [vmem:[%s6457] sm:$0xff] %v6458
  %s6460 = scalar_lea.vmem %s0, 1564
  %v6461 = vld [vmem:[%s6460] sm:$0xf]
  %v6462 = vunpack.c.l.bf16 %v6461
  %v6463 = vunpack.c.h.bf16 %v6461
  %s6464 = scalar_lea.vmem %s1, 2332
  %s6466 = ssub.s32 0, 4
  %s6467 = scalar_lea.vmem %s6464, %s6466
  %v6468 = vpack.c.bf16 %v6462, %v5792
  %6469 = vst [vmem:[%s6467] sm:$0xff] %v6468
  %s6470 = scalar_lea.vmem %s0, 540
  %v6471 = vld [vmem:[%s6470] sm:$0xf]
  %v6472 = vunpack.c.l.bf16 %v6471
  %v6473 = vunpack.c.h.bf16 %v6471
  %s6474 = scalar_lea.vmem %s1, 3356
  %s6476 = ssub.s32 0, 4
  %s6477 = scalar_lea.vmem %s6474, %s6476
  %v6478 = vpack.c.bf16 %v6472, %v5797
  %6479 = vst [vmem:[%s6477] sm:$0xff] %v6478
  %s6480 = scalar_lea.vmem %s0, 3356
  %v6481 = vld [vmem:[%s6480] sm:$0xf]
  %v6482 = vunpack.c.l.bf16 %v6481
  %v6483 = vunpack.c.h.bf16 %v6481
  %s6484 = scalar_lea.vmem %s1, 540
  %s6486 = ssub.s32 0, 4
  %s6487 = scalar_lea.vmem %s6484, %s6486
  %v6488 = vpack.c.bf16 %v6482, %v5802
  %6489 = vst [vmem:[%s6487] sm:$0xff] %v6488
  %s6490 = scalar_lea.vmem %s0, 2332
  %v6491 = vld [vmem:[%s6490] sm:$0xf]
  %v6492 = vunpack.c.l.bf16 %v6491
  %v6493 = vunpack.c.h.bf16 %v6491
  %s6494 = scalar_lea.vmem %s1, 1564
  %s6496 = ssub.s32 0, 4
  %s6497 = scalar_lea.vmem %s6494, %s6496
  %v6498 = vpack.c.bf16 %v6492, %v5807
  %6499 = vst [vmem:[%s6497] sm:$0xff] %v6498
  %s6500 = scalar_lea.vmem %s0, 1308
  %v6501 = vld [vmem:[%s6500] sm:$0xf]
  %v6502 = vunpack.c.l.bf16 %v6501
  %v6503 = vunpack.c.h.bf16 %v6501
  %s6504 = scalar_lea.vmem %s1, 2588
  %s6506 = ssub.s32 0, 4
  %s6507 = scalar_lea.vmem %s6504, %s6506
  %v6508 = vpack.c.bf16 %v6502, %v5812
  %6509 = vst [vmem:[%s6507] sm:$0xff] %v6508
  %s6510 = scalar_lea.vmem %s0, 284
  %v6511 = vld [vmem:[%s6510] sm:$0xf]
  %v6512 = vunpack.c.l.bf16 %v6511
  %v6513 = vunpack.c.h.bf16 %v6511
  %s6514 = scalar_lea.vmem %s1, 3612
  %s6516 = ssub.s32 0, 4
  %s6517 = scalar_lea.vmem %s6514, %s6516
  %v6518 = vpack.c.bf16 %v6512, %v5817
  %6519 = vst [vmem:[%s6517] sm:$0xff] %v6518
  %s6520 = scalar_lea.vmem %s0, 3100
  %v6521 = vld [vmem:[%s6520] sm:$0xf]
  %v6522 = vunpack.c.l.bf16 %v6521
  %v6523 = vunpack.c.h.bf16 %v6521
  %s6524 = scalar_lea.vmem %s1, 796
  %s6526 = ssub.s32 0, 4
  %s6527 = scalar_lea.vmem %s6524, %s6526
  %v6528 = vpack.c.bf16 %v6522, %v5822
  %6529 = vst [vmem:[%s6527] sm:$0xff] %v6528
  %s6530 = scalar_lea.vmem %s0, 2076
  %v6531 = vld [vmem:[%s6530] sm:$0xf]
  %v6532 = vunpack.c.l.bf16 %v6531
  %v6533 = vunpack.c.h.bf16 %v6531
  %s6534 = scalar_lea.vmem %s1, 1820
  %s6536 = ssub.s32 0, 4
  %s6537 = scalar_lea.vmem %s6534, %s6536
  %v6538 = vpack.c.bf16 %v6532, %v5827
  %6539 = vst [vmem:[%s6537] sm:$0xff] %v6538
  %s6540 = scalar_lea.vmem %s0, 1052
  %v6541 = vld [vmem:[%s6540] sm:$0xf]
  %v6542 = vunpack.c.l.bf16 %v6541
  %v6543 = vunpack.c.h.bf16 %v6541
  %s6544 = scalar_lea.vmem %s1, 2844
  %s6546 = ssub.s32 0, 4
  %s6547 = scalar_lea.vmem %s6544, %s6546
  %v6548 = vpack.c.bf16 %v6542, %v5832
  %6549 = vst [vmem:[%s6547] sm:$0xff] %v6548
  %s6550 = scalar_lea.vmem %s0, 28
  %v6551 = vld [vmem:[%s6550] sm:$0xf]
  %v6552 = vunpack.c.l.bf16 %v6551
  %v6553 = vunpack.c.h.bf16 %v6551
  %s6554 = scalar_lea.vmem %s1, 3868
  %s6556 = ssub.s32 0, 4
  %s6557 = scalar_lea.vmem %s6554, %s6556
  %v6558 = vpack.c.bf16 %v6552, %v5837
  %6559 = vst [vmem:[%s6557] sm:$0xff] %v6558
  %s6560 = scalar_lea.vmem %s0, 3900
  %v6561 = vld [vmem:[%s6560] sm:$0xf]
  %v6562 = vunpack.c.l.bf16 %v6561
  %v6563 = vunpack.c.h.bf16 %v6561
  %s6564 = scalar_lea.vmem %s1, 60
  %s6566 = ssub.s32 0, 4
  %s6567 = scalar_lea.vmem %s6564, %s6566
  %v6568 = vpack.c.bf16 %v6562, %v5842
  %6569 = vst [vmem:[%s6567] sm:$0xff] %v6568
  %s6570 = scalar_lea.vmem %s0, 2876
  %v6571 = vld [vmem:[%s6570] sm:$0xf]
  %v6572 = vunpack.c.l.bf16 %v6571
  %v6573 = vunpack.c.h.bf16 %v6571
  %s6574 = scalar_lea.vmem %s1, 1084
  %s6576 = ssub.s32 0, 4
  %s6577 = scalar_lea.vmem %s6574, %s6576
  %v6578 = vpack.c.bf16 %v6572, %v5847
  %6579 = vst [vmem:[%s6577] sm:$0xff] %v6578
  %s6580 = scalar_lea.vmem %s0, 1852
  %v6581 = vld [vmem:[%s6580] sm:$0xf]
  %v6582 = vunpack.c.l.bf16 %v6581
  %v6583 = vunpack.c.h.bf16 %v6581
  %s6584 = scalar_lea.vmem %s1, 2108
  %s6586 = ssub.s32 0, 4
  %s6587 = scalar_lea.vmem %s6584, %s6586
  %v6588 = vpack.c.bf16 %v6582, %v5852
  %6589 = vst [vmem:[%s6587] sm:$0xff] %v6588
  %s6590 = scalar_lea.vmem %s0, 828
  %v6591 = vld [vmem:[%s6590] sm:$0xf]
  %v6592 = vunpack.c.l.bf16 %v6591
  %v6593 = vunpack.c.h.bf16 %v6591
  %s6594 = scalar_lea.vmem %s1, 3132
  %s6596 = ssub.s32 0, 4
  %s6597 = scalar_lea.vmem %s6594, %s6596
  %v6598 = vpack.c.bf16 %v6592, %v5857
  %6599 = vst [vmem:[%s6597] sm:$0xff] %v6598
  %s6600 = scalar_lea.vmem %s0, 3644
  %v6601 = vld [vmem:[%s6600] sm:$0xf]
  %v6602 = vunpack.c.l.bf16 %v6601
  %v6603 = vunpack.c.h.bf16 %v6601
  %s6604 = scalar_lea.vmem %s1, 316
  %s6606 = ssub.s32 0, 4
  %s6607 = scalar_lea.vmem %s6604, %s6606
  %v6608 = vpack.c.bf16 %v6602, %v5862
  %6609 = vst [vmem:[%s6607] sm:$0xff] %v6608
  %s6610 = scalar_lea.vmem %s0, 2620
  %v6611 = vld [vmem:[%s6610] sm:$0xf]
  %v6612 = vunpack.c.l.bf16 %v6611
  %v6613 = vunpack.c.h.bf16 %v6611
  %s6614 = scalar_lea.vmem %s1, 1340
  %s6616 = ssub.s32 0, 4
  %s6617 = scalar_lea.vmem %s6614, %s6616
  %v6618 = vpack.c.bf16 %v6612, %v5867
  %6619 = vst [vmem:[%s6617] sm:$0xff] %v6618
  %s6620 = scalar_lea.vmem %s0, 1596
  %v6621 = vld [vmem:[%s6620] sm:$0xf]
  %v6622 = vunpack.c.l.bf16 %v6621
  %v6623 = vunpack.c.h.bf16 %v6621
  %s6624 = scalar_lea.vmem %s1, 2364
  %s6626 = ssub.s32 0, 4
  %s6627 = scalar_lea.vmem %s6624, %s6626
  %v6628 = vpack.c.bf16 %v6622, %v5872
  %6629 = vst [vmem:[%s6627] sm:$0xff] %v6628
  %s6630 = scalar_lea.vmem %s0, 572
  %v6631 = vld [vmem:[%s6630] sm:$0xf]
  %v6632 = vunpack.c.l.bf16 %v6631
  %v6633 = vunpack.c.h.bf16 %v6631
  %s6634 = scalar_lea.vmem %s1, 3388
  %s6636 = ssub.s32 0, 4
  %s6637 = scalar_lea.vmem %s6634, %s6636
  %v6638 = vpack.c.bf16 %v6632, %v5877
  %6639 = vst [vmem:[%s6637] sm:$0xff] %v6638
  %s6640 = scalar_lea.vmem %s0, 3388
  %v6641 = vld [vmem:[%s6640] sm:$0xf]
  %v6642 = vunpack.c.l.bf16 %v6641
  %v6643 = vunpack.c.h.bf16 %v6641
  %s6644 = scalar_lea.vmem %s1, 572
  %s6646 = ssub.s32 0, 4
  %s6647 = scalar_lea.vmem %s6644, %s6646
  %v6648 = vpack.c.bf16 %v6642, %v5882
  %6649 = vst [vmem:[%s6647] sm:$0xff] %v6648
  %s6650 = scalar_lea.vmem %s0, 2364
  %v6651 = vld [vmem:[%s6650] sm:$0xf]
  %v6652 = vunpack.c.l.bf16 %v6651
  %v6653 = vunpack.c.h.bf16 %v6651
  %s6654 = scalar_lea.vmem %s1, 1596
  %s6656 = ssub.s32 0, 4
  %s6657 = scalar_lea.vmem %s6654, %s6656
  %v6658 = vpack.c.bf16 %v6652, %v5887
  %6659 = vst [vmem:[%s6657] sm:$0xff] %v6658
  %s6660 = scalar_lea.vmem %s0, 1340
  %v6661 = vld [vmem:[%s6660] sm:$0xf]
  %v6662 = vunpack.c.l.bf16 %v6661
  %v6663 = vunpack.c.h.bf16 %v6661
  %s6664 = scalar_lea.vmem %s1, 2620
  %s6666 = ssub.s32 0, 4
  %s6667 = scalar_lea.vmem %s6664, %s6666
  %v6668 = vpack.c.bf16 %v6662, %v5892
  %6669 = vst [vmem:[%s6667] sm:$0xff] %v6668
  %s6670 = scalar_lea.vmem %s0, 316
  %v6671 = vld [vmem:[%s6670] sm:$0xf]
  %v6672 = vunpack.c.l.bf16 %v6671
  %v6673 = vunpack.c.h.bf16 %v6671
  %s6674 = scalar_lea.vmem %s1, 3644
  %s6676 = ssub.s32 0, 4
  %s6677 = scalar_lea.vmem %s6674, %s6676
  %v6678 = vpack.c.bf16 %v6672, %v5897
  %6679 = vst [vmem:[%s6677] sm:$0xff] %v6678
  %s6680 = scalar_lea.vmem %s0, 3132
  %v6681 = vld [vmem:[%s6680] sm:$0xf]
  %v6682 = vunpack.c.l.bf16 %v6681
  %v6683 = vunpack.c.h.bf16 %v6681
  %s6684 = scalar_lea.vmem %s1, 828
  %s6686 = ssub.s32 0, 4
  %s6687 = scalar_lea.vmem %s6684, %s6686
  %v6688 = vpack.c.bf16 %v6682, %v5902
  %6689 = vst [vmem:[%s6687] sm:$0xff] %v6688
  %s6690 = scalar_lea.vmem %s0, 2108
  %v6691 = vld [vmem:[%s6690] sm:$0xf]
  %v6692 = vunpack.c.l.bf16 %v6691
  %v6693 = vunpack.c.h.bf16 %v6691
  %s6694 = scalar_lea.vmem %s1, 1852
  %s6696 = ssub.s32 0, 4
  %s6697 = scalar_lea.vmem %s6694, %s6696
  %v6698 = vpack.c.bf16 %v6692, %v5907
  %6699 = vst [vmem:[%s6697] sm:$0xff] %v6698
  %s6700 = scalar_lea.vmem %s0, 1084
  %v6701 = vld [vmem:[%s6700] sm:$0xf]
  %v6702 = vunpack.c.l.bf16 %v6701
  %v6703 = vunpack.c.h.bf16 %v6701
  %s6704 = scalar_lea.vmem %s1, 2876
  %s6706 = ssub.s32 0, 4
  %s6707 = scalar_lea.vmem %s6704, %s6706
  %v6708 = vpack.c.bf16 %v6702, %v5912
  %6709 = vst [vmem:[%s6707] sm:$0xff] %v6708
  %s6710 = scalar_lea.vmem %s0, 60
  %v6711 = vld [vmem:[%s6710] sm:$0xf]
  %v6712 = vunpack.c.l.bf16 %v6711
  %v6713 = vunpack.c.h.bf16 %v6711
  %s6714 = scalar_lea.vmem %s1, 3900
  %s6716 = ssub.s32 0, 4
  %s6717 = scalar_lea.vmem %s6714, %s6716
  %v6718 = vpack.c.bf16 %v6712, %v5917
  %6719 = vst [vmem:[%s6717] sm:$0xff] %v6718
  %s6720 = scalar_lea.vmem %s0, 3932
  %v6721 = vld [vmem:[%s6720] sm:$0xf]
  %v6722 = vunpack.c.l.bf16 %v6721
  %v6723 = vunpack.c.h.bf16 %v6721
  %s6724 = scalar_lea.vmem %s1, 92
  %s6726 = ssub.s32 0, 4
  %s6727 = scalar_lea.vmem %s6724, %s6726
  %v6728 = vpack.c.bf16 %v6722, %v5922
  %6729 = vst [vmem:[%s6727] sm:$0xff] %v6728
  %s6730 = scalar_lea.vmem %s0, 2908
  %v6731 = vld [vmem:[%s6730] sm:$0xf]
  %v6732 = vunpack.c.l.bf16 %v6731
  %v6733 = vunpack.c.h.bf16 %v6731
  %s6734 = scalar_lea.vmem %s1, 1116
  %s6736 = ssub.s32 0, 4
  %s6737 = scalar_lea.vmem %s6734, %s6736
  %v6738 = vpack.c.bf16 %v6732, %v5927
  %6739 = vst [vmem:[%s6737] sm:$0xff] %v6738
  %s6740 = scalar_lea.vmem %s0, 1884
  %v6741 = vld [vmem:[%s6740] sm:$0xf]
  %v6742 = vunpack.c.l.bf16 %v6741
  %v6743 = vunpack.c.h.bf16 %v6741
  %s6744 = scalar_lea.vmem %s1, 2140
  %s6746 = ssub.s32 0, 4
  %s6747 = scalar_lea.vmem %s6744, %s6746
  %v6748 = vpack.c.bf16 %v6742, %v5932
  %6749 = vst [vmem:[%s6747] sm:$0xff] %v6748
  %s6750 = scalar_lea.vmem %s0, 860
  %v6751 = vld [vmem:[%s6750] sm:$0xf]
  %v6752 = vunpack.c.l.bf16 %v6751
  %v6753 = vunpack.c.h.bf16 %v6751
  %s6754 = scalar_lea.vmem %s1, 3164
  %s6756 = ssub.s32 0, 4
  %s6757 = scalar_lea.vmem %s6754, %s6756
  %v6758 = vpack.c.bf16 %v6752, %v5937
  %6759 = vst [vmem:[%s6757] sm:$0xff] %v6758
  %s6760 = scalar_lea.vmem %s0, 3676
  %v6761 = vld [vmem:[%s6760] sm:$0xf]
  %v6762 = vunpack.c.l.bf16 %v6761
  %v6763 = vunpack.c.h.bf16 %v6761
  %s6764 = scalar_lea.vmem %s1, 348
  %s6766 = ssub.s32 0, 4
  %s6767 = scalar_lea.vmem %s6764, %s6766
  %v6768 = vpack.c.bf16 %v6762, %v5942
  %6769 = vst [vmem:[%s6767] sm:$0xff] %v6768
  %s6770 = scalar_lea.vmem %s0, 2652
  %v6771 = vld [vmem:[%s6770] sm:$0xf]
  %v6772 = vunpack.c.l.bf16 %v6771
  %v6773 = vunpack.c.h.bf16 %v6771
  %s6774 = scalar_lea.vmem %s1, 1372
  %s6776 = ssub.s32 0, 4
  %s6777 = scalar_lea.vmem %s6774, %s6776
  %v6778 = vpack.c.bf16 %v6772, %v5947
  %6779 = vst [vmem:[%s6777] sm:$0xff] %v6778
  %s6780 = scalar_lea.vmem %s0, 1628
  %v6781 = vld [vmem:[%s6780] sm:$0xf]
  %v6782 = vunpack.c.l.bf16 %v6781
  %v6783 = vunpack.c.h.bf16 %v6781
  %s6784 = scalar_lea.vmem %s1, 2396
  %s6786 = ssub.s32 0, 4
  %s6787 = scalar_lea.vmem %s6784, %s6786
  %v6788 = vpack.c.bf16 %v6782, %v5952
  %6789 = vst [vmem:[%s6787] sm:$0xff] %v6788
  %s6790 = scalar_lea.vmem %s0, 604
  %v6791 = vld [vmem:[%s6790] sm:$0xf]
  %v6792 = vunpack.c.l.bf16 %v6791
  %v6793 = vunpack.c.h.bf16 %v6791
  %s6794 = scalar_lea.vmem %s1, 3420
  %s6796 = ssub.s32 0, 4
  %s6797 = scalar_lea.vmem %s6794, %s6796
  %v6798 = vpack.c.bf16 %v6792, %v5957
  %6799 = vst [vmem:[%s6797] sm:$0xff] %v6798
  %s6800 = scalar_lea.vmem %s0, 3420
  %v6801 = vld [vmem:[%s6800] sm:$0xf]
  %v6802 = vunpack.c.l.bf16 %v6801
  %v6803 = vunpack.c.h.bf16 %v6801
  %s6804 = scalar_lea.vmem %s1, 604
  %s6806 = ssub.s32 0, 4
  %s6807 = scalar_lea.vmem %s6804, %s6806
  %v6808 = vpack.c.bf16 %v6802, %v5962
  %6809 = vst [vmem:[%s6807] sm:$0xff] %v6808
  %s6810 = scalar_lea.vmem %s0, 2396
  %v6811 = vld [vmem:[%s6810] sm:$0xf]
  %v6812 = vunpack.c.l.bf16 %v6811
  %v6813 = vunpack.c.h.bf16 %v6811
  %s6814 = scalar_lea.vmem %s1, 1628
  %s6816 = ssub.s32 0, 4
  %s6817 = scalar_lea.vmem %s6814, %s6816
  %v6818 = vpack.c.bf16 %v6812, %v5967
  %6819 = vst [vmem:[%s6817] sm:$0xff] %v6818
  %s6820 = scalar_lea.vmem %s0, 1372
  %v6821 = vld [vmem:[%s6820] sm:$0xf]
  %v6822 = vunpack.c.l.bf16 %v6821
  %v6823 = vunpack.c.h.bf16 %v6821
  %s6824 = scalar_lea.vmem %s1, 2652
  %s6826 = ssub.s32 0, 4
  %s6827 = scalar_lea.vmem %s6824, %s6826
  %v6828 = vpack.c.bf16 %v6822, %v5972
  %6829 = vst [vmem:[%s6827] sm:$0xff] %v6828
  %s6830 = scalar_lea.vmem %s0, 348
  %v6831 = vld [vmem:[%s6830] sm:$0xf]
  %v6832 = vunpack.c.l.bf16 %v6831
  %v6833 = vunpack.c.h.bf16 %v6831
  %s6834 = scalar_lea.vmem %s1, 3676
  %s6836 = ssub.s32 0, 4
  %s6837 = scalar_lea.vmem %s6834, %s6836
  %v6838 = vpack.c.bf16 %v6832, %v5977
  %6839 = vst [vmem:[%s6837] sm:$0xff] %v6838
  %s6840 = scalar_lea.vmem %s0, 3164
  %v6841 = vld [vmem:[%s6840] sm:$0xf]
  %v6842 = vunpack.c.l.bf16 %v6841
  %v6843 = vunpack.c.h.bf16 %v6841
  %s6844 = scalar_lea.vmem %s1, 860
  %s6846 = ssub.s32 0, 4
  %s6847 = scalar_lea.vmem %s6844, %s6846
  %v6848 = vpack.c.bf16 %v6842, %v5982
  %6849 = vst [vmem:[%s6847] sm:$0xff] %v6848
  %s6850 = scalar_lea.vmem %s0, 2140
  %v6851 = vld [vmem:[%s6850] sm:$0xf]
  %v6852 = vunpack.c.l.bf16 %v6851
  %v6853 = vunpack.c.h.bf16 %v6851
  %s6854 = scalar_lea.vmem %s1, 1884
  %s6856 = ssub.s32 0, 4
  %s6857 = scalar_lea.vmem %s6854, %s6856
  %v6858 = vpack.c.bf16 %v6852, %v5987
  %6859 = vst [vmem:[%s6857] sm:$0xff] %v6858
  %s6860 = scalar_lea.vmem %s0, 1116
  %v6861 = vld [vmem:[%s6860] sm:$0xf]
  %v6862 = vunpack.c.l.bf16 %v6861
  %v6863 = vunpack.c.h.bf16 %v6861
  %s6864 = scalar_lea.vmem %s1, 2908
  %s6866 = ssub.s32 0, 4
  %s6867 = scalar_lea.vmem %s6864, %s6866
  %v6868 = vpack.c.bf16 %v6862, %v5992
  %6869 = vst [vmem:[%s6867] sm:$0xff] %v6868
  %s6870 = scalar_lea.vmem %s0, 92
  %v6871 = vld [vmem:[%s6870] sm:$0xf]
  %v6872 = vunpack.c.l.bf16 %v6871
  %v6873 = vunpack.c.h.bf16 %v6871
  %s6874 = scalar_lea.vmem %s1, 3932
  %s6876 = ssub.s32 0, 4
  %s6877 = scalar_lea.vmem %s6874, %s6876
  %v6878 = vpack.c.bf16 %v6872, %v5997
  %6879 = vst [vmem:[%s6877] sm:$0xff] %v6878
  %s6880 = scalar_lea.vmem %s0, 3964
  %v6881 = vld [vmem:[%s6880] sm:$0xf]
  %v6882 = vunpack.c.l.bf16 %v6881
  %v6883 = vunpack.c.h.bf16 %v6881
  %s6884 = scalar_lea.vmem %s1, 124
  %s6886 = ssub.s32 0, 4
  %s6887 = scalar_lea.vmem %s6884, %s6886
  %v6888 = vpack.c.bf16 %v6882, %v6002
  %6889 = vst [vmem:[%s6887] sm:$0xff] %v6888
  %s6890 = scalar_lea.vmem %s0, 2940
  %v6891 = vld [vmem:[%s6890] sm:$0xf]
  %v6892 = vunpack.c.l.bf16 %v6891
  %v6893 = vunpack.c.h.bf16 %v6891
  %s6894 = scalar_lea.vmem %s1, 1148
  %s6896 = ssub.s32 0, 4
  %s6897 = scalar_lea.vmem %s6894, %s6896
  %v6898 = vpack.c.bf16 %v6892, %v6007
  %6899 = vst [vmem:[%s6897] sm:$0xff] %v6898
  %s6900 = scalar_lea.vmem %s0, 1916
  %v6901 = vld [vmem:[%s6900] sm:$0xf]
  %v6902 = vunpack.c.l.bf16 %v6901
  %v6903 = vunpack.c.h.bf16 %v6901
  %s6904 = scalar_lea.vmem %s1, 2172
  %s6906 = ssub.s32 0, 4
  %s6907 = scalar_lea.vmem %s6904, %s6906
  %v6908 = vpack.c.bf16 %v6902, %v6012
  %6909 = vst [vmem:[%s6907] sm:$0xff] %v6908
  %s6910 = scalar_lea.vmem %s0, 892
  %v6911 = vld [vmem:[%s6910] sm:$0xf]
  %v6912 = vunpack.c.l.bf16 %v6911
  %v6913 = vunpack.c.h.bf16 %v6911
  %s6914 = scalar_lea.vmem %s1, 3196
  %s6916 = ssub.s32 0, 4
  %s6917 = scalar_lea.vmem %s6914, %s6916
  %v6918 = vpack.c.bf16 %v6912, %v6017
  %6919 = vst [vmem:[%s6917] sm:$0xff] %v6918
  %s6920 = scalar_lea.vmem %s0, 3708
  %v6921 = vld [vmem:[%s6920] sm:$0xf]
  %v6922 = vunpack.c.l.bf16 %v6921
  %v6923 = vunpack.c.h.bf16 %v6921
  %s6924 = scalar_lea.vmem %s1, 380
  %s6926 = ssub.s32 0, 4
  %s6927 = scalar_lea.vmem %s6924, %s6926
  %v6928 = vpack.c.bf16 %v6922, %v6022
  %6929 = vst [vmem:[%s6927] sm:$0xff] %v6928
  %s6930 = scalar_lea.vmem %s0, 2684
  %v6931 = vld [vmem:[%s6930] sm:$0xf]
  %v6932 = vunpack.c.l.bf16 %v6931
  %v6933 = vunpack.c.h.bf16 %v6931
  %s6934 = scalar_lea.vmem %s1, 1404
  %s6936 = ssub.s32 0, 4
  %s6937 = scalar_lea.vmem %s6934, %s6936
  %v6938 = vpack.c.bf16 %v6932, %v6027
  %6939 = vst [vmem:[%s6937] sm:$0xff] %v6938
  %s6940 = scalar_lea.vmem %s0, 1660
  %v6941 = vld [vmem:[%s6940] sm:$0xf]
  %v6942 = vunpack.c.l.bf16 %v6941
  %v6943 = vunpack.c.h.bf16 %v6941
  %s6944 = scalar_lea.vmem %s1, 2428
  %s6946 = ssub.s32 0, 4
  %s6947 = scalar_lea.vmem %s6944, %s6946
  %v6948 = vpack.c.bf16 %v6942, %v6032
  %6949 = vst [vmem:[%s6947] sm:$0xff] %v6948
  %s6950 = scalar_lea.vmem %s0, 636
  %v6951 = vld [vmem:[%s6950] sm:$0xf]
  %v6952 = vunpack.c.l.bf16 %v6951
  %v6953 = vunpack.c.h.bf16 %v6951
  %s6954 = scalar_lea.vmem %s1, 3452
  %s6956 = ssub.s32 0, 4
  %s6957 = scalar_lea.vmem %s6954, %s6956
  %v6958 = vpack.c.bf16 %v6952, %v6037
  %6959 = vst [vmem:[%s6957] sm:$0xff] %v6958
  %s6960 = scalar_lea.vmem %s0, 3452
  %v6961 = vld [vmem:[%s6960] sm:$0xf]
  %v6962 = vunpack.c.l.bf16 %v6961
  %v6963 = vunpack.c.h.bf16 %v6961
  %s6964 = scalar_lea.vmem %s1, 636
  %s6966 = ssub.s32 0, 4
  %s6967 = scalar_lea.vmem %s6964, %s6966
  %v6968 = vpack.c.bf16 %v6962, %v6042
  %6969 = vst [vmem:[%s6967] sm:$0xff] %v6968
  %s6970 = scalar_lea.vmem %s0, 2428
  %v6971 = vld [vmem:[%s6970] sm:$0xf]
  %v6972 = vunpack.c.l.bf16 %v6971
  %v6973 = vunpack.c.h.bf16 %v6971
  %s6974 = scalar_lea.vmem %s1, 1660
  %s6976 = ssub.s32 0, 4
  %s6977 = scalar_lea.vmem %s6974, %s6976
  %v6978 = vpack.c.bf16 %v6972, %v6047
  %6979 = vst [vmem:[%s6977] sm:$0xff] %v6978
  %s6980 = scalar_lea.vmem %s0, 1404
  %v6981 = vld [vmem:[%s6980] sm:$0xf]
  %v6982 = vunpack.c.l.bf16 %v6981
  %v6983 = vunpack.c.h.bf16 %v6981
  %s6984 = scalar_lea.vmem %s1, 2684
  %s6986 = ssub.s32 0, 4
  %s6987 = scalar_lea.vmem %s6984, %s6986
  %v6988 = vpack.c.bf16 %v6982, %v6052
  %6989 = vst [vmem:[%s6987] sm:$0xff] %v6988
  %s6990 = scalar_lea.vmem %s0, 380
  %v6991 = vld [vmem:[%s6990] sm:$0xf]
  %v6992 = vunpack.c.l.bf16 %v6991
  %v6993 = vunpack.c.h.bf16 %v6991
  %s6994 = scalar_lea.vmem %s1, 3708
  %s6996 = ssub.s32 0, 4
  %s6997 = scalar_lea.vmem %s6994, %s6996
  %v6998 = vpack.c.bf16 %v6992, %v6057
  %6999 = vst [vmem:[%s6997] sm:$0xff] %v6998
  %s7000 = scalar_lea.vmem %s0, 3196
  %v7001 = vld [vmem:[%s7000] sm:$0xf]
  %v7002 = vunpack.c.l.bf16 %v7001
  %v7003 = vunpack.c.h.bf16 %v7001
  %s7004 = scalar_lea.vmem %s1, 892
  %s7006 = ssub.s32 0, 4
  %s7007 = scalar_lea.vmem %s7004, %s7006
  %v7008 = vpack.c.bf16 %v7002, %v6062
  %7009 = vst [vmem:[%s7007] sm:$0xff] %v7008
  %s7010 = scalar_lea.vmem %s0, 2172
  %v7011 = vld [vmem:[%s7010] sm:$0xf]
  %v7012 = vunpack.c.l.bf16 %v7011
  %v7013 = vunpack.c.h.bf16 %v7011
  %s7014 = scalar_lea.vmem %s1, 1916
  %s7016 = ssub.s32 0, 4
  %s7017 = scalar_lea.vmem %s7014, %s7016
  %v7018 = vpack.c.bf16 %v7012, %v6067
  %7019 = vst [vmem:[%s7017] sm:$0xff] %v7018
  %s7020 = scalar_lea.vmem %s0, 1148
  %v7021 = vld [vmem:[%s7020] sm:$0xf]
  %v7022 = vunpack.c.l.bf16 %v7021
  %v7023 = vunpack.c.h.bf16 %v7021
  %s7024 = scalar_lea.vmem %s1, 2940
  %s7026 = ssub.s32 0, 4
  %s7027 = scalar_lea.vmem %s7024, %s7026
  %v7028 = vpack.c.bf16 %v7022, %v6072
  %7029 = vst [vmem:[%s7027] sm:$0xff] %v7028
  %s7030 = scalar_lea.vmem %s0, 124
  %v7031 = vld [vmem:[%s7030] sm:$0xf]
  %v7032 = vunpack.c.l.bf16 %v7031
  %v7033 = vunpack.c.h.bf16 %v7031
  %s7034 = scalar_lea.vmem %s1, 3964
  %s7036 = ssub.s32 0, 4
  %s7037 = scalar_lea.vmem %s7034, %s7036
  %v7038 = vpack.c.bf16 %v7032, %v6077
  %7039 = vst [vmem:[%s7037] sm:$0xff] %v7038
  %s7040 = scalar_lea.vmem %s0, 3996
  %v7041 = vld [vmem:[%s7040] sm:$0xf]
  %v7042 = vunpack.c.l.bf16 %v7041
  %v7043 = vunpack.c.h.bf16 %v7041
  %s7044 = scalar_lea.vmem %s1, 156
  %s7046 = ssub.s32 0, 4
  %s7047 = scalar_lea.vmem %s7044, %s7046
  %v7048 = vpack.c.bf16 %v7042, %v6082
  %7049 = vst [vmem:[%s7047] sm:$0xff] %v7048
  %s7050 = scalar_lea.vmem %s0, 2972
  %v7051 = vld [vmem:[%s7050] sm:$0xf]
  %v7052 = vunpack.c.l.bf16 %v7051
  %v7053 = vunpack.c.h.bf16 %v7051
  %s7054 = scalar_lea.vmem %s1, 1180
  %s7056 = ssub.s32 0, 4
  %s7057 = scalar_lea.vmem %s7054, %s7056
  %v7058 = vpack.c.bf16 %v7052, %v6087
  %7059 = vst [vmem:[%s7057] sm:$0xff] %v7058
  %s7060 = scalar_lea.vmem %s0, 1948
  %v7061 = vld [vmem:[%s7060] sm:$0xf]
  %v7062 = vunpack.c.l.bf16 %v7061
  %v7063 = vunpack.c.h.bf16 %v7061
  %s7064 = scalar_lea.vmem %s1, 2204
  %s7066 = ssub.s32 0, 4
  %s7067 = scalar_lea.vmem %s7064, %s7066
  %v7068 = vpack.c.bf16 %v7062, %v6092
  %7069 = vst [vmem:[%s7067] sm:$0xff] %v7068
  %s7070 = scalar_lea.vmem %s0, 924
  %v7071 = vld [vmem:[%s7070] sm:$0xf]
  %v7072 = vunpack.c.l.bf16 %v7071
  %v7073 = vunpack.c.h.bf16 %v7071
  %s7074 = scalar_lea.vmem %s1, 3228
  %s7076 = ssub.s32 0, 4
  %s7077 = scalar_lea.vmem %s7074, %s7076
  %v7078 = vpack.c.bf16 %v7072, %v6097
  %7079 = vst [vmem:[%s7077] sm:$0xff] %v7078
  %s7080 = scalar_lea.vmem %s0, 3740
  %v7081 = vld [vmem:[%s7080] sm:$0xf]
  %v7082 = vunpack.c.l.bf16 %v7081
  %v7083 = vunpack.c.h.bf16 %v7081
  %s7084 = scalar_lea.vmem %s1, 412
  %s7086 = ssub.s32 0, 4
  %s7087 = scalar_lea.vmem %s7084, %s7086
  %v7088 = vpack.c.bf16 %v7082, %v6102
  %7089 = vst [vmem:[%s7087] sm:$0xff] %v7088
  %s7090 = scalar_lea.vmem %s0, 2716
  %v7091 = vld [vmem:[%s7090] sm:$0xf]
  %v7092 = vunpack.c.l.bf16 %v7091
  %v7093 = vunpack.c.h.bf16 %v7091
  %s7094 = scalar_lea.vmem %s1, 1436
  %s7096 = ssub.s32 0, 4
  %s7097 = scalar_lea.vmem %s7094, %s7096
  %v7098 = vpack.c.bf16 %v7092, %v6107
  %7099 = vst [vmem:[%s7097] sm:$0xff] %v7098
  %s7100 = scalar_lea.vmem %s0, 1692
  %v7101 = vld [vmem:[%s7100] sm:$0xf]
  %v7102 = vunpack.c.l.bf16 %v7101
  %v7103 = vunpack.c.h.bf16 %v7101
  %s7104 = scalar_lea.vmem %s1, 2460
  %s7106 = ssub.s32 0, 4
  %s7107 = scalar_lea.vmem %s7104, %s7106
  %v7108 = vpack.c.bf16 %v7102, %v6112
  %7109 = vst [vmem:[%s7107] sm:$0xff] %v7108
  %s7110 = scalar_lea.vmem %s0, 668
  %v7111 = vld [vmem:[%s7110] sm:$0xf]
  %v7112 = vunpack.c.l.bf16 %v7111
  %v7113 = vunpack.c.h.bf16 %v7111
  %s7114 = scalar_lea.vmem %s1, 3484
  %s7116 = ssub.s32 0, 4
  %s7117 = scalar_lea.vmem %s7114, %s7116
  %v7118 = vpack.c.bf16 %v7112, %v6117
  %7119 = vst [vmem:[%s7117] sm:$0xff] %v7118
  %s7120 = scalar_lea.vmem %s0, 3484
  %v7121 = vld [vmem:[%s7120] sm:$0xf]
  %v7122 = vunpack.c.l.bf16 %v7121
  %v7123 = vunpack.c.h.bf16 %v7121
  %s7124 = scalar_lea.vmem %s1, 668
  %s7126 = ssub.s32 0, 4
  %s7127 = scalar_lea.vmem %s7124, %s7126
  %v7128 = vpack.c.bf16 %v7122, %v6122
  %7129 = vst [vmem:[%s7127] sm:$0xff] %v7128
  %s7130 = scalar_lea.vmem %s0, 2460
  %v7131 = vld [vmem:[%s7130] sm:$0xf]
  %v7132 = vunpack.c.l.bf16 %v7131
  %v7133 = vunpack.c.h.bf16 %v7131
  %s7134 = scalar_lea.vmem %s1, 1692
  %s7136 = ssub.s32 0, 4
  %s7137 = scalar_lea.vmem %s7134, %s7136
  %v7138 = vpack.c.bf16 %v7132, %v6127
  %7139 = vst [vmem:[%s7137] sm:$0xff] %v7138
  %s7140 = scalar_lea.vmem %s0, 1436
  %v7141 = vld [vmem:[%s7140] sm:$0xf]
  %v7142 = vunpack.c.l.bf16 %v7141
  %v7143 = vunpack.c.h.bf16 %v7141
  %s7144 = scalar_lea.vmem %s1, 2716
  %s7146 = ssub.s32 0, 4
  %s7147 = scalar_lea.vmem %s7144, %s7146
  %v7148 = vpack.c.bf16 %v7142, %v6132
  %7149 = vst [vmem:[%s7147] sm:$0xff] %v7148
  %s7150 = scalar_lea.vmem %s0, 412
  %v7151 = vld [vmem:[%s7150] sm:$0xf]
  %v7152 = vunpack.c.l.bf16 %v7151
  %v7153 = vunpack.c.h.bf16 %v7151
  %s7154 = scalar_lea.vmem %s1, 3740
  %s7156 = ssub.s32 0, 4
  %s7157 = scalar_lea.vmem %s7154, %s7156
  %v7158 = vpack.c.bf16 %v7152, %v6137
  %7159 = vst [vmem:[%s7157] sm:$0xff] %v7158
  %s7160 = scalar_lea.vmem %s0, 3228
  %v7161 = vld [vmem:[%s7160] sm:$0xf]
  %v7162 = vunpack.c.l.bf16 %v7161
  %v7163 = vunpack.c.h.bf16 %v7161
  %s7164 = scalar_lea.vmem %s1, 924
  %s7166 = ssub.s32 0, 4
  %s7167 = scalar_lea.vmem %s7164, %s7166
  %v7168 = vpack.c.bf16 %v7162, %v6142
  %7169 = vst [vmem:[%s7167] sm:$0xff] %v7168
  %s7170 = scalar_lea.vmem %s0, 2204
  %v7171 = vld [vmem:[%s7170] sm:$0xf]
  %v7172 = vunpack.c.l.bf16 %v7171
  %v7173 = vunpack.c.h.bf16 %v7171
  %s7174 = scalar_lea.vmem %s1, 1948
  %s7176 = ssub.s32 0, 4
  %s7177 = scalar_lea.vmem %s7174, %s7176
  %v7178 = vpack.c.bf16 %v7172, %v6147
  %7179 = vst [vmem:[%s7177] sm:$0xff] %v7178
  %s7180 = scalar_lea.vmem %s0, 1180
  %v7181 = vld [vmem:[%s7180] sm:$0xf]
  %v7182 = vunpack.c.l.bf16 %v7181
  %v7183 = vunpack.c.h.bf16 %v7181
  %s7184 = scalar_lea.vmem %s1, 2972
  %s7186 = ssub.s32 0, 4
  %s7187 = scalar_lea.vmem %s7184, %s7186
  %v7188 = vpack.c.bf16 %v7182, %v6152
  %7189 = vst [vmem:[%s7187] sm:$0xff] %v7188
  %s7190 = scalar_lea.vmem %s0, 156
  %v7191 = vld [vmem:[%s7190] sm:$0xf]
  %v7192 = vunpack.c.l.bf16 %v7191
  %v7193 = vunpack.c.h.bf16 %v7191
  %s7194 = scalar_lea.vmem %s1, 3996
  %s7196 = ssub.s32 0, 4
  %s7197 = scalar_lea.vmem %s7194, %s7196
  %v7198 = vpack.c.bf16 %v7192, %v6157
  %7199 = vst [vmem:[%s7197] sm:$0xff] %v7198
  %s7200 = scalar_lea.vmem %s0, 4028
  %v7201 = vld [vmem:[%s7200] sm:$0xf]
  %v7202 = vunpack.c.l.bf16 %v7201
  %v7203 = vunpack.c.h.bf16 %v7201
  %s7204 = scalar_lea.vmem %s1, 188
  %s7206 = ssub.s32 0, 4
  %s7207 = scalar_lea.vmem %s7204, %s7206
  %v7208 = vpack.c.bf16 %v7202, %v6162
  %7209 = vst [vmem:[%s7207] sm:$0xff] %v7208
  %s7210 = scalar_lea.vmem %s0, 3004
  %v7211 = vld [vmem:[%s7210] sm:$0xf]
  %v7212 = vunpack.c.l.bf16 %v7211
  %v7213 = vunpack.c.h.bf16 %v7211
  %s7214 = scalar_lea.vmem %s1, 1212
  %s7216 = ssub.s32 0, 4
  %s7217 = scalar_lea.vmem %s7214, %s7216
  %v7218 = vpack.c.bf16 %v7212, %v6167
  %7219 = vst [vmem:[%s7217] sm:$0xff] %v7218
  %s7220 = scalar_lea.vmem %s0, 1980
  %v7221 = vld [vmem:[%s7220] sm:$0xf]
  %v7222 = vunpack.c.l.bf16 %v7221
  %v7223 = vunpack.c.h.bf16 %v7221
  %s7224 = scalar_lea.vmem %s1, 2236
  %s7226 = ssub.s32 0, 4
  %s7227 = scalar_lea.vmem %s7224, %s7226
  %v7228 = vpack.c.bf16 %v7222, %v6172
  %7229 = vst [vmem:[%s7227] sm:$0xff] %v7228
  %s7230 = scalar_lea.vmem %s0, 956
  %v7231 = vld [vmem:[%s7230] sm:$0xf]
  %v7232 = vunpack.c.l.bf16 %v7231
  %v7233 = vunpack.c.h.bf16 %v7231
  %s7234 = scalar_lea.vmem %s1, 3260
  %s7236 = ssub.s32 0, 4
  %s7237 = scalar_lea.vmem %s7234, %s7236
  %v7238 = vpack.c.bf16 %v7232, %v6177
  %7239 = vst [vmem:[%s7237] sm:$0xff] %v7238
  %s7240 = scalar_lea.vmem %s0, 3772
  %v7241 = vld [vmem:[%s7240] sm:$0xf]
  %v7242 = vunpack.c.l.bf16 %v7241
  %v7243 = vunpack.c.h.bf16 %v7241
  %s7244 = scalar_lea.vmem %s1, 444
  %s7246 = ssub.s32 0, 4
  %s7247 = scalar_lea.vmem %s7244, %s7246
  %v7248 = vpack.c.bf16 %v7242, %v6182
  %7249 = vst [vmem:[%s7247] sm:$0xff] %v7248
  %s7250 = scalar_lea.vmem %s0, 2748
  %v7251 = vld [vmem:[%s7250] sm:$0xf]
  %v7252 = vunpack.c.l.bf16 %v7251
  %v7253 = vunpack.c.h.bf16 %v7251
  %s7254 = scalar_lea.vmem %s1, 1468
  %s7256 = ssub.s32 0, 4
  %s7257 = scalar_lea.vmem %s7254, %s7256
  %v7258 = vpack.c.bf16 %v7252, %v6187
  %7259 = vst [vmem:[%s7257] sm:$0xff] %v7258
  %s7260 = scalar_lea.vmem %s0, 1724
  %v7261 = vld [vmem:[%s7260] sm:$0xf]
  %v7262 = vunpack.c.l.bf16 %v7261
  %v7263 = vunpack.c.h.bf16 %v7261
  %s7264 = scalar_lea.vmem %s1, 2492
  %s7266 = ssub.s32 0, 4
  %s7267 = scalar_lea.vmem %s7264, %s7266
  %v7268 = vpack.c.bf16 %v7262, %v6192
  %7269 = vst [vmem:[%s7267] sm:$0xff] %v7268
  %s7270 = scalar_lea.vmem %s0, 700
  %v7271 = vld [vmem:[%s7270] sm:$0xf]
  %v7272 = vunpack.c.l.bf16 %v7271
  %v7273 = vunpack.c.h.bf16 %v7271
  %s7274 = scalar_lea.vmem %s1, 3516
  %s7276 = ssub.s32 0, 4
  %s7277 = scalar_lea.vmem %s7274, %s7276
  %v7278 = vpack.c.bf16 %v7272, %v6197
  %7279 = vst [vmem:[%s7277] sm:$0xff] %v7278
  %s7280 = scalar_lea.vmem %s0, 3516
  %v7281 = vld [vmem:[%s7280] sm:$0xf]
  %v7282 = vunpack.c.l.bf16 %v7281
  %v7283 = vunpack.c.h.bf16 %v7281
  %s7284 = scalar_lea.vmem %s1, 700
  %s7286 = ssub.s32 0, 4
  %s7287 = scalar_lea.vmem %s7284, %s7286
  %v7288 = vpack.c.bf16 %v7282, %v6202
  %7289 = vst [vmem:[%s7287] sm:$0xff] %v7288
  %s7290 = scalar_lea.vmem %s0, 2492
  %v7291 = vld [vmem:[%s7290] sm:$0xf]
  %v7292 = vunpack.c.l.bf16 %v7291
  %v7293 = vunpack.c.h.bf16 %v7291
  %s7294 = scalar_lea.vmem %s1, 1724
  %s7296 = ssub.s32 0, 4
  %s7297 = scalar_lea.vmem %s7294, %s7296
  %v7298 = vpack.c.bf16 %v7292, %v6207
  %7299 = vst [vmem:[%s7297] sm:$0xff] %v7298
  %s7300 = scalar_lea.vmem %s0, 1468
  %v7301 = vld [vmem:[%s7300] sm:$0xf]
  %v7302 = vunpack.c.l.bf16 %v7301
  %v7303 = vunpack.c.h.bf16 %v7301
  %s7304 = scalar_lea.vmem %s1, 2748
  %s7306 = ssub.s32 0, 4
  %s7307 = scalar_lea.vmem %s7304, %s7306
  %v7308 = vpack.c.bf16 %v7302, %v6212
  %7309 = vst [vmem:[%s7307] sm:$0xff] %v7308
  %s7310 = scalar_lea.vmem %s0, 444
  %v7311 = vld [vmem:[%s7310] sm:$0xf]
  %v7312 = vunpack.c.l.bf16 %v7311
  %v7313 = vunpack.c.h.bf16 %v7311
  %s7314 = scalar_lea.vmem %s1, 3772
  %s7316 = ssub.s32 0, 4
  %s7317 = scalar_lea.vmem %s7314, %s7316
  %v7318 = vpack.c.bf16 %v7312, %v6217
  %7319 = vst [vmem:[%s7317] sm:$0xff] %v7318
  %s7320 = scalar_lea.vmem %s0, 3260
  %v7321 = vld [vmem:[%s7320] sm:$0xf]
  %v7322 = vunpack.c.l.bf16 %v7321
  %v7323 = vunpack.c.h.bf16 %v7321
  %s7324 = scalar_lea.vmem %s1, 956
  %s7326 = ssub.s32 0, 4
  %s7327 = scalar_lea.vmem %s7324, %s7326
  %v7328 = vpack.c.bf16 %v7322, %v6222
  %7329 = vst [vmem:[%s7327] sm:$0xff] %v7328
  %s7330 = scalar_lea.vmem %s0, 2236
  %v7331 = vld [vmem:[%s7330] sm:$0xf]
  %v7332 = vunpack.c.l.bf16 %v7331
  %v7333 = vunpack.c.h.bf16 %v7331
  %s7334 = scalar_lea.vmem %s1, 1980
  %s7336 = ssub.s32 0, 4
  %s7337 = scalar_lea.vmem %s7334, %s7336
  %v7338 = vpack.c.bf16 %v7332, %v6227
  %7339 = vst [vmem:[%s7337] sm:$0xff] %v7338
  %s7340 = scalar_lea.vmem %s0, 1212
  %v7341 = vld [vmem:[%s7340] sm:$0xf]
  %v7342 = vunpack.c.l.bf16 %v7341
  %v7343 = vunpack.c.h.bf16 %v7341
  %s7344 = scalar_lea.vmem %s1, 3004
  %s7346 = ssub.s32 0, 4
  %s7347 = scalar_lea.vmem %s7344, %s7346
  %v7348 = vpack.c.bf16 %v7342, %v6232
  %7349 = vst [vmem:[%s7347] sm:$0xff] %v7348
  %s7350 = scalar_lea.vmem %s0, 188
  %v7351 = vld [vmem:[%s7350] sm:$0xf]
  %v7352 = vunpack.c.l.bf16 %v7351
  %v7353 = vunpack.c.h.bf16 %v7351
  %s7354 = scalar_lea.vmem %s1, 4028
  %s7356 = ssub.s32 0, 4
  %s7357 = scalar_lea.vmem %s7354, %s7356
  %v7358 = vpack.c.bf16 %v7352, %v6237
  %7359 = vst [vmem:[%s7357] sm:$0xff] %v7358
  %s7360 = scalar_lea.vmem %s0, 4060
  %v7361 = vld [vmem:[%s7360] sm:$0xf]
  %v7362 = vunpack.c.l.bf16 %v7361
  %v7363 = vunpack.c.h.bf16 %v7361
  %s7364 = scalar_lea.vmem %s1, 220
  %s7366 = ssub.s32 0, 4
  %s7367 = scalar_lea.vmem %s7364, %s7366
  %v7368 = vpack.c.bf16 %v7362, %v6242
  %7369 = vst [vmem:[%s7367] sm:$0xff] %v7368
  %s7370 = scalar_lea.vmem %s0, 3036
  %v7371 = vld [vmem:[%s7370] sm:$0xf]
  %v7372 = vunpack.c.l.bf16 %v7371
  %v7373 = vunpack.c.h.bf16 %v7371
  %s7374 = scalar_lea.vmem %s1, 1244
  %s7376 = ssub.s32 0, 4
  %s7377 = scalar_lea.vmem %s7374, %s7376
  %v7378 = vpack.c.bf16 %v7372, %v6247
  %7379 = vst [vmem:[%s7377] sm:$0xff] %v7378
  %s7380 = scalar_lea.vmem %s0, 2012
  %v7381 = vld [vmem:[%s7380] sm:$0xf]
  %v7382 = vunpack.c.l.bf16 %v7381
  %v7383 = vunpack.c.h.bf16 %v7381
  %s7384 = scalar_lea.vmem %s1, 2268
  %s7386 = ssub.s32 0, 4
  %s7387 = scalar_lea.vmem %s7384, %s7386
  %v7388 = vpack.c.bf16 %v7382, %v6252
  %7389 = vst [vmem:[%s7387] sm:$0xff] %v7388
  %s7390 = scalar_lea.vmem %s0, 988
  %v7391 = vld [vmem:[%s7390] sm:$0xf]
  %v7392 = vunpack.c.l.bf16 %v7391
  %v7393 = vunpack.c.h.bf16 %v7391
  %s7394 = scalar_lea.vmem %s1, 3292
  %s7396 = ssub.s32 0, 4
  %s7397 = scalar_lea.vmem %s7394, %s7396
  %v7398 = vpack.c.bf16 %v7392, %v6257
  %7399 = vst [vmem:[%s7397] sm:$0xff] %v7398
  %s7400 = scalar_lea.vmem %s0, 3804
  %v7401 = vld [vmem:[%s7400] sm:$0xf]
  %v7402 = vunpack.c.l.bf16 %v7401
  %v7403 = vunpack.c.h.bf16 %v7401
  %s7404 = scalar_lea.vmem %s1, 476
  %s7406 = ssub.s32 0, 4
  %s7407 = scalar_lea.vmem %s7404, %s7406
  %v7408 = vpack.c.bf16 %v7402, %v6262
  %7409 = vst [vmem:[%s7407] sm:$0xff] %v7408
  %s7410 = scalar_lea.vmem %s0, 2780
  %v7411 = vld [vmem:[%s7410] sm:$0xf]
  %v7412 = vunpack.c.l.bf16 %v7411
  %v7413 = vunpack.c.h.bf16 %v7411
  %s7414 = scalar_lea.vmem %s1, 1500
  %s7416 = ssub.s32 0, 4
  %s7417 = scalar_lea.vmem %s7414, %s7416
  %v7418 = vpack.c.bf16 %v7412, %v6267
  %7419 = vst [vmem:[%s7417] sm:$0xff] %v7418
  %s7420 = scalar_lea.vmem %s0, 1756
  %v7421 = vld [vmem:[%s7420] sm:$0xf]
  %v7422 = vunpack.c.l.bf16 %v7421
  %v7423 = vunpack.c.h.bf16 %v7421
  %s7424 = scalar_lea.vmem %s1, 2524
  %s7426 = ssub.s32 0, 4
  %s7427 = scalar_lea.vmem %s7424, %s7426
  %v7428 = vpack.c.bf16 %v7422, %v6272
  %7429 = vst [vmem:[%s7427] sm:$0xff] %v7428
  %s7430 = scalar_lea.vmem %s0, 732
  %v7431 = vld [vmem:[%s7430] sm:$0xf]
  %v7432 = vunpack.c.l.bf16 %v7431
  %v7433 = vunpack.c.h.bf16 %v7431
  %s7434 = scalar_lea.vmem %s1, 3548
  %s7436 = ssub.s32 0, 4
  %s7437 = scalar_lea.vmem %s7434, %s7436
  %v7438 = vpack.c.bf16 %v7432, %v6277
  %7439 = vst [vmem:[%s7437] sm:$0xff] %v7438
  %s7440 = scalar_lea.vmem %s0, 3548
  %v7441 = vld [vmem:[%s7440] sm:$0xf]
  %v7442 = vunpack.c.l.bf16 %v7441
  %v7443 = vunpack.c.h.bf16 %v7441
  %s7444 = scalar_lea.vmem %s1, 732
  %s7446 = ssub.s32 0, 4
  %s7447 = scalar_lea.vmem %s7444, %s7446
  %v7448 = vpack.c.bf16 %v7442, %v6282
  %7449 = vst [vmem:[%s7447] sm:$0xff] %v7448
  %s7450 = scalar_lea.vmem %s0, 2524
  %v7451 = vld [vmem:[%s7450] sm:$0xf]
  %v7452 = vunpack.c.l.bf16 %v7451
  %v7453 = vunpack.c.h.bf16 %v7451
  %s7454 = scalar_lea.vmem %s1, 1756
  %s7456 = ssub.s32 0, 4
  %s7457 = scalar_lea.vmem %s7454, %s7456
  %v7458 = vpack.c.bf16 %v7452, %v6287
  %7459 = vst [vmem:[%s7457] sm:$0xff] %v7458
  %s7460 = scalar_lea.vmem %s0, 1500
  %v7461 = vld [vmem:[%s7460] sm:$0xf]
  %v7462 = vunpack.c.l.bf16 %v7461
  %v7463 = vunpack.c.h.bf16 %v7461
  %s7464 = scalar_lea.vmem %s1, 2780
  %s7466 = ssub.s32 0, 4
  %s7467 = scalar_lea.vmem %s7464, %s7466
  %v7468 = vpack.c.bf16 %v7462, %v6292
  %7469 = vst [vmem:[%s7467] sm:$0xff] %v7468
  %s7470 = scalar_lea.vmem %s0, 476
  %v7471 = vld [vmem:[%s7470] sm:$0xf]
  %v7472 = vunpack.c.l.bf16 %v7471
  %v7473 = vunpack.c.h.bf16 %v7471
  %s7474 = scalar_lea.vmem %s1, 3804
  %s7476 = ssub.s32 0, 4
  %s7477 = scalar_lea.vmem %s7474, %s7476
  %v7478 = vpack.c.bf16 %v7472, %v6297
  %7479 = vst [vmem:[%s7477] sm:$0xff] %v7478
  %s7480 = scalar_lea.vmem %s0, 3292
  %v7481 = vld [vmem:[%s7480] sm:$0xf]
  %v7482 = vunpack.c.l.bf16 %v7481
  %v7483 = vunpack.c.h.bf16 %v7481
  %s7484 = scalar_lea.vmem %s1, 988
  %s7486 = ssub.s32 0, 4
  %s7487 = scalar_lea.vmem %s7484, %s7486
  %v7488 = vpack.c.bf16 %v7482, %v6302
  %7489 = vst [vmem:[%s7487] sm:$0xff] %v7488
  %s7490 = scalar_lea.vmem %s0, 2268
  %v7491 = vld [vmem:[%s7490] sm:$0xf]
  %v7492 = vunpack.c.l.bf16 %v7491
  %v7493 = vunpack.c.h.bf16 %v7491
  %s7494 = scalar_lea.vmem %s1, 2012
  %s7496 = ssub.s32 0, 4
  %s7497 = scalar_lea.vmem %s7494, %s7496
  %v7498 = vpack.c.bf16 %v7492, %v6307
  %7499 = vst [vmem:[%s7497] sm:$0xff] %v7498
  %s7500 = scalar_lea.vmem %s0, 1244
  %v7501 = vld [vmem:[%s7500] sm:$0xf]
  %v7502 = vunpack.c.l.bf16 %v7501
  %v7503 = vunpack.c.h.bf16 %v7501
  %s7504 = scalar_lea.vmem %s1, 3036
  %s7506 = ssub.s32 0, 4
  %s7507 = scalar_lea.vmem %s7504, %s7506
  %v7508 = vpack.c.bf16 %v7502, %v6312
  %7509 = vst [vmem:[%s7507] sm:$0xff] %v7508
  %s7510 = scalar_lea.vmem %s0, 220
  %v7511 = vld [vmem:[%s7510] sm:$0xf]
  %v7512 = vunpack.c.l.bf16 %v7511
  %v7513 = vunpack.c.h.bf16 %v7511
  %s7514 = scalar_lea.vmem %s1, 4060
  %s7516 = ssub.s32 0, 4
  %s7517 = scalar_lea.vmem %s7514, %s7516
  %v7518 = vpack.c.bf16 %v7512, %v6317
  %7519 = vst [vmem:[%s7517] sm:$0xff] %v7518
  %s7520 = scalar_lea.vmem %s0, 4092
  %v7521 = vld [vmem:[%s7520] sm:$0xf]
  %v7522 = vunpack.c.l.bf16 %v7521
  %v7523 = vunpack.c.h.bf16 %v7521
  %s7524 = scalar_lea.vmem %s1, 252
  %s7526 = ssub.s32 0, 4
  %s7527 = scalar_lea.vmem %s7524, %s7526
  %v7528 = vpack.c.bf16 %v7522, %v6322
  %7529 = vst [vmem:[%s7527] sm:$0xff] %v7528
  %s7530 = scalar_lea.vmem %s0, 3068
  %v7531 = vld [vmem:[%s7530] sm:$0xf]
  %v7532 = vunpack.c.l.bf16 %v7531
  %v7533 = vunpack.c.h.bf16 %v7531
  %s7534 = scalar_lea.vmem %s1, 1276
  %s7536 = ssub.s32 0, 4
  %s7537 = scalar_lea.vmem %s7534, %s7536
  %v7538 = vpack.c.bf16 %v7532, %v6327
  %7539 = vst [vmem:[%s7537] sm:$0xff] %v7538
  %s7540 = scalar_lea.vmem %s0, 2044
  %v7541 = vld [vmem:[%s7540] sm:$0xf]
  %v7542 = vunpack.c.l.bf16 %v7541
  %v7543 = vunpack.c.h.bf16 %v7541
  %s7544 = scalar_lea.vmem %s1, 2300
  %s7546 = ssub.s32 0, 4
  %s7547 = scalar_lea.vmem %s7544, %s7546
  %v7548 = vpack.c.bf16 %v7542, %v6332
  %7549 = vst [vmem:[%s7547] sm:$0xff] %v7548
  %s7550 = scalar_lea.vmem %s0, 1020
  %v7551 = vld [vmem:[%s7550] sm:$0xf]
  %v7552 = vunpack.c.l.bf16 %v7551
  %v7553 = vunpack.c.h.bf16 %v7551
  %s7554 = scalar_lea.vmem %s1, 3324
  %s7556 = ssub.s32 0, 4
  %s7557 = scalar_lea.vmem %s7554, %s7556
  %v7558 = vpack.c.bf16 %v7552, %v6337
  %7559 = vst [vmem:[%s7557] sm:$0xff] %v7558
  %s7560 = scalar_lea.vmem %s0, 3836
  %v7561 = vld [vmem:[%s7560] sm:$0xf]
  %v7562 = vunpack.c.l.bf16 %v7561
  %v7563 = vunpack.c.h.bf16 %v7561
  %s7564 = scalar_lea.vmem %s1, 508
  %s7566 = ssub.s32 0, 4
  %s7567 = scalar_lea.vmem %s7564, %s7566
  %v7568 = vpack.c.bf16 %v7562, %v6342
  %7569 = vst [vmem:[%s7567] sm:$0xff] %v7568
  %s7570 = scalar_lea.vmem %s0, 2812
  %v7571 = vld [vmem:[%s7570] sm:$0xf]
  %v7572 = vunpack.c.l.bf16 %v7571
  %v7573 = vunpack.c.h.bf16 %v7571
  %s7574 = scalar_lea.vmem %s1, 1532
  %s7576 = ssub.s32 0, 4
  %s7577 = scalar_lea.vmem %s7574, %s7576
  %v7578 = vpack.c.bf16 %v7572, %v6347
  %7579 = vst [vmem:[%s7577] sm:$0xff] %v7578
  %s7580 = scalar_lea.vmem %s0, 1788
  %v7581 = vld [vmem:[%s7580] sm:$0xf]
  %v7582 = vunpack.c.l.bf16 %v7581
  %v7583 = vunpack.c.h.bf16 %v7581
  %s7584 = scalar_lea.vmem %s1, 2556
  %s7586 = ssub.s32 0, 4
  %s7587 = scalar_lea.vmem %s7584, %s7586
  %v7588 = vpack.c.bf16 %v7582, %v6352
  %7589 = vst [vmem:[%s7587] sm:$0xff] %v7588
  %s7590 = scalar_lea.vmem %s0, 764
  %v7591 = vld [vmem:[%s7590] sm:$0xf]
  %v7592 = vunpack.c.l.bf16 %v7591
  %v7593 = vunpack.c.h.bf16 %v7591
  %s7594 = scalar_lea.vmem %s1, 3580
  %s7596 = ssub.s32 0, 4
  %s7597 = scalar_lea.vmem %s7594, %s7596
  %v7598 = vpack.c.bf16 %v7592, %v6357
  %7599 = vst [vmem:[%s7597] sm:$0xff] %v7598
  %s7600 = scalar_lea.vmem %s0, 3580
  %v7601 = vld [vmem:[%s7600] sm:$0xf]
  %v7602 = vunpack.c.l.bf16 %v7601
  %v7603 = vunpack.c.h.bf16 %v7601
  %s7604 = scalar_lea.vmem %s1, 764
  %s7606 = ssub.s32 0, 4
  %s7607 = scalar_lea.vmem %s7604, %s7606
  %v7608 = vpack.c.bf16 %v7602, %v6362
  %7609 = vst [vmem:[%s7607] sm:$0xff] %v7608
  %s7610 = scalar_lea.vmem %s0, 2556
  %v7611 = vld [vmem:[%s7610] sm:$0xf]
  %v7612 = vunpack.c.l.bf16 %v7611
  %v7613 = vunpack.c.h.bf16 %v7611
  %s7614 = scalar_lea.vmem %s1, 1788
  %s7616 = ssub.s32 0, 4
  %s7617 = scalar_lea.vmem %s7614, %s7616
  %v7618 = vpack.c.bf16 %v7612, %v6367
  %7619 = vst [vmem:[%s7617] sm:$0xff] %v7618
  %s7620 = scalar_lea.vmem %s0, 1532
  %v7621 = vld [vmem:[%s7620] sm:$0xf]
  %v7622 = vunpack.c.l.bf16 %v7621
  %v7623 = vunpack.c.h.bf16 %v7621
  %s7624 = scalar_lea.vmem %s1, 2812
  %s7626 = ssub.s32 0, 4
  %s7627 = scalar_lea.vmem %s7624, %s7626
  %v7628 = vpack.c.bf16 %v7622, %v6372
  %7629 = vst [vmem:[%s7627] sm:$0xff] %v7628
  %s7630 = scalar_lea.vmem %s0, 508
  %v7631 = vld [vmem:[%s7630] sm:$0xf]
  %v7632 = vunpack.c.l.bf16 %v7631
  %v7633 = vunpack.c.h.bf16 %v7631
  %s7634 = scalar_lea.vmem %s1, 3836
  %s7636 = ssub.s32 0, 4
  %s7637 = scalar_lea.vmem %s7634, %s7636
  %v7638 = vpack.c.bf16 %v7632, %v6377
  %7639 = vst [vmem:[%s7637] sm:$0xff] %v7638
  %s7640 = scalar_lea.vmem %s0, 3324
  %v7641 = vld [vmem:[%s7640] sm:$0xf]
  %v7642 = vunpack.c.l.bf16 %v7641
  %v7643 = vunpack.c.h.bf16 %v7641
  %s7644 = scalar_lea.vmem %s1, 1020
  %s7646 = ssub.s32 0, 4
  %s7647 = scalar_lea.vmem %s7644, %s7646
  %v7648 = vpack.c.bf16 %v7642, %v6382
  %7649 = vst [vmem:[%s7647] sm:$0xff] %v7648
  %s7650 = scalar_lea.vmem %s0, 2300
  %v7651 = vld [vmem:[%s7650] sm:$0xf]
  %v7652 = vunpack.c.l.bf16 %v7651
  %v7653 = vunpack.c.h.bf16 %v7651
  %s7654 = scalar_lea.vmem %s1, 2044
  %s7656 = ssub.s32 0, 4
  %s7657 = scalar_lea.vmem %s7654, %s7656
  %v7658 = vpack.c.bf16 %v7652, %v6387
  %7659 = vst [vmem:[%s7657] sm:$0xff] %v7658
  %s7660 = scalar_lea.vmem %s0, 1276
  %v7661 = vld [vmem:[%s7660] sm:$0xf]
  %v7662 = vunpack.c.l.bf16 %v7661
  %v7663 = vunpack.c.h.bf16 %v7661
  %s7664 = scalar_lea.vmem %s1, 3068
  %s7666 = ssub.s32 0, 4
  %s7667 = scalar_lea.vmem %s7664, %s7666
  %v7668 = vpack.c.bf16 %v7662, %v6392
  %7669 = vst [vmem:[%s7667] sm:$0xff] %v7668
  %s7670 = scalar_lea.vmem %s0, 252
  %v7671 = vld [vmem:[%s7670] sm:$0xf]
  %v7672 = vunpack.c.l.bf16 %v7671
  %v7673 = vunpack.c.h.bf16 %v7671
  %s7674 = scalar_lea.vmem %s1, 4092
  %s7676 = ssub.s32 0, 4
  %s7677 = scalar_lea.vmem %s7674, %s7676
  %v7678 = vpack.c.bf16 %v7672, %v6397
  %7679 = vst [vmem:[%s7677] sm:$0xff] %v7678

// kernel: discriminator_forward.8
$region0: #{discriminator_forward.8}
  #allocation0 [shape = 'u32[]', space=smem, size = 0x4, offset = 0x4, fixed_abs, tag = 'smem constant byte address 0x4 - core index']
  #allocation1 [shape = 'u32[144,128]{1,0:T(1,128)}', space=vmem, size = 0x12000, scoped, tag = 'internal scratch']
  %s0 = inlined_call_operand.vmem [shape: bf16[512,48], index: 0, kind: input, shape index: {}]
  %s1 = inlined_call_operand.vmem [shape: bf16[8,48], index: 1, kind: input, shape index: {}]
  %s2 = inlined_call_operand.vmem [shape: f32[8,1], index: 2, kind: input, shape index: {}]
  %s3 = inlined_call_operand.vmem [shape: bf16[8,512], index: 3, kind: output, shape index: {}]
  %s4 = sld [smem:[#allocation0]]
  $region45: #{discriminator_forward.8} parent=0
    _
  %s6 = ssub.s32 1, %s4
  %s7 = scalar_select 0, %s6, %s4
  loop: start=0, step=1, limit=4
  $region2: #{discriminator_forward.8} parent=0 // loop_pre_header
    _
  $region3: #{discriminator_forward.8} parent=0 // loop_header
    %s9 = sphi 0, %s13
    %p10 = scmp.ge.s32.totalorder %s9, 4
    %s19 = sphi 0, %s21
    %s22 = sphi 0, %s19
    %s23 = sphi 0, %s22
    %s39 = sphi 0, %s23
    %s43 = sphi 0, %s43
    %s45 = sphi 0, %s43
    %s46 = sphi 0, %s45
    %s60 = sphi 0, %s46
    %s64 = sphi 0, %s64
    %s66 = sphi 0, %s64
    %s67 = sphi 0, %s66
    %s81 = sphi 0, %s67
    %s87 = sphi 0, %s89
    %s90 = sphi 0, %s87
    %s91 = sphi 0, %s90
    %s107 = sphi 0, %s91
  $region4: #{discriminator_forward.8} parent=0 // loop_header_branch
    %12 = sbr.rel (%p10) target = $region8
  $region5: #{discriminator_forward.8} parent=0 // loop_body
    %s14 = ssub.s32 %s9, 1
    %s15 = ssub.s32 %s9, 2
    %s16 = sadd.s32 %s9, 1
    %s17 = ssub.s32 %s9, %s16
    %p18 = scmp.eq.s32.totalorder %s17, 0
    %s20 = sadd.s32 %s19, 1
    %s21 = scalar_select %p18, %s19, %s20
    %p24 = pneg %p18
    %p25 = scmp.eq.s32.totalorder %s9, 1
    %p26 = por %p24, %p25
    %p27 = scmp.ne.s32.totalorder %s19, %s22
    %p28 = scmp.eq.s32.totalorder %s9, 0
    %p29 = por %p27, %p28
    %p30 = scmp.ne.s32.totalorder %s19, %s22
    %p31 = scmp.eq.s32.totalorder %s14, 1
    %p32 = por %p30, %p31
    %p33 = scmp.ne.s32.totalorder %s22, %s23
    %p34 = scmp.eq.s32.totalorder %s14, 0
    %p35 = por %p33, %p34
    %p36 = scmp.ne.s32.totalorder %s22, %s23
    %p37 = scmp.eq.s32.totalorder %s15, 1
    %p38 = por %p36, %p37
    %p40 = scmp.ne.s32.totalorder %s23, %s39
    %p41 = scmp.eq.s32.totalorder %s15, 0
    %p42 = por %p40, %p41
    %s44 = sadd.s32 %s43, 1
    %p47 = scmp.eq.s32.totalorder %s9, 1
    %p48 = scmp.ne.s32.totalorder %s43, %s45
    %p49 = scmp.eq.s32.totalorder %s9, 0
    %p50 = por %p48, %p49
    %p51 = scmp.ne.s32.totalorder %s43, %s45
    %p52 = scmp.eq.s32.totalorder %s14, 1
    %p53 = por %p51, %p52
    %p54 = scmp.ne.s32.totalorder %s45, %s46
    %p55 = scmp.eq.s32.totalorder %s14, 0
    %p56 = por %p54, %p55
    %p57 = scmp.ne.s32.totalorder %s45, %s46
    %p58 = scmp.eq.s32.totalorder %s15, 1
    %p59 = por %p57, %p58
    %p61 = scmp.ne.s32.totalorder %s46, %s60
    %p62 = scmp.eq.s32.totalorder %s15, 0
    %p63 = por %p61, %p62
    %s65 = sadd.s32 %s64, 1
    %p68 = scmp.eq.s32.totalorder %s9, 1
    %p69 = scmp.ne.s32.totalorder %s64, %s66
    %p70 = scmp.eq.s32.totalorder %s9, 0
    %p71 = por %p69, %p70
    %p72 = scmp.ne.s32.totalorder %s64, %s66
    %p73 = scmp.eq.s32.totalorder %s14, 1
    %p74 = por %p72, %p73
    %p75 = scmp.ne.s32.totalorder %s66, %s67
    %p76 = scmp.eq.s32.totalorder %s14, 0
    %p77 = por %p75, %p76
    %p78 = scmp.ne.s32.totalorder %s66, %s67
    %p79 = scmp.eq.s32.totalorder %s15, 1
    %p80 = por %p78, %p79
    %p82 = scmp.ne.s32.totalorder %s67, %s81
    %p83 = scmp.eq.s32.totalorder %s15, 0
    %p84 = por %p82, %p83
    %s85 = ssub.s32 %s9, %s16
    %p86 = scmp.eq.s32.totalorder %s85, 0
    %s88 = sadd.s32 %s87, 1
    %s89 = scalar_select %p86, %s87, %s88
    %p92 = pneg %p86
    %p93 = scmp.eq.s32.totalorder %s9, 1
    %p94 = por %p92, %p93
    %p95 = scmp.ne.s32.totalorder %s87, %s90
    %p96 = scmp.eq.s32.totalorder %s9, 0
    %p97 = por %p95, %p96
    %p98 = scmp.ne.s32.totalorder %s87, %s90
    %p99 = scmp.eq.s32.totalorder %s14, 1
    %p100 = por %p98, %p99
    %p101 = scmp.ne.s32.totalorder %s90, %s91
    %p102 = scmp.eq.s32.totalorder %s14, 0
    %p103 = por %p101, %p102
    %p104 = scmp.ne.s32.totalorder %s90, %s91
    %p105 = scmp.eq.s32.totalorder %s15, 1
    %p106 = por %p104, %p105
    %p108 = scmp.ne.s32.totalorder %s91, %s107
    %p109 = scmp.eq.s32.totalorder %s15, 0
    %p110 = por %p108, %p109
    %p111 = scmp.le.s32.totalorder 1, %s9
    %p112 = scmp.lt.s32.totalorder %s9, 3
    %p113 = pnand %p111, %p112
    %p114 = pneg %p113
    // Predicated region
    $region9: #{discriminator_forward.8} parent=5 // pred_check
      _
    $region10: #{discriminator_forward.8} parent=5 // pred_check_branch
      %116 = sbr.rel (%p113) target = $region12
    $region11: #{discriminator_forward.8} parent=5 // pred_region
      %s117 = ssub.s32 %s9, 1
      // Predicated region
      $region13: #{discriminator_forward.8} parent=11 // pred_check
        %p118 = pneg %p56
      $region14: #{discriminator_forward.8} parent=11 // pred_check_branch
        %120 = sbr.rel (%p118) target = $region16
      $region15: #{discriminator_forward.8} parent=11 // pred_region
        _
      $region16: #{discriminator_forward.8} parent=11 // pred_fallthru
        _
      // Predicated region
      $region17: #{discriminator_forward.8} parent=11 // pred_check
        %p121 = pneg %p77
      $region18: #{discriminator_forward.8} parent=11 // pred_check_branch
        %123 = sbr.rel (%p121) target = $region20
      $region19: #{discriminator_forward.8} parent=11 // pred_region
        _
      $region20: #{discriminator_forward.8} parent=11 // pred_fallthru
        _
    $region12: #{discriminator_forward.8} parent=5 // pred_fallthru
      _
    %p124 = scmp.lt.s32.totalorder %s9, 2
    // Predicated region
    $region21: #{discriminator_forward.8} parent=5 // pred_check
      %p125 = pneg %p124
    $region22: #{discriminator_forward.8} parent=5 // pred_check_branch
      %127 = sbr.rel (%p125) target = $region24
    $region23: #{discriminator_forward.8} parent=5 // pred_region
      // Predicated region
      $region25: #{discriminator_forward.8} parent=23 // pred_check
        %p128 = pneg %p29
      $region26: #{discriminator_forward.8} parent=23 // pred_check_branch
        %130 = sbr.rel (%p128) target = $region28
      $region27: #{discriminator_forward.8} parent=23 // pred_region
        %s131 = smul.u32 32, %s9
        %p132 = scmp.lt.s32.totalorder %s131, 63
        %s133 = scalar_select %p132, %s131, 63
        %s134 = smul.addr %s133, 4
        %s135 = scalar_lea.vmem %s0, %s134
        %s136 = smul.u32 32, %s9
      $region28: #{discriminator_forward.8} parent=23 // pred_fallthru
        _
    $region24: #{discriminator_forward.8} parent=5 // pred_fallthru
      _
    %p137 = scmp.le.s32.totalorder 1, %s9
    %p138 = scmp.lt.s32.totalorder %s9, 3
    %p139 = pnand %p137, %p138
    %p140 = pneg %p139
    // Predicated region
    $region29: #{discriminator_forward.8} parent=5 // pred_check
      _
    $region30: #{discriminator_forward.8} parent=5 // pred_check_branch
      %142 = sbr.rel (%p139) target = $region32
    $region31: #{discriminator_forward.8} parent=5 // pred_region
      %s143 = ssub.s32 %s9, 1
      %s144 = smul.u32 32, %s14
      %p145 = scmp.lt.s32.totalorder %s144, 63
      %s146 = scalar_select %p145, %s144, 63
      %s147 = smul.addr %s146, 4
      %s148 = scalar_lea.vmem %s0, %s147
      %p149 = pneg %p35
      %p150 = pneg %p32
      %p151 = pneg %p56
      %p152 = pneg %p53
      %p153 = pneg %p77
      %p154 = pneg %p74
      %p155 = pneg %p103
      %p156 = pneg %p100
      %s157 = smul.u32 2, %s14
      %p158 = scmp.lt.s32.totalorder %s157, 3
      %s159 = scalar_select %p158, %s157, 3
      %s160 = smul.addr %s159, 4
      %s161 = scalar_lea.vmem %s3, %s160
      %s162 = smul.u32 32, %s14
      %p163 = scmp.lt.s32.totalorder %s162, 63
      %s164 = scalar_select %p163, %s162, 63
      %s165 = smul.addr %s164, 4
      %s166 = scalar_lea.vmem %s0, %s165
      %s167 = smul.u32 32, %s14
      %s168 = smul.u32 2, %s14
      %p169 = scmp.lt.s32.totalorder %s168, 3
      %s170 = scalar_select %p169, %s168, 3
      %s171 = smul.addr %s170, 4
      %s172 = scalar_lea.vmem %s3, %s171
      %s173 = smul.u32 2, %s14
      %v175 = vld [vmem:[%s1] sm:$0xf]
      %v176 = vld [vmem:[%s166] sm:$0xf]
      %v177 = vld [vmem:[%s166 + $0x4] sm:$0xf]
      %v178 = vld [vmem:[%s166 + $0x8] sm:$0xf]
      %v179 = vld [vmem:[%s166 + $0xc] sm:$0xf]
      %v180 = vld [vmem:[%s166 + $0x10] sm:$0xf]
      %v181 = vld [vmem:[%s166 + $0x14] sm:$0xf]
      %v182 = vld [vmem:[%s166 + $0x18] sm:$0xf]
      %v183 = vld [vmem:[%s166 + $0x1c] sm:$0xf]
      %v184 = vld [vmem:[%s166 + $0x20] sm:$0xf]
      %v185 = vld [vmem:[%s166 + $0x24] sm:$0xf]
      %v186 = vld [vmem:[%s166 + $0x28] sm:$0xf]
      %v187 = vld [vmem:[%s166 + $0x2c] sm:$0xf]
      %v188 = vld [vmem:[%s166 + $0x30] sm:$0xf]
      %v189 = vld [vmem:[%s166 + $0x34] sm:$0xf]
      %v190 = vld [vmem:[%s166 + $0x38] sm:$0xf]
      %v191 = vld [vmem:[%s166 + $0x3c] sm:$0xf]
      %v192 = vld [vmem:[%s166 + $0x40] sm:$0xf]
      %v193 = vld [vmem:[%s166 + $0x44] sm:$0xf]
      %v194 = vld [vmem:[%s166 + $0x48] sm:$0xf]
      %v195 = vld [vmem:[%s166 + $0x4c] sm:$0xf]
      %v196 = vld [vmem:[%s166 + $0x50] sm:$0xf]
      %v197 = vld [vmem:[%s166 + $0x54] sm:$0xf]
      %v198 = vld [vmem:[%s166 + $0x58] sm:$0xf]
      %v199 = vld [vmem:[%s166 + $0x5c] sm:$0xf]
      %v200 = vld [vmem:[%s166 + $0x60] sm:$0xf]
      %v201 = vld [vmem:[%s166 + $0x64] sm:$0xf]
      %v202 = vld [vmem:[%s166 + $0x68] sm:$0xf]
      %v203 = vld [vmem:[%s166 + $0x6c] sm:$0xf]
      %v204 = vld [vmem:[%s166 + $0x70] sm:$0xf]
      %v205 = vld [vmem:[%s166 + $0x74] sm:$0xf]
      %v206 = vld [vmem:[%s166 + $0x78] sm:$0xf]
      %v207 = vld [vmem:[%s166 + $0x7c] sm:$0xf]
      %v208 = vld [vmem:[%s2] sm:$0xff]
      %210 = vset.pattern.permute.xlu0 0
      %211 = vperm.xlu0 %210, %v208
      %v212 = vpop.permute.xlu0 %211
      %v246 = vunpack.c.l.b16 %v176
      %v247 = vunpack.c.l.b16 %v177
      %v248 = vunpack.c.l.b16 %v178
      %v249 = vunpack.c.l.b16 %v179
      %v250 = vunpack.c.l.b16 %v180
      %v251 = vunpack.c.l.b16 %v181
      %v252 = vunpack.c.l.b16 %v182
      %v253 = vunpack.c.l.b16 %v183
      %v254 = vunpack.c.l.b16 %v184
      %v255 = vunpack.c.l.b16 %v185
      %v256 = vunpack.c.l.b16 %v186
      %v257 = vunpack.c.l.b16 %v187
      %v258 = vunpack.c.l.b16 %v188
      %v259 = vunpack.c.l.b16 %v189
      %v260 = vunpack.c.l.b16 %v190
      %v261 = vunpack.c.l.b16 %v191
      %v262 = vunpack.c.l.b16 %v192
      %v263 = vunpack.c.l.b16 %v193
      %v264 = vunpack.c.l.b16 %v194
      %v265 = vunpack.c.l.b16 %v195
      %v266 = vunpack.c.l.b16 %v196
      %v267 = vunpack.c.l.b16 %v197
      %v268 = vunpack.c.l.b16 %v198
      %v269 = vunpack.c.l.b16 %v199
      %v270 = vunpack.c.l.b16 %v200
      %v271 = vunpack.c.l.b16 %v201
      %v272 = vunpack.c.l.b16 %v202
      %v273 = vunpack.c.l.b16 %v203
      %v274 = vunpack.c.l.b16 %v204
      %v275 = vunpack.c.l.b16 %v205
      %v276 = vunpack.c.l.b16 %v206
      %v277 = vunpack.c.l.b16 %v207
      %v278 = vpack.c.b16 %v247, %v246
      %v279 = vpack.c.b16 %v249, %v248
      %v280 = vpack.c.b16 %v251, %v250
      %v281 = vpack.c.b16 %v253, %v252
      %v282 = vpack.c.b16 %v255, %v254
      %v283 = vpack.c.b16 %v257, %v256
      %v284 = vpack.c.b16 %v259, %v258
      %v285 = vpack.c.b16 %v261, %v260
      %v286 = vpack.c.b16 %v263, %v262
      %v287 = vpack.c.b16 %v265, %v264
      %v288 = vpack.c.b16 %v267, %v266
      %v289 = vpack.c.b16 %v269, %v268
      %v290 = vpack.c.b16 %v271, %v270
      %v291 = vpack.c.b16 %v273, %v272
      %v292 = vpack.c.b16 %v275, %v274
      %v293 = vpack.c.b16 %v277, %v276
      %vm294 = vcmask 392192
      %v296 = vsel %vm294, %v175, 0
      %v299 = vsel %vm294, %v278, 0
      %v302 = vsel %vm294, %v279, 0
      %v305 = vsel %vm294, %v280, 0
      %v308 = vsel %vm294, %v281, 0
      %v311 = vsel %vm294, %v282, 0
      %v314 = vsel %vm294, %v283, 0
      %v317 = vsel %vm294, %v284, 0
      %v320 = vsel %vm294, %v285, 0
      %v323 = vsel %vm294, %v286, 0
      %v326 = vsel %vm294, %v287, 0
      %v329 = vsel %vm294, %v288, 0
      %v332 = vsel %vm294, %v289, 0
      %v335 = vsel %vm294, %v290, 0
      %v338 = vsel %vm294, %v291, 0
      %v341 = vsel %vm294, %v292, 0
      %v344 = vsel %vm294, %v293, 0
      %346 = vmatprep.subr.bf16.mxu0 0
      %347 = vmatpush1.bf16.xpose.msra.mxu0 %v320
      %348 = vmatprep.subr.bf16.mxu0 0
      %349 = vmatpush1.bf16.xpose.msra.mxu0 %v317
      %350 = vmatprep.subr.bf16.mxu0 0
      %351 = vmatpush1.bf16.xpose.msra.mxu0 %v314
      %352 = vmatprep.subr.bf16.mxu0 0
      %353 = vmatpush1.bf16.xpose.msra.mxu0 %v311
      %354 = vmatprep.subr.bf16.mxu0 0
      %355 = vmatpush1.bf16.xpose.msra.mxu0 %v308
      %356 = vmatprep.subr.bf16.mxu0 0
      %357 = vmatpush1.bf16.xpose.msra.mxu0 %v305
      %358 = vmatprep.subr.bf16.mxu0 0
      %359 = vmatpush1.bf16.xpose.msra.mxu0 %v302
      %360 = vmatprep.subr.bf16.mxu0 0
      %361 = vmatpush1.bf16.xpose.msra.mxu0 %v299
      %362 = vmatprep.subr.bf16.mxu0 0
      %363 = vmatpush2.bf16.xpose.msra.mxu0 %v344
      %364 = vmatprep.subr.bf16.mxu0 0
      %365 = vmatpush2.bf16.xpose.msra.mxu0 %v341
      %366 = vmatprep.subr.bf16.mxu0 0
      %367 = vmatpush2.bf16.xpose.msra.mxu0 %v338
      %368 = vmatprep.subr.bf16.mxu0 0
      %369 = vmatpush2.bf16.xpose.msra.mxu0 %v335
      %370 = vmatprep.subr.bf16.mxu0 0
      %371 = vmatpush2.bf16.xpose.msra.mxu0 %v332
      %372 = vmatprep.subr.bf16.mxu0 0
      %373 = vmatpush2.bf16.xpose.msra.mxu0 %v329
      %374 = vmatprep.subr.bf16.mxu0 0
      %375 = vmatpush2.bf16.xpose.msra.mxu0 %v326
      %376 = vmatprep.subr.bf16.mxu0 0
      %377 = vmatpush2.bf16.xpose.msra.mxu0 %v323
      %378 = vmatprep.mubr.bf16.mxu0 0
      %379 = vmatmul.mubr.bf16.gmra.mxu0 %v296
      %v380 = vpop.f32.mrf.mxu0
      %v381 = vadd.f32 %v212, %v380
      %v382 = vpop.f32.mrf.mxu0
      %v383 = vadd.f32 %v212, %v382
      %v384 = vpop.f32.mrf.mxu0
      %v385 = vpop.f32.mrf.mxu0
      %386 = vdwg.mxu0
      %vm387 = vcmp.ge.f32.partialorder %v381, 0.0
      %vm388 = vcmp.ge.f32.partialorder %v383, 0.0
      %v389 = vmul.f32 %v381, 0.2
      %v390 = vmul.f32 %v383, 0.2
      %v391 = vsel %vm387, %v381, %v389
      %v392 = vsel %vm388, %v383, %v390
      %v393 = vpack.c.bf16 %v391, %v391
      %v394 = vpack.c.bf16 %v392, %v392
      %v397 = vunpack.c.l.b16 %v393
      %v398 = vunpack.c.l.b16 %v394
      %v399 = vpack.c.b16 %v398, %v397
      %401 = vst [vmem:[%s172] sm:$0xff] %v399
      %s402 = smul.u32 2, %s14
      %p403 = scmp.lt.s32.totalorder %s402, 3
      %s404 = scalar_select %p403, %s402, 3
      %s405 = smul.addr %s404, 4
      %s406 = scalar_lea.vmem %s3, %s405
      // Predicated region
      $region33: #{discriminator_forward.8} parent=31 // pred_check
        %p407 = pneg %p100
      $region34: #{discriminator_forward.8} parent=31 // pred_check_branch
        %409 = sbr.rel (%p407) target = $region36
      $region35: #{discriminator_forward.8} parent=31 // pred_region
        %s410 = smul.u32 2, %s14
      $region36: #{discriminator_forward.8} parent=31 // pred_fallthru
        _
    $region32: #{discriminator_forward.8} parent=5 // pred_fallthru
      _
    %p411 = scmp.le.s32.totalorder 2, %s9
    // Predicated region
    $region37: #{discriminator_forward.8} parent=5 // pred_check
      %p412 = pneg %p411
    $region38: #{discriminator_forward.8} parent=5 // pred_check_branch
      %414 = sbr.rel (%p412) target = $region40
    $region39: #{discriminator_forward.8} parent=5 // pred_region
      %s415 = ssub.s32 %s9, 2
      // Predicated region
      $region41: #{discriminator_forward.8} parent=39 // pred_check
        %p416 = pneg %p106
      $region42: #{discriminator_forward.8} parent=39 // pred_check_branch
        %418 = sbr.rel (%p416) target = $region44
      $region43: #{discriminator_forward.8} parent=39 // pred_region
        %s419 = smul.u32 2, %s15
        %p420 = scmp.lt.s32.totalorder %s419, 3
        %s421 = scalar_select %p420, %s419, 3
        %s422 = smul.addr %s421, 4
        %s423 = scalar_lea.vmem %s3, %s422
      $region44: #{discriminator_forward.8} parent=39 // pred_fallthru
        _
    $region40: #{discriminator_forward.8} parent=5 // pred_fallthru
      _
  $region6: #{discriminator_forward.8} parent=0 // loop_footer
    %s13 = sadd.s32 1, %s9
  $region7: #{discriminator_forward.8} parent=0 // loop_footer_branch
    %8 = sbr.rel target = $region3
  $region8: #{discriminator_forward.8} parent=0 // loop_exit
    _

// kernel: discriminator_forward.9
$region0: #{discriminator_forward.9}
  #allocation0 [shape = 'u32[]', space=smem, size = 0x4, offset = 0x4, fixed_abs, tag = 'smem constant byte address 0x4 - core index']
  #allocation1 [shape = 'u32[144,128]{1,0:T(1,128)}', space=vmem, size = 0x12000, scoped, tag = 'internal scratch']
  %s0 = inlined_call_operand.vmem [shape: bf16[128,128], index: 0, kind: input, shape index: {}]
  %s1 = inlined_call_operand.vmem [shape: bf16[16,128], index: 1, kind: input, shape index: {}]
  %s2 = inlined_call_operand.vmem [shape: bf16[16,128], index: 2, kind: output, shape index: {0}]
  %s3 = inlined_call_operand.vmem [shape: f32[16,1], index: 3, kind: output, shape index: {1}]
  %s4 = inlined_call_operand.vmem [shape: f32[16,1], index: 4, kind: output, shape index: {2}]
  %5 = xla_tuple %s2, %s3, %s4
  %s6 = sld [smem:[#allocation0]]
  $region38: #{discriminator_forward.9} parent=0
    _
  %s8 = ssub.s32 1, %s6
  %s9 = scalar_select 0, %s8, %s6
  // Predicated region
  $region2: #{discriminator_forward.9} parent=0 // pred_check
    _
  $region3: #{discriminator_forward.9} parent=0 // pred_check_branch
    %11 = sbr.rel (0) target = $region5
  $region4: #{discriminator_forward.9} parent=0 // pred_region
    _
  $region5: #{discriminator_forward.9} parent=0 // pred_fallthru
    _
  // Predicated region
  $region6: #{discriminator_forward.9} parent=0 // pred_check
    _
  $region7: #{discriminator_forward.9} parent=0 // pred_check_branch
    %13 = sbr.rel (0) target = $region9
  $region8: #{discriminator_forward.9} parent=0 // pred_region
    _
  $region9: #{discriminator_forward.9} parent=0 // pred_fallthru
    _
  %p15 = scmp.eq.s32.totalorder 0, 0
  // Predicated region
  $region10: #{discriminator_forward.9} parent=0 // pred_check
    %p16 = pneg %p15
  $region11: #{discriminator_forward.9} parent=0 // pred_check_branch
    %18 = sbr.rel (%p16) target = $region13
  $region12: #{discriminator_forward.9} parent=0 // pred_region
    %vm19 = vcmask 7168
    %20 = vst.msk [vmem:[%s3] sm:$0xff] %vm19, 0.0
    %21 = vst.msk [vmem:[%s3 + $0x8] sm:$0xff] %vm19, 0.0
    %22 = vst.msk [vmem:[%s4] sm:$0xff] %vm19, 0.0
    %23 = vst.msk [vmem:[%s4 + $0x8] sm:$0xff] %vm19, 0.0
  $region13: #{discriminator_forward.9} parent=0 // pred_fallthru
    _
  %v24 = vld [vmem:[%s1] sm:$0xf]
  %v25 = vld [vmem:[%s1 + $0x4] sm:$0xf]
  %v26 = vld [vmem:[%s0] sm:$0xf]
  %v27 = vld [vmem:[%s0 + $0x4] sm:$0xf]
  %v28 = vld [vmem:[%s0 + $0x8] sm:$0xf]
  %v29 = vld [vmem:[%s0 + $0xc] sm:$0xf]
  %v30 = vld [vmem:[%s0 + $0x10] sm:$0xf]
  %v31 = vld [vmem:[%s0 + $0x14] sm:$0xf]
  %v32 = vld [vmem:[%s0 + $0x18] sm:$0xf]
  %v33 = vld [vmem:[%s0 + $0x1c] sm:$0xf]
  %v34 = vld [vmem:[%s0 + $0x20] sm:$0xf]
  %v35 = vld [vmem:[%s0 + $0x24] sm:$0xf]
  %v36 = vld [vmem:[%s0 + $0x28] sm:$0xf]
  %v37 = vld [vmem:[%s0 + $0x2c] sm:$0xf]
  %v38 = vld [vmem:[%s0 + $0x30] sm:$0xf]
  %v39 = vld [vmem:[%s0 + $0x34] sm:$0xf]
  %v40 = vld [vmem:[%s0 + $0x38] sm:$0xf]
  %v41 = vld [vmem:[%s0 + $0x3c] sm:$0xf]
  %v44 = vunpack.c.l.b16 %v24
  %v45 = vunpack.c.l.b16 %v25
  %v46 = vpack.c.b16 %v45, %v44
  %v64 = vunpack.c.l.b16 %v26
  %v65 = vunpack.c.l.b16 %v27
  %v66 = vunpack.c.l.b16 %v28
  %v67 = vunpack.c.l.b16 %v29
  %v68 = vunpack.c.l.b16 %v30
  %v69 = vunpack.c.l.b16 %v31
  %v70 = vunpack.c.l.b16 %v32
  %v71 = vunpack.c.l.b16 %v33
  %v72 = vunpack.c.l.b16 %v34
  %v73 = vunpack.c.l.b16 %v35
  %v74 = vunpack.c.l.b16 %v36
  %v75 = vunpack.c.l.b16 %v37
  %v76 = vunpack.c.l.b16 %v38
  %v77 = vunpack.c.l.b16 %v39
  %v78 = vunpack.c.l.b16 %v40
  %v79 = vunpack.c.l.b16 %v41
  %v80 = vpack.c.b16 %v65, %v64
  %v81 = vpack.c.b16 %v67, %v66
  %v82 = vpack.c.b16 %v69, %v68
  %v83 = vpack.c.b16 %v71, %v70
  %v84 = vpack.c.b16 %v73, %v72
  %v85 = vpack.c.b16 %v75, %v74
  %v86 = vpack.c.b16 %v77, %v76
  %v87 = vpack.c.b16 %v79, %v78
  %96 = vmatprep.subr.bf16.mxu0 0
  %97 = vmatpush1.bf16.xpose.msra.mxu0 %v87
  %98 = vmatprep.subr.bf16.mxu0 0
  %99 = vmatpush1.bf16.xpose.msra.mxu0 %v86
  %100 = vmatprep.subr.bf16.mxu0 0
  %101 = vmatpush1.bf16.xpose.msra.mxu0 %v85
  %102 = vmatprep.subr.bf16.mxu0 0
  %103 = vmatpush1.bf16.xpose.msra.mxu0 %v84
  %104 = vmatprep.subr.bf16.mxu0 0
  %105 = vmatpush1.bf16.xpose.msra.mxu0 %v83
  %106 = vmatprep.subr.bf16.mxu0 0
  %107 = vmatpush1.bf16.xpose.msra.mxu0 %v82
  %108 = vmatprep.subr.bf16.mxu0 0
  %109 = vmatpush1.bf16.xpose.msra.mxu0 %v81
  %110 = vmatprep.subr.bf16.mxu0 0
  %111 = vmatpush1.bf16.xpose.msra.mxu0 %v80
  %112 = vmatprep.subr.bf16.mxu0 0
  %113 = vmatpush2.bf16.xpose.msra.mxu0 0
  %114 = vmatprep.subr.bf16.mxu0 0
  %115 = vmatpush2.bf16.xpose.msra.mxu0 0
  %116 = vmatprep.subr.bf16.mxu0 0
  %117 = vmatpush2.bf16.xpose.msra.mxu0 0
  %118 = vmatprep.subr.bf16.mxu0 0
  %119 = vmatpush2.bf16.xpose.msra.mxu0 0
  %120 = vmatprep.subr.bf16.mxu0 0
  %121 = vmatpush2.bf16.xpose.msra.mxu0 0
  %122 = vmatprep.subr.bf16.mxu0 0
  %123 = vmatpush2.bf16.xpose.msra.mxu0 0
  %124 = vmatprep.subr.bf16.mxu0 0
  %125 = vmatpush2.bf16.xpose.msra.mxu0 0
  %126 = vmatprep.subr.bf16.mxu0 0
  %127 = vmatpush2.bf16.xpose.msra.mxu0 0
  %128 = vmatprep.mubr.bf16.mxu0 0
  %129 = vmatmul.mubr.bf16.gmra.mxu0 %v46
  %v130 = vpop.f32.mrf.mxu0
  %v131 = vadd.f32 0.0, %v130
  %v132 = vpop.f32.mrf.mxu0
  %v133 = vpop.f32.mrf.mxu0
  %v134 = vadd.f32 0.0, %v133
  %v135 = vpop.f32.mrf.mxu0
  %136 = vdwg.mxu0
  %v137 = vpack.c.bf16 %v134, %v131
  %v139 = vunpack.c.l.b16 %v137
  %v140 = vunpack.c.h.b16 %v137
  %v141 = vpack.c.b16 %v139, %v139
  %v142 = vpack.c.b16 %v140, %v140
  %145 = vst [vmem:[%s2] sm:$0xf] %v141
  %146 = vst [vmem:[%s2 + $0x4] sm:$0xf] %v142
  %v147 = vld [vmem:[%s3] sm:$0xff]
  %v148 = vld [vmem:[%s3 + $0x8] sm:$0xff]
  %149 = vadd.xlane.f32.xlu0 %v131
  %v150 = vpop.xlane.xlu0 %149
  %151 = vadd.xlane.f32.xlu0 %v134
  %v152 = vpop.xlane.xlu0 %151
  %v153 = vadd.f32 %v147, %v150
  %v154 = vadd.f32 %v148, %v152
  %vm155 = vcmask 7168
  %156 = vst.msk [vmem:[%s3] sm:$0xff] %vm155, %v153
  %157 = vst.msk [vmem:[%s3 + $0x8] sm:$0xff] %vm155, %v154
  %v158 = vld [vmem:[%s4] sm:$0xff]
  %v159 = vld [vmem:[%s4 + $0x8] sm:$0xff]
  %v160 = vmul.f32 %v131, %v131
  %v161 = vmul.f32 %v134, %v134
  %162 = vadd.xlane.f32.xlu0 %v160
  %v163 = vpop.xlane.xlu0 %162
  %164 = vadd.xlane.f32.xlu0 %v161
  %v165 = vpop.xlane.xlu0 %164
  %v166 = vadd.f32 %v158, %v163
  %v167 = vadd.f32 %v159, %v165
  %168 = vst.msk [vmem:[%s4] sm:$0xff] %vm155, %v166
  %169 = vst.msk [vmem:[%s4 + $0x8] sm:$0xff] %vm155, %v167
  // Predicated region
  $region14: #{discriminator_forward.9} parent=0 // pred_check
    _
  $region15: #{discriminator_forward.9} parent=0 // pred_check_branch
    %171 = sbr.rel (0) target = $region17
  $region16: #{discriminator_forward.9} parent=0 // pred_region
    _
  $region17: #{discriminator_forward.9} parent=0 // pred_fallthru
    _
  // Predicated region
  $region18: #{discriminator_forward.9} parent=0 // pred_check
    _
  $region19: #{discriminator_forward.9} parent=0 // pred_check_branch
    %173 = sbr.rel (0) target = $region21
  $region20: #{discriminator_forward.9} parent=0 // pred_region
    _
  $region21: #{discriminator_forward.9} parent=0 // pred_fallthru
    _
  // Predicated region
  $region22: #{discriminator_forward.9} parent=0 // pred_check
    _
  $region23: #{discriminator_forward.9} parent=0 // pred_check_branch
    %175 = sbr.rel (0) target = $region25
  $region24: #{discriminator_forward.9} parent=0 // pred_region
    _
  $region25: #{discriminator_forward.9} parent=0 // pred_fallthru
    _
  // Predicated region
  $region26: #{discriminator_forward.9} parent=0 // pred_check
    _
  $region27: #{discriminator_forward.9} parent=0 // pred_check_branch
    %177 = sbr.rel (0) target = $region29
  $region28: #{discriminator_forward.9} parent=0 // pred_region
    _
  $region29: #{discriminator_forward.9} parent=0 // pred_fallthru
    _
  // Predicated region
  $region30: #{discriminator_forward.9} parent=0 // pred_check
    _
  $region31: #{discriminator_forward.9} parent=0 // pred_check_branch
    %179 = sbr.rel (0) target = $region33
  $region32: #{discriminator_forward.9} parent=0 // pred_region
    _
  $region33: #{discriminator_forward.9} parent=0 // pred_fallthru
    _
  // Predicated region
  $region34: #{discriminator_forward.9} parent=0 // pred_check
    _
  $region35: #{discriminator_forward.9} parent=0 // pred_check_branch
    %181 = sbr.rel (0) target = $region37
  $region36: #{discriminator_forward.9} parent=0 // pred_region
    _
  $region37: #{discriminator_forward.9} parent=0 // pred_fallthru
    _

// kernel: discriminator_forward.10
$region0: #{discriminator_forward.10}
  #allocation0 [shape = 'u32[]', space=smem, size = 0x4, offset = 0x4, fixed_abs, tag = 'smem constant byte address 0x4 - core index']
  #allocation1 [shape = 'u32[144,128]{1,0:T(1,128)}', space=vmem, size = 0x12000, scoped, tag = 'internal scratch']
  %s0 = inlined_call_operand.vmem [shape: bf16[16,128], index: 0, kind: input, shape index: {}]
  %s1 = inlined_call_operand.vmem [shape: f32[16,1], index: 1, kind: input, shape index: {}]
  %s2 = inlined_call_operand.vmem [shape: f32[16,1], index: 2, kind: input, shape index: {}]
  %s3 = inlined_call_operand.vmem [shape: bf16[16,128], index: 3, kind: output, shape index: {}]
  %s4 = sld [smem:[#allocation0]]
  $region22: #{discriminator_forward.10} parent=0
    _
  %s6 = ssub.s32 1, %s4
  %s7 = scalar_select 0, %s6, %s4
  // Predicated region
  $region2: #{discriminator_forward.10} parent=0 // pred_check
    _
  $region3: #{discriminator_forward.10} parent=0 // pred_check_branch
    %9 = sbr.rel (0) target = $region5
  $region4: #{discriminator_forward.10} parent=0 // pred_region
    _
  $region5: #{discriminator_forward.10} parent=0 // pred_fallthru
    _
  // Predicated region
  $region6: #{discriminator_forward.10} parent=0 // pred_check
    _
  $region7: #{discriminator_forward.10} parent=0 // pred_check_branch
    %11 = sbr.rel (0) target = $region9
  $region8: #{discriminator_forward.10} parent=0 // pred_region
    _
  $region9: #{discriminator_forward.10} parent=0 // pred_fallthru
    _
  // Predicated region
  $region10: #{discriminator_forward.10} parent=0 // pred_check
    _
  $region11: #{discriminator_forward.10} parent=0 // pred_check_branch
    %13 = sbr.rel (0) target = $region13
  $region12: #{discriminator_forward.10} parent=0 // pred_region
    _
  $region13: #{discriminator_forward.10} parent=0 // pred_fallthru
    _
  %v14 = vld [vmem:[%s0] sm:$0xf]
  %v15 = vld [vmem:[%s0 + $0x4] sm:$0xf]
  %v16 = vunpack.c.l.bf16 %v14
  %v17 = vunpack.c.l.bf16 %v15
  %v18 = vld [vmem:[%s1] sm:$0xff]
  %v19 = vld [vmem:[%s1 + $0x8] sm:$0xff]
  %21 = vset.pattern.permute.xlu0 0
  %22 = vperm.xlu0 %21, %v18
  %v23 = vpop.permute.xlu0 %22
  %26 = vset.pattern.permute.xlu0 0
  %27 = vperm.xlu0 %26, %v19
  %v28 = vpop.permute.xlu0 %27
  %v30 = vmul.f32 %v16, %v23
  %v31 = vmul.f32 %v17, %v28
  %v32 = vld [vmem:[%s2] sm:$0xff]
  %v33 = vld [vmem:[%s2 + $0x8] sm:$0xff]
  %35 = vset.pattern.permute.xlu0 0
  %36 = vperm.xlu0 %35, %v32
  %v37 = vpop.permute.xlu0 %36
  %40 = vset.pattern.permute.xlu0 0
  %41 = vperm.xlu0 %40, %v33
  %v42 = vpop.permute.xlu0 %41
  %v44 = vadd.f32 %v30, %v37
  %v45 = vadd.f32 %v31, %v42
  %vm46 = vcmp.ge.f32.partialorder %v44, 0.0
  %vm47 = vcmp.ge.f32.partialorder %v45, 0.0
  %v48 = vmul.f32 %v44, 0.2
  %v49 = vmul.f32 %v45, 0.2
  %v50 = vsel %vm46, %v44, %v48
  %v51 = vsel %vm47, %v45, %v49
  %v52 = vpack.c.bf16 %v51, %v50
  %v54 = vunpack.c.l.b16 %v52
  %v55 = vunpack.c.h.b16 %v52
  %v56 = vpack.c.b16 %v54, %v54
  %v57 = vpack.c.b16 %v55, %v55
  %60 = vst [vmem:[%s3] sm:$0xf] %v56
  %61 = vst [vmem:[%s3 + $0x4] sm:$0xf] %v57
  // Predicated region
  $region14: #{discriminator_forward.10} parent=0 // pred_check
    _
  $region15: #{discriminator_forward.10} parent=0 // pred_check_branch
    %63 = sbr.rel (0) target = $region17
  $region16: #{discriminator_forward.10} parent=0 // pred_region
    _
  $region17: #{discriminator_forward.10} parent=0 // pred_fallthru
    _
  // Predicated region
  $region18: #{discriminator_forward.10} parent=0 // pred_check
    _
  $region19: #{discriminator_forward.10} parent=0 // pred_check_branch
    %65 = sbr.rel (0) target = $region21
  $region20: #{discriminator_forward.10} parent=0 // pred_region
    _
  $region21: #{discriminator_forward.10} parent=0 // pred_fallthru
    _

// kernel: discriminator_forward.11
$region0: #{discriminator_forward.11}
  #allocation0 [shape = 'u32[]', space=smem, size = 0x4, offset = 0x4, fixed_abs, tag = 'smem constant byte address 0x4 - core index']
  #allocation1 [shape = 'u32[144,128]{1,0:T(1,128)}', space=vmem, size = 0x12000, scoped, tag = 'internal scratch']
  %s0 = inlined_call_operand.vmem [shape: bf16[128,256], index: 0, kind: input, shape index: {}]
  %s1 = inlined_call_operand.vmem [shape: bf16[32,256], index: 1, kind: input, shape index: {}]
  %s2 = inlined_call_operand.vmem [shape: bf16[32,128], index: 2, kind: output, shape index: {0}]
  %s3 = inlined_call_operand.vmem [shape: f32[32,1], index: 3, kind: output, shape index: {1}]
  %s4 = inlined_call_operand.vmem [shape: f32[32,1], index: 4, kind: output, shape index: {2}]
  %5 = xla_tuple %s2, %s3, %s4
  %s6 = sld [smem:[#allocation0]]
  $region38: #{discriminator_forward.11} parent=0
    _
  %s8 = ssub.s32 1, %s6
  %s9 = scalar_select 0, %s8, %s6
  // Predicated region
  $region2: #{discriminator_forward.11} parent=0 // pred_check
    _
  $region3: #{discriminator_forward.11} parent=0 // pred_check_branch
    %11 = sbr.rel (0) target = $region5
  $region4: #{discriminator_forward.11} parent=0 // pred_region
    _
  $region5: #{discriminator_forward.11} parent=0 // pred_fallthru
    _
  // Predicated region
  $region6: #{discriminator_forward.11} parent=0 // pred_check
    _
  $region7: #{discriminator_forward.11} parent=0 // pred_check_branch
    %13 = sbr.rel (0) target = $region9
  $region8: #{discriminator_forward.11} parent=0 // pred_region
    _
  $region9: #{discriminator_forward.11} parent=0 // pred_fallthru
    _
  %p15 = scmp.eq.s32.totalorder 0, 0
  // Predicated region
  $region10: #{discriminator_forward.11} parent=0 // pred_check
    %p16 = pneg %p15
  $region11: #{discriminator_forward.11} parent=0 // pred_check_branch
    %18 = sbr.rel (%p16) target = $region13
  $region12: #{discriminator_forward.11} parent=0 // pred_region
    %vm19 = vcmask 7168
    %20 = vst.msk [vmem:[%s3] sm:$0xff] %vm19, 0.0
    %21 = vst.msk [vmem:[%s3 + $0x8] sm:$0xff] %vm19, 0.0
    %22 = vst.msk [vmem:[%s3 + $0x10] sm:$0xff] %vm19, 0.0
    %23 = vst.msk [vmem:[%s3 + $0x18] sm:$0xff] %vm19, 0.0
    %24 = vst.msk [vmem:[%s4] sm:$0xff] %vm19, 0.0
    %25 = vst.msk [vmem:[%s4 + $0x8] sm:$0xff] %vm19, 0.0
    %26 = vst.msk [vmem:[%s4 + $0x10] sm:$0xff] %vm19, 0.0
    %27 = vst.msk [vmem:[%s4 + $0x18] sm:$0xff] %vm19, 0.0
  $region13: #{discriminator_forward.11} parent=0 // pred_fallthru
    _
  %v28 = vld [vmem:[%s1] sm:$0xff]
  %v29 = vld [vmem:[%s1 + $0x8] sm:$0xff]
  %v30 = vld [vmem:[%s1 + $0x10] sm:$0xff]
  %v31 = vld [vmem:[%s1 + $0x18] sm:$0xff]
  %v32 = vld [vmem:[%s0] sm:$0xff]
  %v33 = vld [vmem:[%s0 + $0x8] sm:$0xff]
  %v34 = vld [vmem:[%s0 + $0x10] sm:$0xff]
  %v35 = vld [vmem:[%s0 + $0x18] sm:$0xff]
  %v36 = vld [vmem:[%s0 + $0x20] sm:$0xff]
  %v37 = vld [vmem:[%s0 + $0x28] sm:$0xff]
  %v38 = vld [vmem:[%s0 + $0x30] sm:$0xff]
  %v39 = vld [vmem:[%s0 + $0x38] sm:$0xff]
  %v40 = vld [vmem:[%s0 + $0x40] sm:$0xff]
  %v41 = vld [vmem:[%s0 + $0x48] sm:$0xff]
  %v42 = vld [vmem:[%s0 + $0x50] sm:$0xff]
  %v43 = vld [vmem:[%s0 + $0x58] sm:$0xff]
  %v44 = vld [vmem:[%s0 + $0x60] sm:$0xff]
  %v45 = vld [vmem:[%s0 + $0x68] sm:$0xff]
  %v46 = vld [vmem:[%s0 + $0x70] sm:$0xff]
  %v47 = vld [vmem:[%s0 + $0x78] sm:$0xff]
  %v52 = vunpack.c.l.b16 %v28
  %v53 = vunpack.c.h.b16 %v28
  %v54 = vunpack.c.l.b16 %v29
  %v55 = vunpack.c.h.b16 %v29
  %v56 = vunpack.c.l.b16 %v30
  %v57 = vunpack.c.h.b16 %v30
  %v58 = vunpack.c.l.b16 %v31
  %v59 = vunpack.c.h.b16 %v31
  %v60 = vpack.c.b16 %v54, %v52
  %v61 = vpack.c.b16 %v55, %v53
  %v62 = vpack.c.b16 %v58, %v56
  %v63 = vpack.c.b16 %v59, %v57
  %v84 = vunpack.c.l.b16 %v32
  %v85 = vunpack.c.h.b16 %v32
  %v86 = vunpack.c.l.b16 %v33
  %v87 = vunpack.c.h.b16 %v33
  %v88 = vunpack.c.l.b16 %v34
  %v89 = vunpack.c.h.b16 %v34
  %v90 = vunpack.c.l.b16 %v35
  %v91 = vunpack.c.h.b16 %v35
  %v92 = vunpack.c.l.b16 %v36
  %v93 = vunpack.c.h.b16 %v36
  %v94 = vunpack.c.l.b16 %v37
  %v95 = vunpack.c.h.b16 %v37
  %v96 = vunpack.c.l.b16 %v38
  %v97 = vunpack.c.h.b16 %v38
  %v98 = vunpack.c.l.b16 %v39
  %v99 = vunpack.c.h.b16 %v39
  %v100 = vunpack.c.l.b16 %v40
  %v101 = vunpack.c.h.b16 %v40
  %v102 = vunpack.c.l.b16 %v41
  %v103 = vunpack.c.h.b16 %v41
  %v104 = vunpack.c.l.b16 %v42
  %v105 = vunpack.c.h.b16 %v42
  %v106 = vunpack.c.l.b16 %v43
  %v107 = vunpack.c.h.b16 %v43
  %v108 = vunpack.c.l.b16 %v44
  %v109 = vunpack.c.h.b16 %v44
  %v110 = vunpack.c.l.b16 %v45
  %v111 = vunpack.c.h.b16 %v45
  %v112 = vunpack.c.l.b16 %v46
  %v113 = vunpack.c.h.b16 %v46
  %v114 = vunpack.c.l.b16 %v47
  %v115 = vunpack.c.h.b16 %v47
  %v116 = vpack.c.b16 %v86, %v84
  %v117 = vpack.c.b16 %v87, %v85
  %v118 = vpack.c.b16 %v90, %v88
  %v119 = vpack.c.b16 %v91, %v89
  %v120 = vpack.c.b16 %v94, %v92
  %v121 = vpack.c.b16 %v95, %v93
  %v122 = vpack.c.b16 %v98, %v96
  %v123 = vpack.c.b16 %v99, %v97
  %v124 = vpack.c.b16 %v102, %v100
  %v125 = vpack.c.b16 %v103, %v101
  %v126 = vpack.c.b16 %v106, %v104
  %v127 = vpack.c.b16 %v107, %v105
  %v128 = vpack.c.b16 %v110, %v108
  %v129 = vpack.c.b16 %v111, %v109
  %v130 = vpack.c.b16 %v114, %v112
  %v131 = vpack.c.b16 %v115, %v113
  %148 = vmatprep.subr.bf16.mxu0 %v131
  %149 = vmatpush1.bf16.xpose.msra.mxu0 %v130
  %150 = vmatprep.subr.bf16.mxu0 %v129
  %151 = vmatpush1.bf16.xpose.msra.mxu0 %v128
  %152 = vmatprep.subr.bf16.mxu0 %v127
  %153 = vmatpush1.bf16.xpose.msra.mxu0 %v126
  %154 = vmatprep.subr.bf16.mxu0 %v125
  %155 = vmatpush1.bf16.xpose.msra.mxu0 %v124
  %156 = vmatprep.subr.bf16.mxu0 %v123
  %157 = vmatpush1.bf16.xpose.msra.mxu0 %v122
  %158 = vmatprep.subr.bf16.mxu0 %v121
  %159 = vmatpush1.bf16.xpose.msra.mxu0 %v120
  %160 = vmatprep.subr.bf16.mxu0 %v119
  %161 = vmatpush1.bf16.xpose.msra.mxu0 %v118
  %162 = vmatprep.subr.bf16.mxu0 %v117
  %163 = vmatpush1.bf16.xpose.msra.mxu0 %v116
  %164 = vmatprep.subr.bf16.mxu0 0
  %165 = vmatpush2.bf16.xpose.msra.mxu0 0
  %166 = vmatprep.subr.bf16.mxu0 0
  %167 = vmatpush2.bf16.xpose.msra.mxu0 0
  %168 = vmatprep.subr.bf16.mxu0 0
  %169 = vmatpush2.bf16.xpose.msra.mxu0 0
  %170 = vmatprep.subr.bf16.mxu0 0
  %171 = vmatpush2.bf16.xpose.msra.mxu0 0
  %172 = vmatprep.subr.bf16.mxu0 0
  %173 = vmatpush2.bf16.xpose.msra.mxu0 0
  %174 = vmatprep.subr.bf16.mxu0 0
  %175 = vmatpush2.bf16.xpose.msra.mxu0 0
  %176 = vmatprep.subr.bf16.mxu0 0
  %177 = vmatpush2.bf16.xpose.msra.mxu0 0
  %178 = vmatprep.subr.bf16.mxu0 0
  %179 = vmatpush2.bf16.xpose.msra.mxu0 0
  %180 = vmatprep.mubr.bf16.mxu0 %v61
  %181 = vmatmul.mubr.bf16.gmra.mxu0 %v60
  %v182 = vpop.f32.mrf.mxu0
  %v183 = vadd.f32 0.0, %v182
  %v184 = vpop.f32.mrf.mxu0
  %v185 = vpop.f32.mrf.mxu0
  %v186 = vadd.f32 0.0, %v185
  %v187 = vpop.f32.mrf.mxu0
  %188 = vmatprep.mubr.bf16.mxu0 %v63
  %189 = vmatmul.mubr.bf16.gmra.mxu0 %v62
  %v190 = vpop.f32.mrf.mxu0
  %v191 = vadd.f32 0.0, %v190
  %v192 = vpop.f32.mrf.mxu0
  %v193 = vpop.f32.mrf.mxu0
  %v194 = vadd.f32 0.0, %v193
  %v195 = vpop.f32.mrf.mxu0
  %196 = vdwg.mxu0
  %v197 = vpack.c.bf16 %v186, %v183
  %v198 = vpack.c.bf16 %v194, %v191
  %v201 = vunpack.c.l.b16 %v197
  %v202 = vunpack.c.h.b16 %v197
  %v203 = vunpack.c.l.b16 %v198
  %v204 = vunpack.c.h.b16 %v198
  %v205 = vpack.c.b16 %v201, %v201
  %v206 = vpack.c.b16 %v202, %v202
  %v207 = vpack.c.b16 %v203, %v203
  %v208 = vpack.c.b16 %v204, %v204
  %213 = vst [vmem:[%s2] sm:$0xf] %v205
  %214 = vst [vmem:[%s2 + $0x4] sm:$0xf] %v206
  %215 = vst [vmem:[%s2 + $0x8] sm:$0xf] %v207
  %216 = vst [vmem:[%s2 + $0xc] sm:$0xf] %v208
  %v217 = vld [vmem:[%s3] sm:$0xff]
  %v218 = vld [vmem:[%s3 + $0x8] sm:$0xff]
  %v219 = vld [vmem:[%s3 + $0x10] sm:$0xff]
  %v220 = vld [vmem:[%s3 + $0x18] sm:$0xff]
  %221 = vadd.xlane.f32.xlu0 %v183
  %v222 = vpop.xlane.xlu0 %221
  %223 = vadd.xlane.f32.xlu0 %v186
  %v224 = vpop.xlane.xlu0 %223
  %225 = vadd.xlane.f32.xlu0 %v191
  %v226 = vpop.xlane.xlu0 %225
  %227 = vadd.xlane.f32.xlu0 %v194
  %v228 = vpop.xlane.xlu0 %227
  %v229 = vadd.f32 %v217, %v222
  %v230 = vadd.f32 %v218, %v224
  %v231 = vadd.f32 %v219, %v226
  %v232 = vadd.f32 %v220, %v228
  %vm233 = vcmask 7168
  %234 = vst.msk [vmem:[%s3] sm:$0xff] %vm233, %v229
  %235 = vst.msk [vmem:[%s3 + $0x8] sm:$0xff] %vm233, %v230
  %236 = vst.msk [vmem:[%s3 + $0x10] sm:$0xff] %vm233, %v231
  %237 = vst.msk [vmem:[%s3 + $0x18] sm:$0xff] %vm233, %v232
  %v238 = vld [vmem:[%s4] sm:$0xff]
  %v239 = vld [vmem:[%s4 + $0x8] sm:$0xff]
  %v240 = vld [vmem:[%s4 + $0x10] sm:$0xff]
  %v241 = vld [vmem:[%s4 + $0x18] sm:$0xff]
  %v242 = vmul.f32 %v183, %v183
  %v243 = vmul.f32 %v186, %v186
  %v244 = vmul.f32 %v191, %v191
  %v245 = vmul.f32 %v194, %v194
  %246 = vadd.xlane.f32.xlu0 %v242
  %v247 = vpop.xlane.xlu0 %246
  %248 = vadd.xlane.f32.xlu0 %v243
  %v249 = vpop.xlane.xlu0 %248
  %250 = vadd.xlane.f32.xlu0 %v244
  %v251 = vpop.xlane.xlu0 %250
  %252 = vadd.xlane.f32.xlu0 %v245
  %v253 = vpop.xlane.xlu0 %252
  %v254 = vadd.f32 %v238, %v247
  %v255 = vadd.f32 %v239, %v249
  %v256 = vadd.f32 %v240, %v251
  %v257 = vadd.f32 %v241, %v253
  %258 = vst.msk [vmem:[%s4] sm:$0xff] %vm233, %v254
  %259 = vst.msk [vmem:[%s4 + $0x8] sm:$0xff] %vm233, %v255
  %260 = vst.msk [vmem:[%s4 + $0x10] sm:$0xff] %vm233, %v256
  %261 = vst.msk [vmem:[%s4 + $0x18] sm:$0xff] %vm233, %v257
  // Predicated region
  $region14: #{discriminator_forward.11} parent=0 // pred_check
    _
  $region15: #{discriminator_forward.11} parent=0 // pred_check_branch
    %263 = sbr.rel (0) target = $region17
  $region16: #{discriminator_forward.11} parent=0 // pred_region
    _
  $region17: #{discriminator_forward.11} parent=0 // pred_fallthru
    _
  // Predicated region
  $region18: #{discriminator_forward.11} parent=0 // pred_check
    _
  $region19: #{discriminator_forward.11} parent=0 // pred_check_branch
    %265 = sbr.rel (0) target = $region21
  $region20: #{discriminator_forward.11} parent=0 // pred_region
    _
  $region21: #{discriminator_forward.11} parent=0 // pred_fallthru
    _
  // Predicated region
  $region22: #{discriminator_forward.11} parent=0 // pred_check
    _
  $region23: #{discriminator_forward.11} parent=0 // pred_check_branch
    %267 = sbr.rel (0) target = $region25
  $region24: #{discriminator_forward.11} parent=0 // pred_region
    _
  $region25: #{discriminator_forward.11} parent=0 // pred_fallthru
    _
  // Predicated region
  $region26: #{discriminator_forward.11} parent=0 // pred_check
    _
  $region27: #{discriminator_forward.11} parent=0 // pred_check_branch
    %269 = sbr.rel (0) target = $region29
  $region28: #{discriminator_forward.11} parent=0 // pred_region
    _
  $region29: #{discriminator_forward.11} parent=0 // pred_fallthru
    _
  // Predicated region
  $region30: #{discriminator_forward.11} parent=0 // pred_check
    _
  $region31: #{discriminator_forward.11} parent=0 // pred_check_branch
    %271 = sbr.rel (0) target = $region33
  $region32: #{discriminator_forward.11} parent=0 // pred_region
    _
  $region33: #{discriminator_forward.11} parent=0 // pred_fallthru
    _
  // Predicated region
  $region34: #{discriminator_forward.11} parent=0 // pred_check
    _
  $region35: #{discriminator_forward.11} parent=0 // pred_check_branch
    %273 = sbr.rel (0) target = $region37
  $region36: #{discriminator_forward.11} parent=0 // pred_region
    _
  $region37: #{discriminator_forward.11} parent=0 // pred_fallthru
    _

// kernel: discriminator_forward.12
$region0: #{discriminator_forward.12}
  #allocation0 [shape = 'u32[]', space=smem, size = 0x4, offset = 0x4, fixed_abs, tag = 'smem constant byte address 0x4 - core index']
  #allocation1 [shape = 'u32[144,128]{1,0:T(1,128)}', space=vmem, size = 0x12000, scoped, tag = 'internal scratch']
  %s0 = inlined_call_operand.vmem [shape: bf16[32,128], index: 0, kind: input, shape index: {}]
  %s1 = inlined_call_operand.vmem [shape: f32[32,1], index: 1, kind: input, shape index: {}]
  %s2 = inlined_call_operand.vmem [shape: f32[32,1], index: 2, kind: input, shape index: {}]
  %s3 = inlined_call_operand.vmem [shape: bf16[32,128], index: 3, kind: output, shape index: {}]
  %s4 = sld [smem:[#allocation0]]
  $region22: #{discriminator_forward.12} parent=0
    _
  %s6 = ssub.s32 1, %s4
  %s7 = scalar_select 0, %s6, %s4
  // Predicated region
  $region2: #{discriminator_forward.12} parent=0 // pred_check
    _
  $region3: #{discriminator_forward.12} parent=0 // pred_check_branch
    %9 = sbr.rel (0) target = $region5
  $region4: #{discriminator_forward.12} parent=0 // pred_region
    _
  $region5: #{discriminator_forward.12} parent=0 // pred_fallthru
    _
  // Predicated region
  $region6: #{discriminator_forward.12} parent=0 // pred_check
    _
  $region7: #{discriminator_forward.12} parent=0 // pred_check_branch
    %11 = sbr.rel (0) target = $region9
  $region8: #{discriminator_forward.12} parent=0 // pred_region
    _
  $region9: #{discriminator_forward.12} parent=0 // pred_fallthru
    _
  // Predicated region
  $region10: #{discriminator_forward.12} parent=0 // pred_check
    _
  $region11: #{discriminator_forward.12} parent=0 // pred_check_branch
    %13 = sbr.rel (0) target = $region13
  $region12: #{discriminator_forward.12} parent=0 // pred_region
    _
  $region13: #{discriminator_forward.12} parent=0 // pred_fallthru
    _
  %v14 = vld [vmem:[%s0] sm:$0xf]
  %v15 = vld [vmem:[%s0 + $0x4] sm:$0xf]
  %v16 = vld [vmem:[%s0 + $0x8] sm:$0xf]
  %v17 = vld [vmem:[%s0 + $0xc] sm:$0xf]
  %v18 = vunpack.c.l.bf16 %v14
  %v19 = vunpack.c.l.bf16 %v15
  %v20 = vunpack.c.l.bf16 %v16
  %v21 = vunpack.c.l.bf16 %v17
  %v22 = vld [vmem:[%s1] sm:$0xff]
  %v23 = vld [vmem:[%s1 + $0x8] sm:$0xff]
  %v24 = vld [vmem:[%s1 + $0x10] sm:$0xff]
  %v25 = vld [vmem:[%s1 + $0x18] sm:$0xff]
  %27 = vset.pattern.permute.xlu0 0
  %28 = vperm.xlu0 %27, %v22
  %v29 = vpop.permute.xlu0 %28
  %32 = vset.pattern.permute.xlu0 0
  %33 = vperm.xlu0 %32, %v23
  %v34 = vpop.permute.xlu0 %33
  %37 = vset.pattern.permute.xlu0 0
  %38 = vperm.xlu0 %37, %v24
  %v39 = vpop.permute.xlu0 %38
  %42 = vset.pattern.permute.xlu0 0
  %43 = vperm.xlu0 %42, %v25
  %v44 = vpop.permute.xlu0 %43
  %v46 = vmul.f32 %v18, %v29
  %v47 = vmul.f32 %v19, %v34
  %v48 = vmul.f32 %v20, %v39
  %v49 = vmul.f32 %v21, %v44
  %v50 = vld [vmem:[%s2] sm:$0xff]
  %v51 = vld [vmem:[%s2 + $0x8] sm:$0xff]
  %v52 = vld [vmem:[%s2 + $0x10] sm:$0xff]
  %v53 = vld [vmem:[%s2 + $0x18] sm:$0xff]
  %55 = vset.pattern.permute.xlu0 0
  %56 = vperm.xlu0 %55, %v50
  %v57 = vpop.permute.xlu0 %56
  %60 = vset.pattern.permute.xlu0 0
  %61 = vperm.xlu0 %60, %v51
  %v62 = vpop.permute.xlu0 %61
  %65 = vset.pattern.permute.xlu0 0
  %66 = vperm.xlu0 %65, %v52
  %v67 = vpop.permute.xlu0 %66
  %70 = vset.pattern.permute.xlu0 0
  %71 = vperm.xlu0 %70, %v53
  %v72 = vpop.permute.xlu0 %71
  %v74 = vadd.f32 %v46, %v57
  %v75 = vadd.f32 %v47, %v62
  %v76 = vadd.f32 %v48, %v67
  %v77 = vadd.f32 %v49, %v72
  %vm78 = vcmp.ge.f32.partialorder %v74, 0.0
  %vm79 = vcmp.ge.f32.partialorder %v75, 0.0
  %vm80 = vcmp.ge.f32.partialorder %v76, 0.0
  %vm81 = vcmp.ge.f32.partialorder %v77, 0.0
  %v82 = vmul.f32 %v74, 0.2
  %v83 = vmul.f32 %v75, 0.2
  %v84 = vmul.f32 %v76, 0.2
  %v85 = vmul.f32 %v77, 0.2
  %v86 = vsel %vm78, %v74, %v82
  %v87 = vsel %vm79, %v75, %v83
  %v88 = vsel %vm80, %v76, %v84
  %v89 = vsel %vm81, %v77, %v85
  %v90 = vpack.c.bf16 %v87, %v86
  %v91 = vpack.c.bf16 %v89, %v88
  %v94 = vunpack.c.l.b16 %v90
  %v95 = vunpack.c.h.b16 %v90
  %v96 = vunpack.c.l.b16 %v91
  %v97 = vunpack.c.h.b16 %v91
  %v98 = vpack.c.b16 %v94, %v94
  %v99 = vpack.c.b16 %v95, %v95
  %v100 = vpack.c.b16 %v96, %v96
  %v101 = vpack.c.b16 %v97, %v97
  %106 = vst [vmem:[%s3] sm:$0xf] %v98
  %107 = vst [vmem:[%s3 + $0x4] sm:$0xf] %v99
  %108 = vst [vmem:[%s3 + $0x8] sm:$0xf] %v100
  %109 = vst [vmem:[%s3 + $0xc] sm:$0xf] %v101
  // Predicated region
  $region14: #{discriminator_forward.12} parent=0 // pred_check
    _
  $region15: #{discriminator_forward.12} parent=0 // pred_check_branch
    %111 = sbr.rel (0) target = $region17
  $region16: #{discriminator_forward.12} parent=0 // pred_region
    _
  $region17: #{discriminator_forward.12} parent=0 // pred_fallthru
    _
  // Predicated region
  $region18: #{discriminator_forward.12} parent=0 // pred_check
    _
  $region19: #{discriminator_forward.12} parent=0 // pred_check_branch
    %113 = sbr.rel (0) target = $region21
  $region20: #{discriminator_forward.12} parent=0 // pred_region
    _
  $region21: #{discriminator_forward.12} parent=0 // pred_fallthru
    _

// kernel: discriminator_forward.14
$region0: #{discriminator_forward.14}
  #allocation0 [shape = 'u32[]', space=smem, size = 0x4, offset = 0x4, fixed_abs, tag = 'smem constant byte address 0x4 - core index']
  #allocation1 [shape = 'u32[144,128]{1,0:T(1,128)}', space=vmem, size = 0x12000, scoped, tag = 'internal scratch']
  %s0 = inlined_call_operand.vmem [shape: bf16[64,128], index: 0, kind: input, shape index: {}]
  %s1 = inlined_call_operand.vmem [shape: f32[64,1], index: 1, kind: input, shape index: {}]
  %s2 = inlined_call_operand.vmem [shape: f32[64,1], index: 2, kind: input, shape index: {}]
  %s3 = inlined_call_operand.vmem [shape: bf16[64,128], index: 3, kind: output, shape index: {}]
  %s4 = sld [smem:[#allocation0]]
  $region22: #{discriminator_forward.14} parent=0
    _
  %s6 = ssub.s32 1, %s4
  %s7 = scalar_select 0, %s6, %s4
  // Predicated region
  $region2: #{discriminator_forward.14} parent=0 // pred_check
    _
  $region3: #{discriminator_forward.14} parent=0 // pred_check_branch
    %9 = sbr.rel (0) target = $region5
  $region4: #{discriminator_forward.14} parent=0 // pred_region
    _
  $region5: #{discriminator_forward.14} parent=0 // pred_fallthru
    _
  // Predicated region
  $region6: #{discriminator_forward.14} parent=0 // pred_check
    _
  $region7: #{discriminator_forward.14} parent=0 // pred_check_branch
    %11 = sbr.rel (0) target = $region9
  $region8: #{discriminator_forward.14} parent=0 // pred_region
    _
  $region9: #{discriminator_forward.14} parent=0 // pred_fallthru
    _
  // Predicated region
  $region10: #{discriminator_forward.14} parent=0 // pred_check
    _
  $region11: #{discriminator_forward.14} parent=0 // pred_check_branch
    %13 = sbr.rel (0) target = $region13
  $region12: #{discriminator_forward.14} parent=0 // pred_region
    _
  $region13: #{discriminator_forward.14} parent=0 // pred_fallthru
    _
  %v14 = vld [vmem:[%s0] sm:$0xf]
  %v15 = vld [vmem:[%s0 + $0x4] sm:$0xf]
  %v16 = vld [vmem:[%s0 + $0x8] sm:$0xf]
  %v17 = vld [vmem:[%s0 + $0xc] sm:$0xf]
  %v18 = vld [vmem:[%s0 + $0x10] sm:$0xf]
  %v19 = vld [vmem:[%s0 + $0x14] sm:$0xf]
  %v20 = vld [vmem:[%s0 + $0x18] sm:$0xf]
  %v21 = vld [vmem:[%s0 + $0x1c] sm:$0xf]
  %v22 = vunpack.c.l.bf16 %v14
  %v23 = vunpack.c.l.bf16 %v15
  %v24 = vunpack.c.l.bf16 %v16
  %v25 = vunpack.c.l.bf16 %v17
  %v26 = vunpack.c.l.bf16 %v18
  %v27 = vunpack.c.l.bf16 %v19
  %v28 = vunpack.c.l.bf16 %v20
  %v29 = vunpack.c.l.bf16 %v21
  %v30 = vld [vmem:[%s1] sm:$0xff]
  %v31 = vld [vmem:[%s1 + $0x8] sm:$0xff]
  %v32 = vld [vmem:[%s1 + $0x10] sm:$0xff]
  %v33 = vld [vmem:[%s1 + $0x18] sm:$0xff]
  %v34 = vld [vmem:[%s1 + $0x20] sm:$0xff]
  %v35 = vld [vmem:[%s1 + $0x28] sm:$0xff]
  %v36 = vld [vmem:[%s1 + $0x30] sm:$0xff]
  %v37 = vld [vmem:[%s1 + $0x38] sm:$0xff]
  %39 = vset.pattern.permute.xlu0 0
  %40 = vperm.xlu0 %39, %v30
  %v41 = vpop.permute.xlu0 %40
  %44 = vset.pattern.permute.xlu0 0
  %45 = vperm.xlu0 %44, %v31
  %v46 = vpop.permute.xlu0 %45
  %49 = vset.pattern.permute.xlu0 0
  %50 = vperm.xlu0 %49, %v32
  %v51 = vpop.permute.xlu0 %50
  %54 = vset.pattern.permute.xlu0 0
  %55 = vperm.xlu0 %54, %v33
  %v56 = vpop.permute.xlu0 %55
  %59 = vset.pattern.permute.xlu0 0
  %60 = vperm.xlu0 %59, %v34
  %v61 = vpop.permute.xlu0 %60
  %64 = vset.pattern.permute.xlu0 0
  %65 = vperm.xlu0 %64, %v35
  %v66 = vpop.permute.xlu0 %65
  %69 = vset.pattern.permute.xlu0 0
  %70 = vperm.xlu0 %69, %v36
  %v71 = vpop.permute.xlu0 %70
  %74 = vset.pattern.permute.xlu0 0
  %75 = vperm.xlu0 %74, %v37
  %v76 = vpop.permute.xlu0 %75
  %v78 = vmul.f32 %v22, %v41
  %v79 = vmul.f32 %v23, %v46
  %v80 = vmul.f32 %v24, %v51
  %v81 = vmul.f32 %v25, %v56
  %v82 = vmul.f32 %v26, %v61
  %v83 = vmul.f32 %v27, %v66
  %v84 = vmul.f32 %v28, %v71
  %v85 = vmul.f32 %v29, %v76
  %v86 = vld [vmem:[%s2] sm:$0xff]
  %v87 = vld [vmem:[%s2 + $0x8] sm:$0xff]
  %v88 = vld [vmem:[%s2 + $0x10] sm:$0xff]
  %v89 = vld [vmem:[%s2 + $0x18] sm:$0xff]
  %v90 = vld [vmem:[%s2 + $0x20] sm:$0xff]
  %v91 = vld [vmem:[%s2 + $0x28] sm:$0xff]
  %v92 = vld [vmem:[%s2 + $0x30] sm:$0xff]
  %v93 = vld [vmem:[%s2 + $0x38] sm:$0xff]
  %95 = vset.pattern.permute.xlu0 0
  %96 = vperm.xlu0 %95, %v86
  %v97 = vpop.permute.xlu0 %96
  %100 = vset.pattern.permute.xlu0 0
  %101 = vperm.xlu0 %100, %v87
  %v102 = vpop.permute.xlu0 %101
  %105 = vset.pattern.permute.xlu0 0
  %106 = vperm.xlu0 %105, %v88
  %v107 = vpop.permute.xlu0 %106
  %110 = vset.pattern.permute.xlu0 0
  %111 = vperm.xlu0 %110, %v89
  %v112 = vpop.permute.xlu0 %111
  %115 = vset.pattern.permute.xlu0 0
  %116 = vperm.xlu0 %115, %v90
  %v117 = vpop.permute.xlu0 %116
  %120 = vset.pattern.permute.xlu0 0
  %121 = vperm.xlu0 %120, %v91
  %v122 = vpop.permute.xlu0 %121
  %125 = vset.pattern.permute.xlu0 0
  %126 = vperm.xlu0 %125, %v92
  %v127 = vpop.permute.xlu0 %126
  %130 = vset.pattern.permute.xlu0 0
  %131 = vperm.xlu0 %130, %v93
  %v132 = vpop.permute.xlu0 %131
  %v134 = vadd.f32 %v78, %v97
  %v135 = vadd.f32 %v79, %v102
  %v136 = vadd.f32 %v80, %v107
  %v137 = vadd.f32 %v81, %v112
  %v138 = vadd.f32 %v82, %v117
  %v139 = vadd.f32 %v83, %v122
  %v140 = vadd.f32 %v84, %v127
  %v141 = vadd.f32 %v85, %v132
  %vm142 = vcmp.ge.f32.partialorder %v134, 0.0
  %vm143 = vcmp.ge.f32.partialorder %v135, 0.0
  %vm144 = vcmp.ge.f32.partialorder %v136, 0.0
  %vm145 = vcmp.ge.f32.partialorder %v137, 0.0
  %vm146 = vcmp.ge.f32.partialorder %v138, 0.0
  %vm147 = vcmp.ge.f32.partialorder %v139, 0.0
  %vm148 = vcmp.ge.f32.partialorder %v140, 0.0
  %vm149 = vcmp.ge.f32.partialorder %v141, 0.0
  %v150 = vmul.f32 %v134, 0.2
  %v151 = vmul.f32 %v135, 0.2
  %v152 = vmul.f32 %v136, 0.2
  %v153 = vmul.f32 %v137, 0.2
  %v154 = vmul.f32 %v138, 0.2
  %v155 = vmul.f32 %v139, 0.2
  %v156 = vmul.f32 %v140, 0.2
  %v157 = vmul.f32 %v141, 0.2
  %v158 = vsel %vm142, %v134, %v150
  %v159 = vsel %vm143, %v135, %v151
  %v160 = vsel %vm144, %v136, %v152
  %v161 = vsel %vm145, %v137, %v153
  %v162 = vsel %vm146, %v138, %v154
  %v163 = vsel %vm147, %v139, %v155
  %v164 = vsel %vm148, %v140, %v156
  %v165 = vsel %vm149, %v141, %v157
  %v166 = vpack.c.bf16 %v159, %v158
  %v167 = vpack.c.bf16 %v161, %v160
  %v168 = vpack.c.bf16 %v163, %v162
  %v169 = vpack.c.bf16 %v165, %v164
  %v174 = vunpack.c.l.b16 %v166
  %v175 = vunpack.c.h.b16 %v166
  %v176 = vunpack.c.l.b16 %v167
  %v177 = vunpack.c.h.b16 %v167
  %v178 = vunpack.c.l.b16 %v168
  %v179 = vunpack.c.h.b16 %v168
  %v180 = vunpack.c.l.b16 %v169
  %v181 = vunpack.c.h.b16 %v169
  %v182 = vpack.c.b16 %v174, %v174
  %v183 = vpack.c.b16 %v175, %v175
  %v184 = vpack.c.b16 %v176, %v176
  %v185 = vpack.c.b16 %v177, %v177
  %v186 = vpack.c.b16 %v178, %v178
  %v187 = vpack.c.b16 %v179, %v179
  %v188 = vpack.c.b16 %v180, %v180
  %v189 = vpack.c.b16 %v181, %v181
  %198 = vst [vmem:[%s3] sm:$0xf] %v182
  %199 = vst [vmem:[%s3 + $0x4] sm:$0xf] %v183
  %200 = vst [vmem:[%s3 + $0x8] sm:$0xf] %v184
  %201 = vst [vmem:[%s3 + $0xc] sm:$0xf] %v185
  %202 = vst [vmem:[%s3 + $0x10] sm:$0xf] %v186
  %203 = vst [vmem:[%s3 + $0x14] sm:$0xf] %v187
  %204 = vst [vmem:[%s3 + $0x18] sm:$0xf] %v188
  %205 = vst [vmem:[%s3 + $0x1c] sm:$0xf] %v189
  // Predicated region
  $region14: #{discriminator_forward.14} parent=0 // pred_check
    _
  $region15: #{discriminator_forward.14} parent=0 // pred_check_branch
    %207 = sbr.rel (0) target = $region17
  $region16: #{discriminator_forward.14} parent=0 // pred_region
    _
  $region17: #{discriminator_forward.14} parent=0 // pred_fallthru
    _
  // Predicated region
  $region18: #{discriminator_forward.14} parent=0 // pred_check
    _
  $region19: #{discriminator_forward.14} parent=0 // pred_check_branch
    %209 = sbr.rel (0) target = $region21
  $region20: #{discriminator_forward.14} parent=0 // pred_region
    _
  $region21: #{discriminator_forward.14} parent=0 // pred_fallthru
    _

// kernel: discriminator_forward.13
$region0: #{discriminator_forward.13}
  #allocation0 [shape = 'u32[]', space=smem, size = 0x4, offset = 0x4, fixed_abs, tag = 'smem constant byte address 0x4 - core index']
  #allocation1 [shape = 'u32[144,128]{1,0:T(1,128)}', space=vmem, size = 0x12000, scoped, tag = 'internal scratch']
  %s0 = inlined_call_operand.vmem [shape: bf16[128,512], index: 0, kind: input, shape index: {}]
  %s1 = inlined_call_operand.vmem [shape: bf16[64,512], index: 1, kind: input, shape index: {}]
  %s2 = inlined_call_operand.vmem [shape: bf16[64,128], index: 2, kind: output, shape index: {0}]
  %s3 = inlined_call_operand.vmem [shape: f32[64,1], index: 3, kind: output, shape index: {1}]
  %s4 = inlined_call_operand.vmem [shape: f32[64,1], index: 4, kind: output, shape index: {2}]
  %5 = xla_tuple %s2, %s3, %s4
  %s6 = sld [smem:[#allocation0]]
  $region38: #{discriminator_forward.13} parent=0
    _
  %s8 = ssub.s32 1, %s6
  %s9 = scalar_select 0, %s8, %s6
  // Predicated region
  $region2: #{discriminator_forward.13} parent=0 // pred_check
    _
  $region3: #{discriminator_forward.13} parent=0 // pred_check_branch
    %11 = sbr.rel (0) target = $region5
  $region4: #{discriminator_forward.13} parent=0 // pred_region
    _
  $region5: #{discriminator_forward.13} parent=0 // pred_fallthru
    _
  // Predicated region
  $region6: #{discriminator_forward.13} parent=0 // pred_check
    _
  $region7: #{discriminator_forward.13} parent=0 // pred_check_branch
    %13 = sbr.rel (0) target = $region9
  $region8: #{discriminator_forward.13} parent=0 // pred_region
    _
  $region9: #{discriminator_forward.13} parent=0 // pred_fallthru
    _
  %p15 = scmp.eq.s32.totalorder 0, 0
  // Predicated region
  $region10: #{discriminator_forward.13} parent=0 // pred_check
    %p16 = pneg %p15
  $region11: #{discriminator_forward.13} parent=0 // pred_check_branch
    %18 = sbr.rel (%p16) target = $region13
  $region12: #{discriminator_forward.13} parent=0 // pred_region
    %vm19 = vcmask 7168
    %20 = vst.msk [vmem:[%s3] sm:$0xff] %vm19, 0.0
    %21 = vst.msk [vmem:[%s3 + $0x8] sm:$0xff] %vm19, 0.0
    %22 = vst.msk [vmem:[%s3 + $0x10] sm:$0xff] %vm19, 0.0
    %23 = vst.msk [vmem:[%s3 + $0x18] sm:$0xff] %vm19, 0.0
    %24 = vst.msk [vmem:[%s3 + $0x20] sm:$0xff] %vm19, 0.0
    %25 = vst.msk [vmem:[%s3 + $0x28] sm:$0xff] %vm19, 0.0
    %26 = vst.msk [vmem:[%s3 + $0x30] sm:$0xff] %vm19, 0.0
    %27 = vst.msk [vmem:[%s3 + $0x38] sm:$0xff] %vm19, 0.0
    %28 = vst.msk [vmem:[%s4] sm:$0xff] %vm19, 0.0
    %29 = vst.msk [vmem:[%s4 + $0x8] sm:$0xff] %vm19, 0.0
    %30 = vst.msk [vmem:[%s4 + $0x10] sm:$0xff] %vm19, 0.0
    %31 = vst.msk [vmem:[%s4 + $0x18] sm:$0xff] %vm19, 0.0
    %32 = vst.msk [vmem:[%s4 + $0x20] sm:$0xff] %vm19, 0.0
    %33 = vst.msk [vmem:[%s4 + $0x28] sm:$0xff] %vm19, 0.0
    %34 = vst.msk [vmem:[%s4 + $0x30] sm:$0xff] %vm19, 0.0
    %35 = vst.msk [vmem:[%s4 + $0x38] sm:$0xff] %vm19, 0.0
  $region13: #{discriminator_forward.13} parent=0 // pred_fallthru
    _
  %v36 = vld [vmem:[%s1] sm:$0xff]
  %v37 = vld [vmem:[%s1 + $0x8] sm:$0xff]
  %v38 = vld [vmem:[%s1 + $0x10] sm:$0xff]
  %v39 = vld [vmem:[%s1 + $0x18] sm:$0xff]
  %v40 = vld [vmem:[%s1 + $0x20] sm:$0xff]
  %v41 = vld [vmem:[%s1 + $0x28] sm:$0xff]
  %v42 = vld [vmem:[%s1 + $0x30] sm:$0xff]
  %v43 = vld [vmem:[%s1 + $0x38] sm:$0xff]
  %v44 = vld [vmem:[%s1 + $0x40] sm:$0xff]
  %v45 = vld [vmem:[%s1 + $0x48] sm:$0xff]
  %v46 = vld [vmem:[%s1 + $0x50] sm:$0xff]
  %v47 = vld [vmem:[%s1 + $0x58] sm:$0xff]
  %v48 = vld [vmem:[%s1 + $0x60] sm:$0xff]
  %v49 = vld [vmem:[%s1 + $0x68] sm:$0xff]
  %v50 = vld [vmem:[%s1 + $0x70] sm:$0xff]
  %v51 = vld [vmem:[%s1 + $0x78] sm:$0xff]
  %v52 = vld [vmem:[%s0] sm:$0xff]
  %v53 = vld [vmem:[%s0 + $0x8] sm:$0xff]
  %v54 = vld [vmem:[%s0 + $0x10] sm:$0xff]
  %v55 = vld [vmem:[%s0 + $0x18] sm:$0xff]
  %v56 = vld [vmem:[%s0 + $0x20] sm:$0xff]
  %v57 = vld [vmem:[%s0 + $0x28] sm:$0xff]
  %v58 = vld [vmem:[%s0 + $0x30] sm:$0xff]
  %v59 = vld [vmem:[%s0 + $0x38] sm:$0xff]
  %v60 = vld [vmem:[%s0 + $0x40] sm:$0xff]
  %v61 = vld [vmem:[%s0 + $0x48] sm:$0xff]
  %v62 = vld [vmem:[%s0 + $0x50] sm:$0xff]
  %v63 = vld [vmem:[%s0 + $0x58] sm:$0xff]
  %v64 = vld [vmem:[%s0 + $0x60] sm:$0xff]
  %v65 = vld [vmem:[%s0 + $0x68] sm:$0xff]
  %v66 = vld [vmem:[%s0 + $0x70] sm:$0xff]
  %v67 = vld [vmem:[%s0 + $0x78] sm:$0xff]
  %v68 = vld [vmem:[%s0 + $0x80] sm:$0xff]
  %v69 = vld [vmem:[%s0 + $0x88] sm:$0xff]
  %v70 = vld [vmem:[%s0 + $0x90] sm:$0xff]
  %v71 = vld [vmem:[%s0 + $0x98] sm:$0xff]
  %v72 = vld [vmem:[%s0 + $0xa0] sm:$0xff]
  %v73 = vld [vmem:[%s0 + $0xa8] sm:$0xff]
  %v74 = vld [vmem:[%s0 + $0xb0] sm:$0xff]
  %v75 = vld [vmem:[%s0 + $0xb8] sm:$0xff]
  %v76 = vld [vmem:[%s0 + $0xc0] sm:$0xff]
  %v77 = vld [vmem:[%s0 + $0xc8] sm:$0xff]
  %v78 = vld [vmem:[%s0 + $0xd0] sm:$0xff]
  %v79 = vld [vmem:[%s0 + $0xd8] sm:$0xff]
  %v80 = vld [vmem:[%s0 + $0xe0] sm:$0xff]
  %v81 = vld [vmem:[%s0 + $0xe8] sm:$0xff]
  %v82 = vld [vmem:[%s0 + $0xf0] sm:$0xff]
  %v83 = vld [vmem:[%s0 + $0xf8] sm:$0xff]
  %v100 = vunpack.c.l.b16 %v36
  %v101 = vunpack.c.h.b16 %v36
  %v102 = vunpack.c.l.b16 %v37
  %v103 = vunpack.c.h.b16 %v37
  %v104 = vunpack.c.l.b16 %v38
  %v105 = vunpack.c.h.b16 %v38
  %v106 = vunpack.c.l.b16 %v39
  %v107 = vunpack.c.h.b16 %v39
  %v108 = vunpack.c.l.b16 %v40
  %v109 = vunpack.c.h.b16 %v40
  %v110 = vunpack.c.l.b16 %v41
  %v111 = vunpack.c.h.b16 %v41
  %v112 = vunpack.c.l.b16 %v42
  %v113 = vunpack.c.h.b16 %v42
  %v114 = vunpack.c.l.b16 %v43
  %v115 = vunpack.c.h.b16 %v43
  %v116 = vunpack.c.l.b16 %v44
  %v117 = vunpack.c.h.b16 %v44
  %v118 = vunpack.c.l.b16 %v45
  %v119 = vunpack.c.h.b16 %v45
  %v120 = vunpack.c.l.b16 %v46
  %v121 = vunpack.c.h.b16 %v46
  %v122 = vunpack.c.l.b16 %v47
  %v123 = vunpack.c.h.b16 %v47
  %v124 = vunpack.c.l.b16 %v48
  %v125 = vunpack.c.h.b16 %v48
  %v126 = vunpack.c.l.b16 %v49
  %v127 = vunpack.c.h.b16 %v49
  %v128 = vunpack.c.l.b16 %v50
  %v129 = vunpack.c.h.b16 %v50
  %v130 = vunpack.c.l.b16 %v51
  %v131 = vunpack.c.h.b16 %v51
  %v132 = vpack.c.b16 %v104, %v100
  %v133 = vpack.c.b16 %v105, %v101
  %v134 = vpack.c.b16 %v106, %v102
  %v135 = vpack.c.b16 %v107, %v103
  %v136 = vpack.c.b16 %v112, %v108
  %v137 = vpack.c.b16 %v113, %v109
  %v138 = vpack.c.b16 %v114, %v110
  %v139 = vpack.c.b16 %v115, %v111
  %v140 = vpack.c.b16 %v120, %v116
  %v141 = vpack.c.b16 %v121, %v117
  %v142 = vpack.c.b16 %v122, %v118
  %v143 = vpack.c.b16 %v123, %v119
  %v144 = vpack.c.b16 %v128, %v124
  %v145 = vpack.c.b16 %v129, %v125
  %v146 = vpack.c.b16 %v130, %v126
  %v147 = vpack.c.b16 %v131, %v127
  %v196 = vunpack.c.l.b16 %v52
  %v197 = vunpack.c.h.b16 %v52
  %v198 = vunpack.c.l.b16 %v53
  %v199 = vunpack.c.h.b16 %v53
  %v200 = vunpack.c.l.b16 %v54
  %v201 = vunpack.c.h.b16 %v54
  %v202 = vunpack.c.l.b16 %v55
  %v203 = vunpack.c.h.b16 %v55
  %v204 = vunpack.c.l.b16 %v56
  %v205 = vunpack.c.h.b16 %v56
  %v206 = vunpack.c.l.b16 %v57
  %v207 = vunpack.c.h.b16 %v57
  %v208 = vunpack.c.l.b16 %v58
  %v209 = vunpack.c.h.b16 %v58
  %v210 = vunpack.c.l.b16 %v59
  %v211 = vunpack.c.h.b16 %v59
  %v212 = vunpack.c.l.b16 %v60
  %v213 = vunpack.c.h.b16 %v60
  %v214 = vunpack.c.l.b16 %v61
  %v215 = vunpack.c.h.b16 %v61
  %v216 = vunpack.c.l.b16 %v62
  %v217 = vunpack.c.h.b16 %v62
  %v218 = vunpack.c.l.b16 %v63
  %v219 = vunpack.c.h.b16 %v63
  %v220 = vunpack.c.l.b16 %v64
  %v221 = vunpack.c.h.b16 %v64
  %v222 = vunpack.c.l.b16 %v65
  %v223 = vunpack.c.h.b16 %v65
  %v224 = vunpack.c.l.b16 %v66
  %v225 = vunpack.c.h.b16 %v66
  %v226 = vunpack.c.l.b16 %v67
  %v227 = vunpack.c.h.b16 %v67
  %v228 = vunpack.c.l.b16 %v68
  %v229 = vunpack.c.h.b16 %v68
  %v230 = vunpack.c.l.b16 %v69
  %v231 = vunpack.c.h.b16 %v69
  %v232 = vunpack.c.l.b16 %v70
  %v233 = vunpack.c.h.b16 %v70
  %v234 = vunpack.c.l.b16 %v71
  %v235 = vunpack.c.h.b16 %v71
  %v236 = vunpack.c.l.b16 %v72
  %v237 = vunpack.c.h.b16 %v72
  %v238 = vunpack.c.l.b16 %v73
  %v239 = vunpack.c.h.b16 %v73
  %v240 = vunpack.c.l.b16 %v74
  %v241 = vunpack.c.h.b16 %v74
  %v242 = vunpack.c.l.b16 %v75
  %v243 = vunpack.c.h.b16 %v75
  %v244 = vunpack.c.l.b16 %v76
  %v245 = vunpack.c.h.b16 %v76
  %v246 = vunpack.c.l.b16 %v77
  %v247 = vunpack.c.h.b16 %v77
  %v248 = vunpack.c.l.b16 %v78
  %v249 = vunpack.c.h.b16 %v78
  %v250 = vunpack.c.l.b16 %v79
  %v251 = vunpack.c.h.b16 %v79
  %v252 = vunpack.c.l.b16 %v80
  %v253 = vunpack.c.h.b16 %v80
  %v254 = vunpack.c.l.b16 %v81
  %v255 = vunpack.c.h.b16 %v81
  %v256 = vunpack.c.l.b16 %v82
  %v257 = vunpack.c.h.b16 %v82
  %v258 = vunpack.c.l.b16 %v83
  %v259 = vunpack.c.h.b16 %v83
  %v260 = vpack.c.b16 %v200, %v196
  %v261 = vpack.c.b16 %v201, %v197
  %v262 = vpack.c.b16 %v202, %v198
  %v263 = vpack.c.b16 %v203, %v199
  %v264 = vpack.c.b16 %v208, %v204
  %v265 = vpack.c.b16 %v209, %v205
  %v266 = vpack.c.b16 %v210, %v206
  %v267 = vpack.c.b16 %v211, %v207
  %v268 = vpack.c.b16 %v216, %v212
  %v269 = vpack.c.b16 %v217, %v213
  %v270 = vpack.c.b16 %v218, %v214
  %v271 = vpack.c.b16 %v219, %v215
  %v272 = vpack.c.b16 %v224, %v220
  %v273 = vpack.c.b16 %v225, %v221
  %v274 = vpack.c.b16 %v226, %v222
  %v275 = vpack.c.b16 %v227, %v223
  %v276 = vpack.c.b16 %v232, %v228
  %v277 = vpack.c.b16 %v233, %v229
  %v278 = vpack.c.b16 %v234, %v230
  %v279 = vpack.c.b16 %v235, %v231
  %v280 = vpack.c.b16 %v240, %v236
  %v281 = vpack.c.b16 %v241, %v237
  %v282 = vpack.c.b16 %v242, %v238
  %v283 = vpack.c.b16 %v243, %v239
  %v284 = vpack.c.b16 %v248, %v244
  %v285 = vpack.c.b16 %v249, %v245
  %v286 = vpack.c.b16 %v250, %v246
  %v287 = vpack.c.b16 %v251, %v247
  %v288 = vpack.c.b16 %v256, %v252
  %v289 = vpack.c.b16 %v257, %v253
  %v290 = vpack.c.b16 %v258, %v254
  %v291 = vpack.c.b16 %v259, %v255
  %324 = vmatprep.subr.bf16.mxu0 %v289
  %325 = vmatpush1.bf16.xpose.msra.mxu0 %v288
  %326 = vmatprep.subr.bf16.mxu0 %v285
  %327 = vmatpush1.bf16.xpose.msra.mxu0 %v284
  %328 = vmatprep.subr.bf16.mxu0 %v281
  %329 = vmatpush1.bf16.xpose.msra.mxu0 %v280
  %330 = vmatprep.subr.bf16.mxu0 %v277
  %331 = vmatpush1.bf16.xpose.msra.mxu0 %v276
  %332 = vmatprep.subr.bf16.mxu0 %v273
  %333 = vmatpush1.bf16.xpose.msra.mxu0 %v272
  %334 = vmatprep.subr.bf16.mxu0 %v269
  %335 = vmatpush1.bf16.xpose.msra.mxu0 %v268
  %336 = vmatprep.subr.bf16.mxu0 %v265
  %337 = vmatpush1.bf16.xpose.msra.mxu0 %v264
  %338 = vmatprep.subr.bf16.mxu0 %v261
  %339 = vmatpush1.bf16.xpose.msra.mxu0 %v260
  %340 = vmatprep.subr.bf16.mxu0 0
  %341 = vmatpush2.bf16.xpose.msra.mxu0 0
  %342 = vmatprep.subr.bf16.mxu0 0
  %343 = vmatpush2.bf16.xpose.msra.mxu0 0
  %344 = vmatprep.subr.bf16.mxu0 0
  %345 = vmatpush2.bf16.xpose.msra.mxu0 0
  %346 = vmatprep.subr.bf16.mxu0 0
  %347 = vmatpush2.bf16.xpose.msra.mxu0 0
  %348 = vmatprep.subr.bf16.mxu0 0
  %349 = vmatpush2.bf16.xpose.msra.mxu0 0
  %350 = vmatprep.subr.bf16.mxu0 0
  %351 = vmatpush2.bf16.xpose.msra.mxu0 0
  %352 = vmatprep.subr.bf16.mxu0 0
  %353 = vmatpush2.bf16.xpose.msra.mxu0 0
  %354 = vmatprep.subr.bf16.mxu0 0
  %355 = vmatpush2.bf16.xpose.msra.mxu0 0
  %356 = vmatprep.mubr.bf16.mxu0 %v133
  %357 = vmatmul.mubr.bf16.gmra.mxu0 %v132
  %v358 = vpop.f32.mrf.mxu0
  %v359 = vadd.f32 0.0, %v358
  %v360 = vpop.f32.mrf.mxu0
  %v361 = vpop.f32.mrf.mxu0
  %v362 = vadd.f32 0.0, %v361
  %v363 = vpop.f32.mrf.mxu0
  %364 = vmatprep.mubr.bf16.mxu0 %v137
  %365 = vmatmul.mubr.bf16.gmra.mxu0 %v136
  %v366 = vpop.f32.mrf.mxu0
  %v367 = vadd.f32 0.0, %v366
  %v368 = vpop.f32.mrf.mxu0
  %v369 = vpop.f32.mrf.mxu0
  %v370 = vadd.f32 0.0, %v369
  %v371 = vpop.f32.mrf.mxu0
  %372 = vmatprep.mubr.bf16.mxu0 %v141
  %373 = vmatmul.mubr.bf16.gmra.mxu0 %v140
  %v374 = vpop.f32.mrf.mxu0
  %v375 = vadd.f32 0.0, %v374
  %v376 = vpop.f32.mrf.mxu0
  %v377 = vpop.f32.mrf.mxu0
  %v378 = vadd.f32 0.0, %v377
  %v379 = vpop.f32.mrf.mxu0
  %380 = vmatprep.mubr.bf16.mxu0 %v145
  %381 = vmatmul.mubr.bf16.gmra.mxu0 %v144
  %v382 = vpop.f32.mrf.mxu0
  %v383 = vadd.f32 0.0, %v382
  %v384 = vpop.f32.mrf.mxu0
  %v385 = vpop.f32.mrf.mxu0
  %v386 = vadd.f32 0.0, %v385
  %v387 = vpop.f32.mrf.mxu0
  %388 = vdwg.mxu0
  %389 = vmatprep.subr.bf16.mxu0 %v291
  %390 = vmatpush1.bf16.xpose.msra.mxu0 %v290
  %391 = vmatprep.subr.bf16.mxu0 %v287
  %392 = vmatpush1.bf16.xpose.msra.mxu0 %v286
  %393 = vmatprep.subr.bf16.mxu0 %v283
  %394 = vmatpush1.bf16.xpose.msra.mxu0 %v282
  %395 = vmatprep.subr.bf16.mxu0 %v279
  %396 = vmatpush1.bf16.xpose.msra.mxu0 %v278
  %397 = vmatprep.subr.bf16.mxu0 %v275
  %398 = vmatpush1.bf16.xpose.msra.mxu0 %v274
  %399 = vmatprep.subr.bf16.mxu0 %v271
  %400 = vmatpush1.bf16.xpose.msra.mxu0 %v270
  %401 = vmatprep.subr.bf16.mxu0 %v267
  %402 = vmatpush1.bf16.xpose.msra.mxu0 %v266
  %403 = vmatprep.subr.bf16.mxu0 %v263
  %404 = vmatpush1.bf16.xpose.msra.mxu0 %v262
  %405 = vmatprep.subr.bf16.mxu0 0
  %406 = vmatpush2.bf16.xpose.msra.mxu0 0
  %407 = vmatprep.subr.bf16.mxu0 0
  %408 = vmatpush2.bf16.xpose.msra.mxu0 0
  %409 = vmatprep.subr.bf16.mxu0 0
  %410 = vmatpush2.bf16.xpose.msra.mxu0 0
  %411 = vmatprep.subr.bf16.mxu0 0
  %412 = vmatpush2.bf16.xpose.msra.mxu0 0
  %413 = vmatprep.subr.bf16.mxu0 0
  %414 = vmatpush2.bf16.xpose.msra.mxu0 0
  %415 = vmatprep.subr.bf16.mxu0 0
  %416 = vmatpush2.bf16.xpose.msra.mxu0 0
  %417 = vmatprep.subr.bf16.mxu0 0
  %418 = vmatpush2.bf16.xpose.msra.mxu0 0
  %419 = vmatprep.subr.bf16.mxu0 0
  %420 = vmatpush2.bf16.xpose.msra.mxu0 0
  %421 = vmatprep.mubr.bf16.mxu0 %v135
  %422 = vmatmul.mubr.bf16.gmra.mxu0 %v134
  %v423 = vpop.f32.mrf.mxu0
  %v424 = vadd.f32 %v359, %v423
  %v425 = vpop.f32.mrf.mxu0
  %v426 = vpop.f32.mrf.mxu0
  %v427 = vadd.f32 %v362, %v426
  %v428 = vpop.f32.mrf.mxu0
  %429 = vmatprep.mubr.bf16.mxu0 %v139
  %430 = vmatmul.mubr.bf16.gmra.mxu0 %v138
  %v431 = vpop.f32.mrf.mxu0
  %v432 = vadd.f32 %v367, %v431
  %v433 = vpop.f32.mrf.mxu0
  %v434 = vpop.f32.mrf.mxu0
  %v435 = vadd.f32 %v370, %v434
  %v436 = vpop.f32.mrf.mxu0
  %437 = vmatprep.mubr.bf16.mxu0 %v143
  %438 = vmatmul.mubr.bf16.gmra.mxu0 %v142
  %v439 = vpop.f32.mrf.mxu0
  %v440 = vadd.f32 %v375, %v439
  %v441 = vpop.f32.mrf.mxu0
  %v442 = vpop.f32.mrf.mxu0
  %v443 = vadd.f32 %v378, %v442
  %v444 = vpop.f32.mrf.mxu0
  %445 = vmatprep.mubr.bf16.mxu0 %v147
  %446 = vmatmul.mubr.bf16.gmra.mxu0 %v146
  %v447 = vpop.f32.mrf.mxu0
  %v448 = vadd.f32 %v383, %v447
  %v449 = vpop.f32.mrf.mxu0
  %v450 = vpop.f32.mrf.mxu0
  %v451 = vadd.f32 %v386, %v450
  %v452 = vpop.f32.mrf.mxu0
  %453 = vdwg.mxu0
  %v454 = vpack.c.bf16 %v427, %v424
  %v455 = vpack.c.bf16 %v435, %v432
  %v456 = vpack.c.bf16 %v443, %v440
  %v457 = vpack.c.bf16 %v451, %v448
  %v462 = vunpack.c.l.b16 %v454
  %v463 = vunpack.c.h.b16 %v454
  %v464 = vunpack.c.l.b16 %v455
  %v465 = vunpack.c.h.b16 %v455
  %v466 = vunpack.c.l.b16 %v456
  %v467 = vunpack.c.h.b16 %v456
  %v468 = vunpack.c.l.b16 %v457
  %v469 = vunpack.c.h.b16 %v457
  %v470 = vpack.c.b16 %v462, %v462
  %v471 = vpack.c.b16 %v463, %v463
  %v472 = vpack.c.b16 %v464, %v464
  %v473 = vpack.c.b16 %v465, %v465
  %v474 = vpack.c.b16 %v466, %v466
  %v475 = vpack.c.b16 %v467, %v467
  %v476 = vpack.c.b16 %v468, %v468
  %v477 = vpack.c.b16 %v469, %v469
  %486 = vst [vmem:[%s2] sm:$0xf] %v470
  %487 = vst [vmem:[%s2 + $0x4] sm:$0xf] %v471
  %488 = vst [vmem:[%s2 + $0x8] sm:$0xf] %v472
  %489 = vst [vmem:[%s2 + $0xc] sm:$0xf] %v473
  %490 = vst [vmem:[%s2 + $0x10] sm:$0xf] %v474
  %491 = vst [vmem:[%s2 + $0x14] sm:$0xf] %v475
  %492 = vst [vmem:[%s2 + $0x18] sm:$0xf] %v476
  %493 = vst [vmem:[%s2 + $0x1c] sm:$0xf] %v477
  %v494 = vld [vmem:[%s3] sm:$0xff]
  %v495 = vld [vmem:[%s3 + $0x8] sm:$0xff]
  %v496 = vld [vmem:[%s3 + $0x10] sm:$0xff]
  %v497 = vld [vmem:[%s3 + $0x18] sm:$0xff]
  %v498 = vld [vmem:[%s3 + $0x20] sm:$0xff]
  %v499 = vld [vmem:[%s3 + $0x28] sm:$0xff]
  %v500 = vld [vmem:[%s3 + $0x30] sm:$0xff]
  %v501 = vld [vmem:[%s3 + $0x38] sm:$0xff]
  %502 = vadd.xlane.f32.xlu0 %v424
  %v503 = vpop.xlane.xlu0 %502
  %504 = vadd.xlane.f32.xlu0 %v427
  %v505 = vpop.xlane.xlu0 %504
  %506 = vadd.xlane.f32.xlu0 %v432
  %v507 = vpop.xlane.xlu0 %506
  %508 = vadd.xlane.f32.xlu0 %v435
  %v509 = vpop.xlane.xlu0 %508
  %510 = vadd.xlane.f32.xlu0 %v440
  %v511 = vpop.xlane.xlu0 %510
  %512 = vadd.xlane.f32.xlu0 %v443
  %v513 = vpop.xlane.xlu0 %512
  %514 = vadd.xlane.f32.xlu0 %v448
  %v515 = vpop.xlane.xlu0 %514
  %516 = vadd.xlane.f32.xlu0 %v451
  %v517 = vpop.xlane.xlu0 %516
  %v518 = vadd.f32 %v494, %v503
  %v519 = vadd.f32 %v495, %v505
  %v520 = vadd.f32 %v496, %v507
  %v521 = vadd.f32 %v497, %v509
  %v522 = vadd.f32 %v498, %v511
  %v523 = vadd.f32 %v499, %v513
  %v524 = vadd.f32 %v500, %v515
  %v525 = vadd.f32 %v501, %v517
  %vm526 = vcmask 7168
  %527 = vst.msk [vmem:[%s3] sm:$0xff] %vm526, %v518
  %528 = vst.msk [vmem:[%s3 + $0x8] sm:$0xff] %vm526, %v519
  %529 = vst.msk [vmem:[%s3 + $0x10] sm:$0xff] %vm526, %v520
  %530 = vst.msk [vmem:[%s3 + $0x18] sm:$0xff] %vm526, %v521
  %531 = vst.msk [vmem:[%s3 + $0x20] sm:$0xff] %vm526, %v522
  %532 = vst.msk [vmem:[%s3 + $0x28] sm:$0xff] %vm526, %v523
  %533 = vst.msk [vmem:[%s3 + $0x30] sm:$0xff] %vm526, %v524
  %534 = vst.msk [vmem:[%s3 + $0x38] sm:$0xff] %vm526, %v525
  %v535 = vld [vmem:[%s4] sm:$0xff]
  %v536 = vld [vmem:[%s4 + $0x8] sm:$0xff]
  %v537 = vld [vmem:[%s4 + $0x10] sm:$0xff]
  %v538 = vld [vmem:[%s4 + $0x18] sm:$0xff]
  %v539 = vld [vmem:[%s4 + $0x20] sm:$0xff]
  %v540 = vld [vmem:[%s4 + $0x28] sm:$0xff]
  %v541 = vld [vmem:[%s4 + $0x30] sm:$0xff]
  %v542 = vld [vmem:[%s4 + $0x38] sm:$0xff]
  %v543 = vmul.f32 %v424, %v424
  %v544 = vmul.f32 %v427, %v427
  %v545 = vmul.f32 %v432, %v432
  %v546 = vmul.f32 %v435, %v435
  %v547 = vmul.f32 %v440, %v440
  %v548 = vmul.f32 %v443, %v443
  %v549 = vmul.f32 %v448, %v448
  %v550 = vmul.f32 %v451, %v451
  %551 = vadd.xlane.f32.xlu0 %v543
  %v552 = vpop.xlane.xlu0 %551
  %553 = vadd.xlane.f32.xlu0 %v544
  %v554 = vpop.xlane.xlu0 %553
  %555 = vadd.xlane.f32.xlu0 %v545
  %v556 = vpop.xlane.xlu0 %555
  %557 = vadd.xlane.f32.xlu0 %v546
  %v558 = vpop.xlane.xlu0 %557
  %559 = vadd.xlane.f32.xlu0 %v547
  %v560 = vpop.xlane.xlu0 %559
  %561 = vadd.xlane.f32.xlu0 %v548
  %v562 = vpop.xlane.xlu0 %561
  %563 = vadd.xlane.f32.xlu0 %v549
  %v564 = vpop.xlane.xlu0 %563
  %565 = vadd.xlane.f32.xlu0 %v550
  %v566 = vpop.xlane.xlu0 %565
  %v567 = vadd.f32 %v535, %v552
  %v568 = vadd.f32 %v536, %v554
  %v569 = vadd.f32 %v537, %v556
  %v570 = vadd.f32 %v538, %v558
  %v571 = vadd.f32 %v539, %v560
  %v572 = vadd.f32 %v540, %v562
  %v573 = vadd.f32 %v541, %v564
  %v574 = vadd.f32 %v542, %v566
  %575 = vst.msk [vmem:[%s4] sm:$0xff] %vm526, %v567
  %576 = vst.msk [vmem:[%s4 + $0x8] sm:$0xff] %vm526, %v568
  %577 = vst.msk [vmem:[%s4 + $0x10] sm:$0xff] %vm526, %v569
  %578 = vst.msk [vmem:[%s4 + $0x18] sm:$0xff] %vm526, %v570
  %579 = vst.msk [vmem:[%s4 + $0x20] sm:$0xff] %vm526, %v571
  %580 = vst.msk [vmem:[%s4 + $0x28] sm:$0xff] %vm526, %v572
  %581 = vst.msk [vmem:[%s4 + $0x30] sm:$0xff] %vm526, %v573
  %582 = vst.msk [vmem:[%s4 + $0x38] sm:$0xff] %vm526, %v574
  // Predicated region
  $region14: #{discriminator_forward.13} parent=0 // pred_check
    _
  $region15: #{discriminator_forward.13} parent=0 // pred_check_branch
    %584 = sbr.rel (0) target = $region17
  $region16: #{discriminator_forward.13} parent=0 // pred_region
    _
  $region17: #{discriminator_forward.13} parent=0 // pred_fallthru
    _
  // Predicated region
  $region18: #{discriminator_forward.13} parent=0 // pred_check
    _
  $region19: #{discriminator_forward.13} parent=0 // pred_check_branch
    %586 = sbr.rel (0) target = $region21
  $region20: #{discriminator_forward.13} parent=0 // pred_region
    _
  $region21: #{discriminator_forward.13} parent=0 // pred_fallthru
    _
  // Predicated region
  $region22: #{discriminator_forward.13} parent=0 // pred_check
    _
  $region23: #{discriminator_forward.13} parent=0 // pred_check_branch
    %588 = sbr.rel (0) target = $region25
  $region24: #{discriminator_forward.13} parent=0 // pred_region
    _
  $region25: #{discriminator_forward.13} parent=0 // pred_fallthru
    _
  // Predicated region
  $region26: #{discriminator_forward.13} parent=0 // pred_check
    _
  $region27: #{discriminator_forward.13} parent=0 // pred_check_branch
    %590 = sbr.rel (0) target = $region29
  $region28: #{discriminator_forward.13} parent=0 // pred_region
    _
  $region29: #{discriminator_forward.13} parent=0 // pred_fallthru
    _
  // Predicated region
  $region30: #{discriminator_forward.13} parent=0 // pred_check
    _
  $region31: #{discriminator_forward.13} parent=0 // pred_check_branch
    %592 = sbr.rel (0) target = $region33
  $region32: #{discriminator_forward.13} parent=0 // pred_region
    _
  $region33: #{discriminator_forward.13} parent=0 // pred_fallthru
    _
  // Predicated region
  $region34: #{discriminator_forward.13} parent=0 // pred_check
    _
  $region35: #{discriminator_forward.13} parent=0 // pred_check_branch
    %594 = sbr.rel (0) target = $region37
  $region36: #{discriminator_forward.13} parent=0 // pred_region
    _
  $region37: #{discriminator_forward.13} parent=0 // pred_fallthru
    _

// kernel: discriminator_forward.15
$region0: #{discriminator_forward.15}
  #allocation0 [shape = 'u32[]', space=smem, size = 0x4, offset = 0x4, fixed_abs, tag = 'smem constant byte address 0x4 - core index']
  #allocation1 [shape = 'u32[144,128]{1,0:T(1,128)}', space=vmem, size = 0x12000, scoped, tag = 'internal scratch']
  #allocation2 [shape = 'f32[1,1]{1,0:T(1,128)S(1)}', space=vmem, size = 0x200, scoped, tag = 'scoped memory for discriminator_forward.15']
  %s0 = inlined_call_operand.vmem [shape: bf16[128,1024], index: 0, kind: input, shape index: {}]
  %s1 = inlined_call_operand.vmem [shape: bf16[1,1024], index: 1, kind: input, shape index: {}]
  %s2 = inlined_call_operand.<no memory space> [shape: f32[1,1], index: 2, kind: input, shape index: {}]
  %s3 = inlined_call_operand.vmem [shape: f32[1,128], index: 3, kind: output, shape index: {}]
  %s4 = sld [smem:[#allocation0]]
  $region22: #{discriminator_forward.15} parent=0
    _
  %s6 = ssub.s32 1, %s4
  %s7 = scalar_select 0, %s6, %s4
  %v8 = vstv %s2
  %9 = vst [vmem:[#allocation2] sm:$0x1] %v8
  // Predicated region
  $region2: #{discriminator_forward.15} parent=0 // pred_check
    _
  $region3: #{discriminator_forward.15} parent=0 // pred_check_branch
    %11 = sbr.rel (0) target = $region5
  $region4: #{discriminator_forward.15} parent=0 // pred_region
    _
  $region5: #{discriminator_forward.15} parent=0 // pred_fallthru
    _
  // Predicated region
  $region6: #{discriminator_forward.15} parent=0 // pred_check
    _
  $region7: #{discriminator_forward.15} parent=0 // pred_check_branch
    %13 = sbr.rel (0) target = $region9
  $region8: #{discriminator_forward.15} parent=0 // pred_region
    _
  $region9: #{discriminator_forward.15} parent=0 // pred_fallthru
    _
  // Predicated region
  $region10: #{discriminator_forward.15} parent=0 // pred_check
    _
  $region11: #{discriminator_forward.15} parent=0 // pred_check_branch
    %15 = sbr.rel (0) target = $region13
  $region12: #{discriminator_forward.15} parent=0 // pred_region
    _
  $region13: #{discriminator_forward.15} parent=0 // pred_fallthru
    _
  %v17 = vld [vmem:[%s1] sm:$0xff]
  %v18 = vld [vmem:[%s0] sm:$0xff]
  %v19 = vld [vmem:[%s0 + $0x8] sm:$0xff]
  %v20 = vld [vmem:[%s0 + $0x10] sm:$0xff]
  %v21 = vld [vmem:[%s0 + $0x18] sm:$0xff]
  %v22 = vld [vmem:[%s0 + $0x20] sm:$0xff]
  %v23 = vld [vmem:[%s0 + $0x28] sm:$0xff]
  %v24 = vld [vmem:[%s0 + $0x30] sm:$0xff]
  %v25 = vld [vmem:[%s0 + $0x38] sm:$0xff]
  %v26 = vld [vmem:[%s0 + $0x40] sm:$0xff]
  %v27 = vld [vmem:[%s0 + $0x48] sm:$0xff]
  %v28 = vld [vmem:[%s0 + $0x50] sm:$0xff]
  %v29 = vld [vmem:[%s0 + $0x58] sm:$0xff]
  %v30 = vld [vmem:[%s0 + $0x60] sm:$0xff]
  %v31 = vld [vmem:[%s0 + $0x68] sm:$0xff]
  %v32 = vld [vmem:[%s0 + $0x70] sm:$0xff]
  %v33 = vld [vmem:[%s0 + $0x78] sm:$0xff]
  %v34 = vld [vmem:[%s0 + $0x80] sm:$0xff]
  %v35 = vld [vmem:[%s0 + $0x88] sm:$0xff]
  %v36 = vld [vmem:[%s0 + $0x90] sm:$0xff]
  %v37 = vld [vmem:[%s0 + $0x98] sm:$0xff]
  %v38 = vld [vmem:[%s0 + $0xa0] sm:$0xff]
  %v39 = vld [vmem:[%s0 + $0xa8] sm:$0xff]
  %v40 = vld [vmem:[%s0 + $0xb0] sm:$0xff]
  %v41 = vld [vmem:[%s0 + $0xb8] sm:$0xff]
  %v42 = vld [vmem:[%s0 + $0xc0] sm:$0xff]
  %v43 = vld [vmem:[%s0 + $0xc8] sm:$0xff]
  %v44 = vld [vmem:[%s0 + $0xd0] sm:$0xff]
  %v45 = vld [vmem:[%s0 + $0xd8] sm:$0xff]
  %v46 = vld [vmem:[%s0 + $0xe0] sm:$0xff]
  %v47 = vld [vmem:[%s0 + $0xe8] sm:$0xff]
  %v48 = vld [vmem:[%s0 + $0xf0] sm:$0xff]
  %v49 = vld [vmem:[%s0 + $0xf8] sm:$0xff]
  %v50 = vld [vmem:[%s0 + $0x100] sm:$0xff]
  %v51 = vld [vmem:[%s0 + $0x108] sm:$0xff]
  %v52 = vld [vmem:[%s0 + $0x110] sm:$0xff]
  %v53 = vld [vmem:[%s0 + $0x118] sm:$0xff]
  %v54 = vld [vmem:[%s0 + $0x120] sm:$0xff]
  %v55 = vld [vmem:[%s0 + $0x128] sm:$0xff]
  %v56 = vld [vmem:[%s0 + $0x130] sm:$0xff]
  %v57 = vld [vmem:[%s0 + $0x138] sm:$0xff]
  %v58 = vld [vmem:[%s0 + $0x140] sm:$0xff]
  %v59 = vld [vmem:[%s0 + $0x148] sm:$0xff]
  %v60 = vld [vmem:[%s0 + $0x150] sm:$0xff]
  %v61 = vld [vmem:[%s0 + $0x158] sm:$0xff]
  %v62 = vld [vmem:[%s0 + $0x160] sm:$0xff]
  %v63 = vld [vmem:[%s0 + $0x168] sm:$0xff]
  %v64 = vld [vmem:[%s0 + $0x170] sm:$0xff]
  %v65 = vld [vmem:[%s0 + $0x178] sm:$0xff]
  %v66 = vld [vmem:[%s0 + $0x180] sm:$0xff]
  %v67 = vld [vmem:[%s0 + $0x188] sm:$0xff]
  %v68 = vld [vmem:[%s0 + $0x190] sm:$0xff]
  %v69 = vld [vmem:[%s0 + $0x198] sm:$0xff]
  %v70 = vld [vmem:[%s0 + $0x1a0] sm:$0xff]
  %v71 = vld [vmem:[%s0 + $0x1a8] sm:$0xff]
  %v72 = vld [vmem:[%s0 + $0x1b0] sm:$0xff]
  %v73 = vld [vmem:[%s0 + $0x1b8] sm:$0xff]
  %v74 = vld [vmem:[%s0 + $0x1c0] sm:$0xff]
  %v75 = vld [vmem:[%s0 + $0x1c8] sm:$0xff]
  %v76 = vld [vmem:[%s0 + $0x1d0] sm:$0xff]
  %v77 = vld [vmem:[%s0 + $0x1d8] sm:$0xff]
  %v78 = vld [vmem:[%s0 + $0x1e0] sm:$0xff]
  %v79 = vld [vmem:[%s0 + $0x1e8] sm:$0xff]
  %v80 = vld [vmem:[%s0 + $0x1f0] sm:$0xff]
  %v81 = vld [vmem:[%s0 + $0x1f8] sm:$0xff]
  %v82 = vld [vmem:[#allocation2] sm:$0x1]
  %84 = vset.pattern.permute.xlu0 0
  %85 = vperm.xlu0 %84, %v82
  %v86 = vpop.permute.xlu0 %85
  %v88 = vlaneseq
  %v89 = vshrl.u32 %v88, 7
  %v90 = vsub.s32 0, %v89
  %v91 = vrot.slane %v86, %v90
  %v93 = vcombine.high %v17, %v17
  %v95 = vunpack.c.l.s4 1966171168
  %v96 = vunpack.c.0.s8 %v95
  %v97 = vlaneseq
  %v98 = vshrl.u32 %v97, 7
  %v99 = vsub.s32 %v96, %v98
  %v100 = vrot.slane %v17, %v99
  %v102 = vunpack.c.l.s4 1966171168
  %v103 = vunpack.c.0.s8 %v102
  %v104 = vlaneseq
  %v105 = vshrl.u32 %v104, 7
  %v106 = vsub.s32 %v103, %v105
  %v107 = vrot.slane %v93, %v106
  %v108 = vcombine.high %v100, %v100
  %v109 = vcombine.high %v107, %v107
  %v111 = vunpack.c.l.s4 1966171168
  %v112 = vunpack.c.0.s8 %v111
  %v113 = vlaneseq
  %v114 = vshrl.u32 %v113, 7
  %v115 = vsub.s32 %v112, %v114
  %v116 = vrot.slane %v100, %v115
  %v118 = vunpack.c.l.s4 1966171168
  %v119 = vunpack.c.0.s8 %v118
  %v120 = vlaneseq
  %v121 = vshrl.u32 %v120, 7
  %v122 = vsub.s32 %v119, %v121
  %v123 = vrot.slane %v107, %v122
  %v125 = vunpack.c.l.s4 1966171168
  %v126 = vunpack.c.0.s8 %v125
  %v127 = vlaneseq
  %v128 = vshrl.u32 %v127, 7
  %v129 = vsub.s32 %v126, %v128
  %v130 = vrot.slane %v108, %v129
  %v132 = vunpack.c.l.s4 1966171168
  %v133 = vunpack.c.0.s8 %v132
  %v134 = vlaneseq
  %v135 = vshrl.u32 %v134, 7
  %v136 = vsub.s32 %v133, %v135
  %v137 = vrot.slane %v109, %v136
  %v138 = vcombine.high %v116, %v116
  %v139 = vcombine.high %v123, %v123
  %v140 = vcombine.high %v130, %v130
  %v141 = vcombine.high %v137, %v137
  %v214 = vunpack.c.l.b16 %v18
  %v215 = vunpack.c.h.b16 %v18
  %v216 = vunpack.c.l.b16 %v19
  %v217 = vunpack.c.h.b16 %v19
  %v218 = vunpack.c.l.b16 %v20
  %v219 = vunpack.c.h.b16 %v20
  %v220 = vunpack.c.l.b16 %v21
  %v221 = vunpack.c.h.b16 %v21
  %v222 = vunpack.c.l.b16 %v22
  %v223 = vunpack.c.h.b16 %v22
  %v224 = vunpack.c.l.b16 %v23
  %v225 = vunpack.c.h.b16 %v23
  %v226 = vunpack.c.l.b16 %v24
  %v227 = vunpack.c.h.b16 %v24
  %v228 = vunpack.c.l.b16 %v25
  %v229 = vunpack.c.h.b16 %v25
  %v230 = vunpack.c.l.b16 %v26
  %v231 = vunpack.c.h.b16 %v26
  %v232 = vunpack.c.l.b16 %v27
  %v233 = vunpack.c.h.b16 %v27
  %v234 = vunpack.c.l.b16 %v28
  %v235 = vunpack.c.h.b16 %v28
  %v236 = vunpack.c.l.b16 %v29
  %v237 = vunpack.c.h.b16 %v29
  %v238 = vunpack.c.l.b16 %v30
  %v239 = vunpack.c.h.b16 %v30
  %v240 = vunpack.c.l.b16 %v31
  %v241 = vunpack.c.h.b16 %v31
  %v242 = vunpack.c.l.b16 %v32
  %v243 = vunpack.c.h.b16 %v32
  %v244 = vunpack.c.l.b16 %v33
  %v245 = vunpack.c.h.b16 %v33
  %v246 = vunpack.c.l.b16 %v34
  %v247 = vunpack.c.h.b16 %v34
  %v248 = vunpack.c.l.b16 %v35
  %v249 = vunpack.c.h.b16 %v35
  %v250 = vunpack.c.l.b16 %v36
  %v251 = vunpack.c.h.b16 %v36
  %v252 = vunpack.c.l.b16 %v37
  %v253 = vunpack.c.h.b16 %v37
  %v254 = vunpack.c.l.b16 %v38
  %v255 = vunpack.c.h.b16 %v38
  %v256 = vunpack.c.l.b16 %v39
  %v257 = vunpack.c.h.b16 %v39
  %v258 = vunpack.c.l.b16 %v40
  %v259 = vunpack.c.h.b16 %v40
  %v260 = vunpack.c.l.b16 %v41
  %v261 = vunpack.c.h.b16 %v41
  %v262 = vunpack.c.l.b16 %v42
  %v263 = vunpack.c.h.b16 %v42
  %v264 = vunpack.c.l.b16 %v43
  %v265 = vunpack.c.h.b16 %v43
  %v266 = vunpack.c.l.b16 %v44
  %v267 = vunpack.c.h.b16 %v44
  %v268 = vunpack.c.l.b16 %v45
  %v269 = vunpack.c.h.b16 %v45
  %v270 = vunpack.c.l.b16 %v46
  %v271 = vunpack.c.h.b16 %v46
  %v272 = vunpack.c.l.b16 %v47
  %v273 = vunpack.c.h.b16 %v47
  %v274 = vunpack.c.l.b16 %v48
  %v275 = vunpack.c.h.b16 %v48
  %v276 = vunpack.c.l.b16 %v49
  %v277 = vunpack.c.h.b16 %v49
  %v278 = vunpack.c.l.b16 %v50
  %v279 = vunpack.c.h.b16 %v50
  %v280 = vunpack.c.l.b16 %v51
  %v281 = vunpack.c.h.b16 %v51
  %v282 = vunpack.c.l.b16 %v52
  %v283 = vunpack.c.h.b16 %v52
  %v284 = vunpack.c.l.b16 %v53
  %v285 = vunpack.c.h.b16 %v53
  %v286 = vunpack.c.l.b16 %v54
  %v287 = vunpack.c.h.b16 %v54
  %v288 = vunpack.c.l.b16 %v55
  %v289 = vunpack.c.h.b16 %v55
  %v290 = vunpack.c.l.b16 %v56
  %v291 = vunpack.c.h.b16 %v56
  %v292 = vunpack.c.l.b16 %v57
  %v293 = vunpack.c.h.b16 %v57
  %v294 = vunpack.c.l.b16 %v58
  %v295 = vunpack.c.h.b16 %v58
  %v296 = vunpack.c.l.b16 %v59
  %v297 = vunpack.c.h.b16 %v59
  %v298 = vunpack.c.l.b16 %v60
  %v299 = vunpack.c.h.b16 %v60
  %v300 = vunpack.c.l.b16 %v61
  %v301 = vunpack.c.h.b16 %v61
  %v302 = vunpack.c.l.b16 %v62
  %v303 = vunpack.c.h.b16 %v62
  %v304 = vunpack.c.l.b16 %v63
  %v305 = vunpack.c.h.b16 %v63
  %v306 = vunpack.c.l.b16 %v64
  %v307 = vunpack.c.h.b16 %v64
  %v308 = vunpack.c.l.b16 %v65
  %v309 = vunpack.c.h.b16 %v65
  %v310 = vunpack.c.l.b16 %v66
  %v311 = vunpack.c.h.b16 %v66
  %v312 = vunpack.c.l.b16 %v67
  %v313 = vunpack.c.h.b16 %v67
  %v314 = vunpack.c.l.b16 %v68
  %v315 = vunpack.c.h.b16 %v68
  %v316 = vunpack.c.l.b16 %v69
  %v317 = vunpack.c.h.b16 %v69
  %v318 = vunpack.c.l.b16 %v70
  %v319 = vunpack.c.h.b16 %v70
  %v320 = vunpack.c.l.b16 %v71
  %v321 = vunpack.c.h.b16 %v71
  %v322 = vunpack.c.l.b16 %v72
  %v323 = vunpack.c.h.b16 %v72
  %v324 = vunpack.c.l.b16 %v73
  %v325 = vunpack.c.h.b16 %v73
  %v326 = vunpack.c.l.b16 %v74
  %v327 = vunpack.c.h.b16 %v74
  %v328 = vunpack.c.l.b16 %v75
  %v329 = vunpack.c.h.b16 %v75
  %v330 = vunpack.c.l.b16 %v76
  %v331 = vunpack.c.h.b16 %v76
  %v332 = vunpack.c.l.b16 %v77
  %v333 = vunpack.c.h.b16 %v77
  %v334 = vunpack.c.l.b16 %v78
  %v335 = vunpack.c.h.b16 %v78
  %v336 = vunpack.c.l.b16 %v79
  %v337 = vunpack.c.h.b16 %v79
  %v338 = vunpack.c.l.b16 %v80
  %v339 = vunpack.c.h.b16 %v80
  %v340 = vunpack.c.l.b16 %v81
  %v341 = vunpack.c.h.b16 %v81
  %v342 = vpack.c.b16 %v222, %v214
  %v343 = vpack.c.b16 %v223, %v215
  %v344 = vpack.c.b16 %v224, %v216
  %v345 = vpack.c.b16 %v225, %v217
  %v346 = vpack.c.b16 %v226, %v218
  %v347 = vpack.c.b16 %v227, %v219
  %v348 = vpack.c.b16 %v228, %v220
  %v349 = vpack.c.b16 %v229, %v221
  %v350 = vpack.c.b16 %v238, %v230
  %v351 = vpack.c.b16 %v239, %v231
  %v352 = vpack.c.b16 %v240, %v232
  %v353 = vpack.c.b16 %v241, %v233
  %v354 = vpack.c.b16 %v242, %v234
  %v355 = vpack.c.b16 %v243, %v235
  %v356 = vpack.c.b16 %v244, %v236
  %v357 = vpack.c.b16 %v245, %v237
  %v358 = vpack.c.b16 %v254, %v246
  %v359 = vpack.c.b16 %v255, %v247
  %v360 = vpack.c.b16 %v256, %v248
  %v361 = vpack.c.b16 %v257, %v249
  %v362 = vpack.c.b16 %v258, %v250
  %v363 = vpack.c.b16 %v259, %v251
  %v364 = vpack.c.b16 %v260, %v252
  %v365 = vpack.c.b16 %v261, %v253
  %v366 = vpack.c.b16 %v270, %v262
  %v367 = vpack.c.b16 %v271, %v263
  %v368 = vpack.c.b16 %v272, %v264
  %v369 = vpack.c.b16 %v273, %v265
  %v370 = vpack.c.b16 %v274, %v266
  %v371 = vpack.c.b16 %v275, %v267
  %v372 = vpack.c.b16 %v276, %v268
  %v373 = vpack.c.b16 %v277, %v269
  %v374 = vpack.c.b16 %v286, %v278
  %v375 = vpack.c.b16 %v287, %v279
  %v376 = vpack.c.b16 %v288, %v280
  %v377 = vpack.c.b16 %v289, %v281
  %v378 = vpack.c.b16 %v290, %v282
  %v379 = vpack.c.b16 %v291, %v283
  %v380 = vpack.c.b16 %v292, %v284
  %v381 = vpack.c.b16 %v293, %v285
  %v382 = vpack.c.b16 %v302, %v294
  %v383 = vpack.c.b16 %v303, %v295
  %v384 = vpack.c.b16 %v304, %v296
  %v385 = vpack.c.b16 %v305, %v297
  %v386 = vpack.c.b16 %v306, %v298
  %v387 = vpack.c.b16 %v307, %v299
  %v388 = vpack.c.b16 %v308, %v300
  %v389 = vpack.c.b16 %v309, %v301
  %v390 = vpack.c.b16 %v318, %v310
  %v391 = vpack.c.b16 %v319, %v311
  %v392 = vpack.c.b16 %v320, %v312
  %v393 = vpack.c.b16 %v321, %v313
  %v394 = vpack.c.b16 %v322, %v314
  %v395 = vpack.c.b16 %v323, %v315
  %v396 = vpack.c.b16 %v324, %v316
  %v397 = vpack.c.b16 %v325, %v317
  %v398 = vpack.c.b16 %v334, %v326
  %v399 = vpack.c.b16 %v335, %v327
  %v400 = vpack.c.b16 %v336, %v328
  %v401 = vpack.c.b16 %v337, %v329
  %v402 = vpack.c.b16 %v338, %v330
  %v403 = vpack.c.b16 %v339, %v331
  %v404 = vpack.c.b16 %v340, %v332
  %v405 = vpack.c.b16 %v341, %v333
  %470 = vmatprep.subr.bf16.mxu0 %v399
  %471 = vmatpush1.bf16.xpose.msra.mxu0 %v398
  %472 = vmatprep.subr.bf16.mxu0 %v391
  %473 = vmatpush1.bf16.xpose.msra.mxu0 %v390
  %474 = vmatprep.subr.bf16.mxu0 %v383
  %475 = vmatpush1.bf16.xpose.msra.mxu0 %v382
  %476 = vmatprep.subr.bf16.mxu0 %v375
  %477 = vmatpush1.bf16.xpose.msra.mxu0 %v374
  %478 = vmatprep.subr.bf16.mxu0 %v367
  %479 = vmatpush1.bf16.xpose.msra.mxu0 %v366
  %480 = vmatprep.subr.bf16.mxu0 %v359
  %481 = vmatpush1.bf16.xpose.msra.mxu0 %v358
  %482 = vmatprep.subr.bf16.mxu0 %v351
  %483 = vmatpush1.bf16.xpose.msra.mxu0 %v350
  %484 = vmatprep.subr.bf16.mxu0 %v343
  %485 = vmatpush1.bf16.xpose.msra.mxu0 %v342
  %486 = vmatprep.subr.bf16.mxu0 0
  %487 = vmatpush2.bf16.xpose.msra.mxu0 0
  %488 = vmatprep.subr.bf16.mxu0 0
  %489 = vmatpush2.bf16.xpose.msra.mxu0 0
  %490 = vmatprep.subr.bf16.mxu0 0
  %491 = vmatpush2.bf16.xpose.msra.mxu0 0
  %492 = vmatprep.subr.bf16.mxu0 0
  %493 = vmatpush2.bf16.xpose.msra.mxu0 0
  %494 = vmatprep.subr.bf16.mxu0 0
  %495 = vmatpush2.bf16.xpose.msra.mxu0 0
  %496 = vmatprep.subr.bf16.mxu0 0
  %497 = vmatpush2.bf16.xpose.msra.mxu0 0
  %498 = vmatprep.subr.bf16.mxu0 0
  %499 = vmatpush2.bf16.xpose.msra.mxu0 0
  %500 = vmatprep.subr.bf16.mxu0 0
  %501 = vmatpush2.bf16.xpose.msra.mxu0 0
  %502 = vmatprep.mubr.bf16.mxu0 %v130
  %503 = vmatmul.mubr.bf16.gmra.mxu0 %v116
  %v504 = vpop.f32.mrf.mxu0
  %v505 = vadd.f32 %v91, %v504
  %v506 = vpop.f32.mrf.mxu0
  %v507 = vpop.f32.mrf.mxu0
  %v508 = vpop.f32.mrf.mxu0
  %509 = vdwg.mxu0
  %510 = vmatprep.subr.bf16.mxu0 %v401
  %511 = vmatpush1.bf16.xpose.msra.mxu0 %v400
  %512 = vmatprep.subr.bf16.mxu0 %v393
  %513 = vmatpush1.bf16.xpose.msra.mxu0 %v392
  %514 = vmatprep.subr.bf16.mxu0 %v385
  %515 = vmatpush1.bf16.xpose.msra.mxu0 %v384
  %516 = vmatprep.subr.bf16.mxu0 %v377
  %517 = vmatpush1.bf16.xpose.msra.mxu0 %v376
  %518 = vmatprep.subr.bf16.mxu0 %v369
  %519 = vmatpush1.bf16.xpose.msra.mxu0 %v368
  %520 = vmatprep.subr.bf16.mxu0 %v361
  %521 = vmatpush1.bf16.xpose.msra.mxu0 %v360
  %522 = vmatprep.subr.bf16.mxu0 %v353
  %523 = vmatpush1.bf16.xpose.msra.mxu0 %v352
  %524 = vmatprep.subr.bf16.mxu0 %v345
  %525 = vmatpush1.bf16.xpose.msra.mxu0 %v344
  %526 = vmatprep.subr.bf16.mxu0 0
  %527 = vmatpush2.bf16.xpose.msra.mxu0 0
  %528 = vmatprep.subr.bf16.mxu0 0
  %529 = vmatpush2.bf16.xpose.msra.mxu0 0
  %530 = vmatprep.subr.bf16.mxu0 0
  %531 = vmatpush2.bf16.xpose.msra.mxu0 0
  %532 = vmatprep.subr.bf16.mxu0 0
  %533 = vmatpush2.bf16.xpose.msra.mxu0 0
  %534 = vmatprep.subr.bf16.mxu0 0
  %535 = vmatpush2.bf16.xpose.msra.mxu0 0
  %536 = vmatprep.subr.bf16.mxu0 0
  %537 = vmatpush2.bf16.xpose.msra.mxu0 0
  %538 = vmatprep.subr.bf16.mxu0 0
  %539 = vmatpush2.bf16.xpose.msra.mxu0 0
  %540 = vmatprep.subr.bf16.mxu0 0
  %541 = vmatpush2.bf16.xpose.msra.mxu0 0
  %542 = vmatprep.mubr.bf16.mxu0 %v140
  %543 = vmatmul.mubr.bf16.gmra.mxu0 %v138
  %v544 = vpop.f32.mrf.mxu0
  %v545 = vadd.f32 %v505, %v544
  %v546 = vpop.f32.mrf.mxu0
  %v547 = vpop.f32.mrf.mxu0
  %v548 = vpop.f32.mrf.mxu0
  %549 = vdwg.mxu0
  %550 = vmatprep.subr.bf16.mxu0 %v403
  %551 = vmatpush1.bf16.xpose.msra.mxu0 %v402
  %552 = vmatprep.subr.bf16.mxu0 %v395
  %553 = vmatpush1.bf16.xpose.msra.mxu0 %v394
  %554 = vmatprep.subr.bf16.mxu0 %v387
  %555 = vmatpush1.bf16.xpose.msra.mxu0 %v386
  %556 = vmatprep.subr.bf16.mxu0 %v379
  %557 = vmatpush1.bf16.xpose.msra.mxu0 %v378
  %558 = vmatprep.subr.bf16.mxu0 %v371
  %559 = vmatpush1.bf16.xpose.msra.mxu0 %v370
  %560 = vmatprep.subr.bf16.mxu0 %v363
  %561 = vmatpush1.bf16.xpose.msra.mxu0 %v362
  %562 = vmatprep.subr.bf16.mxu0 %v355
  %563 = vmatpush1.bf16.xpose.msra.mxu0 %v354
  %564 = vmatprep.subr.bf16.mxu0 %v347
  %565 = vmatpush1.bf16.xpose.msra.mxu0 %v346
  %566 = vmatprep.subr.bf16.mxu0 0
  %567 = vmatpush2.bf16.xpose.msra.mxu0 0
  %568 = vmatprep.subr.bf16.mxu0 0
  %569 = vmatpush2.bf16.xpose.msra.mxu0 0
  %570 = vmatprep.subr.bf16.mxu0 0
  %571 = vmatpush2.bf16.xpose.msra.mxu0 0
  %572 = vmatprep.subr.bf16.mxu0 0
  %573 = vmatpush2.bf16.xpose.msra.mxu0 0
  %574 = vmatprep.subr.bf16.mxu0 0
  %575 = vmatpush2.bf16.xpose.msra.mxu0 0
  %576 = vmatprep.subr.bf16.mxu0 0
  %577 = vmatpush2.bf16.xpose.msra.mxu0 0
  %578 = vmatprep.subr.bf16.mxu0 0
  %579 = vmatpush2.bf16.xpose.msra.mxu0 0
  %580 = vmatprep.subr.bf16.mxu0 0
  %581 = vmatpush2.bf16.xpose.msra.mxu0 0
  %582 = vmatprep.mubr.bf16.mxu0 %v137
  %583 = vmatmul.mubr.bf16.gmra.mxu0 %v123
  %v584 = vpop.f32.mrf.mxu0
  %v585 = vadd.f32 %v545, %v584
  %v586 = vpop.f32.mrf.mxu0
  %v587 = vpop.f32.mrf.mxu0
  %v588 = vpop.f32.mrf.mxu0
  %589 = vdwg.mxu0
  %590 = vmatprep.subr.bf16.mxu0 %v405
  %591 = vmatpush1.bf16.xpose.msra.mxu0 %v404
  %592 = vmatprep.subr.bf16.mxu0 %v397
  %593 = vmatpush1.bf16.xpose.msra.mxu0 %v396
  %594 = vmatprep.subr.bf16.mxu0 %v389
  %595 = vmatpush1.bf16.xpose.msra.mxu0 %v388
  %596 = vmatprep.subr.bf16.mxu0 %v381
  %597 = vmatpush1.bf16.xpose.msra.mxu0 %v380
  %598 = vmatprep.subr.bf16.mxu0 %v373
  %599 = vmatpush1.bf16.xpose.msra.mxu0 %v372
  %600 = vmatprep.subr.bf16.mxu0 %v365
  %601 = vmatpush1.bf16.xpose.msra.mxu0 %v364
  %602 = vmatprep.subr.bf16.mxu0 %v357
  %603 = vmatpush1.bf16.xpose.msra.mxu0 %v356
  %604 = vmatprep.subr.bf16.mxu0 %v349
  %605 = vmatpush1.bf16.xpose.msra.mxu0 %v348
  %606 = vmatprep.subr.bf16.mxu0 0
  %607 = vmatpush2.bf16.xpose.msra.mxu0 0
  %608 = vmatprep.subr.bf16.mxu0 0
  %609 = vmatpush2.bf16.xpose.msra.mxu0 0
  %610 = vmatprep.subr.bf16.mxu0 0
  %611 = vmatpush2.bf16.xpose.msra.mxu0 0
  %612 = vmatprep.subr.bf16.mxu0 0
  %613 = vmatpush2.bf16.xpose.msra.mxu0 0
  %614 = vmatprep.subr.bf16.mxu0 0
  %615 = vmatpush2.bf16.xpose.msra.mxu0 0
  %616 = vmatprep.subr.bf16.mxu0 0
  %617 = vmatpush2.bf16.xpose.msra.mxu0 0
  %618 = vmatprep.subr.bf16.mxu0 0
  %619 = vmatpush2.bf16.xpose.msra.mxu0 0
  %620 = vmatprep.subr.bf16.mxu0 0
  %621 = vmatpush2.bf16.xpose.msra.mxu0 0
  %622 = vmatprep.mubr.bf16.mxu0 %v141
  %623 = vmatmul.mubr.bf16.gmra.mxu0 %v139
  %v624 = vpop.f32.mrf.mxu0
  %v625 = vadd.f32 %v585, %v624
  %v626 = vpop.f32.mrf.mxu0
  %v627 = vpop.f32.mrf.mxu0
  %v628 = vpop.f32.mrf.mxu0
  %629 = vdwg.mxu0
  %630 = vst [vmem:[%s3] sm:$0x1] %v625
  // Predicated region
  $region14: #{discriminator_forward.15} parent=0 // pred_check
    _
  $region15: #{discriminator_forward.15} parent=0 // pred_check_branch
    %632 = sbr.rel (0) target = $region17
  $region16: #{discriminator_forward.15} parent=0 // pred_region
    _
  $region17: #{discriminator_forward.15} parent=0 // pred_fallthru
    _
  // Predicated region
  $region18: #{discriminator_forward.15} parent=0 // pred_check
    _
  $region19: #{discriminator_forward.15} parent=0 // pred_check_branch
    %634 = sbr.rel (0) target = $region21
  $region20: #{discriminator_forward.15} parent=0 // pred_region
    _
  $region21: #{discriminator_forward.15} parent=0 // pred_fallthru
    _

</llo_original>
